<compile_context>
chip_gen: v5e
topology: v5e:2x2
jax: 0.10.0
libtpu: 0.0.40
codegen_flags: <defaults>
</compile_context>

<pallas_src>
import math
import jax
import jax.numpy as jnp
from jax.experimental import pallas as pl
from jax.experimental.pallas import tpu as pltpu


# --------------------------------- kernel -----------------------------------

def ffnn_kernel(x_ref, w1_ref, b1_ref, w2_ref, b2_ref, w3_ref, b3_ref, o_ref):
    # ---- Linear(F -> 512) + ReLU  (bf16 MXU matmul, f32 accumulation) ----
    h = jnp.dot(x_ref[...], w1_ref[...],
                preferred_element_type=jnp.float32) + b1_ref[...]
    h = jnp.maximum(h, 0.0)
    # BN1 (eval, running stats) folded into w2/b2; Dropout(0.5) == identity.

    # ---- Linear(512 -> 1024) + ReLU ----
    h = jnp.dot(h.astype(jnp.bfloat16), w2_ref[...],
                preferred_element_type=jnp.float32) + b2_ref[...]
    h = jnp.maximum(h, 0.0)
    # BN2 (eval) folded into w3/b3.

    # ---- Linear(1024 -> F_out) ----
    o = jnp.dot(h.astype(jnp.bfloat16), w3_ref[...],
                preferred_element_type=jnp.float32) + b3_ref[...]
    o_ref[...] = o.astype(o_ref.dtype)


# --------------------------------- wrapper ----------------------------------

def _vmem_limit_bytes(tm, F_in, F_out, params, out_dtype):
    """Conservative scoped-VMEM budget for the chosen tile size."""
    x_bytes = 2 * tm * F_in * 2                                # bf16 x tile, 2 buffers
    o_bytes = 2 * tm * F_out * jnp.dtype(out_dtype).itemsize   # out tile, 2 buffers
    w_bytes = 2 * sum(int(v.size) * v.dtype.itemsize for v in params.values())
    h_bytes = tm * (512 + 1024) * 4                            # f32 intermediates
    total = x_bytes + o_bytes + w_bytes + h_bytes
    # 1.5x slack for compiler scratch; clamp to [32 MiB, 48 MiB]
    # (v7x has only 64 MiB physical VMEM per TensorCore).
    return int(min(max(total * 3 // 2, 32 << 20), 48 << 20))


def ffnn_forward(x_flat, params, *, tm=512, out_dtype=jnp.float32):
    """Eval-mode forward.  x_flat: (B, F_in).  Returns (B, F_out) in out_dtype.

    NOTE: `params` must be the folded eval-mode params from make_params(); this
    kernel is NOT valid for training (batch-stat BN / stochastic dropout).
    """
    B, F_in = x_flat.shape
    F_out = params["w3"].shape[1]
    assert params["w1"].shape == (F_in, 512), "params do not match input width"

    # Activations travel as bf16 (the MXU inputs are bf16 anyway).  If the
    # caller already produces bf16 this cast is a no-op.
    x_bf16 = x_flat.astype(jnp.bfloat16)

    tm = min(tm, B)                      # tiny batch => single block / one grid step
    grid = (pl.cdiv(B, tm),)

    row_map = lambda i: (i, 0)           # batch tile advances with the grid
    rep_map = lambda i: (0, 0)           # constant block: weights stay VMEM-resident

    in_specs = [
        pl.BlockSpec((tm, F_in), row_map),
        pl.BlockSpec(params["w1"].shape, rep_map),
        pl.BlockSpec(params["b1"].shape, rep_map),
        pl.BlockSpec(params["w2"].shape, rep_map),
        pl.BlockSpec(params["b2"].shape, rep_map),
        pl.BlockSpec(params["w3"].shape, rep_map),
        pl.BlockSpec(params["b3"].shape, rep_map),
    ]
    out_specs = pl.BlockSpec((tm, F_out), row_map)

    return pl.pallas_call(
        ffnn_kernel,
        out_shape=jax.ShapeDtypeStruct((B, F_out), out_dtype),
        grid=grid,
        in_specs=in_specs,
        out_specs=out_specs,
        compiler_params=pltpu.CompilerParams(
            dimension_semantics=("parallel",),   # batch axis: megacore-shardable (v7x)
            vmem_limit_bytes=_vmem_limit_bytes(tm, F_in, F_out, params, out_dtype),
        ),
    )(x_bf16, params["w1"], params["b1"], params["w2"], params["b2"],
      params["w3"], params["b3"])


# ------------------------------ parameter prep ------------------------------

def xavier_uniform(key, fan_in, fan_out):
    # matches torch.nn.init.xavier_uniform_ (gain=1), stored as (in, out)
    bound = math.sqrt(6.0 / (fan_in + fan_out))
    return jax.random.uniform(key, (fan_in, fan_out), jnp.float32, -bound, bound)


def linear_bias(key, fan_in, fan_out):
    # PyTorch default Linear bias init: U(-1/sqrt(fan_in), 1/sqrt(fan_in))
    bound = 1.0 / math.sqrt(fan_in)
    return jax.random.uniform(key, (1, fan_out), jnp.float32, -bound, bound)


def make_params(key, in_features, out_features, eps=1e-5):
    """Returns (kernel_params, raw_params).

    kernel_params: BN-folded, bf16 weights / f32 biases, for ffnn_forward.
    raw_params:    unfolded full-f32 params (incl. BN stats) for the exact
                   PyTorch-equivalent eval-mode reference.
    """
    ks = jax.random.split(key, 6)
    w1 = xavier_uniform(ks[0], in_features, 512)
    b1 = linear_bias(ks[1], in_features, 512)
    w2 = xavier_uniform(ks[2], 512, 1024)
    b2 = linear_bias(ks[3], 512, 1024)
    w3 = xavier_uniform(ks[4], 1024, out_features)
    b3 = linear_bias(ks[5], 1024, out_features)

    def bn_state(c):
        return dict(gamma=jnp.ones((1, c), jnp.float32),
                    beta=jnp.zeros((1, c), jnp.float32),
                    mean=jnp.zeros((1, c), jnp.float32),
                    var=jnp.ones((1, c), jnp.float32))

    bn1, bn2 = bn_state(512), bn_state(1024)
    raw = dict(w1=w1, b1=b1, w2=w2, b2=b2, w3=w3, b3=b3,
               bn1=bn1, bn2=bn2, eps=eps)

    def bn_affine(bn):
        scale = bn["gamma"] / jnp.sqrt(bn["var"] + eps)
        shift = bn["beta"] - bn["mean"] * scale
        return scale, shift

    s1, t1 = bn_affine(bn1)
    s2, t2 = bn_affine(bn2)

    # BN follows the ReLU, so it folds exactly into the next Linear:
    #   (relu(h)*s + t) @ W + b  ==  relu(h) @ (diag(s) @ W) + (t @ W + b)
    w2f = w2 * s1.reshape(-1, 1)
    b2f = b2 + t1 @ w2
    w3f = w3 * s2.reshape(-1, 1)
    b3f = b3 + t2 @ w3

    kernel_params = {
        "w1": w1.astype(jnp.bfloat16), "b1": b1,
        "w2": w2f.astype(jnp.bfloat16), "b2": b2f,
        "w3": w3f.astype(jnp.bfloat16), "b3": b3f,
    }
    return kernel_params, raw


# -------------------------------- references --------------------------------

def ffnn_reference_f32(x_flat, raw):
    """Unfolded, full-f32 reference == the PyTorch module in eval mode."""
    def bn(h, p):
        return (h - p["mean"]) / jnp.sqrt(p["var"] + raw["eps"]) * p["gamma"] + p["beta"]
    h = x_flat @ raw["w1"] + raw["b1"]
    h = jnp.maximum(h, 0.0)
    h = bn(h, raw["bn1"])                 # Dropout(0.5) == identity in eval mode
    h = h @ raw["w2"] + raw["b2"]
    h = jnp.maximum(h, 0.0)
    h = bn(h, raw["bn2"])
    return h @ raw["w3"] + raw["b3"]


def ffnn_reference_folded(x_flat, params):
    """Plain-JAX reference with the kernel's exact dtypes (bf16 matmul, f32 acc)."""
    h = jnp.dot(x_flat.astype(jnp.bfloat16), params["w1"],
                preferred_element_type=jnp.float32) + params["b1"]
    h = jnp.maximum(h, 0.0)
    h = jnp.dot(h.astype(jnp.bfloat16), params["w2"],
                preferred_element_type=jnp.float32) + params["b2"]
    h = jnp.maximum(h, 0.0)
    return jnp.dot(h.astype(jnp.bfloat16), params["w3"],
                   preferred_element_type=jnp.float32) + params["b3"]


# ----------------------------------- main -----------------------------------

if __name__ == "__main__":
    # input_shape = (4, 16, 16)  -> input_features  = 1024
    # output_shape = (4, 16, 16) -> output_features = 1024
    B, C, H, W = 2, 4, 16, 16
    in_features = C * H * W
    out_features = C * H * W

    key = jax.random.PRNGKey(0)
    k_x, k_p = jax.random.split(key)

    x = jax.random.normal(k_x, (B, C, H, W), jnp.float32)   # NCHW, like PyTorch
    params, raw = make_params(k_p, in_features, out_features)

    # glue: flatten exactly like x.view(x.size(0), -1)
    x_flat = x.reshape(B, -1)

    y = ffnn_forward(x_flat, params)
    y = jax.block_until_ready(y)
    assert y.shape == (B, out_features)

    # (1) tight check vs. a reference using the kernel's exact dtypes
    y_folded = ffnn_reference_folded(x_flat, params)
    assert jnp.allclose(y, y_folded, atol=2e-3, rtol=2e-3)

    # (2) check vs. the unfolded, full-f32 PyTorch-equivalent eval-mode model
    #     (bf16 weights/activations => ~1e-2-level agreement expected)
    y_f32 = ffnn_reference_f32(x_flat, raw)
    assert jnp.allclose(y, y_f32, atol=3e-2, rtol=3e-2)

    print("KERNEL_OK")
</pallas_src>

<mosaic_0001>
module attributes {stable_mosaic.version = 11 : i64} {
  func.func @ffnn_kernel(%arg0: i32, %arg1: memref<2x1024xbf16, #tpu.memory_space<vmem>>, %arg2: memref<1024x512xbf16, #tpu.memory_space<vmem>>, %arg3: memref<1x512xf32, #tpu.memory_space<vmem>>, %arg4: memref<512x1024xbf16, #tpu.memory_space<vmem>>, %arg5: memref<1x1024xf32, #tpu.memory_space<vmem>>, %arg6: memref<1024x1024xbf16, #tpu.memory_space<vmem>>, %arg7: memref<1x1024xf32, #tpu.memory_space<vmem>>, %arg8: memref<2x1024xf32, #tpu.memory_space<vmem>>) attributes {dimension_semantics = [#tpu.dimension_semantics<parallel>], iteration_bounds = array<i64: 1>, scalar_prefetch = 0 : i64, scratch_operands = 0 : i64, tpu.core_type = #tpu.core_type<tc>, window_params = [{transform_indices = @transform_0, window_bounds = array<i64: 2, 1024>}, {pipeline_mode = #tpu.pipeline_mode<synchronous>, transform_indices = @transform_1, window_bounds = array<i64: 1024, 512>}, {pipeline_mode = #tpu.pipeline_mode<synchronous>, transform_indices = @transform_2, window_bounds = array<i64: 1, 512>}, {pipeline_mode = #tpu.pipeline_mode<synchronous>, transform_indices = @transform_3, window_bounds = array<i64: 512, 1024>}, {pipeline_mode = #tpu.pipeline_mode<synchronous>, transform_indices = @transform_4, window_bounds = array<i64: 1, 1024>}, {pipeline_mode = #tpu.pipeline_mode<synchronous>, transform_indices = @transform_5, window_bounds = array<i64: 1024, 1024>}, {pipeline_mode = #tpu.pipeline_mode<synchronous>, transform_indices = @transform_6, window_bounds = array<i64: 1, 1024>}, {transform_indices = @transform_7, window_bounds = array<i64: 2, 1024>}]} {
    %c0 = arith.constant 0 : index
    %c0_0 = arith.constant 0 : index
    %0 = vector.load %arg1[%c0, %c0_0] : memref<2x1024xbf16, #tpu.memory_space<vmem>>, vector<2x1024xbf16>
    %c0_1 = arith.constant 0 : index
    %c0_2 = arith.constant 0 : index
    %1 = vector.load %arg2[%c0_1, %c0_2] : memref<1024x512xbf16, #tpu.memory_space<vmem>>, vector<1024x512xbf16>
    %cst = arith.constant dense<0.000000e+00> : vector<2x512xf32>
    %2 = tpu.matmul %0, %1, %cst {dimension_numbers = #tpu.dot_dimension_numbers<[1], [0], [0], [1], [0, 0, 1, 1], [], []>} : vector<2x1024xbf16>, vector<1024x512xbf16>, vector<2x512xf32> -> vector<2x512xf32>
    %c0_3 = arith.constant 0 : index
    %c0_4 = arith.constant 0 : index
    %3 = vector.load %arg3[%c0_3, %c0_4] : memref<1x512xf32, #tpu.memory_space<vmem>>, vector<1x512xf32>
    %4 = vector.broadcast %3 : vector<1x512xf32> to vector<2x512xf32>
    %5 = arith.addf %2, %4 : vector<2x512xf32>
    %cst_5 = arith.constant 0.000000e+00 : f32
    %6 = vector.broadcast %cst_5 : f32 to vector<2x512xf32>
    %7 = arith.maximumf %5, %6 : vector<2x512xf32>
    %8 = arith.truncf %7 : vector<2x512xf32> to vector<2x512xbf16>
    %c0_6 = arith.constant 0 : index
    %c0_7 = arith.constant 0 : index
    %9 = vector.load %arg4[%c0_6, %c0_7] : memref<512x1024xbf16, #tpu.memory_space<vmem>>, vector<512x1024xbf16>
    %cst_8 = arith.constant dense<0.000000e+00> : vector<2x1024xf32>
    %10 = tpu.matmul %8, %9, %cst_8 {dimension_numbers = #tpu.dot_dimension_numbers<[1], [0], [0], [1], [0, 0, 1, 1], [], []>} : vector<2x512xbf16>, vector<512x1024xbf16>, vector<2x1024xf32> -> vector<2x1024xf32>
    %c0_9 = arith.constant 0 : index
    %c0_10 = arith.constant 0 : index
    %11 = vector.load %arg5[%c0_9, %c0_10] : memref<1x1024xf32, #tpu.memory_space<vmem>>, vector<1x1024xf32>
    %12 = vector.broadcast %11 : vector<1x1024xf32> to vector<2x1024xf32>
    %13 = arith.addf %10, %12 : vector<2x1024xf32>
    %cst_11 = arith.constant 0.000000e+00 : f32
    %14 = vector.broadcast %cst_11 : f32 to vector<2x1024xf32>
    %15 = arith.maximumf %13, %14 : vector<2x1024xf32>
    %16 = arith.truncf %15 : vector<2x1024xf32> to vector<2x1024xbf16>
    %c0_12 = arith.constant 0 : index
    %c0_13 = arith.constant 0 : index
    %17 = vector.load %arg6[%c0_12, %c0_13] : memref<1024x1024xbf16, #tpu.memory_space<vmem>>, vector<1024x1024xbf16>
    %cst_14 = arith.constant dense<0.000000e+00> : vector<2x1024xf32>
    %18 = tpu.matmul %16, %17, %cst_14 {dimension_numbers = #tpu.dot_dimension_numbers<[1], [0], [0], [1], [0, 0, 1, 1], [], []>} : vector<2x1024xbf16>, vector<1024x1024xbf16>, vector<2x1024xf32> -> vector<2x1024xf32>
    %c0_15 = arith.constant 0 : index
    %c0_16 = arith.constant 0 : index
    %19 = vector.load %arg7[%c0_15, %c0_16] : memref<1x1024xf32, #tpu.memory_space<vmem>>, vector<1x1024xf32>
    %20 = vector.broadcast %19 : vector<1x1024xf32> to vector<2x1024xf32>
    %21 = arith.addf %18, %20 : vector<2x1024xf32>
    %c0_17 = arith.constant 0 : index
    %c0_18 = arith.constant 0 : index
    %22 = vector.load %arg8[%c0_17, %c0_18] : memref<2x1024xf32, #tpu.memory_space<vmem>>, vector<2x1024xf32>
    tpu.vector_store %arg8[%c0_17, %c0_18], %21 {strides = array<i32>} : memref<2x1024xf32, #tpu.memory_space<vmem>>, vector<2x1024xf32>,
    return
  }
  func.func @transform_0(%arg0: i32) -> (i32, i32) {
    %c0_i32 = arith.constant 0 : i32
    %c0_i32_0 = arith.constant 0 : i32
    return %arg0, %c0_i32 : i32, i32
  }
  func.func @transform_1(%arg0: i32) -> (i32, i32) {
    %c0_i32 = arith.constant 0 : i32
    %c0_i32_0 = arith.constant 0 : i32
    %c0_i32_1 = arith.constant 0 : i32
    return %c0_i32, %c0_i32_0 : i32, i32
  }
  func.func @transform_2(%arg0: i32) -> (i32, i32) {
    %c0_i32 = arith.constant 0 : i32
    %c0_i32_0 = arith.constant 0 : i32
    %c0_i32_1 = arith.constant 0 : i32
    return %c0_i32, %c0_i32_0 : i32, i32
  }
  func.func @transform_3(%arg0: i32) -> (i32, i32) {
    %c0_i32 = arith.constant 0 : i32
    %c0_i32_0 = arith.constant 0 : i32
    %c0_i32_1 = arith.constant 0 : i32
    return %c0_i32, %c0_i32_0 : i32, i32
  }
  func.func @transform_4(%arg0: i32) -> (i32, i32) {
    %c0_i32 = arith.constant 0 : i32
    %c0_i32_0 = arith.constant 0 : i32
    %c0_i32_1 = arith.constant 0 : i32
    return %c0_i32, %c0_i32_0 : i32, i32
  }
  func.func @transform_5(%arg0: i32) -> (i32, i32) {
    %c0_i32 = arith.constant 0 : i32
    %c0_i32_0 = arith.constant 0 : i32
    %c0_i32_1 = arith.constant 0 : i32
    return %c0_i32, %c0_i32_0 : i32, i32
  }
  func.func @transform_6(%arg0: i32) -> (i32, i32) {
    %c0_i32 = arith.constant 0 : i32
    %c0_i32_0 = arith.constant 0 : i32
    %c0_i32_1 = arith.constant 0 : i32
    return %c0_i32, %c0_i32_0 : i32, i32
  }
  func.func @transform_7(%arg0: i32) -> (i32, i32) {
    %c0_i32 = arith.constant 0 : i32
    %c0_i32_0 = arith.constant 0 : i32
    return %arg0, %c0_i32 : i32, i32
  }
}

</mosaic_0001>

<llo_original>
// kernel: tpu_custom_call.1
$region0: #{tpu_custom_call.1}
  #allocation0 [shape = 'u32[]', space=smem, size = 0x4, offset = 0x4, fixed_abs, tag = 'smem constant byte address 0x4 - core index']
  #allocation1 [shape = 'u32[72,128]{1,0:T(1,128)}', space=vmem, size = 0x9000, scoped, tag = 'internal scratch']
  %s0 = inlined_call_operand.hbm [shape: bf16[2,1024], index: 0, kind: input, shape index: {}]
  %s1 = inlined_call_operand.hbm [shape: bf16[1024,512], index: 1, kind: input, shape index: {}]
  %s2 = inlined_call_operand.hbm [shape: f32[1,512], index: 2, kind: input, shape index: {}]
  %s3 = inlined_call_operand.hbm [shape: bf16[512,1024], index: 3, kind: input, shape index: {}]
  %s4 = inlined_call_operand.hbm [shape: f32[1,1024], index: 4, kind: input, shape index: {}]
  %s5 = inlined_call_operand.hbm [shape: bf16[1024,1024], index: 5, kind: input, shape index: {}]
  %s6 = inlined_call_operand.hbm [shape: f32[1,1024], index: 6, kind: input, shape index: {}]
  %s7 = inlined_call_operand.hbm [shape: f32[2,1024], index: 7, kind: output, shape index: {}]
  %s8 = sld [smem:[#allocation0]]
  $region66: #{tpu_custom_call.1} parent=0
    _
  %s10 = ssub.s32 1, %s8
  %s11 = scalar_select 0, %s10, %s8
  $region1: #{tpu_custom_call.1} parent=0
    #allocation2 [shape = 'u8[4096]{0}', space=vmem, size = 0x1000, scoped, tag = 'input window, operand 0, single buffered']
    #allocation3 [shape = 's32[1]{0}', space=sflag, size = 0x4, scoped, tag = 'scoped memory for tpu_custom_call.1']
    #allocation4 [shape = 's32[1]{0}', space=sflag, size = 0x4, scoped, tag = 'scoped memory for tpu_custom_call.1']
    #allocation5 [shape = 'u8[1048576]{0}', space=vmem, size = 0x100000, scoped, tag = 'input window, operand 1, single buffered']
    #allocation6 [shape = 's32[1]{0}', space=sflag, size = 0x4, scoped, tag = 'scoped memory for tpu_custom_call.1']
    #allocation7 [shape = 'u8[2048]{0}', space=vmem, size = 0x800, scoped, tag = 'input window, operand 2, single buffered']
    #allocation8 [shape = 'u8[1048576]{0}', space=vmem, size = 0x100000, scoped, tag = 'input window, operand 3, single buffered']
    #allocation9 [shape = 's32[1]{0}', space=sflag, size = 0x4, scoped, tag = 'scoped memory for tpu_custom_call.1']
    #allocation10 [shape = 'u8[4096]{0}', space=vmem, size = 0x1000, scoped, tag = 'input window, operand 4, single buffered']
    #allocation11 [shape = 'u8[2097152]{0}', space=vmem, size = 0x200000, scoped, tag = 'input window, operand 5, single buffered']
    #allocation12 [shape = 's32[1]{0}', space=sflag, size = 0x4, scoped, tag = 'scoped memory for tpu_custom_call.1']
    #allocation13 [shape = 'u8[4096]{0}', space=vmem, size = 0x1000, scoped, tag = 'input window, operand 6, single buffered']
    #allocation14 [shape = 'u8[8192]{0}', space=vmem, size = 0x2000, scoped, tag = 'output window, operand 0, single buffered']
    %12 = vsyncpa [#allocation3], 0
    %13 = vsyncpa [#allocation6], 0
    %14 = vsyncpa [#allocation9], 0
    %15 = vsyncpa [#allocation12], 0
    %16 = vsyncpa [#allocation4], 0
    // Predicated region
    $region2: #{tpu_custom_call.1} parent=1 // pred_check
      _
    $region3: #{tpu_custom_call.1} parent=1 // pred_check_branch
      %18 = sbr.rel (0) target = $region5
    $region4: #{tpu_custom_call.1} parent=1 // pred_region
      %20 = vsyncadd [#allocation3], 0
      %s22 = sshll.u32 %s0, 4
      %s23 = int_to_ptr.hbm [resolvable:$true] %s22
      %s24 = sshll.u32 [#allocation2], 4
      %s25 = int_to_ptr.vmem [resolvable:$true] %s24
      %27 = dma.hbm_to_vmem [thread:$0]  %s23, 128, %s25, [#allocation3]
    $region5: #{tpu_custom_call.1} parent=1 // pred_fallthru
      _
    // Predicated region
    $region6: #{tpu_custom_call.1} parent=1 // pred_check
      _
    $region7: #{tpu_custom_call.1} parent=1 // pred_check_branch
      %29 = sbr.rel (0) target = $region9
    $region8: #{tpu_custom_call.1} parent=1 // pred_region
      %31 = vsyncadd [#allocation6], 0
      %s32 = sshll.u32 %s1, 4
      %s33 = int_to_ptr.hbm [resolvable:$true] %s32
      %s34 = sshll.u32 [#allocation5], 4
      %s35 = int_to_ptr.vmem [resolvable:$true] %s34
      %40 = dma.hbm_to_vmem [thread:$0]  %s33, 32768, %s35, [#allocation6], 256, 256, 16
    $region9: #{tpu_custom_call.1} parent=1 // pred_fallthru
      _
    // Predicated region
    $region10: #{tpu_custom_call.1} parent=1 // pred_check
      _
    $region11: #{tpu_custom_call.1} parent=1 // pred_check_branch
      %42 = sbr.rel (0) target = $region13
    $region12: #{tpu_custom_call.1} parent=1 // pred_region
      %44 = vsyncadd [#allocation6], 0
      %s46 = sshll.u32 %s2, 4
      %s47 = int_to_ptr.hbm [resolvable:$true] %s46
      %s48 = sshll.u32 [#allocation7], 4
      %s49 = int_to_ptr.vmem [resolvable:$true] %s48
      %51 = dma.hbm_to_vmem [thread:$0]  %s47, 64, %s49, [#allocation6]
    $region13: #{tpu_custom_call.1} parent=1 // pred_fallthru
      _
    // Predicated region
    $region14: #{tpu_custom_call.1} parent=1 // pred_check
      _
    $region15: #{tpu_custom_call.1} parent=1 // pred_check_branch
      %53 = sbr.rel (0) target = $region17
    $region16: #{tpu_custom_call.1} parent=1 // pred_region
      %55 = vsyncadd [#allocation9], 0
      %s56 = sshll.u32 %s3, 4
      %s57 = int_to_ptr.hbm [resolvable:$true] %s56
      %s58 = sshll.u32 [#allocation8], 4
      %s59 = int_to_ptr.vmem [resolvable:$true] %s58
      %64 = dma.hbm_to_vmem [thread:$0]  %s57, 32768, %s59, [#allocation9], 512, 512, 32
    $region17: #{tpu_custom_call.1} parent=1 // pred_fallthru
      _
    // Predicated region
    $region18: #{tpu_custom_call.1} parent=1 // pred_check
      _
    $region19: #{tpu_custom_call.1} parent=1 // pred_check_branch
      %66 = sbr.rel (0) target = $region21
    $region20: #{tpu_custom_call.1} parent=1 // pred_region
      %68 = vsyncadd [#allocation9], 0
      %s70 = sshll.u32 %s4, 4
      %s71 = int_to_ptr.hbm [resolvable:$true] %s70
      %s72 = sshll.u32 [#allocation10], 4
      %s73 = int_to_ptr.vmem [resolvable:$true] %s72
      %75 = dma.hbm_to_vmem [thread:$0]  %s71, 128, %s73, [#allocation9]
    $region21: #{tpu_custom_call.1} parent=1 // pred_fallthru
      _
    // Predicated region
    $region22: #{tpu_custom_call.1} parent=1 // pred_check
      _
    $region23: #{tpu_custom_call.1} parent=1 // pred_check_branch
      %77 = sbr.rel (0) target = $region25
    $region24: #{tpu_custom_call.1} parent=1 // pred_region
      %79 = vsyncadd [#allocation12], 0
      %s80 = sshll.u32 %s5, 4
      %s81 = int_to_ptr.hbm [resolvable:$true] %s80
      %s82 = sshll.u32 [#allocation11], 4
      %s83 = int_to_ptr.vmem [resolvable:$true] %s82
      %88 = dma.hbm_to_vmem [thread:$0]  %s81, 65536, %s83, [#allocation12], 512, 512, 32
    $region25: #{tpu_custom_call.1} parent=1 // pred_fallthru
      _
    // Predicated region
    $region26: #{tpu_custom_call.1} parent=1 // pred_check
      _
    $region27: #{tpu_custom_call.1} parent=1 // pred_check_branch
      %90 = sbr.rel (0) target = $region29
    $region28: #{tpu_custom_call.1} parent=1 // pred_region
      %92 = vsyncadd [#allocation12], 0
      %s94 = sshll.u32 %s6, 4
      %s95 = int_to_ptr.hbm [resolvable:$true] %s94
      %s96 = sshll.u32 [#allocation13], 4
      %s97 = int_to_ptr.vmem [resolvable:$true] %s96
      %99 = dma.hbm_to_vmem [thread:$0]  %s95, 128, %s97, [#allocation12]
    $region29: #{tpu_custom_call.1} parent=1 // pred_fallthru
      _
    // Predicated region
    $region30: #{tpu_custom_call.1} parent=1 // pred_check
      _
    $region31: #{tpu_custom_call.1} parent=1 // pred_check_branch
      %101 = sbr.rel (0) target = $region33
    $region32: #{tpu_custom_call.1} parent=1 // pred_region
      %103 = dma.done [#allocation3], 128
    $region33: #{tpu_custom_call.1} parent=1 // pred_fallthru
      _
    // Predicated region
    $region34: #{tpu_custom_call.1} parent=1 // pred_check
      _
    $region35: #{tpu_custom_call.1} parent=1 // pred_check_branch
      %105 = sbr.rel (0) target = $region37
    $region36: #{tpu_custom_call.1} parent=1 // pred_region
      %107 = dma.done [#allocation6], 32768
    $region37: #{tpu_custom_call.1} parent=1 // pred_fallthru
      _
    // Predicated region
    $region38: #{tpu_custom_call.1} parent=1 // pred_check
      _
    $region39: #{tpu_custom_call.1} parent=1 // pred_check_branch
      %109 = sbr.rel (0) target = $region41
    $region40: #{tpu_custom_call.1} parent=1 // pred_region
      %111 = dma.done [#allocation6], 64
    $region41: #{tpu_custom_call.1} parent=1 // pred_fallthru
      _
    // Predicated region
    $region42: #{tpu_custom_call.1} parent=1 // pred_check
      _
    $region43: #{tpu_custom_call.1} parent=1 // pred_check_branch
      %113 = sbr.rel (0) target = $region45
    $region44: #{tpu_custom_call.1} parent=1 // pred_region
      %115 = dma.done [#allocation9], 32768
    $region45: #{tpu_custom_call.1} parent=1 // pred_fallthru
      _
    // Predicated region
    $region46: #{tpu_custom_call.1} parent=1 // pred_check
      _
    $region47: #{tpu_custom_call.1} parent=1 // pred_check_branch
      %117 = sbr.rel (0) target = $region49
    $region48: #{tpu_custom_call.1} parent=1 // pred_region
      %119 = dma.done [#allocation9], 128
    $region49: #{tpu_custom_call.1} parent=1 // pred_fallthru
      _
    // Predicated region
    $region50: #{tpu_custom_call.1} parent=1 // pred_check
      _
    $region51: #{tpu_custom_call.1} parent=1 // pred_check_branch
      %121 = sbr.rel (0) target = $region53
    $region52: #{tpu_custom_call.1} parent=1 // pred_region
      %123 = dma.done [#allocation12], 65536
    $region53: #{tpu_custom_call.1} parent=1 // pred_fallthru
      _
    // Predicated region
    $region54: #{tpu_custom_call.1} parent=1 // pred_check
      _
    $region55: #{tpu_custom_call.1} parent=1 // pred_check_branch
      %125 = sbr.rel (0) target = $region57
    $region56: #{tpu_custom_call.1} parent=1 // pred_region
      %127 = dma.done [#allocation12], 128
    $region57: #{tpu_custom_call.1} parent=1 // pred_fallthru
      _
    %v128 = vld [vmem:[#allocation2] sm:$0xff]
    %v129 = vld [vmem:[#allocation5] sm:$0xff]
    %v130 = vld [vmem:[#allocation5 + $0x8] sm:$0xff]
    %v131 = vld [vmem:[#allocation5 + $0x10] sm:$0xff]
    %v132 = vld [vmem:[#allocation5 + $0x18] sm:$0xff]
    %v133 = vld [vmem:[#allocation5 + $0x20] sm:$0xff]
    %v134 = vld [vmem:[#allocation5 + $0x28] sm:$0xff]
    %v135 = vld [vmem:[#allocation5 + $0x30] sm:$0xff]
    %v136 = vld [vmem:[#allocation5 + $0x38] sm:$0xff]
    %v137 = vld [vmem:[#allocation5 + $0x40] sm:$0xff]
    %v138 = vld [vmem:[#allocation5 + $0x48] sm:$0xff]
    %v139 = vld [vmem:[#allocation5 + $0x50] sm:$0xff]
    %v140 = vld [vmem:[#allocation5 + $0x58] sm:$0xff]
    %v141 = vld [vmem:[#allocation5 + $0x60] sm:$0xff]
    %v142 = vld [vmem:[#allocation5 + $0x68] sm:$0xff]
    %v143 = vld [vmem:[#allocation5 + $0x70] sm:$0xff]
    %v144 = vld [vmem:[#allocation5 + $0x78] sm:$0xff]
    %v145 = vld [vmem:[#allocation5 + $0x80] sm:$0xff]
    %v146 = vld [vmem:[#allocation5 + $0x88] sm:$0xff]
    %v147 = vld [vmem:[#allocation5 + $0x90] sm:$0xff]
    %v148 = vld [vmem:[#allocation5 + $0x98] sm:$0xff]
    %v149 = vld [vmem:[#allocation5 + $0xa0] sm:$0xff]
    %v150 = vld [vmem:[#allocation5 + $0xa8] sm:$0xff]
    %v151 = vld [vmem:[#allocation5 + $0xb0] sm:$0xff]
    %v152 = vld [vmem:[#allocation5 + $0xb8] sm:$0xff]
    %v153 = vld [vmem:[#allocation5 + $0xc0] sm:$0xff]
    %v154 = vld [vmem:[#allocation5 + $0xc8] sm:$0xff]
    %v155 = vld [vmem:[#allocation5 + $0xd0] sm:$0xff]
    %v156 = vld [vmem:[#allocation5 + $0xd8] sm:$0xff]
    %v157 = vld [vmem:[#allocation5 + $0xe0] sm:$0xff]
    %v158 = vld [vmem:[#allocation5 + $0xe8] sm:$0xff]
    %v159 = vld [vmem:[#allocation5 + $0xf0] sm:$0xff]
    %v160 = vld [vmem:[#allocation5 + $0xf8] sm:$0xff]
    %v161 = vld [vmem:[#allocation5 + $0x100] sm:$0xff]
    %v162 = vld [vmem:[#allocation5 + $0x108] sm:$0xff]
    %v163 = vld [vmem:[#allocation5 + $0x110] sm:$0xff]
    %v164 = vld [vmem:[#allocation5 + $0x118] sm:$0xff]
    %v165 = vld [vmem:[#allocation5 + $0x120] sm:$0xff]
    %v166 = vld [vmem:[#allocation5 + $0x128] sm:$0xff]
    %v167 = vld [vmem:[#allocation5 + $0x130] sm:$0xff]
    %v168 = vld [vmem:[#allocation5 + $0x138] sm:$0xff]
    %v169 = vld [vmem:[#allocation5 + $0x140] sm:$0xff]
    %v170 = vld [vmem:[#allocation5 + $0x148] sm:$0xff]
    %v171 = vld [vmem:[#allocation5 + $0x150] sm:$0xff]
    %v172 = vld [vmem:[#allocation5 + $0x158] sm:$0xff]
    %v173 = vld [vmem:[#allocation5 + $0x160] sm:$0xff]
    %v174 = vld [vmem:[#allocation5 + $0x168] sm:$0xff]
    %v175 = vld [vmem:[#allocation5 + $0x170] sm:$0xff]
    %v176 = vld [vmem:[#allocation5 + $0x178] sm:$0xff]
    %v177 = vld [vmem:[#allocation5 + $0x180] sm:$0xff]
    %v178 = vld [vmem:[#allocation5 + $0x188] sm:$0xff]
    %v179 = vld [vmem:[#allocation5 + $0x190] sm:$0xff]
    %v180 = vld [vmem:[#allocation5 + $0x198] sm:$0xff]
    %v181 = vld [vmem:[#allocation5 + $0x1a0] sm:$0xff]
    %v182 = vld [vmem:[#allocation5 + $0x1a8] sm:$0xff]
    %v183 = vld [vmem:[#allocation5 + $0x1b0] sm:$0xff]
    %v184 = vld [vmem:[#allocation5 + $0x1b8] sm:$0xff]
    %v185 = vld [vmem:[#allocation5 + $0x1c0] sm:$0xff]
    %v186 = vld [vmem:[#allocation5 + $0x1c8] sm:$0xff]
    %v187 = vld [vmem:[#allocation5 + $0x1d0] sm:$0xff]
    %v188 = vld [vmem:[#allocation5 + $0x1d8] sm:$0xff]
    %v189 = vld [vmem:[#allocation5 + $0x1e0] sm:$0xff]
    %v190 = vld [vmem:[#allocation5 + $0x1e8] sm:$0xff]
    %v191 = vld [vmem:[#allocation5 + $0x1f0] sm:$0xff]
    %v192 = vld [vmem:[#allocation5 + $0x1f8] sm:$0xff]
    %v193 = vld [vmem:[#allocation5 + $0x200] sm:$0xff]
    %v194 = vld [vmem:[#allocation5 + $0x208] sm:$0xff]
    %v195 = vld [vmem:[#allocation5 + $0x210] sm:$0xff]
    %v196 = vld [vmem:[#allocation5 + $0x218] sm:$0xff]
    %v197 = vld [vmem:[#allocation5 + $0x220] sm:$0xff]
    %v198 = vld [vmem:[#allocation5 + $0x228] sm:$0xff]
    %v199 = vld [vmem:[#allocation5 + $0x230] sm:$0xff]
    %v200 = vld [vmem:[#allocation5 + $0x238] sm:$0xff]
    %v201 = vld [vmem:[#allocation5 + $0x240] sm:$0xff]
    %v202 = vld [vmem:[#allocation5 + $0x248] sm:$0xff]
    %v203 = vld [vmem:[#allocation5 + $0x250] sm:$0xff]
    %v204 = vld [vmem:[#allocation5 + $0x258] sm:$0xff]
    %v205 = vld [vmem:[#allocation5 + $0x260] sm:$0xff]
    %v206 = vld [vmem:[#allocation5 + $0x268] sm:$0xff]
    %v207 = vld [vmem:[#allocation5 + $0x270] sm:$0xff]
    %v208 = vld [vmem:[#allocation5 + $0x278] sm:$0xff]
    %v209 = vld [vmem:[#allocation5 + $0x280] sm:$0xff]
    %v210 = vld [vmem:[#allocation5 + $0x288] sm:$0xff]
    %v211 = vld [vmem:[#allocation5 + $0x290] sm:$0xff]
    %v212 = vld [vmem:[#allocation5 + $0x298] sm:$0xff]
    %v213 = vld [vmem:[#allocation5 + $0x2a0] sm:$0xff]
    %v214 = vld [vmem:[#allocation5 + $0x2a8] sm:$0xff]
    %v215 = vld [vmem:[#allocation5 + $0x2b0] sm:$0xff]
    %v216 = vld [vmem:[#allocation5 + $0x2b8] sm:$0xff]
    %v217 = vld [vmem:[#allocation5 + $0x2c0] sm:$0xff]
    %v218 = vld [vmem:[#allocation5 + $0x2c8] sm:$0xff]
    %v219 = vld [vmem:[#allocation5 + $0x2d0] sm:$0xff]
    %v220 = vld [vmem:[#allocation5 + $0x2d8] sm:$0xff]
    %v221 = vld [vmem:[#allocation5 + $0x2e0] sm:$0xff]
    %v222 = vld [vmem:[#allocation5 + $0x2e8] sm:$0xff]
    %v223 = vld [vmem:[#allocation5 + $0x2f0] sm:$0xff]
    %v224 = vld [vmem:[#allocation5 + $0x2f8] sm:$0xff]
    %v225 = vld [vmem:[#allocation5 + $0x300] sm:$0xff]
    %v226 = vld [vmem:[#allocation5 + $0x308] sm:$0xff]
    %v227 = vld [vmem:[#allocation5 + $0x310] sm:$0xff]
    %v228 = vld [vmem:[#allocation5 + $0x318] sm:$0xff]
    %v229 = vld [vmem:[#allocation5 + $0x320] sm:$0xff]
    %v230 = vld [vmem:[#allocation5 + $0x328] sm:$0xff]
    %v231 = vld [vmem:[#allocation5 + $0x330] sm:$0xff]
    %v232 = vld [vmem:[#allocation5 + $0x338] sm:$0xff]
    %v233 = vld [vmem:[#allocation5 + $0x340] sm:$0xff]
    %v234 = vld [vmem:[#allocation5 + $0x348] sm:$0xff]
    %v235 = vld [vmem:[#allocation5 + $0x350] sm:$0xff]
    %v236 = vld [vmem:[#allocation5 + $0x358] sm:$0xff]
    %v237 = vld [vmem:[#allocation5 + $0x360] sm:$0xff]
    %v238 = vld [vmem:[#allocation5 + $0x368] sm:$0xff]
    %v239 = vld [vmem:[#allocation5 + $0x370] sm:$0xff]
    %v240 = vld [vmem:[#allocation5 + $0x378] sm:$0xff]
    %v241 = vld [vmem:[#allocation5 + $0x380] sm:$0xff]
    %v242 = vld [vmem:[#allocation5 + $0x388] sm:$0xff]
    %v243 = vld [vmem:[#allocation5 + $0x390] sm:$0xff]
    %v244 = vld [vmem:[#allocation5 + $0x398] sm:$0xff]
    %v245 = vld [vmem:[#allocation5 + $0x3a0] sm:$0xff]
    %v246 = vld [vmem:[#allocation5 + $0x3a8] sm:$0xff]
    %v247 = vld [vmem:[#allocation5 + $0x3b0] sm:$0xff]
    %v248 = vld [vmem:[#allocation5 + $0x3b8] sm:$0xff]
    %v249 = vld [vmem:[#allocation5 + $0x3c0] sm:$0xff]
    %v250 = vld [vmem:[#allocation5 + $0x3c8] sm:$0xff]
    %v251 = vld [vmem:[#allocation5 + $0x3d0] sm:$0xff]
    %v252 = vld [vmem:[#allocation5 + $0x3d8] sm:$0xff]
    %v253 = vld [vmem:[#allocation5 + $0x3e0] sm:$0xff]
    %v254 = vld [vmem:[#allocation5 + $0x3e8] sm:$0xff]
    %v255 = vld [vmem:[#allocation5 + $0x3f0] sm:$0xff]
    %v256 = vld [vmem:[#allocation5 + $0x3f8] sm:$0xff]
    %v257 = vld [vmem:[#allocation5 + $0x400] sm:$0xff]
    %v258 = vld [vmem:[#allocation5 + $0x408] sm:$0xff]
    %v259 = vld [vmem:[#allocation5 + $0x410] sm:$0xff]
    %v260 = vld [vmem:[#allocation5 + $0x418] sm:$0xff]
    %v261 = vld [vmem:[#allocation5 + $0x420] sm:$0xff]
    %v262 = vld [vmem:[#allocation5 + $0x428] sm:$0xff]
    %v263 = vld [vmem:[#allocation5 + $0x430] sm:$0xff]
    %v264 = vld [vmem:[#allocation5 + $0x438] sm:$0xff]
    %v265 = vld [vmem:[#allocation5 + $0x440] sm:$0xff]
    %v266 = vld [vmem:[#allocation5 + $0x448] sm:$0xff]
    %v267 = vld [vmem:[#allocation5 + $0x450] sm:$0xff]
    %v268 = vld [vmem:[#allocation5 + $0x458] sm:$0xff]
    %v269 = vld [vmem:[#allocation5 + $0x460] sm:$0xff]
    %v270 = vld [vmem:[#allocation5 + $0x468] sm:$0xff]
    %v271 = vld [vmem:[#allocation5 + $0x470] sm:$0xff]
    %v272 = vld [vmem:[#allocation5 + $0x478] sm:$0xff]
    %v273 = vld [vmem:[#allocation5 + $0x480] sm:$0xff]
    %v274 = vld [vmem:[#allocation5 + $0x488] sm:$0xff]
    %v275 = vld [vmem:[#allocation5 + $0x490] sm:$0xff]
    %v276 = vld [vmem:[#allocation5 + $0x498] sm:$0xff]
    %v277 = vld [vmem:[#allocation5 + $0x4a0] sm:$0xff]
    %v278 = vld [vmem:[#allocation5 + $0x4a8] sm:$0xff]
    %v279 = vld [vmem:[#allocation5 + $0x4b0] sm:$0xff]
    %v280 = vld [vmem:[#allocation5 + $0x4b8] sm:$0xff]
    %v281 = vld [vmem:[#allocation5 + $0x4c0] sm:$0xff]
    %v282 = vld [vmem:[#allocation5 + $0x4c8] sm:$0xff]
    %v283 = vld [vmem:[#allocation5 + $0x4d0] sm:$0xff]
    %v284 = vld [vmem:[#allocation5 + $0x4d8] sm:$0xff]
    %v285 = vld [vmem:[#allocation5 + $0x4e0] sm:$0xff]
    %v286 = vld [vmem:[#allocation5 + $0x4e8] sm:$0xff]
    %v287 = vld [vmem:[#allocation5 + $0x4f0] sm:$0xff]
    %v288 = vld [vmem:[#allocation5 + $0x4f8] sm:$0xff]
    %v289 = vld [vmem:[#allocation5 + $0x500] sm:$0xff]
    %v290 = vld [vmem:[#allocation5 + $0x508] sm:$0xff]
    %v291 = vld [vmem:[#allocation5 + $0x510] sm:$0xff]
    %v292 = vld [vmem:[#allocation5 + $0x518] sm:$0xff]
    %v293 = vld [vmem:[#allocation5 + $0x520] sm:$0xff]
    %v294 = vld [vmem:[#allocation5 + $0x528] sm:$0xff]
    %v295 = vld [vmem:[#allocation5 + $0x530] sm:$0xff]
    %v296 = vld [vmem:[#allocation5 + $0x538] sm:$0xff]
    %v297 = vld [vmem:[#allocation5 + $0x540] sm:$0xff]
    %v298 = vld [vmem:[#allocation5 + $0x548] sm:$0xff]
    %v299 = vld [vmem:[#allocation5 + $0x550] sm:$0xff]
    %v300 = vld [vmem:[#allocation5 + $0x558] sm:$0xff]
    %v301 = vld [vmem:[#allocation5 + $0x560] sm:$0xff]
    %v302 = vld [vmem:[#allocation5 + $0x568] sm:$0xff]
    %v303 = vld [vmem:[#allocation5 + $0x570] sm:$0xff]
    %v304 = vld [vmem:[#allocation5 + $0x578] sm:$0xff]
    %v305 = vld [vmem:[#allocation5 + $0x580] sm:$0xff]
    %v306 = vld [vmem:[#allocation5 + $0x588] sm:$0xff]
    %v307 = vld [vmem:[#allocation5 + $0x590] sm:$0xff]
    %v308 = vld [vmem:[#allocation5 + $0x598] sm:$0xff]
    %v309 = vld [vmem:[#allocation5 + $0x5a0] sm:$0xff]
    %v310 = vld [vmem:[#allocation5 + $0x5a8] sm:$0xff]
    %v311 = vld [vmem:[#allocation5 + $0x5b0] sm:$0xff]
    %v312 = vld [vmem:[#allocation5 + $0x5b8] sm:$0xff]
    %v313 = vld [vmem:[#allocation5 + $0x5c0] sm:$0xff]
    %v314 = vld [vmem:[#allocation5 + $0x5c8] sm:$0xff]
    %v315 = vld [vmem:[#allocation5 + $0x5d0] sm:$0xff]
    %v316 = vld [vmem:[#allocation5 + $0x5d8] sm:$0xff]
    %v317 = vld [vmem:[#allocation5 + $0x5e0] sm:$0xff]
    %v318 = vld [vmem:[#allocation5 + $0x5e8] sm:$0xff]
    %v319 = vld [vmem:[#allocation5 + $0x5f0] sm:$0xff]
    %v320 = vld [vmem:[#allocation5 + $0x5f8] sm:$0xff]
    %v321 = vld [vmem:[#allocation5 + $0x600] sm:$0xff]
    %v322 = vld [vmem:[#allocation5 + $0x608] sm:$0xff]
    %v323 = vld [vmem:[#allocation5 + $0x610] sm:$0xff]
    %v324 = vld [vmem:[#allocation5 + $0x618] sm:$0xff]
    %v325 = vld [vmem:[#allocation5 + $0x620] sm:$0xff]
    %v326 = vld [vmem:[#allocation5 + $0x628] sm:$0xff]
    %v327 = vld [vmem:[#allocation5 + $0x630] sm:$0xff]
    %v328 = vld [vmem:[#allocation5 + $0x638] sm:$0xff]
    %v329 = vld [vmem:[#allocation5 + $0x640] sm:$0xff]
    %v330 = vld [vmem:[#allocation5 + $0x648] sm:$0xff]
    %v331 = vld [vmem:[#allocation5 + $0x650] sm:$0xff]
    %v332 = vld [vmem:[#allocation5 + $0x658] sm:$0xff]
    %v333 = vld [vmem:[#allocation5 + $0x660] sm:$0xff]
    %v334 = vld [vmem:[#allocation5 + $0x668] sm:$0xff]
    %v335 = vld [vmem:[#allocation5 + $0x670] sm:$0xff]
    %v336 = vld [vmem:[#allocation5 + $0x678] sm:$0xff]
    %v337 = vld [vmem:[#allocation5 + $0x680] sm:$0xff]
    %v338 = vld [vmem:[#allocation5 + $0x688] sm:$0xff]
    %v339 = vld [vmem:[#allocation5 + $0x690] sm:$0xff]
    %v340 = vld [vmem:[#allocation5 + $0x698] sm:$0xff]
    %v341 = vld [vmem:[#allocation5 + $0x6a0] sm:$0xff]
    %v342 = vld [vmem:[#allocation5 + $0x6a8] sm:$0xff]
    %v343 = vld [vmem:[#allocation5 + $0x6b0] sm:$0xff]
    %v344 = vld [vmem:[#allocation5 + $0x6b8] sm:$0xff]
    %v345 = vld [vmem:[#allocation5 + $0x6c0] sm:$0xff]
    %v346 = vld [vmem:[#allocation5 + $0x6c8] sm:$0xff]
    %v347 = vld [vmem:[#allocation5 + $0x6d0] sm:$0xff]
    %v348 = vld [vmem:[#allocation5 + $0x6d8] sm:$0xff]
    %v349 = vld [vmem:[#allocation5 + $0x6e0] sm:$0xff]
    %v350 = vld [vmem:[#allocation5 + $0x6e8] sm:$0xff]
    %v351 = vld [vmem:[#allocation5 + $0x6f0] sm:$0xff]
    %v352 = vld [vmem:[#allocation5 + $0x6f8] sm:$0xff]
    %v353 = vld [vmem:[#allocation5 + $0x700] sm:$0xff]
    %v354 = vld [vmem:[#allocation5 + $0x708] sm:$0xff]
    %v355 = vld [vmem:[#allocation5 + $0x710] sm:$0xff]
    %v356 = vld [vmem:[#allocation5 + $0x718] sm:$0xff]
    %v357 = vld [vmem:[#allocation5 + $0x720] sm:$0xff]
    %v358 = vld [vmem:[#allocation5 + $0x728] sm:$0xff]
    %v359 = vld [vmem:[#allocation5 + $0x730] sm:$0xff]
    %v360 = vld [vmem:[#allocation5 + $0x738] sm:$0xff]
    %v361 = vld [vmem:[#allocation5 + $0x740] sm:$0xff]
    %v362 = vld [vmem:[#allocation5 + $0x748] sm:$0xff]
    %v363 = vld [vmem:[#allocation5 + $0x750] sm:$0xff]
    %v364 = vld [vmem:[#allocation5 + $0x758] sm:$0xff]
    %v365 = vld [vmem:[#allocation5 + $0x760] sm:$0xff]
    %v366 = vld [vmem:[#allocation5 + $0x768] sm:$0xff]
    %v367 = vld [vmem:[#allocation5 + $0x770] sm:$0xff]
    %v368 = vld [vmem:[#allocation5 + $0x778] sm:$0xff]
    %v369 = vld [vmem:[#allocation5 + $0x780] sm:$0xff]
    %v370 = vld [vmem:[#allocation5 + $0x788] sm:$0xff]
    %v371 = vld [vmem:[#allocation5 + $0x790] sm:$0xff]
    %v372 = vld [vmem:[#allocation5 + $0x798] sm:$0xff]
    %v373 = vld [vmem:[#allocation5 + $0x7a0] sm:$0xff]
    %v374 = vld [vmem:[#allocation5 + $0x7a8] sm:$0xff]
    %v375 = vld [vmem:[#allocation5 + $0x7b0] sm:$0xff]
    %v376 = vld [vmem:[#allocation5 + $0x7b8] sm:$0xff]
    %v377 = vld [vmem:[#allocation5 + $0x7c0] sm:$0xff]
    %v378 = vld [vmem:[#allocation5 + $0x7c8] sm:$0xff]
    %v379 = vld [vmem:[#allocation5 + $0x7d0] sm:$0xff]
    %v380 = vld [vmem:[#allocation5 + $0x7d8] sm:$0xff]
    %v381 = vld [vmem:[#allocation5 + $0x7e0] sm:$0xff]
    %v382 = vld [vmem:[#allocation5 + $0x7e8] sm:$0xff]
    %v383 = vld [vmem:[#allocation5 + $0x7f0] sm:$0xff]
    %v384 = vld [vmem:[#allocation5 + $0x7f8] sm:$0xff]
    %v385 = vld [vmem:[#allocation7] sm:$0xf]
    %v387 = vperm.slane %v385, 0
    %v388 = vperm.slane %v385, 1
    %v389 = vperm.slane %v385, 2
    %v390 = vperm.slane %v385, 3
    %396 = vst [vmem:[#allocation1] ss:$9 sm:$0xff] %v128
    %v397 = vld [vmem:[#allocation1] sm:$0xff]
    %v398 = vld [vmem:[#allocation1 + $0x9] sm:$0xff]
    %v399 = vld [vmem:[#allocation1 + $0x12] sm:$0xff]
    %v400 = vld [vmem:[#allocation1 + $0x1b] sm:$0xff]
    %v401 = vld [vmem:[#allocation1 + $0x24] sm:$0xff]
    %v402 = vld [vmem:[#allocation1 + $0x2d] sm:$0xff]
    %v403 = vld [vmem:[#allocation1 + $0x36] sm:$0xff]
    %v404 = vld [vmem:[#allocation1 + $0x3f] sm:$0xff]
    %v669 = vunpack.c.l.b16 %v129
    %v670 = vunpack.c.h.b16 %v129
    %v671 = vunpack.c.l.b16 %v130
    %v672 = vunpack.c.h.b16 %v130
    %v673 = vunpack.c.l.b16 %v131
    %v674 = vunpack.c.h.b16 %v131
    %v675 = vunpack.c.l.b16 %v132
    %v676 = vunpack.c.h.b16 %v132
    %v677 = vunpack.c.l.b16 %v133
    %v678 = vunpack.c.h.b16 %v133
    %v679 = vunpack.c.l.b16 %v134
    %v680 = vunpack.c.h.b16 %v134
    %v681 = vunpack.c.l.b16 %v135
    %v682 = vunpack.c.h.b16 %v135
    %v683 = vunpack.c.l.b16 %v136
    %v684 = vunpack.c.h.b16 %v136
    %v685 = vunpack.c.l.b16 %v137
    %v686 = vunpack.c.h.b16 %v137
    %v687 = vunpack.c.l.b16 %v138
    %v688 = vunpack.c.h.b16 %v138
    %v689 = vunpack.c.l.b16 %v139
    %v690 = vunpack.c.h.b16 %v139
    %v691 = vunpack.c.l.b16 %v140
    %v692 = vunpack.c.h.b16 %v140
    %v693 = vunpack.c.l.b16 %v141
    %v694 = vunpack.c.h.b16 %v141
    %v695 = vunpack.c.l.b16 %v142
    %v696 = vunpack.c.h.b16 %v142
    %v697 = vunpack.c.l.b16 %v143
    %v698 = vunpack.c.h.b16 %v143
    %v699 = vunpack.c.l.b16 %v144
    %v700 = vunpack.c.h.b16 %v144
    %v701 = vunpack.c.l.b16 %v145
    %v702 = vunpack.c.h.b16 %v145
    %v703 = vunpack.c.l.b16 %v146
    %v704 = vunpack.c.h.b16 %v146
    %v705 = vunpack.c.l.b16 %v147
    %v706 = vunpack.c.h.b16 %v147
    %v707 = vunpack.c.l.b16 %v148
    %v708 = vunpack.c.h.b16 %v148
    %v709 = vunpack.c.l.b16 %v149
    %v710 = vunpack.c.h.b16 %v149
    %v711 = vunpack.c.l.b16 %v150
    %v712 = vunpack.c.h.b16 %v150
    %v713 = vunpack.c.l.b16 %v151
    %v714 = vunpack.c.h.b16 %v151
    %v715 = vunpack.c.l.b16 %v152
    %v716 = vunpack.c.h.b16 %v152
    %v717 = vunpack.c.l.b16 %v153
    %v718 = vunpack.c.h.b16 %v153
    %v719 = vunpack.c.l.b16 %v154
    %v720 = vunpack.c.h.b16 %v154
    %v721 = vunpack.c.l.b16 %v155
    %v722 = vunpack.c.h.b16 %v155
    %v723 = vunpack.c.l.b16 %v156
    %v724 = vunpack.c.h.b16 %v156
    %v725 = vunpack.c.l.b16 %v157
    %v726 = vunpack.c.h.b16 %v157
    %v727 = vunpack.c.l.b16 %v158
    %v728 = vunpack.c.h.b16 %v158
    %v729 = vunpack.c.l.b16 %v159
    %v730 = vunpack.c.h.b16 %v159
    %v731 = vunpack.c.l.b16 %v160
    %v732 = vunpack.c.h.b16 %v160
    %v733 = vunpack.c.l.b16 %v161
    %v734 = vunpack.c.h.b16 %v161
    %v735 = vunpack.c.l.b16 %v162
    %v736 = vunpack.c.h.b16 %v162
    %v737 = vunpack.c.l.b16 %v163
    %v738 = vunpack.c.h.b16 %v163
    %v739 = vunpack.c.l.b16 %v164
    %v740 = vunpack.c.h.b16 %v164
    %v741 = vunpack.c.l.b16 %v165
    %v742 = vunpack.c.h.b16 %v165
    %v743 = vunpack.c.l.b16 %v166
    %v744 = vunpack.c.h.b16 %v166
    %v745 = vunpack.c.l.b16 %v167
    %v746 = vunpack.c.h.b16 %v167
    %v747 = vunpack.c.l.b16 %v168
    %v748 = vunpack.c.h.b16 %v168
    %v749 = vunpack.c.l.b16 %v169
    %v750 = vunpack.c.h.b16 %v169
    %v751 = vunpack.c.l.b16 %v170
    %v752 = vunpack.c.h.b16 %v170
    %v753 = vunpack.c.l.b16 %v171
    %v754 = vunpack.c.h.b16 %v171
    %v755 = vunpack.c.l.b16 %v172
    %v756 = vunpack.c.h.b16 %v172
    %v757 = vunpack.c.l.b16 %v173
    %v758 = vunpack.c.h.b16 %v173
    %v759 = vunpack.c.l.b16 %v174
    %v760 = vunpack.c.h.b16 %v174
    %v761 = vunpack.c.l.b16 %v175
    %v762 = vunpack.c.h.b16 %v175
    %v763 = vunpack.c.l.b16 %v176
    %v764 = vunpack.c.h.b16 %v176
    %v765 = vunpack.c.l.b16 %v177
    %v766 = vunpack.c.h.b16 %v177
    %v767 = vunpack.c.l.b16 %v178
    %v768 = vunpack.c.h.b16 %v178
    %v769 = vunpack.c.l.b16 %v179
    %v770 = vunpack.c.h.b16 %v179
    %v771 = vunpack.c.l.b16 %v180
    %v772 = vunpack.c.h.b16 %v180
    %v773 = vunpack.c.l.b16 %v181
    %v774 = vunpack.c.h.b16 %v181
    %v775 = vunpack.c.l.b16 %v182
    %v776 = vunpack.c.h.b16 %v182
    %v777 = vunpack.c.l.b16 %v183
    %v778 = vunpack.c.h.b16 %v183
    %v779 = vunpack.c.l.b16 %v184
    %v780 = vunpack.c.h.b16 %v184
    %v781 = vunpack.c.l.b16 %v185
    %v782 = vunpack.c.h.b16 %v185
    %v783 = vunpack.c.l.b16 %v186
    %v784 = vunpack.c.h.b16 %v186
    %v785 = vunpack.c.l.b16 %v187
    %v786 = vunpack.c.h.b16 %v187
    %v787 = vunpack.c.l.b16 %v188
    %v788 = vunpack.c.h.b16 %v188
    %v789 = vunpack.c.l.b16 %v189
    %v790 = vunpack.c.h.b16 %v189
    %v791 = vunpack.c.l.b16 %v190
    %v792 = vunpack.c.h.b16 %v190
    %v793 = vunpack.c.l.b16 %v191
    %v794 = vunpack.c.h.b16 %v191
    %v795 = vunpack.c.l.b16 %v192
    %v796 = vunpack.c.h.b16 %v192
    %v797 = vunpack.c.l.b16 %v193
    %v798 = vunpack.c.h.b16 %v193
    %v799 = vunpack.c.l.b16 %v194
    %v800 = vunpack.c.h.b16 %v194
    %v801 = vunpack.c.l.b16 %v195
    %v802 = vunpack.c.h.b16 %v195
    %v803 = vunpack.c.l.b16 %v196
    %v804 = vunpack.c.h.b16 %v196
    %v805 = vunpack.c.l.b16 %v197
    %v806 = vunpack.c.h.b16 %v197
    %v807 = vunpack.c.l.b16 %v198
    %v808 = vunpack.c.h.b16 %v198
    %v809 = vunpack.c.l.b16 %v199
    %v810 = vunpack.c.h.b16 %v199
    %v811 = vunpack.c.l.b16 %v200
    %v812 = vunpack.c.h.b16 %v200
    %v813 = vunpack.c.l.b16 %v201
    %v814 = vunpack.c.h.b16 %v201
    %v815 = vunpack.c.l.b16 %v202
    %v816 = vunpack.c.h.b16 %v202
    %v817 = vunpack.c.l.b16 %v203
    %v818 = vunpack.c.h.b16 %v203
    %v819 = vunpack.c.l.b16 %v204
    %v820 = vunpack.c.h.b16 %v204
    %v821 = vunpack.c.l.b16 %v205
    %v822 = vunpack.c.h.b16 %v205
    %v823 = vunpack.c.l.b16 %v206
    %v824 = vunpack.c.h.b16 %v206
    %v825 = vunpack.c.l.b16 %v207
    %v826 = vunpack.c.h.b16 %v207
    %v827 = vunpack.c.l.b16 %v208
    %v828 = vunpack.c.h.b16 %v208
    %v829 = vunpack.c.l.b16 %v209
    %v830 = vunpack.c.h.b16 %v209
    %v831 = vunpack.c.l.b16 %v210
    %v832 = vunpack.c.h.b16 %v210
    %v833 = vunpack.c.l.b16 %v211
    %v834 = vunpack.c.h.b16 %v211
    %v835 = vunpack.c.l.b16 %v212
    %v836 = vunpack.c.h.b16 %v212
    %v837 = vunpack.c.l.b16 %v213
    %v838 = vunpack.c.h.b16 %v213
    %v839 = vunpack.c.l.b16 %v214
    %v840 = vunpack.c.h.b16 %v214
    %v841 = vunpack.c.l.b16 %v215
    %v842 = vunpack.c.h.b16 %v215
    %v843 = vunpack.c.l.b16 %v216
    %v844 = vunpack.c.h.b16 %v216
    %v845 = vunpack.c.l.b16 %v217
    %v846 = vunpack.c.h.b16 %v217
    %v847 = vunpack.c.l.b16 %v218
    %v848 = vunpack.c.h.b16 %v218
    %v849 = vunpack.c.l.b16 %v219
    %v850 = vunpack.c.h.b16 %v219
    %v851 = vunpack.c.l.b16 %v220
    %v852 = vunpack.c.h.b16 %v220
    %v853 = vunpack.c.l.b16 %v221
    %v854 = vunpack.c.h.b16 %v221
    %v855 = vunpack.c.l.b16 %v222
    %v856 = vunpack.c.h.b16 %v222
    %v857 = vunpack.c.l.b16 %v223
    %v858 = vunpack.c.h.b16 %v223
    %v859 = vunpack.c.l.b16 %v224
    %v860 = vunpack.c.h.b16 %v224
    %v861 = vunpack.c.l.b16 %v225
    %v862 = vunpack.c.h.b16 %v225
    %v863 = vunpack.c.l.b16 %v226
    %v864 = vunpack.c.h.b16 %v226
    %v865 = vunpack.c.l.b16 %v227
    %v866 = vunpack.c.h.b16 %v227
    %v867 = vunpack.c.l.b16 %v228
    %v868 = vunpack.c.h.b16 %v228
    %v869 = vunpack.c.l.b16 %v229
    %v870 = vunpack.c.h.b16 %v229
    %v871 = vunpack.c.l.b16 %v230
    %v872 = vunpack.c.h.b16 %v230
    %v873 = vunpack.c.l.b16 %v231
    %v874 = vunpack.c.h.b16 %v231
    %v875 = vunpack.c.l.b16 %v232
    %v876 = vunpack.c.h.b16 %v232
    %v877 = vunpack.c.l.b16 %v233
    %v878 = vunpack.c.h.b16 %v233
    %v879 = vunpack.c.l.b16 %v234
    %v880 = vunpack.c.h.b16 %v234
    %v881 = vunpack.c.l.b16 %v235
    %v882 = vunpack.c.h.b16 %v235
    %v883 = vunpack.c.l.b16 %v236
    %v884 = vunpack.c.h.b16 %v236
    %v885 = vunpack.c.l.b16 %v237
    %v886 = vunpack.c.h.b16 %v237
    %v887 = vunpack.c.l.b16 %v238
    %v888 = vunpack.c.h.b16 %v238
    %v889 = vunpack.c.l.b16 %v239
    %v890 = vunpack.c.h.b16 %v239
    %v891 = vunpack.c.l.b16 %v240
    %v892 = vunpack.c.h.b16 %v240
    %v893 = vunpack.c.l.b16 %v241
    %v894 = vunpack.c.h.b16 %v241
    %v895 = vunpack.c.l.b16 %v242
    %v896 = vunpack.c.h.b16 %v242
    %v897 = vunpack.c.l.b16 %v243
    %v898 = vunpack.c.h.b16 %v243
    %v899 = vunpack.c.l.b16 %v244
    %v900 = vunpack.c.h.b16 %v244
    %v901 = vunpack.c.l.b16 %v245
    %v902 = vunpack.c.h.b16 %v245
    %v903 = vunpack.c.l.b16 %v246
    %v904 = vunpack.c.h.b16 %v246
    %v905 = vunpack.c.l.b16 %v247
    %v906 = vunpack.c.h.b16 %v247
    %v907 = vunpack.c.l.b16 %v248
    %v908 = vunpack.c.h.b16 %v248
    %v909 = vunpack.c.l.b16 %v249
    %v910 = vunpack.c.h.b16 %v249
    %v911 = vunpack.c.l.b16 %v250
    %v912 = vunpack.c.h.b16 %v250
    %v913 = vunpack.c.l.b16 %v251
    %v914 = vunpack.c.h.b16 %v251
    %v915 = vunpack.c.l.b16 %v252
    %v916 = vunpack.c.h.b16 %v252
    %v917 = vunpack.c.l.b16 %v253
    %v918 = vunpack.c.h.b16 %v253
    %v919 = vunpack.c.l.b16 %v254
    %v920 = vunpack.c.h.b16 %v254
    %v921 = vunpack.c.l.b16 %v255
    %v922 = vunpack.c.h.b16 %v255
    %v923 = vunpack.c.l.b16 %v256
    %v924 = vunpack.c.h.b16 %v256
    %v925 = vunpack.c.l.b16 %v257
    %v926 = vunpack.c.h.b16 %v257
    %v927 = vunpack.c.l.b16 %v258
    %v928 = vunpack.c.h.b16 %v258
    %v929 = vunpack.c.l.b16 %v259
    %v930 = vunpack.c.h.b16 %v259
    %v931 = vunpack.c.l.b16 %v260
    %v932 = vunpack.c.h.b16 %v260
    %v933 = vunpack.c.l.b16 %v261
    %v934 = vunpack.c.h.b16 %v261
    %v935 = vunpack.c.l.b16 %v262
    %v936 = vunpack.c.h.b16 %v262
    %v937 = vunpack.c.l.b16 %v263
    %v938 = vunpack.c.h.b16 %v263
    %v939 = vunpack.c.l.b16 %v264
    %v940 = vunpack.c.h.b16 %v264
    %v941 = vunpack.c.l.b16 %v265
    %v942 = vunpack.c.h.b16 %v265
    %v943 = vunpack.c.l.b16 %v266
    %v944 = vunpack.c.h.b16 %v266
    %v945 = vunpack.c.l.b16 %v267
    %v946 = vunpack.c.h.b16 %v267
    %v947 = vunpack.c.l.b16 %v268
    %v948 = vunpack.c.h.b16 %v268
    %v949 = vunpack.c.l.b16 %v269
    %v950 = vunpack.c.h.b16 %v269
    %v951 = vunpack.c.l.b16 %v270
    %v952 = vunpack.c.h.b16 %v270
    %v953 = vunpack.c.l.b16 %v271
    %v954 = vunpack.c.h.b16 %v271
    %v955 = vunpack.c.l.b16 %v272
    %v956 = vunpack.c.h.b16 %v272
    %v957 = vunpack.c.l.b16 %v273
    %v958 = vunpack.c.h.b16 %v273
    %v959 = vunpack.c.l.b16 %v274
    %v960 = vunpack.c.h.b16 %v274
    %v961 = vunpack.c.l.b16 %v275
    %v962 = vunpack.c.h.b16 %v275
    %v963 = vunpack.c.l.b16 %v276
    %v964 = vunpack.c.h.b16 %v276
    %v965 = vunpack.c.l.b16 %v277
    %v966 = vunpack.c.h.b16 %v277
    %v967 = vunpack.c.l.b16 %v278
    %v968 = vunpack.c.h.b16 %v278
    %v969 = vunpack.c.l.b16 %v279
    %v970 = vunpack.c.h.b16 %v279
    %v971 = vunpack.c.l.b16 %v280
    %v972 = vunpack.c.h.b16 %v280
    %v973 = vunpack.c.l.b16 %v281
    %v974 = vunpack.c.h.b16 %v281
    %v975 = vunpack.c.l.b16 %v282
    %v976 = vunpack.c.h.b16 %v282
    %v977 = vunpack.c.l.b16 %v283
    %v978 = vunpack.c.h.b16 %v283
    %v979 = vunpack.c.l.b16 %v284
    %v980 = vunpack.c.h.b16 %v284
    %v981 = vunpack.c.l.b16 %v285
    %v982 = vunpack.c.h.b16 %v285
    %v983 = vunpack.c.l.b16 %v286
    %v984 = vunpack.c.h.b16 %v286
    %v985 = vunpack.c.l.b16 %v287
    %v986 = vunpack.c.h.b16 %v287
    %v987 = vunpack.c.l.b16 %v288
    %v988 = vunpack.c.h.b16 %v288
    %v989 = vunpack.c.l.b16 %v289
    %v990 = vunpack.c.h.b16 %v289
    %v991 = vunpack.c.l.b16 %v290
    %v992 = vunpack.c.h.b16 %v290
    %v993 = vunpack.c.l.b16 %v291
    %v994 = vunpack.c.h.b16 %v291
    %v995 = vunpack.c.l.b16 %v292
    %v996 = vunpack.c.h.b16 %v292
    %v997 = vunpack.c.l.b16 %v293
    %v998 = vunpack.c.h.b16 %v293
    %v999 = vunpack.c.l.b16 %v294
    %v1000 = vunpack.c.h.b16 %v294
    %v1001 = vunpack.c.l.b16 %v295
    %v1002 = vunpack.c.h.b16 %v295
    %v1003 = vunpack.c.l.b16 %v296
    %v1004 = vunpack.c.h.b16 %v296
    %v1005 = vunpack.c.l.b16 %v297
    %v1006 = vunpack.c.h.b16 %v297
    %v1007 = vunpack.c.l.b16 %v298
    %v1008 = vunpack.c.h.b16 %v298
    %v1009 = vunpack.c.l.b16 %v299
    %v1010 = vunpack.c.h.b16 %v299
    %v1011 = vunpack.c.l.b16 %v300
    %v1012 = vunpack.c.h.b16 %v300
    %v1013 = vunpack.c.l.b16 %v301
    %v1014 = vunpack.c.h.b16 %v301
    %v1015 = vunpack.c.l.b16 %v302
    %v1016 = vunpack.c.h.b16 %v302
    %v1017 = vunpack.c.l.b16 %v303
    %v1018 = vunpack.c.h.b16 %v303
    %v1019 = vunpack.c.l.b16 %v304
    %v1020 = vunpack.c.h.b16 %v304
    %v1021 = vunpack.c.l.b16 %v305
    %v1022 = vunpack.c.h.b16 %v305
    %v1023 = vunpack.c.l.b16 %v306
    %v1024 = vunpack.c.h.b16 %v306
    %v1025 = vunpack.c.l.b16 %v307
    %v1026 = vunpack.c.h.b16 %v307
    %v1027 = vunpack.c.l.b16 %v308
    %v1028 = vunpack.c.h.b16 %v308
    %v1029 = vunpack.c.l.b16 %v309
    %v1030 = vunpack.c.h.b16 %v309
    %v1031 = vunpack.c.l.b16 %v310
    %v1032 = vunpack.c.h.b16 %v310
    %v1033 = vunpack.c.l.b16 %v311
    %v1034 = vunpack.c.h.b16 %v311
    %v1035 = vunpack.c.l.b16 %v312
    %v1036 = vunpack.c.h.b16 %v312
    %v1037 = vunpack.c.l.b16 %v313
    %v1038 = vunpack.c.h.b16 %v313
    %v1039 = vunpack.c.l.b16 %v314
    %v1040 = vunpack.c.h.b16 %v314
    %v1041 = vunpack.c.l.b16 %v315
    %v1042 = vunpack.c.h.b16 %v315
    %v1043 = vunpack.c.l.b16 %v316
    %v1044 = vunpack.c.h.b16 %v316
    %v1045 = vunpack.c.l.b16 %v317
    %v1046 = vunpack.c.h.b16 %v317
    %v1047 = vunpack.c.l.b16 %v318
    %v1048 = vunpack.c.h.b16 %v318
    %v1049 = vunpack.c.l.b16 %v319
    %v1050 = vunpack.c.h.b16 %v319
    %v1051 = vunpack.c.l.b16 %v320
    %v1052 = vunpack.c.h.b16 %v320
    %v1053 = vunpack.c.l.b16 %v321
    %v1054 = vunpack.c.h.b16 %v321
    %v1055 = vunpack.c.l.b16 %v322
    %v1056 = vunpack.c.h.b16 %v322
    %v1057 = vunpack.c.l.b16 %v323
    %v1058 = vunpack.c.h.b16 %v323
    %v1059 = vunpack.c.l.b16 %v324
    %v1060 = vunpack.c.h.b16 %v324
    %v1061 = vunpack.c.l.b16 %v325
    %v1062 = vunpack.c.h.b16 %v325
    %v1063 = vunpack.c.l.b16 %v326
    %v1064 = vunpack.c.h.b16 %v326
    %v1065 = vunpack.c.l.b16 %v327
    %v1066 = vunpack.c.h.b16 %v327
    %v1067 = vunpack.c.l.b16 %v328
    %v1068 = vunpack.c.h.b16 %v328
    %v1069 = vunpack.c.l.b16 %v329
    %v1070 = vunpack.c.h.b16 %v329
    %v1071 = vunpack.c.l.b16 %v330
    %v1072 = vunpack.c.h.b16 %v330
    %v1073 = vunpack.c.l.b16 %v331
    %v1074 = vunpack.c.h.b16 %v331
    %v1075 = vunpack.c.l.b16 %v332
    %v1076 = vunpack.c.h.b16 %v332
    %v1077 = vunpack.c.l.b16 %v333
    %v1078 = vunpack.c.h.b16 %v333
    %v1079 = vunpack.c.l.b16 %v334
    %v1080 = vunpack.c.h.b16 %v334
    %v1081 = vunpack.c.l.b16 %v335
    %v1082 = vunpack.c.h.b16 %v335
    %v1083 = vunpack.c.l.b16 %v336
    %v1084 = vunpack.c.h.b16 %v336
    %v1085 = vunpack.c.l.b16 %v337
    %v1086 = vunpack.c.h.b16 %v337
    %v1087 = vunpack.c.l.b16 %v338
    %v1088 = vunpack.c.h.b16 %v338
    %v1089 = vunpack.c.l.b16 %v339
    %v1090 = vunpack.c.h.b16 %v339
    %v1091 = vunpack.c.l.b16 %v340
    %v1092 = vunpack.c.h.b16 %v340
    %v1093 = vunpack.c.l.b16 %v341
    %v1094 = vunpack.c.h.b16 %v341
    %v1095 = vunpack.c.l.b16 %v342
    %v1096 = vunpack.c.h.b16 %v342
    %v1097 = vunpack.c.l.b16 %v343
    %v1098 = vunpack.c.h.b16 %v343
    %v1099 = vunpack.c.l.b16 %v344
    %v1100 = vunpack.c.h.b16 %v344
    %v1101 = vunpack.c.l.b16 %v345
    %v1102 = vunpack.c.h.b16 %v345
    %v1103 = vunpack.c.l.b16 %v346
    %v1104 = vunpack.c.h.b16 %v346
    %v1105 = vunpack.c.l.b16 %v347
    %v1106 = vunpack.c.h.b16 %v347
    %v1107 = vunpack.c.l.b16 %v348
    %v1108 = vunpack.c.h.b16 %v348
    %v1109 = vunpack.c.l.b16 %v349
    %v1110 = vunpack.c.h.b16 %v349
    %v1111 = vunpack.c.l.b16 %v350
    %v1112 = vunpack.c.h.b16 %v350
    %v1113 = vunpack.c.l.b16 %v351
    %v1114 = vunpack.c.h.b16 %v351
    %v1115 = vunpack.c.l.b16 %v352
    %v1116 = vunpack.c.h.b16 %v352
    %v1117 = vunpack.c.l.b16 %v353
    %v1118 = vunpack.c.h.b16 %v353
    %v1119 = vunpack.c.l.b16 %v354
    %v1120 = vunpack.c.h.b16 %v354
    %v1121 = vunpack.c.l.b16 %v355
    %v1122 = vunpack.c.h.b16 %v355
    %v1123 = vunpack.c.l.b16 %v356
    %v1124 = vunpack.c.h.b16 %v356
    %v1125 = vunpack.c.l.b16 %v357
    %v1126 = vunpack.c.h.b16 %v357
    %v1127 = vunpack.c.l.b16 %v358
    %v1128 = vunpack.c.h.b16 %v358
    %v1129 = vunpack.c.l.b16 %v359
    %v1130 = vunpack.c.h.b16 %v359
    %v1131 = vunpack.c.l.b16 %v360
    %v1132 = vunpack.c.h.b16 %v360
    %v1133 = vunpack.c.l.b16 %v361
    %v1134 = vunpack.c.h.b16 %v361
    %v1135 = vunpack.c.l.b16 %v362
    %v1136 = vunpack.c.h.b16 %v362
    %v1137 = vunpack.c.l.b16 %v363
    %v1138 = vunpack.c.h.b16 %v363
    %v1139 = vunpack.c.l.b16 %v364
    %v1140 = vunpack.c.h.b16 %v364
    %v1141 = vunpack.c.l.b16 %v365
    %v1142 = vunpack.c.h.b16 %v365
    %v1143 = vunpack.c.l.b16 %v366
    %v1144 = vunpack.c.h.b16 %v366
    %v1145 = vunpack.c.l.b16 %v367
    %v1146 = vunpack.c.h.b16 %v367
    %v1147 = vunpack.c.l.b16 %v368
    %v1148 = vunpack.c.h.b16 %v368
    %v1149 = vunpack.c.l.b16 %v369
    %v1150 = vunpack.c.h.b16 %v369
    %v1151 = vunpack.c.l.b16 %v370
    %v1152 = vunpack.c.h.b16 %v370
    %v1153 = vunpack.c.l.b16 %v371
    %v1154 = vunpack.c.h.b16 %v371
    %v1155 = vunpack.c.l.b16 %v372
    %v1156 = vunpack.c.h.b16 %v372
    %v1157 = vunpack.c.l.b16 %v373
    %v1158 = vunpack.c.h.b16 %v373
    %v1159 = vunpack.c.l.b16 %v374
    %v1160 = vunpack.c.h.b16 %v374
    %v1161 = vunpack.c.l.b16 %v375
    %v1162 = vunpack.c.h.b16 %v375
    %v1163 = vunpack.c.l.b16 %v376
    %v1164 = vunpack.c.h.b16 %v376
    %v1165 = vunpack.c.l.b16 %v377
    %v1166 = vunpack.c.h.b16 %v377
    %v1167 = vunpack.c.l.b16 %v378
    %v1168 = vunpack.c.h.b16 %v378
    %v1169 = vunpack.c.l.b16 %v379
    %v1170 = vunpack.c.h.b16 %v379
    %v1171 = vunpack.c.l.b16 %v380
    %v1172 = vunpack.c.h.b16 %v380
    %v1173 = vunpack.c.l.b16 %v381
    %v1174 = vunpack.c.h.b16 %v381
    %v1175 = vunpack.c.l.b16 %v382
    %v1176 = vunpack.c.h.b16 %v382
    %v1177 = vunpack.c.l.b16 %v383
    %v1178 = vunpack.c.h.b16 %v383
    %v1179 = vunpack.c.l.b16 %v384
    %v1180 = vunpack.c.h.b16 %v384
    %v1181 = vpack.c.b16 %v673, %v669
    %v1182 = vpack.c.b16 %v674, %v670
    %v1183 = vpack.c.b16 %v675, %v671
    %v1184 = vpack.c.b16 %v676, %v672
    %v1185 = vpack.c.b16 %v681, %v677
    %v1186 = vpack.c.b16 %v682, %v678
    %v1187 = vpack.c.b16 %v683, %v679
    %v1188 = vpack.c.b16 %v684, %v680
    %v1189 = vpack.c.b16 %v689, %v685
    %v1190 = vpack.c.b16 %v690, %v686
    %v1191 = vpack.c.b16 %v691, %v687
    %v1192 = vpack.c.b16 %v692, %v688
    %v1193 = vpack.c.b16 %v697, %v693
    %v1194 = vpack.c.b16 %v698, %v694
    %v1195 = vpack.c.b16 %v699, %v695
    %v1196 = vpack.c.b16 %v700, %v696
    %v1197 = vpack.c.b16 %v705, %v701
    %v1198 = vpack.c.b16 %v706, %v702
    %v1199 = vpack.c.b16 %v707, %v703
    %v1200 = vpack.c.b16 %v708, %v704
    %v1201 = vpack.c.b16 %v713, %v709
    %v1202 = vpack.c.b16 %v714, %v710
    %v1203 = vpack.c.b16 %v715, %v711
    %v1204 = vpack.c.b16 %v716, %v712
    %v1205 = vpack.c.b16 %v721, %v717
    %v1206 = vpack.c.b16 %v722, %v718
    %v1207 = vpack.c.b16 %v723, %v719
    %v1208 = vpack.c.b16 %v724, %v720
    %v1209 = vpack.c.b16 %v729, %v725
    %v1210 = vpack.c.b16 %v730, %v726
    %v1211 = vpack.c.b16 %v731, %v727
    %v1212 = vpack.c.b16 %v732, %v728
    %v1213 = vpack.c.b16 %v737, %v733
    %v1214 = vpack.c.b16 %v738, %v734
    %v1215 = vpack.c.b16 %v739, %v735
    %v1216 = vpack.c.b16 %v740, %v736
    %v1217 = vpack.c.b16 %v745, %v741
    %v1218 = vpack.c.b16 %v746, %v742
    %v1219 = vpack.c.b16 %v747, %v743
    %v1220 = vpack.c.b16 %v748, %v744
    %v1221 = vpack.c.b16 %v753, %v749
    %v1222 = vpack.c.b16 %v754, %v750
    %v1223 = vpack.c.b16 %v755, %v751
    %v1224 = vpack.c.b16 %v756, %v752
    %v1225 = vpack.c.b16 %v761, %v757
    %v1226 = vpack.c.b16 %v762, %v758
    %v1227 = vpack.c.b16 %v763, %v759
    %v1228 = vpack.c.b16 %v764, %v760
    %v1229 = vpack.c.b16 %v769, %v765
    %v1230 = vpack.c.b16 %v770, %v766
    %v1231 = vpack.c.b16 %v771, %v767
    %v1232 = vpack.c.b16 %v772, %v768
    %v1233 = vpack.c.b16 %v777, %v773
    %v1234 = vpack.c.b16 %v778, %v774
    %v1235 = vpack.c.b16 %v779, %v775
    %v1236 = vpack.c.b16 %v780, %v776
    %v1237 = vpack.c.b16 %v785, %v781
    %v1238 = vpack.c.b16 %v786, %v782
    %v1239 = vpack.c.b16 %v787, %v783
    %v1240 = vpack.c.b16 %v788, %v784
    %v1241 = vpack.c.b16 %v793, %v789
    %v1242 = vpack.c.b16 %v794, %v790
    %v1243 = vpack.c.b16 %v795, %v791
    %v1244 = vpack.c.b16 %v796, %v792
    %v1245 = vpack.c.b16 %v801, %v797
    %v1246 = vpack.c.b16 %v802, %v798
    %v1247 = vpack.c.b16 %v803, %v799
    %v1248 = vpack.c.b16 %v804, %v800
    %v1249 = vpack.c.b16 %v809, %v805
    %v1250 = vpack.c.b16 %v810, %v806
    %v1251 = vpack.c.b16 %v811, %v807
    %v1252 = vpack.c.b16 %v812, %v808
    %v1253 = vpack.c.b16 %v817, %v813
    %v1254 = vpack.c.b16 %v818, %v814
    %v1255 = vpack.c.b16 %v819, %v815
    %v1256 = vpack.c.b16 %v820, %v816
    %v1257 = vpack.c.b16 %v825, %v821
    %v1258 = vpack.c.b16 %v826, %v822
    %v1259 = vpack.c.b16 %v827, %v823
    %v1260 = vpack.c.b16 %v828, %v824
    %v1261 = vpack.c.b16 %v833, %v829
    %v1262 = vpack.c.b16 %v834, %v830
    %v1263 = vpack.c.b16 %v835, %v831
    %v1264 = vpack.c.b16 %v836, %v832
    %v1265 = vpack.c.b16 %v841, %v837
    %v1266 = vpack.c.b16 %v842, %v838
    %v1267 = vpack.c.b16 %v843, %v839
    %v1268 = vpack.c.b16 %v844, %v840
    %v1269 = vpack.c.b16 %v849, %v845
    %v1270 = vpack.c.b16 %v850, %v846
    %v1271 = vpack.c.b16 %v851, %v847
    %v1272 = vpack.c.b16 %v852, %v848
    %v1273 = vpack.c.b16 %v857, %v853
    %v1274 = vpack.c.b16 %v858, %v854
    %v1275 = vpack.c.b16 %v859, %v855
    %v1276 = vpack.c.b16 %v860, %v856
    %v1277 = vpack.c.b16 %v865, %v861
    %v1278 = vpack.c.b16 %v866, %v862
    %v1279 = vpack.c.b16 %v867, %v863
    %v1280 = vpack.c.b16 %v868, %v864
    %v1281 = vpack.c.b16 %v873, %v869
    %v1282 = vpack.c.b16 %v874, %v870
    %v1283 = vpack.c.b16 %v875, %v871
    %v1284 = vpack.c.b16 %v876, %v872
    %v1285 = vpack.c.b16 %v881, %v877
    %v1286 = vpack.c.b16 %v882, %v878
    %v1287 = vpack.c.b16 %v883, %v879
    %v1288 = vpack.c.b16 %v884, %v880
    %v1289 = vpack.c.b16 %v889, %v885
    %v1290 = vpack.c.b16 %v890, %v886
    %v1291 = vpack.c.b16 %v891, %v887
    %v1292 = vpack.c.b16 %v892, %v888
    %v1293 = vpack.c.b16 %v897, %v893
    %v1294 = vpack.c.b16 %v898, %v894
    %v1295 = vpack.c.b16 %v899, %v895
    %v1296 = vpack.c.b16 %v900, %v896
    %v1297 = vpack.c.b16 %v905, %v901
    %v1298 = vpack.c.b16 %v906, %v902
    %v1299 = vpack.c.b16 %v907, %v903
    %v1300 = vpack.c.b16 %v908, %v904
    %v1301 = vpack.c.b16 %v913, %v909
    %v1302 = vpack.c.b16 %v914, %v910
    %v1303 = vpack.c.b16 %v915, %v911
    %v1304 = vpack.c.b16 %v916, %v912
    %v1305 = vpack.c.b16 %v921, %v917
    %v1306 = vpack.c.b16 %v922, %v918
    %v1307 = vpack.c.b16 %v923, %v919
    %v1308 = vpack.c.b16 %v924, %v920
    %v1309 = vpack.c.b16 %v929, %v925
    %v1310 = vpack.c.b16 %v930, %v926
    %v1311 = vpack.c.b16 %v931, %v927
    %v1312 = vpack.c.b16 %v932, %v928
    %v1313 = vpack.c.b16 %v937, %v933
    %v1314 = vpack.c.b16 %v938, %v934
    %v1315 = vpack.c.b16 %v939, %v935
    %v1316 = vpack.c.b16 %v940, %v936
    %v1317 = vpack.c.b16 %v945, %v941
    %v1318 = vpack.c.b16 %v946, %v942
    %v1319 = vpack.c.b16 %v947, %v943
    %v1320 = vpack.c.b16 %v948, %v944
    %v1321 = vpack.c.b16 %v953, %v949
    %v1322 = vpack.c.b16 %v954, %v950
    %v1323 = vpack.c.b16 %v955, %v951
    %v1324 = vpack.c.b16 %v956, %v952
    %v1325 = vpack.c.b16 %v961, %v957
    %v1326 = vpack.c.b16 %v962, %v958
    %v1327 = vpack.c.b16 %v963, %v959
    %v1328 = vpack.c.b16 %v964, %v960
    %v1329 = vpack.c.b16 %v969, %v965
    %v1330 = vpack.c.b16 %v970, %v966
    %v1331 = vpack.c.b16 %v971, %v967
    %v1332 = vpack.c.b16 %v972, %v968
    %v1333 = vpack.c.b16 %v977, %v973
    %v1334 = vpack.c.b16 %v978, %v974
    %v1335 = vpack.c.b16 %v979, %v975
    %v1336 = vpack.c.b16 %v980, %v976
    %v1337 = vpack.c.b16 %v985, %v981
    %v1338 = vpack.c.b16 %v986, %v982
    %v1339 = vpack.c.b16 %v987, %v983
    %v1340 = vpack.c.b16 %v988, %v984
    %v1341 = vpack.c.b16 %v993, %v989
    %v1342 = vpack.c.b16 %v994, %v990
    %v1343 = vpack.c.b16 %v995, %v991
    %v1344 = vpack.c.b16 %v996, %v992
    %v1345 = vpack.c.b16 %v1001, %v997
    %v1346 = vpack.c.b16 %v1002, %v998
    %v1347 = vpack.c.b16 %v1003, %v999
    %v1348 = vpack.c.b16 %v1004, %v1000
    %v1349 = vpack.c.b16 %v1009, %v1005
    %v1350 = vpack.c.b16 %v1010, %v1006
    %v1351 = vpack.c.b16 %v1011, %v1007
    %v1352 = vpack.c.b16 %v1012, %v1008
    %v1353 = vpack.c.b16 %v1017, %v1013
    %v1354 = vpack.c.b16 %v1018, %v1014
    %v1355 = vpack.c.b16 %v1019, %v1015
    %v1356 = vpack.c.b16 %v1020, %v1016
    %v1357 = vpack.c.b16 %v1025, %v1021
    %v1358 = vpack.c.b16 %v1026, %v1022
    %v1359 = vpack.c.b16 %v1027, %v1023
    %v1360 = vpack.c.b16 %v1028, %v1024
    %v1361 = vpack.c.b16 %v1033, %v1029
    %v1362 = vpack.c.b16 %v1034, %v1030
    %v1363 = vpack.c.b16 %v1035, %v1031
    %v1364 = vpack.c.b16 %v1036, %v1032
    %v1365 = vpack.c.b16 %v1041, %v1037
    %v1366 = vpack.c.b16 %v1042, %v1038
    %v1367 = vpack.c.b16 %v1043, %v1039
    %v1368 = vpack.c.b16 %v1044, %v1040
    %v1369 = vpack.c.b16 %v1049, %v1045
    %v1370 = vpack.c.b16 %v1050, %v1046
    %v1371 = vpack.c.b16 %v1051, %v1047
    %v1372 = vpack.c.b16 %v1052, %v1048
    %v1373 = vpack.c.b16 %v1057, %v1053
    %v1374 = vpack.c.b16 %v1058, %v1054
    %v1375 = vpack.c.b16 %v1059, %v1055
    %v1376 = vpack.c.b16 %v1060, %v1056
    %v1377 = vpack.c.b16 %v1065, %v1061
    %v1378 = vpack.c.b16 %v1066, %v1062
    %v1379 = vpack.c.b16 %v1067, %v1063
    %v1380 = vpack.c.b16 %v1068, %v1064
    %v1381 = vpack.c.b16 %v1073, %v1069
    %v1382 = vpack.c.b16 %v1074, %v1070
    %v1383 = vpack.c.b16 %v1075, %v1071
    %v1384 = vpack.c.b16 %v1076, %v1072
    %v1385 = vpack.c.b16 %v1081, %v1077
    %v1386 = vpack.c.b16 %v1082, %v1078
    %v1387 = vpack.c.b16 %v1083, %v1079
    %v1388 = vpack.c.b16 %v1084, %v1080
    %v1389 = vpack.c.b16 %v1089, %v1085
    %v1390 = vpack.c.b16 %v1090, %v1086
    %v1391 = vpack.c.b16 %v1091, %v1087
    %v1392 = vpack.c.b16 %v1092, %v1088
    %v1393 = vpack.c.b16 %v1097, %v1093
    %v1394 = vpack.c.b16 %v1098, %v1094
    %v1395 = vpack.c.b16 %v1099, %v1095
    %v1396 = vpack.c.b16 %v1100, %v1096
    %v1397 = vpack.c.b16 %v1105, %v1101
    %v1398 = vpack.c.b16 %v1106, %v1102
    %v1399 = vpack.c.b16 %v1107, %v1103
    %v1400 = vpack.c.b16 %v1108, %v1104
    %v1401 = vpack.c.b16 %v1113, %v1109
    %v1402 = vpack.c.b16 %v1114, %v1110
    %v1403 = vpack.c.b16 %v1115, %v1111
    %v1404 = vpack.c.b16 %v1116, %v1112
    %v1405 = vpack.c.b16 %v1121, %v1117
    %v1406 = vpack.c.b16 %v1122, %v1118
    %v1407 = vpack.c.b16 %v1123, %v1119
    %v1408 = vpack.c.b16 %v1124, %v1120
    %v1409 = vpack.c.b16 %v1129, %v1125
    %v1410 = vpack.c.b16 %v1130, %v1126
    %v1411 = vpack.c.b16 %v1131, %v1127
    %v1412 = vpack.c.b16 %v1132, %v1128
    %v1413 = vpack.c.b16 %v1137, %v1133
    %v1414 = vpack.c.b16 %v1138, %v1134
    %v1415 = vpack.c.b16 %v1139, %v1135
    %v1416 = vpack.c.b16 %v1140, %v1136
    %v1417 = vpack.c.b16 %v1145, %v1141
    %v1418 = vpack.c.b16 %v1146, %v1142
    %v1419 = vpack.c.b16 %v1147, %v1143
    %v1420 = vpack.c.b16 %v1148, %v1144
    %v1421 = vpack.c.b16 %v1153, %v1149
    %v1422 = vpack.c.b16 %v1154, %v1150
    %v1423 = vpack.c.b16 %v1155, %v1151
    %v1424 = vpack.c.b16 %v1156, %v1152
    %v1425 = vpack.c.b16 %v1161, %v1157
    %v1426 = vpack.c.b16 %v1162, %v1158
    %v1427 = vpack.c.b16 %v1163, %v1159
    %v1428 = vpack.c.b16 %v1164, %v1160
    %v1429 = vpack.c.b16 %v1169, %v1165
    %v1430 = vpack.c.b16 %v1170, %v1166
    %v1431 = vpack.c.b16 %v1171, %v1167
    %v1432 = vpack.c.b16 %v1172, %v1168
    %v1433 = vpack.c.b16 %v1177, %v1173
    %v1434 = vpack.c.b16 %v1178, %v1174
    %v1435 = vpack.c.b16 %v1179, %v1175
    %v1436 = vpack.c.b16 %v1180, %v1176
    %1693 = vmatpush.bf16.msra.mxu0 %v1209
    %1694 = vmatpush.bf16.msra.mxu0 %v1205
    %1695 = vmatpush.bf16.msra.mxu0 %v1201
    %1696 = vmatpush.bf16.msra.mxu0 %v1197
    %1697 = vmatpush.bf16.msra.mxu0 %v1193
    %1698 = vmatpush.bf16.msra.mxu0 %v1189
    %1699 = vmatpush.bf16.msra.mxu0 %v1185
    %1700 = vmatpush.bf16.msra.mxu0 %v1181
    %1701 = vmatmul.bf16.gmra.mxu0 %v397
    %v1702 = vpop.f32.mrf.mxu0
    %v1703 = vadd.f32 %v387, %v1702
    %v1704 = vpop.f32.mrf.mxu0
    %1705 = vdwg.mxu0
    %1706 = vmatpush.bf16.msra.mxu0 %v1241
    %1707 = vmatpush.bf16.msra.mxu0 %v1237
    %1708 = vmatpush.bf16.msra.mxu0 %v1233
    %1709 = vmatpush.bf16.msra.mxu0 %v1229
    %1710 = vmatpush.bf16.msra.mxu0 %v1225
    %1711 = vmatpush.bf16.msra.mxu0 %v1221
    %1712 = vmatpush.bf16.msra.mxu0 %v1217
    %1713 = vmatpush.bf16.msra.mxu0 %v1213
    %1714 = vmatmul.bf16.gmra.mxu0 %v398
    %v1715 = vpop.f32.mrf.mxu0
    %v1716 = vadd.f32 %v1703, %v1715
    %v1717 = vpop.f32.mrf.mxu0
    %1718 = vdwg.mxu0
    %1719 = vmatpush.bf16.msra.mxu0 %v1273
    %1720 = vmatpush.bf16.msra.mxu0 %v1269
    %1721 = vmatpush.bf16.msra.mxu0 %v1265
    %1722 = vmatpush.bf16.msra.mxu0 %v1261
    %1723 = vmatpush.bf16.msra.mxu0 %v1257
    %1724 = vmatpush.bf16.msra.mxu0 %v1253
    %1725 = vmatpush.bf16.msra.mxu0 %v1249
    %1726 = vmatpush.bf16.msra.mxu0 %v1245
    %1727 = vmatmul.bf16.gmra.mxu0 %v399
    %v1728 = vpop.f32.mrf.mxu0
    %v1729 = vadd.f32 %v1716, %v1728
    %v1730 = vpop.f32.mrf.mxu0
    %1731 = vdwg.mxu0
    %1732 = vmatpush.bf16.msra.mxu0 %v1305
    %1733 = vmatpush.bf16.msra.mxu0 %v1301
    %1734 = vmatpush.bf16.msra.mxu0 %v1297
    %1735 = vmatpush.bf16.msra.mxu0 %v1293
    %1736 = vmatpush.bf16.msra.mxu0 %v1289
    %1737 = vmatpush.bf16.msra.mxu0 %v1285
    %1738 = vmatpush.bf16.msra.mxu0 %v1281
    %1739 = vmatpush.bf16.msra.mxu0 %v1277
    %1740 = vmatmul.bf16.gmra.mxu0 %v400
    %v1741 = vpop.f32.mrf.mxu0
    %v1742 = vadd.f32 %v1729, %v1741
    %v1743 = vpop.f32.mrf.mxu0
    %1744 = vdwg.mxu0
    %1745 = vmatpush.bf16.msra.mxu0 %v1337
    %1746 = vmatpush.bf16.msra.mxu0 %v1333
    %1747 = vmatpush.bf16.msra.mxu0 %v1329
    %1748 = vmatpush.bf16.msra.mxu0 %v1325
    %1749 = vmatpush.bf16.msra.mxu0 %v1321
    %1750 = vmatpush.bf16.msra.mxu0 %v1317
    %1751 = vmatpush.bf16.msra.mxu0 %v1313
    %1752 = vmatpush.bf16.msra.mxu0 %v1309
    %1753 = vmatmul.bf16.gmra.mxu0 %v401
    %v1754 = vpop.f32.mrf.mxu0
    %v1755 = vadd.f32 %v1742, %v1754
    %v1756 = vpop.f32.mrf.mxu0
    %1757 = vdwg.mxu0
    %1758 = vmatpush.bf16.msra.mxu0 %v1369
    %1759 = vmatpush.bf16.msra.mxu0 %v1365
    %1760 = vmatpush.bf16.msra.mxu0 %v1361
    %1761 = vmatpush.bf16.msra.mxu0 %v1357
    %1762 = vmatpush.bf16.msra.mxu0 %v1353
    %1763 = vmatpush.bf16.msra.mxu0 %v1349
    %1764 = vmatpush.bf16.msra.mxu0 %v1345
    %1765 = vmatpush.bf16.msra.mxu0 %v1341
    %1766 = vmatmul.bf16.gmra.mxu0 %v402
    %v1767 = vpop.f32.mrf.mxu0
    %v1768 = vadd.f32 %v1755, %v1767
    %v1769 = vpop.f32.mrf.mxu0
    %1770 = vdwg.mxu0
    %1771 = vmatpush.bf16.msra.mxu0 %v1401
    %1772 = vmatpush.bf16.msra.mxu0 %v1397
    %1773 = vmatpush.bf16.msra.mxu0 %v1393
    %1774 = vmatpush.bf16.msra.mxu0 %v1389
    %1775 = vmatpush.bf16.msra.mxu0 %v1385
    %1776 = vmatpush.bf16.msra.mxu0 %v1381
    %1777 = vmatpush.bf16.msra.mxu0 %v1377
    %1778 = vmatpush.bf16.msra.mxu0 %v1373
    %1779 = vmatmul.bf16.gmra.mxu0 %v403
    %v1780 = vpop.f32.mrf.mxu0
    %v1781 = vadd.f32 %v1768, %v1780
    %v1782 = vpop.f32.mrf.mxu0
    %1783 = vdwg.mxu0
    %1784 = vmatpush.bf16.msra.mxu0 %v1433
    %1785 = vmatpush.bf16.msra.mxu0 %v1429
    %1786 = vmatpush.bf16.msra.mxu0 %v1425
    %1787 = vmatpush.bf16.msra.mxu0 %v1421
    %1788 = vmatpush.bf16.msra.mxu0 %v1417
    %1789 = vmatpush.bf16.msra.mxu0 %v1413
    %1790 = vmatpush.bf16.msra.mxu0 %v1409
    %1791 = vmatpush.bf16.msra.mxu0 %v1405
    %1792 = vmatmul.bf16.gmra.mxu0 %v404
    %v1793 = vpop.f32.mrf.mxu0
    %v1794 = vadd.f32 %v1781, %v1793
    %v1795 = vpop.f32.mrf.mxu0
    %1796 = vdwg.mxu0
    %1797 = vmatpush.bf16.msra.mxu0 %v1210
    %1798 = vmatpush.bf16.msra.mxu0 %v1206
    %1799 = vmatpush.bf16.msra.mxu0 %v1202
    %1800 = vmatpush.bf16.msra.mxu0 %v1198
    %1801 = vmatpush.bf16.msra.mxu0 %v1194
    %1802 = vmatpush.bf16.msra.mxu0 %v1190
    %1803 = vmatpush.bf16.msra.mxu0 %v1186
    %1804 = vmatpush.bf16.msra.mxu0 %v1182
    %1805 = vmatmul.bf16.gmra.mxu0 %v397
    %v1806 = vpop.f32.mrf.mxu0
    %v1807 = vadd.f32 %v388, %v1806
    %v1808 = vpop.f32.mrf.mxu0
    %1809 = vdwg.mxu0
    %1810 = vmatpush.bf16.msra.mxu0 %v1242
    %1811 = vmatpush.bf16.msra.mxu0 %v1238
    %1812 = vmatpush.bf16.msra.mxu0 %v1234
    %1813 = vmatpush.bf16.msra.mxu0 %v1230
    %1814 = vmatpush.bf16.msra.mxu0 %v1226
    %1815 = vmatpush.bf16.msra.mxu0 %v1222
    %1816 = vmatpush.bf16.msra.mxu0 %v1218
    %1817 = vmatpush.bf16.msra.mxu0 %v1214
    %1818 = vmatmul.bf16.gmra.mxu0 %v398
    %v1819 = vpop.f32.mrf.mxu0
    %v1820 = vadd.f32 %v1807, %v1819
    %v1821 = vpop.f32.mrf.mxu0
    %1822 = vdwg.mxu0
    %1823 = vmatpush.bf16.msra.mxu0 %v1274
    %1824 = vmatpush.bf16.msra.mxu0 %v1270
    %1825 = vmatpush.bf16.msra.mxu0 %v1266
    %1826 = vmatpush.bf16.msra.mxu0 %v1262
    %1827 = vmatpush.bf16.msra.mxu0 %v1258
    %1828 = vmatpush.bf16.msra.mxu0 %v1254
    %1829 = vmatpush.bf16.msra.mxu0 %v1250
    %1830 = vmatpush.bf16.msra.mxu0 %v1246
    %1831 = vmatmul.bf16.gmra.mxu0 %v399
    %v1832 = vpop.f32.mrf.mxu0
    %v1833 = vadd.f32 %v1820, %v1832
    %v1834 = vpop.f32.mrf.mxu0
    %1835 = vdwg.mxu0
    %1836 = vmatpush.bf16.msra.mxu0 %v1306
    %1837 = vmatpush.bf16.msra.mxu0 %v1302
    %1838 = vmatpush.bf16.msra.mxu0 %v1298
    %1839 = vmatpush.bf16.msra.mxu0 %v1294
    %1840 = vmatpush.bf16.msra.mxu0 %v1290
    %1841 = vmatpush.bf16.msra.mxu0 %v1286
    %1842 = vmatpush.bf16.msra.mxu0 %v1282
    %1843 = vmatpush.bf16.msra.mxu0 %v1278
    %1844 = vmatmul.bf16.gmra.mxu0 %v400
    %v1845 = vpop.f32.mrf.mxu0
    %v1846 = vadd.f32 %v1833, %v1845
    %v1847 = vpop.f32.mrf.mxu0
    %1848 = vdwg.mxu0
    %1849 = vmatpush.bf16.msra.mxu0 %v1338
    %1850 = vmatpush.bf16.msra.mxu0 %v1334
    %1851 = vmatpush.bf16.msra.mxu0 %v1330
    %1852 = vmatpush.bf16.msra.mxu0 %v1326
    %1853 = vmatpush.bf16.msra.mxu0 %v1322
    %1854 = vmatpush.bf16.msra.mxu0 %v1318
    %1855 = vmatpush.bf16.msra.mxu0 %v1314
    %1856 = vmatpush.bf16.msra.mxu0 %v1310
    %1857 = vmatmul.bf16.gmra.mxu0 %v401
    %v1858 = vpop.f32.mrf.mxu0
    %v1859 = vadd.f32 %v1846, %v1858
    %v1860 = vpop.f32.mrf.mxu0
    %1861 = vdwg.mxu0
    %1862 = vmatpush.bf16.msra.mxu0 %v1370
    %1863 = vmatpush.bf16.msra.mxu0 %v1366
    %1864 = vmatpush.bf16.msra.mxu0 %v1362
    %1865 = vmatpush.bf16.msra.mxu0 %v1358
    %1866 = vmatpush.bf16.msra.mxu0 %v1354
    %1867 = vmatpush.bf16.msra.mxu0 %v1350
    %1868 = vmatpush.bf16.msra.mxu0 %v1346
    %1869 = vmatpush.bf16.msra.mxu0 %v1342
    %1870 = vmatmul.bf16.gmra.mxu0 %v402
    %v1871 = vpop.f32.mrf.mxu0
    %v1872 = vadd.f32 %v1859, %v1871
    %v1873 = vpop.f32.mrf.mxu0
    %1874 = vdwg.mxu0
    %1875 = vmatpush.bf16.msra.mxu0 %v1402
    %1876 = vmatpush.bf16.msra.mxu0 %v1398
    %1877 = vmatpush.bf16.msra.mxu0 %v1394
    %1878 = vmatpush.bf16.msra.mxu0 %v1390
    %1879 = vmatpush.bf16.msra.mxu0 %v1386
    %1880 = vmatpush.bf16.msra.mxu0 %v1382
    %1881 = vmatpush.bf16.msra.mxu0 %v1378
    %1882 = vmatpush.bf16.msra.mxu0 %v1374
    %1883 = vmatmul.bf16.gmra.mxu0 %v403
    %v1884 = vpop.f32.mrf.mxu0
    %v1885 = vadd.f32 %v1872, %v1884
    %v1886 = vpop.f32.mrf.mxu0
    %1887 = vdwg.mxu0
    %1888 = vmatpush.bf16.msra.mxu0 %v1434
    %1889 = vmatpush.bf16.msra.mxu0 %v1430
    %1890 = vmatpush.bf16.msra.mxu0 %v1426
    %1891 = vmatpush.bf16.msra.mxu0 %v1422
    %1892 = vmatpush.bf16.msra.mxu0 %v1418
    %1893 = vmatpush.bf16.msra.mxu0 %v1414
    %1894 = vmatpush.bf16.msra.mxu0 %v1410
    %1895 = vmatpush.bf16.msra.mxu0 %v1406
    %1896 = vmatmul.bf16.gmra.mxu0 %v404
    %v1897 = vpop.f32.mrf.mxu0
    %v1898 = vadd.f32 %v1885, %v1897
    %v1899 = vpop.f32.mrf.mxu0
    %1900 = vdwg.mxu0
    %1901 = vmatpush.bf16.msra.mxu0 %v1211
    %1902 = vmatpush.bf16.msra.mxu0 %v1207
    %1903 = vmatpush.bf16.msra.mxu0 %v1203
    %1904 = vmatpush.bf16.msra.mxu0 %v1199
    %1905 = vmatpush.bf16.msra.mxu0 %v1195
    %1906 = vmatpush.bf16.msra.mxu0 %v1191
    %1907 = vmatpush.bf16.msra.mxu0 %v1187
    %1908 = vmatpush.bf16.msra.mxu0 %v1183
    %1909 = vmatmul.bf16.gmra.mxu0 %v397
    %v1910 = vpop.f32.mrf.mxu0
    %v1911 = vadd.f32 %v389, %v1910
    %v1912 = vpop.f32.mrf.mxu0
    %1913 = vdwg.mxu0
    %1914 = vmatpush.bf16.msra.mxu0 %v1243
    %1915 = vmatpush.bf16.msra.mxu0 %v1239
    %1916 = vmatpush.bf16.msra.mxu0 %v1235
    %1917 = vmatpush.bf16.msra.mxu0 %v1231
    %1918 = vmatpush.bf16.msra.mxu0 %v1227
    %1919 = vmatpush.bf16.msra.mxu0 %v1223
    %1920 = vmatpush.bf16.msra.mxu0 %v1219
    %1921 = vmatpush.bf16.msra.mxu0 %v1215
    %1922 = vmatmul.bf16.gmra.mxu0 %v398
    %v1923 = vpop.f32.mrf.mxu0
    %v1924 = vadd.f32 %v1911, %v1923
    %v1925 = vpop.f32.mrf.mxu0
    %1926 = vdwg.mxu0
    %1927 = vmatpush.bf16.msra.mxu0 %v1275
    %1928 = vmatpush.bf16.msra.mxu0 %v1271
    %1929 = vmatpush.bf16.msra.mxu0 %v1267
    %1930 = vmatpush.bf16.msra.mxu0 %v1263
    %1931 = vmatpush.bf16.msra.mxu0 %v1259
    %1932 = vmatpush.bf16.msra.mxu0 %v1255
    %1933 = vmatpush.bf16.msra.mxu0 %v1251
    %1934 = vmatpush.bf16.msra.mxu0 %v1247
    %1935 = vmatmul.bf16.gmra.mxu0 %v399
    %v1936 = vpop.f32.mrf.mxu0
    %v1937 = vadd.f32 %v1924, %v1936
    %v1938 = vpop.f32.mrf.mxu0
    %1939 = vdwg.mxu0
    %1940 = vmatpush.bf16.msra.mxu0 %v1307
    %1941 = vmatpush.bf16.msra.mxu0 %v1303
    %1942 = vmatpush.bf16.msra.mxu0 %v1299
    %1943 = vmatpush.bf16.msra.mxu0 %v1295
    %1944 = vmatpush.bf16.msra.mxu0 %v1291
    %1945 = vmatpush.bf16.msra.mxu0 %v1287
    %1946 = vmatpush.bf16.msra.mxu0 %v1283
    %1947 = vmatpush.bf16.msra.mxu0 %v1279
    %1948 = vmatmul.bf16.gmra.mxu0 %v400
    %v1949 = vpop.f32.mrf.mxu0
    %v1950 = vadd.f32 %v1937, %v1949
    %v1951 = vpop.f32.mrf.mxu0
    %1952 = vdwg.mxu0
    %1953 = vmatpush.bf16.msra.mxu0 %v1339
    %1954 = vmatpush.bf16.msra.mxu0 %v1335
    %1955 = vmatpush.bf16.msra.mxu0 %v1331
    %1956 = vmatpush.bf16.msra.mxu0 %v1327
    %1957 = vmatpush.bf16.msra.mxu0 %v1323
    %1958 = vmatpush.bf16.msra.mxu0 %v1319
    %1959 = vmatpush.bf16.msra.mxu0 %v1315
    %1960 = vmatpush.bf16.msra.mxu0 %v1311
    %1961 = vmatmul.bf16.gmra.mxu0 %v401
    %v1962 = vpop.f32.mrf.mxu0
    %v1963 = vadd.f32 %v1950, %v1962
    %v1964 = vpop.f32.mrf.mxu0
    %1965 = vdwg.mxu0
    %1966 = vmatpush.bf16.msra.mxu0 %v1371
    %1967 = vmatpush.bf16.msra.mxu0 %v1367
    %1968 = vmatpush.bf16.msra.mxu0 %v1363
    %1969 = vmatpush.bf16.msra.mxu0 %v1359
    %1970 = vmatpush.bf16.msra.mxu0 %v1355
    %1971 = vmatpush.bf16.msra.mxu0 %v1351
    %1972 = vmatpush.bf16.msra.mxu0 %v1347
    %1973 = vmatpush.bf16.msra.mxu0 %v1343
    %1974 = vmatmul.bf16.gmra.mxu0 %v402
    %v1975 = vpop.f32.mrf.mxu0
    %v1976 = vadd.f32 %v1963, %v1975
    %v1977 = vpop.f32.mrf.mxu0
    %1978 = vdwg.mxu0
    %1979 = vmatpush.bf16.msra.mxu0 %v1403
    %1980 = vmatpush.bf16.msra.mxu0 %v1399
    %1981 = vmatpush.bf16.msra.mxu0 %v1395
    %1982 = vmatpush.bf16.msra.mxu0 %v1391
    %1983 = vmatpush.bf16.msra.mxu0 %v1387
    %1984 = vmatpush.bf16.msra.mxu0 %v1383
    %1985 = vmatpush.bf16.msra.mxu0 %v1379
    %1986 = vmatpush.bf16.msra.mxu0 %v1375
    %1987 = vmatmul.bf16.gmra.mxu0 %v403
    %v1988 = vpop.f32.mrf.mxu0
    %v1989 = vadd.f32 %v1976, %v1988
    %v1990 = vpop.f32.mrf.mxu0
    %1991 = vdwg.mxu0
    %1992 = vmatpush.bf16.msra.mxu0 %v1435
    %1993 = vmatpush.bf16.msra.mxu0 %v1431
    %1994 = vmatpush.bf16.msra.mxu0 %v1427
    %1995 = vmatpush.bf16.msra.mxu0 %v1423
    %1996 = vmatpush.bf16.msra.mxu0 %v1419
    %1997 = vmatpush.bf16.msra.mxu0 %v1415
    %1998 = vmatpush.bf16.msra.mxu0 %v1411
    %1999 = vmatpush.bf16.msra.mxu0 %v1407
    %2000 = vmatmul.bf16.gmra.mxu0 %v404
    %v2001 = vpop.f32.mrf.mxu0
    %v2002 = vadd.f32 %v1989, %v2001
    %v2003 = vpop.f32.mrf.mxu0
    %2004 = vdwg.mxu0
    %2005 = vmatpush.bf16.msra.mxu0 %v1212
    %2006 = vmatpush.bf16.msra.mxu0 %v1208
    %2007 = vmatpush.bf16.msra.mxu0 %v1204
    %2008 = vmatpush.bf16.msra.mxu0 %v1200
    %2009 = vmatpush.bf16.msra.mxu0 %v1196
    %2010 = vmatpush.bf16.msra.mxu0 %v1192
    %2011 = vmatpush.bf16.msra.mxu0 %v1188
    %2012 = vmatpush.bf16.msra.mxu0 %v1184
    %2013 = vmatmul.bf16.gmra.mxu0 %v397
    %v2014 = vpop.f32.mrf.mxu0
    %v2015 = vadd.f32 %v390, %v2014
    %v2016 = vpop.f32.mrf.mxu0
    %2017 = vdwg.mxu0
    %2018 = vmatpush.bf16.msra.mxu0 %v1244
    %2019 = vmatpush.bf16.msra.mxu0 %v1240
    %2020 = vmatpush.bf16.msra.mxu0 %v1236
    %2021 = vmatpush.bf16.msra.mxu0 %v1232
    %2022 = vmatpush.bf16.msra.mxu0 %v1228
    %2023 = vmatpush.bf16.msra.mxu0 %v1224
    %2024 = vmatpush.bf16.msra.mxu0 %v1220
    %2025 = vmatpush.bf16.msra.mxu0 %v1216
    %2026 = vmatmul.bf16.gmra.mxu0 %v398
    %v2027 = vpop.f32.mrf.mxu0
    %v2028 = vadd.f32 %v2015, %v2027
    %v2029 = vpop.f32.mrf.mxu0
    %2030 = vdwg.mxu0
    %2031 = vmatpush.bf16.msra.mxu0 %v1276
    %2032 = vmatpush.bf16.msra.mxu0 %v1272
    %2033 = vmatpush.bf16.msra.mxu0 %v1268
    %2034 = vmatpush.bf16.msra.mxu0 %v1264
    %2035 = vmatpush.bf16.msra.mxu0 %v1260
    %2036 = vmatpush.bf16.msra.mxu0 %v1256
    %2037 = vmatpush.bf16.msra.mxu0 %v1252
    %2038 = vmatpush.bf16.msra.mxu0 %v1248
    %2039 = vmatmul.bf16.gmra.mxu0 %v399
    %v2040 = vpop.f32.mrf.mxu0
    %v2041 = vadd.f32 %v2028, %v2040
    %v2042 = vpop.f32.mrf.mxu0
    %2043 = vdwg.mxu0
    %2044 = vmatpush.bf16.msra.mxu0 %v1308
    %2045 = vmatpush.bf16.msra.mxu0 %v1304
    %2046 = vmatpush.bf16.msra.mxu0 %v1300
    %2047 = vmatpush.bf16.msra.mxu0 %v1296
    %2048 = vmatpush.bf16.msra.mxu0 %v1292
    %2049 = vmatpush.bf16.msra.mxu0 %v1288
    %2050 = vmatpush.bf16.msra.mxu0 %v1284
    %2051 = vmatpush.bf16.msra.mxu0 %v1280
    %2052 = vmatmul.bf16.gmra.mxu0 %v400
    %v2053 = vpop.f32.mrf.mxu0
    %v2054 = vadd.f32 %v2041, %v2053
    %v2055 = vpop.f32.mrf.mxu0
    %2056 = vdwg.mxu0
    %2057 = vmatpush.bf16.msra.mxu0 %v1340
    %2058 = vmatpush.bf16.msra.mxu0 %v1336
    %2059 = vmatpush.bf16.msra.mxu0 %v1332
    %2060 = vmatpush.bf16.msra.mxu0 %v1328
    %2061 = vmatpush.bf16.msra.mxu0 %v1324
    %2062 = vmatpush.bf16.msra.mxu0 %v1320
    %2063 = vmatpush.bf16.msra.mxu0 %v1316
    %2064 = vmatpush.bf16.msra.mxu0 %v1312
    %2065 = vmatmul.bf16.gmra.mxu0 %v401
    %v2066 = vpop.f32.mrf.mxu0
    %v2067 = vadd.f32 %v2054, %v2066
    %v2068 = vpop.f32.mrf.mxu0
    %2069 = vdwg.mxu0
    %2070 = vmatpush.bf16.msra.mxu0 %v1372
    %2071 = vmatpush.bf16.msra.mxu0 %v1368
    %2072 = vmatpush.bf16.msra.mxu0 %v1364
    %2073 = vmatpush.bf16.msra.mxu0 %v1360
    %2074 = vmatpush.bf16.msra.mxu0 %v1356
    %2075 = vmatpush.bf16.msra.mxu0 %v1352
    %2076 = vmatpush.bf16.msra.mxu0 %v1348
    %2077 = vmatpush.bf16.msra.mxu0 %v1344
    %2078 = vmatmul.bf16.gmra.mxu0 %v402
    %v2079 = vpop.f32.mrf.mxu0
    %v2080 = vadd.f32 %v2067, %v2079
    %v2081 = vpop.f32.mrf.mxu0
    %2082 = vdwg.mxu0
    %2083 = vmatpush.bf16.msra.mxu0 %v1404
    %2084 = vmatpush.bf16.msra.mxu0 %v1400
    %2085 = vmatpush.bf16.msra.mxu0 %v1396
    %2086 = vmatpush.bf16.msra.mxu0 %v1392
    %2087 = vmatpush.bf16.msra.mxu0 %v1388
    %2088 = vmatpush.bf16.msra.mxu0 %v1384
    %2089 = vmatpush.bf16.msra.mxu0 %v1380
    %2090 = vmatpush.bf16.msra.mxu0 %v1376
    %2091 = vmatmul.bf16.gmra.mxu0 %v403
    %v2092 = vpop.f32.mrf.mxu0
    %v2093 = vadd.f32 %v2080, %v2092
    %v2094 = vpop.f32.mrf.mxu0
    %2095 = vdwg.mxu0
    %2096 = vmatpush.bf16.msra.mxu0 %v1436
    %2097 = vmatpush.bf16.msra.mxu0 %v1432
    %2098 = vmatpush.bf16.msra.mxu0 %v1428
    %2099 = vmatpush.bf16.msra.mxu0 %v1424
    %2100 = vmatpush.bf16.msra.mxu0 %v1420
    %2101 = vmatpush.bf16.msra.mxu0 %v1416
    %2102 = vmatpush.bf16.msra.mxu0 %v1412
    %2103 = vmatpush.bf16.msra.mxu0 %v1408
    %2104 = vmatmul.bf16.gmra.mxu0 %v404
    %v2105 = vpop.f32.mrf.mxu0
    %v2106 = vadd.f32 %v2093, %v2105
    %v2107 = vpop.f32.mrf.mxu0
    %2108 = vdwg.mxu0
    %v2109 = vmax.f32 %v1794, 0.0
    %v2110 = vmax.f32 %v1898, 0.0
    %v2111 = vmax.f32 %v2002, 0.0
    %v2112 = vmax.f32 %v2106, 0.0
    %v2113 = vpack.c.bf16 %v2109, %v2109
    %v2114 = vpack.c.bf16 %v2110, %v2110
    %v2115 = vpack.c.bf16 %v2111, %v2111
    %v2116 = vpack.c.bf16 %v2112, %v2112
    %v2117 = vld [vmem:[#allocation8] sm:$0xff]
    %v2118 = vld [vmem:[#allocation8 + $0x8] sm:$0xff]
    %v2119 = vld [vmem:[#allocation8 + $0x10] sm:$0xff]
    %v2120 = vld [vmem:[#allocation8 + $0x18] sm:$0xff]
    %v2121 = vld [vmem:[#allocation8 + $0x20] sm:$0xff]
    %v2122 = vld [vmem:[#allocation8 + $0x28] sm:$0xff]
    %v2123 = vld [vmem:[#allocation8 + $0x30] sm:$0xff]
    %v2124 = vld [vmem:[#allocation8 + $0x38] sm:$0xff]
    %v2125 = vld [vmem:[#allocation8 + $0x40] sm:$0xff]
    %v2126 = vld [vmem:[#allocation8 + $0x48] sm:$0xff]
    %v2127 = vld [vmem:[#allocation8 + $0x50] sm:$0xff]
    %v2128 = vld [vmem:[#allocation8 + $0x58] sm:$0xff]
    %v2129 = vld [vmem:[#allocation8 + $0x60] sm:$0xff]
    %v2130 = vld [vmem:[#allocation8 + $0x68] sm:$0xff]
    %v2131 = vld [vmem:[#allocation8 + $0x70] sm:$0xff]
    %v2132 = vld [vmem:[#allocation8 + $0x78] sm:$0xff]
    %v2133 = vld [vmem:[#allocation8 + $0x80] sm:$0xff]
    %v2134 = vld [vmem:[#allocation8 + $0x88] sm:$0xff]
    %v2135 = vld [vmem:[#allocation8 + $0x90] sm:$0xff]
    %v2136 = vld [vmem:[#allocation8 + $0x98] sm:$0xff]
    %v2137 = vld [vmem:[#allocation8 + $0xa0] sm:$0xff]
    %v2138 = vld [vmem:[#allocation8 + $0xa8] sm:$0xff]
    %v2139 = vld [vmem:[#allocation8 + $0xb0] sm:$0xff]
    %v2140 = vld [vmem:[#allocation8 + $0xb8] sm:$0xff]
    %v2141 = vld [vmem:[#allocation8 + $0xc0] sm:$0xff]
    %v2142 = vld [vmem:[#allocation8 + $0xc8] sm:$0xff]
    %v2143 = vld [vmem:[#allocation8 + $0xd0] sm:$0xff]
    %v2144 = vld [vmem:[#allocation8 + $0xd8] sm:$0xff]
    %v2145 = vld [vmem:[#allocation8 + $0xe0] sm:$0xff]
    %v2146 = vld [vmem:[#allocation8 + $0xe8] sm:$0xff]
    %v2147 = vld [vmem:[#allocation8 + $0xf0] sm:$0xff]
    %v2148 = vld [vmem:[#allocation8 + $0xf8] sm:$0xff]
    %v2149 = vld [vmem:[#allocation8 + $0x100] sm:$0xff]
    %v2150 = vld [vmem:[#allocation8 + $0x108] sm:$0xff]
    %v2151 = vld [vmem:[#allocation8 + $0x110] sm:$0xff]
    %v2152 = vld [vmem:[#allocation8 + $0x118] sm:$0xff]
    %v2153 = vld [vmem:[#allocation8 + $0x120] sm:$0xff]
    %v2154 = vld [vmem:[#allocation8 + $0x128] sm:$0xff]
    %v2155 = vld [vmem:[#allocation8 + $0x130] sm:$0xff]
    %v2156 = vld [vmem:[#allocation8 + $0x138] sm:$0xff]
    %v2157 = vld [vmem:[#allocation8 + $0x140] sm:$0xff]
    %v2158 = vld [vmem:[#allocation8 + $0x148] sm:$0xff]
    %v2159 = vld [vmem:[#allocation8 + $0x150] sm:$0xff]
    %v2160 = vld [vmem:[#allocation8 + $0x158] sm:$0xff]
    %v2161 = vld [vmem:[#allocation8 + $0x160] sm:$0xff]
    %v2162 = vld [vmem:[#allocation8 + $0x168] sm:$0xff]
    %v2163 = vld [vmem:[#allocation8 + $0x170] sm:$0xff]
    %v2164 = vld [vmem:[#allocation8 + $0x178] sm:$0xff]
    %v2165 = vld [vmem:[#allocation8 + $0x180] sm:$0xff]
    %v2166 = vld [vmem:[#allocation8 + $0x188] sm:$0xff]
    %v2167 = vld [vmem:[#allocation8 + $0x190] sm:$0xff]
    %v2168 = vld [vmem:[#allocation8 + $0x198] sm:$0xff]
    %v2169 = vld [vmem:[#allocation8 + $0x1a0] sm:$0xff]
    %v2170 = vld [vmem:[#allocation8 + $0x1a8] sm:$0xff]
    %v2171 = vld [vmem:[#allocation8 + $0x1b0] sm:$0xff]
    %v2172 = vld [vmem:[#allocation8 + $0x1b8] sm:$0xff]
    %v2173 = vld [vmem:[#allocation8 + $0x1c0] sm:$0xff]
    %v2174 = vld [vmem:[#allocation8 + $0x1c8] sm:$0xff]
    %v2175 = vld [vmem:[#allocation8 + $0x1d0] sm:$0xff]
    %v2176 = vld [vmem:[#allocation8 + $0x1d8] sm:$0xff]
    %v2177 = vld [vmem:[#allocation8 + $0x1e0] sm:$0xff]
    %v2178 = vld [vmem:[#allocation8 + $0x1e8] sm:$0xff]
    %v2179 = vld [vmem:[#allocation8 + $0x1f0] sm:$0xff]
    %v2180 = vld [vmem:[#allocation8 + $0x1f8] sm:$0xff]
    %v2181 = vld [vmem:[#allocation8 + $0x200] sm:$0xff]
    %v2182 = vld [vmem:[#allocation8 + $0x208] sm:$0xff]
    %v2183 = vld [vmem:[#allocation8 + $0x210] sm:$0xff]
    %v2184 = vld [vmem:[#allocation8 + $0x218] sm:$0xff]
    %v2185 = vld [vmem:[#allocation8 + $0x220] sm:$0xff]
    %v2186 = vld [vmem:[#allocation8 + $0x228] sm:$0xff]
    %v2187 = vld [vmem:[#allocation8 + $0x230] sm:$0xff]
    %v2188 = vld [vmem:[#allocation8 + $0x238] sm:$0xff]
    %v2189 = vld [vmem:[#allocation8 + $0x240] sm:$0xff]
    %v2190 = vld [vmem:[#allocation8 + $0x248] sm:$0xff]
    %v2191 = vld [vmem:[#allocation8 + $0x250] sm:$0xff]
    %v2192 = vld [vmem:[#allocation8 + $0x258] sm:$0xff]
    %v2193 = vld [vmem:[#allocation8 + $0x260] sm:$0xff]
    %v2194 = vld [vmem:[#allocation8 + $0x268] sm:$0xff]
    %v2195 = vld [vmem:[#allocation8 + $0x270] sm:$0xff]
    %v2196 = vld [vmem:[#allocation8 + $0x278] sm:$0xff]
    %v2197 = vld [vmem:[#allocation8 + $0x280] sm:$0xff]
    %v2198 = vld [vmem:[#allocation8 + $0x288] sm:$0xff]
    %v2199 = vld [vmem:[#allocation8 + $0x290] sm:$0xff]
    %v2200 = vld [vmem:[#allocation8 + $0x298] sm:$0xff]
    %v2201 = vld [vmem:[#allocation8 + $0x2a0] sm:$0xff]
    %v2202 = vld [vmem:[#allocation8 + $0x2a8] sm:$0xff]
    %v2203 = vld [vmem:[#allocation8 + $0x2b0] sm:$0xff]
    %v2204 = vld [vmem:[#allocation8 + $0x2b8] sm:$0xff]
    %v2205 = vld [vmem:[#allocation8 + $0x2c0] sm:$0xff]
    %v2206 = vld [vmem:[#allocation8 + $0x2c8] sm:$0xff]
    %v2207 = vld [vmem:[#allocation8 + $0x2d0] sm:$0xff]
    %v2208 = vld [vmem:[#allocation8 + $0x2d8] sm:$0xff]
    %v2209 = vld [vmem:[#allocation8 + $0x2e0] sm:$0xff]
    %v2210 = vld [vmem:[#allocation8 + $0x2e8] sm:$0xff]
    %v2211 = vld [vmem:[#allocation8 + $0x2f0] sm:$0xff]
    %v2212 = vld [vmem:[#allocation8 + $0x2f8] sm:$0xff]
    %v2213 = vld [vmem:[#allocation8 + $0x300] sm:$0xff]
    %v2214 = vld [vmem:[#allocation8 + $0x308] sm:$0xff]
    %v2215 = vld [vmem:[#allocation8 + $0x310] sm:$0xff]
    %v2216 = vld [vmem:[#allocation8 + $0x318] sm:$0xff]
    %v2217 = vld [vmem:[#allocation8 + $0x320] sm:$0xff]
    %v2218 = vld [vmem:[#allocation8 + $0x328] sm:$0xff]
    %v2219 = vld [vmem:[#allocation8 + $0x330] sm:$0xff]
    %v2220 = vld [vmem:[#allocation8 + $0x338] sm:$0xff]
    %v2221 = vld [vmem:[#allocation8 + $0x340] sm:$0xff]
    %v2222 = vld [vmem:[#allocation8 + $0x348] sm:$0xff]
    %v2223 = vld [vmem:[#allocation8 + $0x350] sm:$0xff]
    %v2224 = vld [vmem:[#allocation8 + $0x358] sm:$0xff]
    %v2225 = vld [vmem:[#allocation8 + $0x360] sm:$0xff]
    %v2226 = vld [vmem:[#allocation8 + $0x368] sm:$0xff]
    %v2227 = vld [vmem:[#allocation8 + $0x370] sm:$0xff]
    %v2228 = vld [vmem:[#allocation8 + $0x378] sm:$0xff]
    %v2229 = vld [vmem:[#allocation8 + $0x380] sm:$0xff]
    %v2230 = vld [vmem:[#allocation8 + $0x388] sm:$0xff]
    %v2231 = vld [vmem:[#allocation8 + $0x390] sm:$0xff]
    %v2232 = vld [vmem:[#allocation8 + $0x398] sm:$0xff]
    %v2233 = vld [vmem:[#allocation8 + $0x3a0] sm:$0xff]
    %v2234 = vld [vmem:[#allocation8 + $0x3a8] sm:$0xff]
    %v2235 = vld [vmem:[#allocation8 + $0x3b0] sm:$0xff]
    %v2236 = vld [vmem:[#allocation8 + $0x3b8] sm:$0xff]
    %v2237 = vld [vmem:[#allocation8 + $0x3c0] sm:$0xff]
    %v2238 = vld [vmem:[#allocation8 + $0x3c8] sm:$0xff]
    %v2239 = vld [vmem:[#allocation8 + $0x3d0] sm:$0xff]
    %v2240 = vld [vmem:[#allocation8 + $0x3d8] sm:$0xff]
    %v2241 = vld [vmem:[#allocation8 + $0x3e0] sm:$0xff]
    %v2242 = vld [vmem:[#allocation8 + $0x3e8] sm:$0xff]
    %v2243 = vld [vmem:[#allocation8 + $0x3f0] sm:$0xff]
    %v2244 = vld [vmem:[#allocation8 + $0x3f8] sm:$0xff]
    %v2245 = vld [vmem:[#allocation8 + $0x400] sm:$0xff]
    %v2246 = vld [vmem:[#allocation8 + $0x408] sm:$0xff]
    %v2247 = vld [vmem:[#allocation8 + $0x410] sm:$0xff]
    %v2248 = vld [vmem:[#allocation8 + $0x418] sm:$0xff]
    %v2249 = vld [vmem:[#allocation8 + $0x420] sm:$0xff]
    %v2250 = vld [vmem:[#allocation8 + $0x428] sm:$0xff]
    %v2251 = vld [vmem:[#allocation8 + $0x430] sm:$0xff]
    %v2252 = vld [vmem:[#allocation8 + $0x438] sm:$0xff]
    %v2253 = vld [vmem:[#allocation8 + $0x440] sm:$0xff]
    %v2254 = vld [vmem:[#allocation8 + $0x448] sm:$0xff]
    %v2255 = vld [vmem:[#allocation8 + $0x450] sm:$0xff]
    %v2256 = vld [vmem:[#allocation8 + $0x458] sm:$0xff]
    %v2257 = vld [vmem:[#allocation8 + $0x460] sm:$0xff]
    %v2258 = vld [vmem:[#allocation8 + $0x468] sm:$0xff]
    %v2259 = vld [vmem:[#allocation8 + $0x470] sm:$0xff]
    %v2260 = vld [vmem:[#allocation8 + $0x478] sm:$0xff]
    %v2261 = vld [vmem:[#allocation8 + $0x480] sm:$0xff]
    %v2262 = vld [vmem:[#allocation8 + $0x488] sm:$0xff]
    %v2263 = vld [vmem:[#allocation8 + $0x490] sm:$0xff]
    %v2264 = vld [vmem:[#allocation8 + $0x498] sm:$0xff]
    %v2265 = vld [vmem:[#allocation8 + $0x4a0] sm:$0xff]
    %v2266 = vld [vmem:[#allocation8 + $0x4a8] sm:$0xff]
    %v2267 = vld [vmem:[#allocation8 + $0x4b0] sm:$0xff]
    %v2268 = vld [vmem:[#allocation8 + $0x4b8] sm:$0xff]
    %v2269 = vld [vmem:[#allocation8 + $0x4c0] sm:$0xff]
    %v2270 = vld [vmem:[#allocation8 + $0x4c8] sm:$0xff]
    %v2271 = vld [vmem:[#allocation8 + $0x4d0] sm:$0xff]
    %v2272 = vld [vmem:[#allocation8 + $0x4d8] sm:$0xff]
    %v2273 = vld [vmem:[#allocation8 + $0x4e0] sm:$0xff]
    %v2274 = vld [vmem:[#allocation8 + $0x4e8] sm:$0xff]
    %v2275 = vld [vmem:[#allocation8 + $0x4f0] sm:$0xff]
    %v2276 = vld [vmem:[#allocation8 + $0x4f8] sm:$0xff]
    %v2277 = vld [vmem:[#allocation8 + $0x500] sm:$0xff]
    %v2278 = vld [vmem:[#allocation8 + $0x508] sm:$0xff]
    %v2279 = vld [vmem:[#allocation8 + $0x510] sm:$0xff]
    %v2280 = vld [vmem:[#allocation8 + $0x518] sm:$0xff]
    %v2281 = vld [vmem:[#allocation8 + $0x520] sm:$0xff]
    %v2282 = vld [vmem:[#allocation8 + $0x528] sm:$0xff]
    %v2283 = vld [vmem:[#allocation8 + $0x530] sm:$0xff]
    %v2284 = vld [vmem:[#allocation8 + $0x538] sm:$0xff]
    %v2285 = vld [vmem:[#allocation8 + $0x540] sm:$0xff]
    %v2286 = vld [vmem:[#allocation8 + $0x548] sm:$0xff]
    %v2287 = vld [vmem:[#allocation8 + $0x550] sm:$0xff]
    %v2288 = vld [vmem:[#allocation8 + $0x558] sm:$0xff]
    %v2289 = vld [vmem:[#allocation8 + $0x560] sm:$0xff]
    %v2290 = vld [vmem:[#allocation8 + $0x568] sm:$0xff]
    %v2291 = vld [vmem:[#allocation8 + $0x570] sm:$0xff]
    %v2292 = vld [vmem:[#allocation8 + $0x578] sm:$0xff]
    %v2293 = vld [vmem:[#allocation8 + $0x580] sm:$0xff]
    %v2294 = vld [vmem:[#allocation8 + $0x588] sm:$0xff]
    %v2295 = vld [vmem:[#allocation8 + $0x590] sm:$0xff]
    %v2296 = vld [vmem:[#allocation8 + $0x598] sm:$0xff]
    %v2297 = vld [vmem:[#allocation8 + $0x5a0] sm:$0xff]
    %v2298 = vld [vmem:[#allocation8 + $0x5a8] sm:$0xff]
    %v2299 = vld [vmem:[#allocation8 + $0x5b0] sm:$0xff]
    %v2300 = vld [vmem:[#allocation8 + $0x5b8] sm:$0xff]
    %v2301 = vld [vmem:[#allocation8 + $0x5c0] sm:$0xff]
    %v2302 = vld [vmem:[#allocation8 + $0x5c8] sm:$0xff]
    %v2303 = vld [vmem:[#allocation8 + $0x5d0] sm:$0xff]
    %v2304 = vld [vmem:[#allocation8 + $0x5d8] sm:$0xff]
    %v2305 = vld [vmem:[#allocation8 + $0x5e0] sm:$0xff]
    %v2306 = vld [vmem:[#allocation8 + $0x5e8] sm:$0xff]
    %v2307 = vld [vmem:[#allocation8 + $0x5f0] sm:$0xff]
    %v2308 = vld [vmem:[#allocation8 + $0x5f8] sm:$0xff]
    %v2309 = vld [vmem:[#allocation8 + $0x600] sm:$0xff]
    %v2310 = vld [vmem:[#allocation8 + $0x608] sm:$0xff]
    %v2311 = vld [vmem:[#allocation8 + $0x610] sm:$0xff]
    %v2312 = vld [vmem:[#allocation8 + $0x618] sm:$0xff]
    %v2313 = vld [vmem:[#allocation8 + $0x620] sm:$0xff]
    %v2314 = vld [vmem:[#allocation8 + $0x628] sm:$0xff]
    %v2315 = vld [vmem:[#allocation8 + $0x630] sm:$0xff]
    %v2316 = vld [vmem:[#allocation8 + $0x638] sm:$0xff]
    %v2317 = vld [vmem:[#allocation8 + $0x640] sm:$0xff]
    %v2318 = vld [vmem:[#allocation8 + $0x648] sm:$0xff]
    %v2319 = vld [vmem:[#allocation8 + $0x650] sm:$0xff]
    %v2320 = vld [vmem:[#allocation8 + $0x658] sm:$0xff]
    %v2321 = vld [vmem:[#allocation8 + $0x660] sm:$0xff]
    %v2322 = vld [vmem:[#allocation8 + $0x668] sm:$0xff]
    %v2323 = vld [vmem:[#allocation8 + $0x670] sm:$0xff]
    %v2324 = vld [vmem:[#allocation8 + $0x678] sm:$0xff]
    %v2325 = vld [vmem:[#allocation8 + $0x680] sm:$0xff]
    %v2326 = vld [vmem:[#allocation8 + $0x688] sm:$0xff]
    %v2327 = vld [vmem:[#allocation8 + $0x690] sm:$0xff]
    %v2328 = vld [vmem:[#allocation8 + $0x698] sm:$0xff]
    %v2329 = vld [vmem:[#allocation8 + $0x6a0] sm:$0xff]
    %v2330 = vld [vmem:[#allocation8 + $0x6a8] sm:$0xff]
    %v2331 = vld [vmem:[#allocation8 + $0x6b0] sm:$0xff]
    %v2332 = vld [vmem:[#allocation8 + $0x6b8] sm:$0xff]
    %v2333 = vld [vmem:[#allocation8 + $0x6c0] sm:$0xff]
    %v2334 = vld [vmem:[#allocation8 + $0x6c8] sm:$0xff]
    %v2335 = vld [vmem:[#allocation8 + $0x6d0] sm:$0xff]
    %v2336 = vld [vmem:[#allocation8 + $0x6d8] sm:$0xff]
    %v2337 = vld [vmem:[#allocation8 + $0x6e0] sm:$0xff]
    %v2338 = vld [vmem:[#allocation8 + $0x6e8] sm:$0xff]
    %v2339 = vld [vmem:[#allocation8 + $0x6f0] sm:$0xff]
    %v2340 = vld [vmem:[#allocation8 + $0x6f8] sm:$0xff]
    %v2341 = vld [vmem:[#allocation8 + $0x700] sm:$0xff]
    %v2342 = vld [vmem:[#allocation8 + $0x708] sm:$0xff]
    %v2343 = vld [vmem:[#allocation8 + $0x710] sm:$0xff]
    %v2344 = vld [vmem:[#allocation8 + $0x718] sm:$0xff]
    %v2345 = vld [vmem:[#allocation8 + $0x720] sm:$0xff]
    %v2346 = vld [vmem:[#allocation8 + $0x728] sm:$0xff]
    %v2347 = vld [vmem:[#allocation8 + $0x730] sm:$0xff]
    %v2348 = vld [vmem:[#allocation8 + $0x738] sm:$0xff]
    %v2349 = vld [vmem:[#allocation8 + $0x740] sm:$0xff]
    %v2350 = vld [vmem:[#allocation8 + $0x748] sm:$0xff]
    %v2351 = vld [vmem:[#allocation8 + $0x750] sm:$0xff]
    %v2352 = vld [vmem:[#allocation8 + $0x758] sm:$0xff]
    %v2353 = vld [vmem:[#allocation8 + $0x760] sm:$0xff]
    %v2354 = vld [vmem:[#allocation8 + $0x768] sm:$0xff]
    %v2355 = vld [vmem:[#allocation8 + $0x770] sm:$0xff]
    %v2356 = vld [vmem:[#allocation8 + $0x778] sm:$0xff]
    %v2357 = vld [vmem:[#allocation8 + $0x780] sm:$0xff]
    %v2358 = vld [vmem:[#allocation8 + $0x788] sm:$0xff]
    %v2359 = vld [vmem:[#allocation8 + $0x790] sm:$0xff]
    %v2360 = vld [vmem:[#allocation8 + $0x798] sm:$0xff]
    %v2361 = vld [vmem:[#allocation8 + $0x7a0] sm:$0xff]
    %v2362 = vld [vmem:[#allocation8 + $0x7a8] sm:$0xff]
    %v2363 = vld [vmem:[#allocation8 + $0x7b0] sm:$0xff]
    %v2364 = vld [vmem:[#allocation8 + $0x7b8] sm:$0xff]
    %v2365 = vld [vmem:[#allocation8 + $0x7c0] sm:$0xff]
    %v2366 = vld [vmem:[#allocation8 + $0x7c8] sm:$0xff]
    %v2367 = vld [vmem:[#allocation8 + $0x7d0] sm:$0xff]
    %v2368 = vld [vmem:[#allocation8 + $0x7d8] sm:$0xff]
    %v2369 = vld [vmem:[#allocation8 + $0x7e0] sm:$0xff]
    %v2370 = vld [vmem:[#allocation8 + $0x7e8] sm:$0xff]
    %v2371 = vld [vmem:[#allocation8 + $0x7f0] sm:$0xff]
    %v2372 = vld [vmem:[#allocation8 + $0x7f8] sm:$0xff]
    %v2373 = vld [vmem:[#allocation10] sm:$0xff]
    %v2375 = vperm.slane %v2373, 0
    %v2376 = vperm.slane %v2373, 1
    %v2377 = vperm.slane %v2373, 2
    %v2378 = vperm.slane %v2373, 3
    %v2379 = vperm.slane %v2373, 4
    %v2380 = vperm.slane %v2373, 5
    %v2381 = vperm.slane %v2373, 6
    %v2382 = vperm.slane %v2373, 7
    %v2647 = vunpack.c.l.b16 %v2117
    %v2648 = vunpack.c.h.b16 %v2117
    %v2649 = vunpack.c.l.b16 %v2118
    %v2650 = vunpack.c.h.b16 %v2118
    %v2651 = vunpack.c.l.b16 %v2119
    %v2652 = vunpack.c.h.b16 %v2119
    %v2653 = vunpack.c.l.b16 %v2120
    %v2654 = vunpack.c.h.b16 %v2120
    %v2655 = vunpack.c.l.b16 %v2121
    %v2656 = vunpack.c.h.b16 %v2121
    %v2657 = vunpack.c.l.b16 %v2122
    %v2658 = vunpack.c.h.b16 %v2122
    %v2659 = vunpack.c.l.b16 %v2123
    %v2660 = vunpack.c.h.b16 %v2123
    %v2661 = vunpack.c.l.b16 %v2124
    %v2662 = vunpack.c.h.b16 %v2124
    %v2663 = vunpack.c.l.b16 %v2125
    %v2664 = vunpack.c.h.b16 %v2125
    %v2665 = vunpack.c.l.b16 %v2126
    %v2666 = vunpack.c.h.b16 %v2126
    %v2667 = vunpack.c.l.b16 %v2127
    %v2668 = vunpack.c.h.b16 %v2127
    %v2669 = vunpack.c.l.b16 %v2128
    %v2670 = vunpack.c.h.b16 %v2128
    %v2671 = vunpack.c.l.b16 %v2129
    %v2672 = vunpack.c.h.b16 %v2129
    %v2673 = vunpack.c.l.b16 %v2130
    %v2674 = vunpack.c.h.b16 %v2130
    %v2675 = vunpack.c.l.b16 %v2131
    %v2676 = vunpack.c.h.b16 %v2131
    %v2677 = vunpack.c.l.b16 %v2132
    %v2678 = vunpack.c.h.b16 %v2132
    %v2679 = vunpack.c.l.b16 %v2133
    %v2680 = vunpack.c.h.b16 %v2133
    %v2681 = vunpack.c.l.b16 %v2134
    %v2682 = vunpack.c.h.b16 %v2134
    %v2683 = vunpack.c.l.b16 %v2135
    %v2684 = vunpack.c.h.b16 %v2135
    %v2685 = vunpack.c.l.b16 %v2136
    %v2686 = vunpack.c.h.b16 %v2136
    %v2687 = vunpack.c.l.b16 %v2137
    %v2688 = vunpack.c.h.b16 %v2137
    %v2689 = vunpack.c.l.b16 %v2138
    %v2690 = vunpack.c.h.b16 %v2138
    %v2691 = vunpack.c.l.b16 %v2139
    %v2692 = vunpack.c.h.b16 %v2139
    %v2693 = vunpack.c.l.b16 %v2140
    %v2694 = vunpack.c.h.b16 %v2140
    %v2695 = vunpack.c.l.b16 %v2141
    %v2696 = vunpack.c.h.b16 %v2141
    %v2697 = vunpack.c.l.b16 %v2142
    %v2698 = vunpack.c.h.b16 %v2142
    %v2699 = vunpack.c.l.b16 %v2143
    %v2700 = vunpack.c.h.b16 %v2143
    %v2701 = vunpack.c.l.b16 %v2144
    %v2702 = vunpack.c.h.b16 %v2144
    %v2703 = vunpack.c.l.b16 %v2145
    %v2704 = vunpack.c.h.b16 %v2145
    %v2705 = vunpack.c.l.b16 %v2146
    %v2706 = vunpack.c.h.b16 %v2146
    %v2707 = vunpack.c.l.b16 %v2147
    %v2708 = vunpack.c.h.b16 %v2147
    %v2709 = vunpack.c.l.b16 %v2148
    %v2710 = vunpack.c.h.b16 %v2148
    %v2711 = vunpack.c.l.b16 %v2149
    %v2712 = vunpack.c.h.b16 %v2149
    %v2713 = vunpack.c.l.b16 %v2150
    %v2714 = vunpack.c.h.b16 %v2150
    %v2715 = vunpack.c.l.b16 %v2151
    %v2716 = vunpack.c.h.b16 %v2151
    %v2717 = vunpack.c.l.b16 %v2152
    %v2718 = vunpack.c.h.b16 %v2152
    %v2719 = vunpack.c.l.b16 %v2153
    %v2720 = vunpack.c.h.b16 %v2153
    %v2721 = vunpack.c.l.b16 %v2154
    %v2722 = vunpack.c.h.b16 %v2154
    %v2723 = vunpack.c.l.b16 %v2155
    %v2724 = vunpack.c.h.b16 %v2155
    %v2725 = vunpack.c.l.b16 %v2156
    %v2726 = vunpack.c.h.b16 %v2156
    %v2727 = vunpack.c.l.b16 %v2157
    %v2728 = vunpack.c.h.b16 %v2157
    %v2729 = vunpack.c.l.b16 %v2158
    %v2730 = vunpack.c.h.b16 %v2158
    %v2731 = vunpack.c.l.b16 %v2159
    %v2732 = vunpack.c.h.b16 %v2159
    %v2733 = vunpack.c.l.b16 %v2160
    %v2734 = vunpack.c.h.b16 %v2160
    %v2735 = vunpack.c.l.b16 %v2161
    %v2736 = vunpack.c.h.b16 %v2161
    %v2737 = vunpack.c.l.b16 %v2162
    %v2738 = vunpack.c.h.b16 %v2162
    %v2739 = vunpack.c.l.b16 %v2163
    %v2740 = vunpack.c.h.b16 %v2163
    %v2741 = vunpack.c.l.b16 %v2164
    %v2742 = vunpack.c.h.b16 %v2164
    %v2743 = vunpack.c.l.b16 %v2165
    %v2744 = vunpack.c.h.b16 %v2165
    %v2745 = vunpack.c.l.b16 %v2166
    %v2746 = vunpack.c.h.b16 %v2166
    %v2747 = vunpack.c.l.b16 %v2167
    %v2748 = vunpack.c.h.b16 %v2167
    %v2749 = vunpack.c.l.b16 %v2168
    %v2750 = vunpack.c.h.b16 %v2168
    %v2751 = vunpack.c.l.b16 %v2169
    %v2752 = vunpack.c.h.b16 %v2169
    %v2753 = vunpack.c.l.b16 %v2170
    %v2754 = vunpack.c.h.b16 %v2170
    %v2755 = vunpack.c.l.b16 %v2171
    %v2756 = vunpack.c.h.b16 %v2171
    %v2757 = vunpack.c.l.b16 %v2172
    %v2758 = vunpack.c.h.b16 %v2172
    %v2759 = vunpack.c.l.b16 %v2173
    %v2760 = vunpack.c.h.b16 %v2173
    %v2761 = vunpack.c.l.b16 %v2174
    %v2762 = vunpack.c.h.b16 %v2174
    %v2763 = vunpack.c.l.b16 %v2175
    %v2764 = vunpack.c.h.b16 %v2175
    %v2765 = vunpack.c.l.b16 %v2176
    %v2766 = vunpack.c.h.b16 %v2176
    %v2767 = vunpack.c.l.b16 %v2177
    %v2768 = vunpack.c.h.b16 %v2177
    %v2769 = vunpack.c.l.b16 %v2178
    %v2770 = vunpack.c.h.b16 %v2178
    %v2771 = vunpack.c.l.b16 %v2179
    %v2772 = vunpack.c.h.b16 %v2179
    %v2773 = vunpack.c.l.b16 %v2180
    %v2774 = vunpack.c.h.b16 %v2180
    %v2775 = vunpack.c.l.b16 %v2181
    %v2776 = vunpack.c.h.b16 %v2181
    %v2777 = vunpack.c.l.b16 %v2182
    %v2778 = vunpack.c.h.b16 %v2182
    %v2779 = vunpack.c.l.b16 %v2183
    %v2780 = vunpack.c.h.b16 %v2183
    %v2781 = vunpack.c.l.b16 %v2184
    %v2782 = vunpack.c.h.b16 %v2184
    %v2783 = vunpack.c.l.b16 %v2185
    %v2784 = vunpack.c.h.b16 %v2185
    %v2785 = vunpack.c.l.b16 %v2186
    %v2786 = vunpack.c.h.b16 %v2186
    %v2787 = vunpack.c.l.b16 %v2187
    %v2788 = vunpack.c.h.b16 %v2187
    %v2789 = vunpack.c.l.b16 %v2188
    %v2790 = vunpack.c.h.b16 %v2188
    %v2791 = vunpack.c.l.b16 %v2189
    %v2792 = vunpack.c.h.b16 %v2189
    %v2793 = vunpack.c.l.b16 %v2190
    %v2794 = vunpack.c.h.b16 %v2190
    %v2795 = vunpack.c.l.b16 %v2191
    %v2796 = vunpack.c.h.b16 %v2191
    %v2797 = vunpack.c.l.b16 %v2192
    %v2798 = vunpack.c.h.b16 %v2192
    %v2799 = vunpack.c.l.b16 %v2193
    %v2800 = vunpack.c.h.b16 %v2193
    %v2801 = vunpack.c.l.b16 %v2194
    %v2802 = vunpack.c.h.b16 %v2194
    %v2803 = vunpack.c.l.b16 %v2195
    %v2804 = vunpack.c.h.b16 %v2195
    %v2805 = vunpack.c.l.b16 %v2196
    %v2806 = vunpack.c.h.b16 %v2196
    %v2807 = vunpack.c.l.b16 %v2197
    %v2808 = vunpack.c.h.b16 %v2197
    %v2809 = vunpack.c.l.b16 %v2198
    %v2810 = vunpack.c.h.b16 %v2198
    %v2811 = vunpack.c.l.b16 %v2199
    %v2812 = vunpack.c.h.b16 %v2199
    %v2813 = vunpack.c.l.b16 %v2200
    %v2814 = vunpack.c.h.b16 %v2200
    %v2815 = vunpack.c.l.b16 %v2201
    %v2816 = vunpack.c.h.b16 %v2201
    %v2817 = vunpack.c.l.b16 %v2202
    %v2818 = vunpack.c.h.b16 %v2202
    %v2819 = vunpack.c.l.b16 %v2203
    %v2820 = vunpack.c.h.b16 %v2203
    %v2821 = vunpack.c.l.b16 %v2204
    %v2822 = vunpack.c.h.b16 %v2204
    %v2823 = vunpack.c.l.b16 %v2205
    %v2824 = vunpack.c.h.b16 %v2205
    %v2825 = vunpack.c.l.b16 %v2206
    %v2826 = vunpack.c.h.b16 %v2206
    %v2827 = vunpack.c.l.b16 %v2207
    %v2828 = vunpack.c.h.b16 %v2207
    %v2829 = vunpack.c.l.b16 %v2208
    %v2830 = vunpack.c.h.b16 %v2208
    %v2831 = vunpack.c.l.b16 %v2209
    %v2832 = vunpack.c.h.b16 %v2209
    %v2833 = vunpack.c.l.b16 %v2210
    %v2834 = vunpack.c.h.b16 %v2210
    %v2835 = vunpack.c.l.b16 %v2211
    %v2836 = vunpack.c.h.b16 %v2211
    %v2837 = vunpack.c.l.b16 %v2212
    %v2838 = vunpack.c.h.b16 %v2212
    %v2839 = vunpack.c.l.b16 %v2213
    %v2840 = vunpack.c.h.b16 %v2213
    %v2841 = vunpack.c.l.b16 %v2214
    %v2842 = vunpack.c.h.b16 %v2214
    %v2843 = vunpack.c.l.b16 %v2215
    %v2844 = vunpack.c.h.b16 %v2215
    %v2845 = vunpack.c.l.b16 %v2216
    %v2846 = vunpack.c.h.b16 %v2216
    %v2847 = vunpack.c.l.b16 %v2217
    %v2848 = vunpack.c.h.b16 %v2217
    %v2849 = vunpack.c.l.b16 %v2218
    %v2850 = vunpack.c.h.b16 %v2218
    %v2851 = vunpack.c.l.b16 %v2219
    %v2852 = vunpack.c.h.b16 %v2219
    %v2853 = vunpack.c.l.b16 %v2220
    %v2854 = vunpack.c.h.b16 %v2220
    %v2855 = vunpack.c.l.b16 %v2221
    %v2856 = vunpack.c.h.b16 %v2221
    %v2857 = vunpack.c.l.b16 %v2222
    %v2858 = vunpack.c.h.b16 %v2222
    %v2859 = vunpack.c.l.b16 %v2223
    %v2860 = vunpack.c.h.b16 %v2223
    %v2861 = vunpack.c.l.b16 %v2224
    %v2862 = vunpack.c.h.b16 %v2224
    %v2863 = vunpack.c.l.b16 %v2225
    %v2864 = vunpack.c.h.b16 %v2225
    %v2865 = vunpack.c.l.b16 %v2226
    %v2866 = vunpack.c.h.b16 %v2226
    %v2867 = vunpack.c.l.b16 %v2227
    %v2868 = vunpack.c.h.b16 %v2227
    %v2869 = vunpack.c.l.b16 %v2228
    %v2870 = vunpack.c.h.b16 %v2228
    %v2871 = vunpack.c.l.b16 %v2229
    %v2872 = vunpack.c.h.b16 %v2229
    %v2873 = vunpack.c.l.b16 %v2230
    %v2874 = vunpack.c.h.b16 %v2230
    %v2875 = vunpack.c.l.b16 %v2231
    %v2876 = vunpack.c.h.b16 %v2231
    %v2877 = vunpack.c.l.b16 %v2232
    %v2878 = vunpack.c.h.b16 %v2232
    %v2879 = vunpack.c.l.b16 %v2233
    %v2880 = vunpack.c.h.b16 %v2233
    %v2881 = vunpack.c.l.b16 %v2234
    %v2882 = vunpack.c.h.b16 %v2234
    %v2883 = vunpack.c.l.b16 %v2235
    %v2884 = vunpack.c.h.b16 %v2235
    %v2885 = vunpack.c.l.b16 %v2236
    %v2886 = vunpack.c.h.b16 %v2236
    %v2887 = vunpack.c.l.b16 %v2237
    %v2888 = vunpack.c.h.b16 %v2237
    %v2889 = vunpack.c.l.b16 %v2238
    %v2890 = vunpack.c.h.b16 %v2238
    %v2891 = vunpack.c.l.b16 %v2239
    %v2892 = vunpack.c.h.b16 %v2239
    %v2893 = vunpack.c.l.b16 %v2240
    %v2894 = vunpack.c.h.b16 %v2240
    %v2895 = vunpack.c.l.b16 %v2241
    %v2896 = vunpack.c.h.b16 %v2241
    %v2897 = vunpack.c.l.b16 %v2242
    %v2898 = vunpack.c.h.b16 %v2242
    %v2899 = vunpack.c.l.b16 %v2243
    %v2900 = vunpack.c.h.b16 %v2243
    %v2901 = vunpack.c.l.b16 %v2244
    %v2902 = vunpack.c.h.b16 %v2244
    %v2903 = vunpack.c.l.b16 %v2245
    %v2904 = vunpack.c.h.b16 %v2245
    %v2905 = vunpack.c.l.b16 %v2246
    %v2906 = vunpack.c.h.b16 %v2246
    %v2907 = vunpack.c.l.b16 %v2247
    %v2908 = vunpack.c.h.b16 %v2247
    %v2909 = vunpack.c.l.b16 %v2248
    %v2910 = vunpack.c.h.b16 %v2248
    %v2911 = vunpack.c.l.b16 %v2249
    %v2912 = vunpack.c.h.b16 %v2249
    %v2913 = vunpack.c.l.b16 %v2250
    %v2914 = vunpack.c.h.b16 %v2250
    %v2915 = vunpack.c.l.b16 %v2251
    %v2916 = vunpack.c.h.b16 %v2251
    %v2917 = vunpack.c.l.b16 %v2252
    %v2918 = vunpack.c.h.b16 %v2252
    %v2919 = vunpack.c.l.b16 %v2253
    %v2920 = vunpack.c.h.b16 %v2253
    %v2921 = vunpack.c.l.b16 %v2254
    %v2922 = vunpack.c.h.b16 %v2254
    %v2923 = vunpack.c.l.b16 %v2255
    %v2924 = vunpack.c.h.b16 %v2255
    %v2925 = vunpack.c.l.b16 %v2256
    %v2926 = vunpack.c.h.b16 %v2256
    %v2927 = vunpack.c.l.b16 %v2257
    %v2928 = vunpack.c.h.b16 %v2257
    %v2929 = vunpack.c.l.b16 %v2258
    %v2930 = vunpack.c.h.b16 %v2258
    %v2931 = vunpack.c.l.b16 %v2259
    %v2932 = vunpack.c.h.b16 %v2259
    %v2933 = vunpack.c.l.b16 %v2260
    %v2934 = vunpack.c.h.b16 %v2260
    %v2935 = vunpack.c.l.b16 %v2261
    %v2936 = vunpack.c.h.b16 %v2261
    %v2937 = vunpack.c.l.b16 %v2262
    %v2938 = vunpack.c.h.b16 %v2262
    %v2939 = vunpack.c.l.b16 %v2263
    %v2940 = vunpack.c.h.b16 %v2263
    %v2941 = vunpack.c.l.b16 %v2264
    %v2942 = vunpack.c.h.b16 %v2264
    %v2943 = vunpack.c.l.b16 %v2265
    %v2944 = vunpack.c.h.b16 %v2265
    %v2945 = vunpack.c.l.b16 %v2266
    %v2946 = vunpack.c.h.b16 %v2266
    %v2947 = vunpack.c.l.b16 %v2267
    %v2948 = vunpack.c.h.b16 %v2267
    %v2949 = vunpack.c.l.b16 %v2268
    %v2950 = vunpack.c.h.b16 %v2268
    %v2951 = vunpack.c.l.b16 %v2269
    %v2952 = vunpack.c.h.b16 %v2269
    %v2953 = vunpack.c.l.b16 %v2270
    %v2954 = vunpack.c.h.b16 %v2270
    %v2955 = vunpack.c.l.b16 %v2271
    %v2956 = vunpack.c.h.b16 %v2271
    %v2957 = vunpack.c.l.b16 %v2272
    %v2958 = vunpack.c.h.b16 %v2272
    %v2959 = vunpack.c.l.b16 %v2273
    %v2960 = vunpack.c.h.b16 %v2273
    %v2961 = vunpack.c.l.b16 %v2274
    %v2962 = vunpack.c.h.b16 %v2274
    %v2963 = vunpack.c.l.b16 %v2275
    %v2964 = vunpack.c.h.b16 %v2275
    %v2965 = vunpack.c.l.b16 %v2276
    %v2966 = vunpack.c.h.b16 %v2276
    %v2967 = vunpack.c.l.b16 %v2277
    %v2968 = vunpack.c.h.b16 %v2277
    %v2969 = vunpack.c.l.b16 %v2278
    %v2970 = vunpack.c.h.b16 %v2278
    %v2971 = vunpack.c.l.b16 %v2279
    %v2972 = vunpack.c.h.b16 %v2279
    %v2973 = vunpack.c.l.b16 %v2280
    %v2974 = vunpack.c.h.b16 %v2280
    %v2975 = vunpack.c.l.b16 %v2281
    %v2976 = vunpack.c.h.b16 %v2281
    %v2977 = vunpack.c.l.b16 %v2282
    %v2978 = vunpack.c.h.b16 %v2282
    %v2979 = vunpack.c.l.b16 %v2283
    %v2980 = vunpack.c.h.b16 %v2283
    %v2981 = vunpack.c.l.b16 %v2284
    %v2982 = vunpack.c.h.b16 %v2284
    %v2983 = vunpack.c.l.b16 %v2285
    %v2984 = vunpack.c.h.b16 %v2285
    %v2985 = vunpack.c.l.b16 %v2286
    %v2986 = vunpack.c.h.b16 %v2286
    %v2987 = vunpack.c.l.b16 %v2287
    %v2988 = vunpack.c.h.b16 %v2287
    %v2989 = vunpack.c.l.b16 %v2288
    %v2990 = vunpack.c.h.b16 %v2288
    %v2991 = vunpack.c.l.b16 %v2289
    %v2992 = vunpack.c.h.b16 %v2289
    %v2993 = vunpack.c.l.b16 %v2290
    %v2994 = vunpack.c.h.b16 %v2290
    %v2995 = vunpack.c.l.b16 %v2291
    %v2996 = vunpack.c.h.b16 %v2291
    %v2997 = vunpack.c.l.b16 %v2292
    %v2998 = vunpack.c.h.b16 %v2292
    %v2999 = vunpack.c.l.b16 %v2293
    %v3000 = vunpack.c.h.b16 %v2293
    %v3001 = vunpack.c.l.b16 %v2294
    %v3002 = vunpack.c.h.b16 %v2294
    %v3003 = vunpack.c.l.b16 %v2295
    %v3004 = vunpack.c.h.b16 %v2295
    %v3005 = vunpack.c.l.b16 %v2296
    %v3006 = vunpack.c.h.b16 %v2296
    %v3007 = vunpack.c.l.b16 %v2297
    %v3008 = vunpack.c.h.b16 %v2297
    %v3009 = vunpack.c.l.b16 %v2298
    %v3010 = vunpack.c.h.b16 %v2298
    %v3011 = vunpack.c.l.b16 %v2299
    %v3012 = vunpack.c.h.b16 %v2299
    %v3013 = vunpack.c.l.b16 %v2300
    %v3014 = vunpack.c.h.b16 %v2300
    %v3015 = vunpack.c.l.b16 %v2301
    %v3016 = vunpack.c.h.b16 %v2301
    %v3017 = vunpack.c.l.b16 %v2302
    %v3018 = vunpack.c.h.b16 %v2302
    %v3019 = vunpack.c.l.b16 %v2303
    %v3020 = vunpack.c.h.b16 %v2303
    %v3021 = vunpack.c.l.b16 %v2304
    %v3022 = vunpack.c.h.b16 %v2304
    %v3023 = vunpack.c.l.b16 %v2305
    %v3024 = vunpack.c.h.b16 %v2305
    %v3025 = vunpack.c.l.b16 %v2306
    %v3026 = vunpack.c.h.b16 %v2306
    %v3027 = vunpack.c.l.b16 %v2307
    %v3028 = vunpack.c.h.b16 %v2307
    %v3029 = vunpack.c.l.b16 %v2308
    %v3030 = vunpack.c.h.b16 %v2308
    %v3031 = vunpack.c.l.b16 %v2309
    %v3032 = vunpack.c.h.b16 %v2309
    %v3033 = vunpack.c.l.b16 %v2310
    %v3034 = vunpack.c.h.b16 %v2310
    %v3035 = vunpack.c.l.b16 %v2311
    %v3036 = vunpack.c.h.b16 %v2311
    %v3037 = vunpack.c.l.b16 %v2312
    %v3038 = vunpack.c.h.b16 %v2312
    %v3039 = vunpack.c.l.b16 %v2313
    %v3040 = vunpack.c.h.b16 %v2313
    %v3041 = vunpack.c.l.b16 %v2314
    %v3042 = vunpack.c.h.b16 %v2314
    %v3043 = vunpack.c.l.b16 %v2315
    %v3044 = vunpack.c.h.b16 %v2315
    %v3045 = vunpack.c.l.b16 %v2316
    %v3046 = vunpack.c.h.b16 %v2316
    %v3047 = vunpack.c.l.b16 %v2317
    %v3048 = vunpack.c.h.b16 %v2317
    %v3049 = vunpack.c.l.b16 %v2318
    %v3050 = vunpack.c.h.b16 %v2318
    %v3051 = vunpack.c.l.b16 %v2319
    %v3052 = vunpack.c.h.b16 %v2319
    %v3053 = vunpack.c.l.b16 %v2320
    %v3054 = vunpack.c.h.b16 %v2320
    %v3055 = vunpack.c.l.b16 %v2321
    %v3056 = vunpack.c.h.b16 %v2321
    %v3057 = vunpack.c.l.b16 %v2322
    %v3058 = vunpack.c.h.b16 %v2322
    %v3059 = vunpack.c.l.b16 %v2323
    %v3060 = vunpack.c.h.b16 %v2323
    %v3061 = vunpack.c.l.b16 %v2324
    %v3062 = vunpack.c.h.b16 %v2324
    %v3063 = vunpack.c.l.b16 %v2325
    %v3064 = vunpack.c.h.b16 %v2325
    %v3065 = vunpack.c.l.b16 %v2326
    %v3066 = vunpack.c.h.b16 %v2326
    %v3067 = vunpack.c.l.b16 %v2327
    %v3068 = vunpack.c.h.b16 %v2327
    %v3069 = vunpack.c.l.b16 %v2328
    %v3070 = vunpack.c.h.b16 %v2328
    %v3071 = vunpack.c.l.b16 %v2329
    %v3072 = vunpack.c.h.b16 %v2329
    %v3073 = vunpack.c.l.b16 %v2330
    %v3074 = vunpack.c.h.b16 %v2330
    %v3075 = vunpack.c.l.b16 %v2331
    %v3076 = vunpack.c.h.b16 %v2331
    %v3077 = vunpack.c.l.b16 %v2332
    %v3078 = vunpack.c.h.b16 %v2332
    %v3079 = vunpack.c.l.b16 %v2333
    %v3080 = vunpack.c.h.b16 %v2333
    %v3081 = vunpack.c.l.b16 %v2334
    %v3082 = vunpack.c.h.b16 %v2334
    %v3083 = vunpack.c.l.b16 %v2335
    %v3084 = vunpack.c.h.b16 %v2335
    %v3085 = vunpack.c.l.b16 %v2336
    %v3086 = vunpack.c.h.b16 %v2336
    %v3087 = vunpack.c.l.b16 %v2337
    %v3088 = vunpack.c.h.b16 %v2337
    %v3089 = vunpack.c.l.b16 %v2338
    %v3090 = vunpack.c.h.b16 %v2338
    %v3091 = vunpack.c.l.b16 %v2339
    %v3092 = vunpack.c.h.b16 %v2339
    %v3093 = vunpack.c.l.b16 %v2340
    %v3094 = vunpack.c.h.b16 %v2340
    %v3095 = vunpack.c.l.b16 %v2341
    %v3096 = vunpack.c.h.b16 %v2341
    %v3097 = vunpack.c.l.b16 %v2342
    %v3098 = vunpack.c.h.b16 %v2342
    %v3099 = vunpack.c.l.b16 %v2343
    %v3100 = vunpack.c.h.b16 %v2343
    %v3101 = vunpack.c.l.b16 %v2344
    %v3102 = vunpack.c.h.b16 %v2344
    %v3103 = vunpack.c.l.b16 %v2345
    %v3104 = vunpack.c.h.b16 %v2345
    %v3105 = vunpack.c.l.b16 %v2346
    %v3106 = vunpack.c.h.b16 %v2346
    %v3107 = vunpack.c.l.b16 %v2347
    %v3108 = vunpack.c.h.b16 %v2347
    %v3109 = vunpack.c.l.b16 %v2348
    %v3110 = vunpack.c.h.b16 %v2348
    %v3111 = vunpack.c.l.b16 %v2349
    %v3112 = vunpack.c.h.b16 %v2349
    %v3113 = vunpack.c.l.b16 %v2350
    %v3114 = vunpack.c.h.b16 %v2350
    %v3115 = vunpack.c.l.b16 %v2351
    %v3116 = vunpack.c.h.b16 %v2351
    %v3117 = vunpack.c.l.b16 %v2352
    %v3118 = vunpack.c.h.b16 %v2352
    %v3119 = vunpack.c.l.b16 %v2353
    %v3120 = vunpack.c.h.b16 %v2353
    %v3121 = vunpack.c.l.b16 %v2354
    %v3122 = vunpack.c.h.b16 %v2354
    %v3123 = vunpack.c.l.b16 %v2355
    %v3124 = vunpack.c.h.b16 %v2355
    %v3125 = vunpack.c.l.b16 %v2356
    %v3126 = vunpack.c.h.b16 %v2356
    %v3127 = vunpack.c.l.b16 %v2357
    %v3128 = vunpack.c.h.b16 %v2357
    %v3129 = vunpack.c.l.b16 %v2358
    %v3130 = vunpack.c.h.b16 %v2358
    %v3131 = vunpack.c.l.b16 %v2359
    %v3132 = vunpack.c.h.b16 %v2359
    %v3133 = vunpack.c.l.b16 %v2360
    %v3134 = vunpack.c.h.b16 %v2360
    %v3135 = vunpack.c.l.b16 %v2361
    %v3136 = vunpack.c.h.b16 %v2361
    %v3137 = vunpack.c.l.b16 %v2362
    %v3138 = vunpack.c.h.b16 %v2362
    %v3139 = vunpack.c.l.b16 %v2363
    %v3140 = vunpack.c.h.b16 %v2363
    %v3141 = vunpack.c.l.b16 %v2364
    %v3142 = vunpack.c.h.b16 %v2364
    %v3143 = vunpack.c.l.b16 %v2365
    %v3144 = vunpack.c.h.b16 %v2365
    %v3145 = vunpack.c.l.b16 %v2366
    %v3146 = vunpack.c.h.b16 %v2366
    %v3147 = vunpack.c.l.b16 %v2367
    %v3148 = vunpack.c.h.b16 %v2367
    %v3149 = vunpack.c.l.b16 %v2368
    %v3150 = vunpack.c.h.b16 %v2368
    %v3151 = vunpack.c.l.b16 %v2369
    %v3152 = vunpack.c.h.b16 %v2369
    %v3153 = vunpack.c.l.b16 %v2370
    %v3154 = vunpack.c.h.b16 %v2370
    %v3155 = vunpack.c.l.b16 %v2371
    %v3156 = vunpack.c.h.b16 %v2371
    %v3157 = vunpack.c.l.b16 %v2372
    %v3158 = vunpack.c.h.b16 %v2372
    %v3159 = vpack.c.b16 %v2655, %v2647
    %v3160 = vpack.c.b16 %v2656, %v2648
    %v3161 = vpack.c.b16 %v2657, %v2649
    %v3162 = vpack.c.b16 %v2658, %v2650
    %v3163 = vpack.c.b16 %v2659, %v2651
    %v3164 = vpack.c.b16 %v2660, %v2652
    %v3165 = vpack.c.b16 %v2661, %v2653
    %v3166 = vpack.c.b16 %v2662, %v2654
    %v3167 = vpack.c.b16 %v2671, %v2663
    %v3168 = vpack.c.b16 %v2672, %v2664
    %v3169 = vpack.c.b16 %v2673, %v2665
    %v3170 = vpack.c.b16 %v2674, %v2666
    %v3171 = vpack.c.b16 %v2675, %v2667
    %v3172 = vpack.c.b16 %v2676, %v2668
    %v3173 = vpack.c.b16 %v2677, %v2669
    %v3174 = vpack.c.b16 %v2678, %v2670
    %v3175 = vpack.c.b16 %v2687, %v2679
    %v3176 = vpack.c.b16 %v2688, %v2680
    %v3177 = vpack.c.b16 %v2689, %v2681
    %v3178 = vpack.c.b16 %v2690, %v2682
    %v3179 = vpack.c.b16 %v2691, %v2683
    %v3180 = vpack.c.b16 %v2692, %v2684
    %v3181 = vpack.c.b16 %v2693, %v2685
    %v3182 = vpack.c.b16 %v2694, %v2686
    %v3183 = vpack.c.b16 %v2703, %v2695
    %v3184 = vpack.c.b16 %v2704, %v2696
    %v3185 = vpack.c.b16 %v2705, %v2697
    %v3186 = vpack.c.b16 %v2706, %v2698
    %v3187 = vpack.c.b16 %v2707, %v2699
    %v3188 = vpack.c.b16 %v2708, %v2700
    %v3189 = vpack.c.b16 %v2709, %v2701
    %v3190 = vpack.c.b16 %v2710, %v2702
    %v3191 = vpack.c.b16 %v2719, %v2711
    %v3192 = vpack.c.b16 %v2720, %v2712
    %v3193 = vpack.c.b16 %v2721, %v2713
    %v3194 = vpack.c.b16 %v2722, %v2714
    %v3195 = vpack.c.b16 %v2723, %v2715
    %v3196 = vpack.c.b16 %v2724, %v2716
    %v3197 = vpack.c.b16 %v2725, %v2717
    %v3198 = vpack.c.b16 %v2726, %v2718
    %v3199 = vpack.c.b16 %v2735, %v2727
    %v3200 = vpack.c.b16 %v2736, %v2728
    %v3201 = vpack.c.b16 %v2737, %v2729
    %v3202 = vpack.c.b16 %v2738, %v2730
    %v3203 = vpack.c.b16 %v2739, %v2731
    %v3204 = vpack.c.b16 %v2740, %v2732
    %v3205 = vpack.c.b16 %v2741, %v2733
    %v3206 = vpack.c.b16 %v2742, %v2734
    %v3207 = vpack.c.b16 %v2751, %v2743
    %v3208 = vpack.c.b16 %v2752, %v2744
    %v3209 = vpack.c.b16 %v2753, %v2745
    %v3210 = vpack.c.b16 %v2754, %v2746
    %v3211 = vpack.c.b16 %v2755, %v2747
    %v3212 = vpack.c.b16 %v2756, %v2748
    %v3213 = vpack.c.b16 %v2757, %v2749
    %v3214 = vpack.c.b16 %v2758, %v2750
    %v3215 = vpack.c.b16 %v2767, %v2759
    %v3216 = vpack.c.b16 %v2768, %v2760
    %v3217 = vpack.c.b16 %v2769, %v2761
    %v3218 = vpack.c.b16 %v2770, %v2762
    %v3219 = vpack.c.b16 %v2771, %v2763
    %v3220 = vpack.c.b16 %v2772, %v2764
    %v3221 = vpack.c.b16 %v2773, %v2765
    %v3222 = vpack.c.b16 %v2774, %v2766
    %v3223 = vpack.c.b16 %v2783, %v2775
    %v3224 = vpack.c.b16 %v2784, %v2776
    %v3225 = vpack.c.b16 %v2785, %v2777
    %v3226 = vpack.c.b16 %v2786, %v2778
    %v3227 = vpack.c.b16 %v2787, %v2779
    %v3228 = vpack.c.b16 %v2788, %v2780
    %v3229 = vpack.c.b16 %v2789, %v2781
    %v3230 = vpack.c.b16 %v2790, %v2782
    %v3231 = vpack.c.b16 %v2799, %v2791
    %v3232 = vpack.c.b16 %v2800, %v2792
    %v3233 = vpack.c.b16 %v2801, %v2793
    %v3234 = vpack.c.b16 %v2802, %v2794
    %v3235 = vpack.c.b16 %v2803, %v2795
    %v3236 = vpack.c.b16 %v2804, %v2796
    %v3237 = vpack.c.b16 %v2805, %v2797
    %v3238 = vpack.c.b16 %v2806, %v2798
    %v3239 = vpack.c.b16 %v2815, %v2807
    %v3240 = vpack.c.b16 %v2816, %v2808
    %v3241 = vpack.c.b16 %v2817, %v2809
    %v3242 = vpack.c.b16 %v2818, %v2810
    %v3243 = vpack.c.b16 %v2819, %v2811
    %v3244 = vpack.c.b16 %v2820, %v2812
    %v3245 = vpack.c.b16 %v2821, %v2813
    %v3246 = vpack.c.b16 %v2822, %v2814
    %v3247 = vpack.c.b16 %v2831, %v2823
    %v3248 = vpack.c.b16 %v2832, %v2824
    %v3249 = vpack.c.b16 %v2833, %v2825
    %v3250 = vpack.c.b16 %v2834, %v2826
    %v3251 = vpack.c.b16 %v2835, %v2827
    %v3252 = vpack.c.b16 %v2836, %v2828
    %v3253 = vpack.c.b16 %v2837, %v2829
    %v3254 = vpack.c.b16 %v2838, %v2830
    %v3255 = vpack.c.b16 %v2847, %v2839
    %v3256 = vpack.c.b16 %v2848, %v2840
    %v3257 = vpack.c.b16 %v2849, %v2841
    %v3258 = vpack.c.b16 %v2850, %v2842
    %v3259 = vpack.c.b16 %v2851, %v2843
    %v3260 = vpack.c.b16 %v2852, %v2844
    %v3261 = vpack.c.b16 %v2853, %v2845
    %v3262 = vpack.c.b16 %v2854, %v2846
    %v3263 = vpack.c.b16 %v2863, %v2855
    %v3264 = vpack.c.b16 %v2864, %v2856
    %v3265 = vpack.c.b16 %v2865, %v2857
    %v3266 = vpack.c.b16 %v2866, %v2858
    %v3267 = vpack.c.b16 %v2867, %v2859
    %v3268 = vpack.c.b16 %v2868, %v2860
    %v3269 = vpack.c.b16 %v2869, %v2861
    %v3270 = vpack.c.b16 %v2870, %v2862
    %v3271 = vpack.c.b16 %v2879, %v2871
    %v3272 = vpack.c.b16 %v2880, %v2872
    %v3273 = vpack.c.b16 %v2881, %v2873
    %v3274 = vpack.c.b16 %v2882, %v2874
    %v3275 = vpack.c.b16 %v2883, %v2875
    %v3276 = vpack.c.b16 %v2884, %v2876
    %v3277 = vpack.c.b16 %v2885, %v2877
    %v3278 = vpack.c.b16 %v2886, %v2878
    %v3279 = vpack.c.b16 %v2895, %v2887
    %v3280 = vpack.c.b16 %v2896, %v2888
    %v3281 = vpack.c.b16 %v2897, %v2889
    %v3282 = vpack.c.b16 %v2898, %v2890
    %v3283 = vpack.c.b16 %v2899, %v2891
    %v3284 = vpack.c.b16 %v2900, %v2892
    %v3285 = vpack.c.b16 %v2901, %v2893
    %v3286 = vpack.c.b16 %v2902, %v2894
    %v3287 = vpack.c.b16 %v2911, %v2903
    %v3288 = vpack.c.b16 %v2912, %v2904
    %v3289 = vpack.c.b16 %v2913, %v2905
    %v3290 = vpack.c.b16 %v2914, %v2906
    %v3291 = vpack.c.b16 %v2915, %v2907
    %v3292 = vpack.c.b16 %v2916, %v2908
    %v3293 = vpack.c.b16 %v2917, %v2909
    %v3294 = vpack.c.b16 %v2918, %v2910
    %v3295 = vpack.c.b16 %v2927, %v2919
    %v3296 = vpack.c.b16 %v2928, %v2920
    %v3297 = vpack.c.b16 %v2929, %v2921
    %v3298 = vpack.c.b16 %v2930, %v2922
    %v3299 = vpack.c.b16 %v2931, %v2923
    %v3300 = vpack.c.b16 %v2932, %v2924
    %v3301 = vpack.c.b16 %v2933, %v2925
    %v3302 = vpack.c.b16 %v2934, %v2926
    %v3303 = vpack.c.b16 %v2943, %v2935
    %v3304 = vpack.c.b16 %v2944, %v2936
    %v3305 = vpack.c.b16 %v2945, %v2937
    %v3306 = vpack.c.b16 %v2946, %v2938
    %v3307 = vpack.c.b16 %v2947, %v2939
    %v3308 = vpack.c.b16 %v2948, %v2940
    %v3309 = vpack.c.b16 %v2949, %v2941
    %v3310 = vpack.c.b16 %v2950, %v2942
    %v3311 = vpack.c.b16 %v2959, %v2951
    %v3312 = vpack.c.b16 %v2960, %v2952
    %v3313 = vpack.c.b16 %v2961, %v2953
    %v3314 = vpack.c.b16 %v2962, %v2954
    %v3315 = vpack.c.b16 %v2963, %v2955
    %v3316 = vpack.c.b16 %v2964, %v2956
    %v3317 = vpack.c.b16 %v2965, %v2957
    %v3318 = vpack.c.b16 %v2966, %v2958
    %v3319 = vpack.c.b16 %v2975, %v2967
    %v3320 = vpack.c.b16 %v2976, %v2968
    %v3321 = vpack.c.b16 %v2977, %v2969
    %v3322 = vpack.c.b16 %v2978, %v2970
    %v3323 = vpack.c.b16 %v2979, %v2971
    %v3324 = vpack.c.b16 %v2980, %v2972
    %v3325 = vpack.c.b16 %v2981, %v2973
    %v3326 = vpack.c.b16 %v2982, %v2974
    %v3327 = vpack.c.b16 %v2991, %v2983
    %v3328 = vpack.c.b16 %v2992, %v2984
    %v3329 = vpack.c.b16 %v2993, %v2985
    %v3330 = vpack.c.b16 %v2994, %v2986
    %v3331 = vpack.c.b16 %v2995, %v2987
    %v3332 = vpack.c.b16 %v2996, %v2988
    %v3333 = vpack.c.b16 %v2997, %v2989
    %v3334 = vpack.c.b16 %v2998, %v2990
    %v3335 = vpack.c.b16 %v3007, %v2999
    %v3336 = vpack.c.b16 %v3008, %v3000
    %v3337 = vpack.c.b16 %v3009, %v3001
    %v3338 = vpack.c.b16 %v3010, %v3002
    %v3339 = vpack.c.b16 %v3011, %v3003
    %v3340 = vpack.c.b16 %v3012, %v3004
    %v3341 = vpack.c.b16 %v3013, %v3005
    %v3342 = vpack.c.b16 %v3014, %v3006
    %v3343 = vpack.c.b16 %v3023, %v3015
    %v3344 = vpack.c.b16 %v3024, %v3016
    %v3345 = vpack.c.b16 %v3025, %v3017
    %v3346 = vpack.c.b16 %v3026, %v3018
    %v3347 = vpack.c.b16 %v3027, %v3019
    %v3348 = vpack.c.b16 %v3028, %v3020
    %v3349 = vpack.c.b16 %v3029, %v3021
    %v3350 = vpack.c.b16 %v3030, %v3022
    %v3351 = vpack.c.b16 %v3039, %v3031
    %v3352 = vpack.c.b16 %v3040, %v3032
    %v3353 = vpack.c.b16 %v3041, %v3033
    %v3354 = vpack.c.b16 %v3042, %v3034
    %v3355 = vpack.c.b16 %v3043, %v3035
    %v3356 = vpack.c.b16 %v3044, %v3036
    %v3357 = vpack.c.b16 %v3045, %v3037
    %v3358 = vpack.c.b16 %v3046, %v3038
    %v3359 = vpack.c.b16 %v3055, %v3047
    %v3360 = vpack.c.b16 %v3056, %v3048
    %v3361 = vpack.c.b16 %v3057, %v3049
    %v3362 = vpack.c.b16 %v3058, %v3050
    %v3363 = vpack.c.b16 %v3059, %v3051
    %v3364 = vpack.c.b16 %v3060, %v3052
    %v3365 = vpack.c.b16 %v3061, %v3053
    %v3366 = vpack.c.b16 %v3062, %v3054
    %v3367 = vpack.c.b16 %v3071, %v3063
    %v3368 = vpack.c.b16 %v3072, %v3064
    %v3369 = vpack.c.b16 %v3073, %v3065
    %v3370 = vpack.c.b16 %v3074, %v3066
    %v3371 = vpack.c.b16 %v3075, %v3067
    %v3372 = vpack.c.b16 %v3076, %v3068
    %v3373 = vpack.c.b16 %v3077, %v3069
    %v3374 = vpack.c.b16 %v3078, %v3070
    %v3375 = vpack.c.b16 %v3087, %v3079
    %v3376 = vpack.c.b16 %v3088, %v3080
    %v3377 = vpack.c.b16 %v3089, %v3081
    %v3378 = vpack.c.b16 %v3090, %v3082
    %v3379 = vpack.c.b16 %v3091, %v3083
    %v3380 = vpack.c.b16 %v3092, %v3084
    %v3381 = vpack.c.b16 %v3093, %v3085
    %v3382 = vpack.c.b16 %v3094, %v3086
    %v3383 = vpack.c.b16 %v3103, %v3095
    %v3384 = vpack.c.b16 %v3104, %v3096
    %v3385 = vpack.c.b16 %v3105, %v3097
    %v3386 = vpack.c.b16 %v3106, %v3098
    %v3387 = vpack.c.b16 %v3107, %v3099
    %v3388 = vpack.c.b16 %v3108, %v3100
    %v3389 = vpack.c.b16 %v3109, %v3101
    %v3390 = vpack.c.b16 %v3110, %v3102
    %v3391 = vpack.c.b16 %v3119, %v3111
    %v3392 = vpack.c.b16 %v3120, %v3112
    %v3393 = vpack.c.b16 %v3121, %v3113
    %v3394 = vpack.c.b16 %v3122, %v3114
    %v3395 = vpack.c.b16 %v3123, %v3115
    %v3396 = vpack.c.b16 %v3124, %v3116
    %v3397 = vpack.c.b16 %v3125, %v3117
    %v3398 = vpack.c.b16 %v3126, %v3118
    %v3399 = vpack.c.b16 %v3135, %v3127
    %v3400 = vpack.c.b16 %v3136, %v3128
    %v3401 = vpack.c.b16 %v3137, %v3129
    %v3402 = vpack.c.b16 %v3138, %v3130
    %v3403 = vpack.c.b16 %v3139, %v3131
    %v3404 = vpack.c.b16 %v3140, %v3132
    %v3405 = vpack.c.b16 %v3141, %v3133
    %v3406 = vpack.c.b16 %v3142, %v3134
    %v3407 = vpack.c.b16 %v3151, %v3143
    %v3408 = vpack.c.b16 %v3152, %v3144
    %v3409 = vpack.c.b16 %v3153, %v3145
    %v3410 = vpack.c.b16 %v3154, %v3146
    %v3411 = vpack.c.b16 %v3155, %v3147
    %v3412 = vpack.c.b16 %v3156, %v3148
    %v3413 = vpack.c.b16 %v3157, %v3149
    %v3414 = vpack.c.b16 %v3158, %v3150
    %3671 = vmatpush.bf16.msra.mxu0 %v3215
    %3672 = vmatpush.bf16.msra.mxu0 %v3207
    %3673 = vmatpush.bf16.msra.mxu0 %v3199
    %3674 = vmatpush.bf16.msra.mxu0 %v3191
    %3675 = vmatpush.bf16.msra.mxu0 %v3183
    %3676 = vmatpush.bf16.msra.mxu0 %v3175
    %3677 = vmatpush.bf16.msra.mxu0 %v3167
    %3678 = vmatpush.bf16.msra.mxu0 %v3159
    %3679 = vmatmul.bf16.gmra.mxu0 %v2113
    %v3680 = vpop.f32.mrf.mxu0
    %v3681 = vadd.f32 %v2375, %v3680
    %v3682 = vpop.f32.mrf.mxu0
    %3683 = vdwg.mxu0
    %3684 = vmatpush.bf16.msra.mxu0 %v3279
    %3685 = vmatpush.bf16.msra.mxu0 %v3271
    %3686 = vmatpush.bf16.msra.mxu0 %v3263
    %3687 = vmatpush.bf16.msra.mxu0 %v3255
    %3688 = vmatpush.bf16.msra.mxu0 %v3247
    %3689 = vmatpush.bf16.msra.mxu0 %v3239
    %3690 = vmatpush.bf16.msra.mxu0 %v3231
    %3691 = vmatpush.bf16.msra.mxu0 %v3223
    %3692 = vmatmul.bf16.gmra.mxu0 %v2114
    %v3693 = vpop.f32.mrf.mxu0
    %v3694 = vadd.f32 %v3681, %v3693
    %v3695 = vpop.f32.mrf.mxu0
    %3696 = vdwg.mxu0
    %3697 = vmatpush.bf16.msra.mxu0 %v3343
    %3698 = vmatpush.bf16.msra.mxu0 %v3335
    %3699 = vmatpush.bf16.msra.mxu0 %v3327
    %3700 = vmatpush.bf16.msra.mxu0 %v3319
    %3701 = vmatpush.bf16.msra.mxu0 %v3311
    %3702 = vmatpush.bf16.msra.mxu0 %v3303
    %3703 = vmatpush.bf16.msra.mxu0 %v3295
    %3704 = vmatpush.bf16.msra.mxu0 %v3287
    %3705 = vmatmul.bf16.gmra.mxu0 %v2115
    %v3706 = vpop.f32.mrf.mxu0
    %v3707 = vadd.f32 %v3694, %v3706
    %v3708 = vpop.f32.mrf.mxu0
    %3709 = vdwg.mxu0
    %3710 = vmatpush.bf16.msra.mxu0 %v3407
    %3711 = vmatpush.bf16.msra.mxu0 %v3399
    %3712 = vmatpush.bf16.msra.mxu0 %v3391
    %3713 = vmatpush.bf16.msra.mxu0 %v3383
    %3714 = vmatpush.bf16.msra.mxu0 %v3375
    %3715 = vmatpush.bf16.msra.mxu0 %v3367
    %3716 = vmatpush.bf16.msra.mxu0 %v3359
    %3717 = vmatpush.bf16.msra.mxu0 %v3351
    %3718 = vmatmul.bf16.gmra.mxu0 %v2116
    %v3719 = vpop.f32.mrf.mxu0
    %v3720 = vadd.f32 %v3707, %v3719
    %v3721 = vpop.f32.mrf.mxu0
    %3722 = vdwg.mxu0
    %3723 = vmatpush.bf16.msra.mxu0 %v3216
    %3724 = vmatpush.bf16.msra.mxu0 %v3208
    %3725 = vmatpush.bf16.msra.mxu0 %v3200
    %3726 = vmatpush.bf16.msra.mxu0 %v3192
    %3727 = vmatpush.bf16.msra.mxu0 %v3184
    %3728 = vmatpush.bf16.msra.mxu0 %v3176
    %3729 = vmatpush.bf16.msra.mxu0 %v3168
    %3730 = vmatpush.bf16.msra.mxu0 %v3160
    %3731 = vmatmul.bf16.gmra.mxu0 %v2113
    %v3732 = vpop.f32.mrf.mxu0
    %v3733 = vadd.f32 %v2376, %v3732
    %v3734 = vpop.f32.mrf.mxu0
    %3735 = vdwg.mxu0
    %3736 = vmatpush.bf16.msra.mxu0 %v3280
    %3737 = vmatpush.bf16.msra.mxu0 %v3272
    %3738 = vmatpush.bf16.msra.mxu0 %v3264
    %3739 = vmatpush.bf16.msra.mxu0 %v3256
    %3740 = vmatpush.bf16.msra.mxu0 %v3248
    %3741 = vmatpush.bf16.msra.mxu0 %v3240
    %3742 = vmatpush.bf16.msra.mxu0 %v3232
    %3743 = vmatpush.bf16.msra.mxu0 %v3224
    %3744 = vmatmul.bf16.gmra.mxu0 %v2114
    %v3745 = vpop.f32.mrf.mxu0
    %v3746 = vadd.f32 %v3733, %v3745
    %v3747 = vpop.f32.mrf.mxu0
    %3748 = vdwg.mxu0
    %3749 = vmatpush.bf16.msra.mxu0 %v3344
    %3750 = vmatpush.bf16.msra.mxu0 %v3336
    %3751 = vmatpush.bf16.msra.mxu0 %v3328
    %3752 = vmatpush.bf16.msra.mxu0 %v3320
    %3753 = vmatpush.bf16.msra.mxu0 %v3312
    %3754 = vmatpush.bf16.msra.mxu0 %v3304
    %3755 = vmatpush.bf16.msra.mxu0 %v3296
    %3756 = vmatpush.bf16.msra.mxu0 %v3288
    %3757 = vmatmul.bf16.gmra.mxu0 %v2115
    %v3758 = vpop.f32.mrf.mxu0
    %v3759 = vadd.f32 %v3746, %v3758
    %v3760 = vpop.f32.mrf.mxu0
    %3761 = vdwg.mxu0
    %3762 = vmatpush.bf16.msra.mxu0 %v3408
    %3763 = vmatpush.bf16.msra.mxu0 %v3400
    %3764 = vmatpush.bf16.msra.mxu0 %v3392
    %3765 = vmatpush.bf16.msra.mxu0 %v3384
    %3766 = vmatpush.bf16.msra.mxu0 %v3376
    %3767 = vmatpush.bf16.msra.mxu0 %v3368
    %3768 = vmatpush.bf16.msra.mxu0 %v3360
    %3769 = vmatpush.bf16.msra.mxu0 %v3352
    %3770 = vmatmul.bf16.gmra.mxu0 %v2116
    %v3771 = vpop.f32.mrf.mxu0
    %v3772 = vadd.f32 %v3759, %v3771
    %v3773 = vpop.f32.mrf.mxu0
    %3774 = vdwg.mxu0
    %3775 = vmatpush.bf16.msra.mxu0 %v3217
    %3776 = vmatpush.bf16.msra.mxu0 %v3209
    %3777 = vmatpush.bf16.msra.mxu0 %v3201
    %3778 = vmatpush.bf16.msra.mxu0 %v3193
    %3779 = vmatpush.bf16.msra.mxu0 %v3185
    %3780 = vmatpush.bf16.msra.mxu0 %v3177
    %3781 = vmatpush.bf16.msra.mxu0 %v3169
    %3782 = vmatpush.bf16.msra.mxu0 %v3161
    %3783 = vmatmul.bf16.gmra.mxu0 %v2113
    %v3784 = vpop.f32.mrf.mxu0
    %v3785 = vadd.f32 %v2377, %v3784
    %v3786 = vpop.f32.mrf.mxu0
    %3787 = vdwg.mxu0
    %3788 = vmatpush.bf16.msra.mxu0 %v3281
    %3789 = vmatpush.bf16.msra.mxu0 %v3273
    %3790 = vmatpush.bf16.msra.mxu0 %v3265
    %3791 = vmatpush.bf16.msra.mxu0 %v3257
    %3792 = vmatpush.bf16.msra.mxu0 %v3249
    %3793 = vmatpush.bf16.msra.mxu0 %v3241
    %3794 = vmatpush.bf16.msra.mxu0 %v3233
    %3795 = vmatpush.bf16.msra.mxu0 %v3225
    %3796 = vmatmul.bf16.gmra.mxu0 %v2114
    %v3797 = vpop.f32.mrf.mxu0
    %v3798 = vadd.f32 %v3785, %v3797
    %v3799 = vpop.f32.mrf.mxu0
    %3800 = vdwg.mxu0
    %3801 = vmatpush.bf16.msra.mxu0 %v3345
    %3802 = vmatpush.bf16.msra.mxu0 %v3337
    %3803 = vmatpush.bf16.msra.mxu0 %v3329
    %3804 = vmatpush.bf16.msra.mxu0 %v3321
    %3805 = vmatpush.bf16.msra.mxu0 %v3313
    %3806 = vmatpush.bf16.msra.mxu0 %v3305
    %3807 = vmatpush.bf16.msra.mxu0 %v3297
    %3808 = vmatpush.bf16.msra.mxu0 %v3289
    %3809 = vmatmul.bf16.gmra.mxu0 %v2115
    %v3810 = vpop.f32.mrf.mxu0
    %v3811 = vadd.f32 %v3798, %v3810
    %v3812 = vpop.f32.mrf.mxu0
    %3813 = vdwg.mxu0
    %3814 = vmatpush.bf16.msra.mxu0 %v3409
    %3815 = vmatpush.bf16.msra.mxu0 %v3401
    %3816 = vmatpush.bf16.msra.mxu0 %v3393
    %3817 = vmatpush.bf16.msra.mxu0 %v3385
    %3818 = vmatpush.bf16.msra.mxu0 %v3377
    %3819 = vmatpush.bf16.msra.mxu0 %v3369
    %3820 = vmatpush.bf16.msra.mxu0 %v3361
    %3821 = vmatpush.bf16.msra.mxu0 %v3353
    %3822 = vmatmul.bf16.gmra.mxu0 %v2116
    %v3823 = vpop.f32.mrf.mxu0
    %v3824 = vadd.f32 %v3811, %v3823
    %v3825 = vpop.f32.mrf.mxu0
    %3826 = vdwg.mxu0
    %3827 = vmatpush.bf16.msra.mxu0 %v3218
    %3828 = vmatpush.bf16.msra.mxu0 %v3210
    %3829 = vmatpush.bf16.msra.mxu0 %v3202
    %3830 = vmatpush.bf16.msra.mxu0 %v3194
    %3831 = vmatpush.bf16.msra.mxu0 %v3186
    %3832 = vmatpush.bf16.msra.mxu0 %v3178
    %3833 = vmatpush.bf16.msra.mxu0 %v3170
    %3834 = vmatpush.bf16.msra.mxu0 %v3162
    %3835 = vmatmul.bf16.gmra.mxu0 %v2113
    %v3836 = vpop.f32.mrf.mxu0
    %v3837 = vadd.f32 %v2378, %v3836
    %v3838 = vpop.f32.mrf.mxu0
    %3839 = vdwg.mxu0
    %3840 = vmatpush.bf16.msra.mxu0 %v3282
    %3841 = vmatpush.bf16.msra.mxu0 %v3274
    %3842 = vmatpush.bf16.msra.mxu0 %v3266
    %3843 = vmatpush.bf16.msra.mxu0 %v3258
    %3844 = vmatpush.bf16.msra.mxu0 %v3250
    %3845 = vmatpush.bf16.msra.mxu0 %v3242
    %3846 = vmatpush.bf16.msra.mxu0 %v3234
    %3847 = vmatpush.bf16.msra.mxu0 %v3226
    %3848 = vmatmul.bf16.gmra.mxu0 %v2114
    %v3849 = vpop.f32.mrf.mxu0
    %v3850 = vadd.f32 %v3837, %v3849
    %v3851 = vpop.f32.mrf.mxu0
    %3852 = vdwg.mxu0
    %3853 = vmatpush.bf16.msra.mxu0 %v3346
    %3854 = vmatpush.bf16.msra.mxu0 %v3338
    %3855 = vmatpush.bf16.msra.mxu0 %v3330
    %3856 = vmatpush.bf16.msra.mxu0 %v3322
    %3857 = vmatpush.bf16.msra.mxu0 %v3314
    %3858 = vmatpush.bf16.msra.mxu0 %v3306
    %3859 = vmatpush.bf16.msra.mxu0 %v3298
    %3860 = vmatpush.bf16.msra.mxu0 %v3290
    %3861 = vmatmul.bf16.gmra.mxu0 %v2115
    %v3862 = vpop.f32.mrf.mxu0
    %v3863 = vadd.f32 %v3850, %v3862
    %v3864 = vpop.f32.mrf.mxu0
    %3865 = vdwg.mxu0
    %3866 = vmatpush.bf16.msra.mxu0 %v3410
    %3867 = vmatpush.bf16.msra.mxu0 %v3402
    %3868 = vmatpush.bf16.msra.mxu0 %v3394
    %3869 = vmatpush.bf16.msra.mxu0 %v3386
    %3870 = vmatpush.bf16.msra.mxu0 %v3378
    %3871 = vmatpush.bf16.msra.mxu0 %v3370
    %3872 = vmatpush.bf16.msra.mxu0 %v3362
    %3873 = vmatpush.bf16.msra.mxu0 %v3354
    %3874 = vmatmul.bf16.gmra.mxu0 %v2116
    %v3875 = vpop.f32.mrf.mxu0
    %v3876 = vadd.f32 %v3863, %v3875
    %v3877 = vpop.f32.mrf.mxu0
    %3878 = vdwg.mxu0
    %3879 = vmatpush.bf16.msra.mxu0 %v3219
    %3880 = vmatpush.bf16.msra.mxu0 %v3211
    %3881 = vmatpush.bf16.msra.mxu0 %v3203
    %3882 = vmatpush.bf16.msra.mxu0 %v3195
    %3883 = vmatpush.bf16.msra.mxu0 %v3187
    %3884 = vmatpush.bf16.msra.mxu0 %v3179
    %3885 = vmatpush.bf16.msra.mxu0 %v3171
    %3886 = vmatpush.bf16.msra.mxu0 %v3163
    %3887 = vmatmul.bf16.gmra.mxu0 %v2113
    %v3888 = vpop.f32.mrf.mxu0
    %v3889 = vadd.f32 %v2379, %v3888
    %v3890 = vpop.f32.mrf.mxu0
    %3891 = vdwg.mxu0
    %3892 = vmatpush.bf16.msra.mxu0 %v3283
    %3893 = vmatpush.bf16.msra.mxu0 %v3275
    %3894 = vmatpush.bf16.msra.mxu0 %v3267
    %3895 = vmatpush.bf16.msra.mxu0 %v3259
    %3896 = vmatpush.bf16.msra.mxu0 %v3251
    %3897 = vmatpush.bf16.msra.mxu0 %v3243
    %3898 = vmatpush.bf16.msra.mxu0 %v3235
    %3899 = vmatpush.bf16.msra.mxu0 %v3227
    %3900 = vmatmul.bf16.gmra.mxu0 %v2114
    %v3901 = vpop.f32.mrf.mxu0
    %v3902 = vadd.f32 %v3889, %v3901
    %v3903 = vpop.f32.mrf.mxu0
    %3904 = vdwg.mxu0
    %3905 = vmatpush.bf16.msra.mxu0 %v3347
    %3906 = vmatpush.bf16.msra.mxu0 %v3339
    %3907 = vmatpush.bf16.msra.mxu0 %v3331
    %3908 = vmatpush.bf16.msra.mxu0 %v3323
    %3909 = vmatpush.bf16.msra.mxu0 %v3315
    %3910 = vmatpush.bf16.msra.mxu0 %v3307
    %3911 = vmatpush.bf16.msra.mxu0 %v3299
    %3912 = vmatpush.bf16.msra.mxu0 %v3291
    %3913 = vmatmul.bf16.gmra.mxu0 %v2115
    %v3914 = vpop.f32.mrf.mxu0
    %v3915 = vadd.f32 %v3902, %v3914
    %v3916 = vpop.f32.mrf.mxu0
    %3917 = vdwg.mxu0
    %3918 = vmatpush.bf16.msra.mxu0 %v3411
    %3919 = vmatpush.bf16.msra.mxu0 %v3403
    %3920 = vmatpush.bf16.msra.mxu0 %v3395
    %3921 = vmatpush.bf16.msra.mxu0 %v3387
    %3922 = vmatpush.bf16.msra.mxu0 %v3379
    %3923 = vmatpush.bf16.msra.mxu0 %v3371
    %3924 = vmatpush.bf16.msra.mxu0 %v3363
    %3925 = vmatpush.bf16.msra.mxu0 %v3355
    %3926 = vmatmul.bf16.gmra.mxu0 %v2116
    %v3927 = vpop.f32.mrf.mxu0
    %v3928 = vadd.f32 %v3915, %v3927
    %v3929 = vpop.f32.mrf.mxu0
    %3930 = vdwg.mxu0
    %3931 = vmatpush.bf16.msra.mxu0 %v3220
    %3932 = vmatpush.bf16.msra.mxu0 %v3212
    %3933 = vmatpush.bf16.msra.mxu0 %v3204
    %3934 = vmatpush.bf16.msra.mxu0 %v3196
    %3935 = vmatpush.bf16.msra.mxu0 %v3188
    %3936 = vmatpush.bf16.msra.mxu0 %v3180
    %3937 = vmatpush.bf16.msra.mxu0 %v3172
    %3938 = vmatpush.bf16.msra.mxu0 %v3164
    %3939 = vmatmul.bf16.gmra.mxu0 %v2113
    %v3940 = vpop.f32.mrf.mxu0
    %v3941 = vadd.f32 %v2380, %v3940
    %v3942 = vpop.f32.mrf.mxu0
    %3943 = vdwg.mxu0
    %3944 = vmatpush.bf16.msra.mxu0 %v3284
    %3945 = vmatpush.bf16.msra.mxu0 %v3276
    %3946 = vmatpush.bf16.msra.mxu0 %v3268
    %3947 = vmatpush.bf16.msra.mxu0 %v3260
    %3948 = vmatpush.bf16.msra.mxu0 %v3252
    %3949 = vmatpush.bf16.msra.mxu0 %v3244
    %3950 = vmatpush.bf16.msra.mxu0 %v3236
    %3951 = vmatpush.bf16.msra.mxu0 %v3228
    %3952 = vmatmul.bf16.gmra.mxu0 %v2114
    %v3953 = vpop.f32.mrf.mxu0
    %v3954 = vadd.f32 %v3941, %v3953
    %v3955 = vpop.f32.mrf.mxu0
    %3956 = vdwg.mxu0
    %3957 = vmatpush.bf16.msra.mxu0 %v3348
    %3958 = vmatpush.bf16.msra.mxu0 %v3340
    %3959 = vmatpush.bf16.msra.mxu0 %v3332
    %3960 = vmatpush.bf16.msra.mxu0 %v3324
    %3961 = vmatpush.bf16.msra.mxu0 %v3316
    %3962 = vmatpush.bf16.msra.mxu0 %v3308
    %3963 = vmatpush.bf16.msra.mxu0 %v3300
    %3964 = vmatpush.bf16.msra.mxu0 %v3292
    %3965 = vmatmul.bf16.gmra.mxu0 %v2115
    %v3966 = vpop.f32.mrf.mxu0
    %v3967 = vadd.f32 %v3954, %v3966
    %v3968 = vpop.f32.mrf.mxu0
    %3969 = vdwg.mxu0
    %3970 = vmatpush.bf16.msra.mxu0 %v3412
    %3971 = vmatpush.bf16.msra.mxu0 %v3404
    %3972 = vmatpush.bf16.msra.mxu0 %v3396
    %3973 = vmatpush.bf16.msra.mxu0 %v3388
    %3974 = vmatpush.bf16.msra.mxu0 %v3380
    %3975 = vmatpush.bf16.msra.mxu0 %v3372
    %3976 = vmatpush.bf16.msra.mxu0 %v3364
    %3977 = vmatpush.bf16.msra.mxu0 %v3356
    %3978 = vmatmul.bf16.gmra.mxu0 %v2116
    %v3979 = vpop.f32.mrf.mxu0
    %v3980 = vadd.f32 %v3967, %v3979
    %v3981 = vpop.f32.mrf.mxu0
    %3982 = vdwg.mxu0
    %3983 = vmatpush.bf16.msra.mxu0 %v3221
    %3984 = vmatpush.bf16.msra.mxu0 %v3213
    %3985 = vmatpush.bf16.msra.mxu0 %v3205
    %3986 = vmatpush.bf16.msra.mxu0 %v3197
    %3987 = vmatpush.bf16.msra.mxu0 %v3189
    %3988 = vmatpush.bf16.msra.mxu0 %v3181
    %3989 = vmatpush.bf16.msra.mxu0 %v3173
    %3990 = vmatpush.bf16.msra.mxu0 %v3165
    %3991 = vmatmul.bf16.gmra.mxu0 %v2113
    %v3992 = vpop.f32.mrf.mxu0
    %v3993 = vadd.f32 %v2381, %v3992
    %v3994 = vpop.f32.mrf.mxu0
    %3995 = vdwg.mxu0
    %3996 = vmatpush.bf16.msra.mxu0 %v3285
    %3997 = vmatpush.bf16.msra.mxu0 %v3277
    %3998 = vmatpush.bf16.msra.mxu0 %v3269
    %3999 = vmatpush.bf16.msra.mxu0 %v3261
    %4000 = vmatpush.bf16.msra.mxu0 %v3253
    %4001 = vmatpush.bf16.msra.mxu0 %v3245
    %4002 = vmatpush.bf16.msra.mxu0 %v3237
    %4003 = vmatpush.bf16.msra.mxu0 %v3229
    %4004 = vmatmul.bf16.gmra.mxu0 %v2114
    %v4005 = vpop.f32.mrf.mxu0
    %v4006 = vadd.f32 %v3993, %v4005
    %v4007 = vpop.f32.mrf.mxu0
    %4008 = vdwg.mxu0
    %4009 = vmatpush.bf16.msra.mxu0 %v3349
    %4010 = vmatpush.bf16.msra.mxu0 %v3341
    %4011 = vmatpush.bf16.msra.mxu0 %v3333
    %4012 = vmatpush.bf16.msra.mxu0 %v3325
    %4013 = vmatpush.bf16.msra.mxu0 %v3317
    %4014 = vmatpush.bf16.msra.mxu0 %v3309
    %4015 = vmatpush.bf16.msra.mxu0 %v3301
    %4016 = vmatpush.bf16.msra.mxu0 %v3293
    %4017 = vmatmul.bf16.gmra.mxu0 %v2115
    %v4018 = vpop.f32.mrf.mxu0
    %v4019 = vadd.f32 %v4006, %v4018
    %v4020 = vpop.f32.mrf.mxu0
    %4021 = vdwg.mxu0
    %4022 = vmatpush.bf16.msra.mxu0 %v3413
    %4023 = vmatpush.bf16.msra.mxu0 %v3405
    %4024 = vmatpush.bf16.msra.mxu0 %v3397
    %4025 = vmatpush.bf16.msra.mxu0 %v3389
    %4026 = vmatpush.bf16.msra.mxu0 %v3381
    %4027 = vmatpush.bf16.msra.mxu0 %v3373
    %4028 = vmatpush.bf16.msra.mxu0 %v3365
    %4029 = vmatpush.bf16.msra.mxu0 %v3357
    %4030 = vmatmul.bf16.gmra.mxu0 %v2116
    %v4031 = vpop.f32.mrf.mxu0
    %v4032 = vadd.f32 %v4019, %v4031
    %v4033 = vpop.f32.mrf.mxu0
    %4034 = vdwg.mxu0
    %4035 = vmatpush.bf16.msra.mxu0 %v3222
    %4036 = vmatpush.bf16.msra.mxu0 %v3214
    %4037 = vmatpush.bf16.msra.mxu0 %v3206
    %4038 = vmatpush.bf16.msra.mxu0 %v3198
    %4039 = vmatpush.bf16.msra.mxu0 %v3190
    %4040 = vmatpush.bf16.msra.mxu0 %v3182
    %4041 = vmatpush.bf16.msra.mxu0 %v3174
    %4042 = vmatpush.bf16.msra.mxu0 %v3166
    %4043 = vmatmul.bf16.gmra.mxu0 %v2113
    %v4044 = vpop.f32.mrf.mxu0
    %v4045 = vadd.f32 %v2382, %v4044
    %v4046 = vpop.f32.mrf.mxu0
    %4047 = vdwg.mxu0
    %4048 = vmatpush.bf16.msra.mxu0 %v3286
    %4049 = vmatpush.bf16.msra.mxu0 %v3278
    %4050 = vmatpush.bf16.msra.mxu0 %v3270
    %4051 = vmatpush.bf16.msra.mxu0 %v3262
    %4052 = vmatpush.bf16.msra.mxu0 %v3254
    %4053 = vmatpush.bf16.msra.mxu0 %v3246
    %4054 = vmatpush.bf16.msra.mxu0 %v3238
    %4055 = vmatpush.bf16.msra.mxu0 %v3230
    %4056 = vmatmul.bf16.gmra.mxu0 %v2114
    %v4057 = vpop.f32.mrf.mxu0
    %v4058 = vadd.f32 %v4045, %v4057
    %v4059 = vpop.f32.mrf.mxu0
    %4060 = vdwg.mxu0
    %4061 = vmatpush.bf16.msra.mxu0 %v3350
    %4062 = vmatpush.bf16.msra.mxu0 %v3342
    %4063 = vmatpush.bf16.msra.mxu0 %v3334
    %4064 = vmatpush.bf16.msra.mxu0 %v3326
    %4065 = vmatpush.bf16.msra.mxu0 %v3318
    %4066 = vmatpush.bf16.msra.mxu0 %v3310
    %4067 = vmatpush.bf16.msra.mxu0 %v3302
    %4068 = vmatpush.bf16.msra.mxu0 %v3294
    %4069 = vmatmul.bf16.gmra.mxu0 %v2115
    %v4070 = vpop.f32.mrf.mxu0
    %v4071 = vadd.f32 %v4058, %v4070
    %v4072 = vpop.f32.mrf.mxu0
    %4073 = vdwg.mxu0
    %4074 = vmatpush.bf16.msra.mxu0 %v3414
    %4075 = vmatpush.bf16.msra.mxu0 %v3406
    %4076 = vmatpush.bf16.msra.mxu0 %v3398
    %4077 = vmatpush.bf16.msra.mxu0 %v3390
    %4078 = vmatpush.bf16.msra.mxu0 %v3382
    %4079 = vmatpush.bf16.msra.mxu0 %v3374
    %4080 = vmatpush.bf16.msra.mxu0 %v3366
    %4081 = vmatpush.bf16.msra.mxu0 %v3358
    %4082 = vmatmul.bf16.gmra.mxu0 %v2116
    %v4083 = vpop.f32.mrf.mxu0
    %v4084 = vadd.f32 %v4071, %v4083
    %v4085 = vpop.f32.mrf.mxu0
    %4086 = vdwg.mxu0
    %v4087 = vmax.f32 %v3720, 0.0
    %v4088 = vmax.f32 %v3772, 0.0
    %v4089 = vmax.f32 %v3824, 0.0
    %v4090 = vmax.f32 %v3876, 0.0
    %v4091 = vmax.f32 %v3928, 0.0
    %v4092 = vmax.f32 %v3980, 0.0
    %v4093 = vmax.f32 %v4032, 0.0
    %v4094 = vmax.f32 %v4084, 0.0
    %v4095 = vpack.c.bf16 %v4087, %v4087
    %v4096 = vpack.c.bf16 %v4088, %v4088
    %v4097 = vpack.c.bf16 %v4089, %v4089
    %v4098 = vpack.c.bf16 %v4090, %v4090
    %v4099 = vpack.c.bf16 %v4091, %v4091
    %v4100 = vpack.c.bf16 %v4092, %v4092
    %v4101 = vpack.c.bf16 %v4093, %v4093
    %v4102 = vpack.c.bf16 %v4094, %v4094
    %v4103 = vld [vmem:[#allocation11] sm:$0xff]
    %v4104 = vld [vmem:[#allocation11 + $0x8] sm:$0xff]
    %v4105 = vld [vmem:[#allocation11 + $0x10] sm:$0xff]
    %v4106 = vld [vmem:[#allocation11 + $0x18] sm:$0xff]
    %v4107 = vld [vmem:[#allocation11 + $0x20] sm:$0xff]
    %v4108 = vld [vmem:[#allocation11 + $0x28] sm:$0xff]
    %v4109 = vld [vmem:[#allocation11 + $0x30] sm:$0xff]
    %v4110 = vld [vmem:[#allocation11 + $0x38] sm:$0xff]
    %v4111 = vld [vmem:[#allocation11 + $0x40] sm:$0xff]
    %v4112 = vld [vmem:[#allocation11 + $0x48] sm:$0xff]
    %v4113 = vld [vmem:[#allocation11 + $0x50] sm:$0xff]
    %v4114 = vld [vmem:[#allocation11 + $0x58] sm:$0xff]
    %v4115 = vld [vmem:[#allocation11 + $0x60] sm:$0xff]
    %v4116 = vld [vmem:[#allocation11 + $0x68] sm:$0xff]
    %v4117 = vld [vmem:[#allocation11 + $0x70] sm:$0xff]
    %v4118 = vld [vmem:[#allocation11 + $0x78] sm:$0xff]
    %v4119 = vld [vmem:[#allocation11 + $0x80] sm:$0xff]
    %v4120 = vld [vmem:[#allocation11 + $0x88] sm:$0xff]
    %v4121 = vld [vmem:[#allocation11 + $0x90] sm:$0xff]
    %v4122 = vld [vmem:[#allocation11 + $0x98] sm:$0xff]
    %v4123 = vld [vmem:[#allocation11 + $0xa0] sm:$0xff]
    %v4124 = vld [vmem:[#allocation11 + $0xa8] sm:$0xff]
    %v4125 = vld [vmem:[#allocation11 + $0xb0] sm:$0xff]
    %v4126 = vld [vmem:[#allocation11 + $0xb8] sm:$0xff]
    %v4127 = vld [vmem:[#allocation11 + $0xc0] sm:$0xff]
    %v4128 = vld [vmem:[#allocation11 + $0xc8] sm:$0xff]
    %v4129 = vld [vmem:[#allocation11 + $0xd0] sm:$0xff]
    %v4130 = vld [vmem:[#allocation11 + $0xd8] sm:$0xff]
    %v4131 = vld [vmem:[#allocation11 + $0xe0] sm:$0xff]
    %v4132 = vld [vmem:[#allocation11 + $0xe8] sm:$0xff]
    %v4133 = vld [vmem:[#allocation11 + $0xf0] sm:$0xff]
    %v4134 = vld [vmem:[#allocation11 + $0xf8] sm:$0xff]
    %v4135 = vld [vmem:[#allocation11 + $0x100] sm:$0xff]
    %v4136 = vld [vmem:[#allocation11 + $0x108] sm:$0xff]
    %v4137 = vld [vmem:[#allocation11 + $0x110] sm:$0xff]
    %v4138 = vld [vmem:[#allocation11 + $0x118] sm:$0xff]
    %v4139 = vld [vmem:[#allocation11 + $0x120] sm:$0xff]
    %v4140 = vld [vmem:[#allocation11 + $0x128] sm:$0xff]
    %v4141 = vld [vmem:[#allocation11 + $0x130] sm:$0xff]
    %v4142 = vld [vmem:[#allocation11 + $0x138] sm:$0xff]
    %v4143 = vld [vmem:[#allocation11 + $0x140] sm:$0xff]
    %v4144 = vld [vmem:[#allocation11 + $0x148] sm:$0xff]
    %v4145 = vld [vmem:[#allocation11 + $0x150] sm:$0xff]
    %v4146 = vld [vmem:[#allocation11 + $0x158] sm:$0xff]
    %v4147 = vld [vmem:[#allocation11 + $0x160] sm:$0xff]
    %v4148 = vld [vmem:[#allocation11 + $0x168] sm:$0xff]
    %v4149 = vld [vmem:[#allocation11 + $0x170] sm:$0xff]
    %v4150 = vld [vmem:[#allocation11 + $0x178] sm:$0xff]
    %v4151 = vld [vmem:[#allocation11 + $0x180] sm:$0xff]
    %v4152 = vld [vmem:[#allocation11 + $0x188] sm:$0xff]
    %v4153 = vld [vmem:[#allocation11 + $0x190] sm:$0xff]
    %v4154 = vld [vmem:[#allocation11 + $0x198] sm:$0xff]
    %v4155 = vld [vmem:[#allocation11 + $0x1a0] sm:$0xff]
    %v4156 = vld [vmem:[#allocation11 + $0x1a8] sm:$0xff]
    %v4157 = vld [vmem:[#allocation11 + $0x1b0] sm:$0xff]
    %v4158 = vld [vmem:[#allocation11 + $0x1b8] sm:$0xff]
    %v4159 = vld [vmem:[#allocation11 + $0x1c0] sm:$0xff]
    %v4160 = vld [vmem:[#allocation11 + $0x1c8] sm:$0xff]
    %v4161 = vld [vmem:[#allocation11 + $0x1d0] sm:$0xff]
    %v4162 = vld [vmem:[#allocation11 + $0x1d8] sm:$0xff]
    %v4163 = vld [vmem:[#allocation11 + $0x1e0] sm:$0xff]
    %v4164 = vld [vmem:[#allocation11 + $0x1e8] sm:$0xff]
    %v4165 = vld [vmem:[#allocation11 + $0x1f0] sm:$0xff]
    %v4166 = vld [vmem:[#allocation11 + $0x1f8] sm:$0xff]
    %v4167 = vld [vmem:[#allocation11 + $0x200] sm:$0xff]
    %v4168 = vld [vmem:[#allocation11 + $0x208] sm:$0xff]
    %v4169 = vld [vmem:[#allocation11 + $0x210] sm:$0xff]
    %v4170 = vld [vmem:[#allocation11 + $0x218] sm:$0xff]
    %v4171 = vld [vmem:[#allocation11 + $0x220] sm:$0xff]
    %v4172 = vld [vmem:[#allocation11 + $0x228] sm:$0xff]
    %v4173 = vld [vmem:[#allocation11 + $0x230] sm:$0xff]
    %v4174 = vld [vmem:[#allocation11 + $0x238] sm:$0xff]
    %v4175 = vld [vmem:[#allocation11 + $0x240] sm:$0xff]
    %v4176 = vld [vmem:[#allocation11 + $0x248] sm:$0xff]
    %v4177 = vld [vmem:[#allocation11 + $0x250] sm:$0xff]
    %v4178 = vld [vmem:[#allocation11 + $0x258] sm:$0xff]
    %v4179 = vld [vmem:[#allocation11 + $0x260] sm:$0xff]
    %v4180 = vld [vmem:[#allocation11 + $0x268] sm:$0xff]
    %v4181 = vld [vmem:[#allocation11 + $0x270] sm:$0xff]
    %v4182 = vld [vmem:[#allocation11 + $0x278] sm:$0xff]
    %v4183 = vld [vmem:[#allocation11 + $0x280] sm:$0xff]
    %v4184 = vld [vmem:[#allocation11 + $0x288] sm:$0xff]
    %v4185 = vld [vmem:[#allocation11 + $0x290] sm:$0xff]
    %v4186 = vld [vmem:[#allocation11 + $0x298] sm:$0xff]
    %v4187 = vld [vmem:[#allocation11 + $0x2a0] sm:$0xff]
    %v4188 = vld [vmem:[#allocation11 + $0x2a8] sm:$0xff]
    %v4189 = vld [vmem:[#allocation11 + $0x2b0] sm:$0xff]
    %v4190 = vld [vmem:[#allocation11 + $0x2b8] sm:$0xff]
    %v4191 = vld [vmem:[#allocation11 + $0x2c0] sm:$0xff]
    %v4192 = vld [vmem:[#allocation11 + $0x2c8] sm:$0xff]
    %v4193 = vld [vmem:[#allocation11 + $0x2d0] sm:$0xff]
    %v4194 = vld [vmem:[#allocation11 + $0x2d8] sm:$0xff]
    %v4195 = vld [vmem:[#allocation11 + $0x2e0] sm:$0xff]
    %v4196 = vld [vmem:[#allocation11 + $0x2e8] sm:$0xff]
    %v4197 = vld [vmem:[#allocation11 + $0x2f0] sm:$0xff]
    %v4198 = vld [vmem:[#allocation11 + $0x2f8] sm:$0xff]
    %v4199 = vld [vmem:[#allocation11 + $0x300] sm:$0xff]
    %v4200 = vld [vmem:[#allocation11 + $0x308] sm:$0xff]
    %v4201 = vld [vmem:[#allocation11 + $0x310] sm:$0xff]
    %v4202 = vld [vmem:[#allocation11 + $0x318] sm:$0xff]
    %v4203 = vld [vmem:[#allocation11 + $0x320] sm:$0xff]
    %v4204 = vld [vmem:[#allocation11 + $0x328] sm:$0xff]
    %v4205 = vld [vmem:[#allocation11 + $0x330] sm:$0xff]
    %v4206 = vld [vmem:[#allocation11 + $0x338] sm:$0xff]
    %v4207 = vld [vmem:[#allocation11 + $0x340] sm:$0xff]
    %v4208 = vld [vmem:[#allocation11 + $0x348] sm:$0xff]
    %v4209 = vld [vmem:[#allocation11 + $0x350] sm:$0xff]
    %v4210 = vld [vmem:[#allocation11 + $0x358] sm:$0xff]
    %v4211 = vld [vmem:[#allocation11 + $0x360] sm:$0xff]
    %v4212 = vld [vmem:[#allocation11 + $0x368] sm:$0xff]
    %v4213 = vld [vmem:[#allocation11 + $0x370] sm:$0xff]
    %v4214 = vld [vmem:[#allocation11 + $0x378] sm:$0xff]
    %v4215 = vld [vmem:[#allocation11 + $0x380] sm:$0xff]
    %v4216 = vld [vmem:[#allocation11 + $0x388] sm:$0xff]
    %v4217 = vld [vmem:[#allocation11 + $0x390] sm:$0xff]
    %v4218 = vld [vmem:[#allocation11 + $0x398] sm:$0xff]
    %v4219 = vld [vmem:[#allocation11 + $0x3a0] sm:$0xff]
    %v4220 = vld [vmem:[#allocation11 + $0x3a8] sm:$0xff]
    %v4221 = vld [vmem:[#allocation11 + $0x3b0] sm:$0xff]
    %v4222 = vld [vmem:[#allocation11 + $0x3b8] sm:$0xff]
    %v4223 = vld [vmem:[#allocation11 + $0x3c0] sm:$0xff]
    %v4224 = vld [vmem:[#allocation11 + $0x3c8] sm:$0xff]
    %v4225 = vld [vmem:[#allocation11 + $0x3d0] sm:$0xff]
    %v4226 = vld [vmem:[#allocation11 + $0x3d8] sm:$0xff]
    %v4227 = vld [vmem:[#allocation11 + $0x3e0] sm:$0xff]
    %v4228 = vld [vmem:[#allocation11 + $0x3e8] sm:$0xff]
    %v4229 = vld [vmem:[#allocation11 + $0x3f0] sm:$0xff]
    %v4230 = vld [vmem:[#allocation11 + $0x3f8] sm:$0xff]
    %v4231 = vld [vmem:[#allocation11 + $0x400] sm:$0xff]
    %v4232 = vld [vmem:[#allocation11 + $0x408] sm:$0xff]
    %v4233 = vld [vmem:[#allocation11 + $0x410] sm:$0xff]
    %v4234 = vld [vmem:[#allocation11 + $0x418] sm:$0xff]
    %v4235 = vld [vmem:[#allocation11 + $0x420] sm:$0xff]
    %v4236 = vld [vmem:[#allocation11 + $0x428] sm:$0xff]
    %v4237 = vld [vmem:[#allocation11 + $0x430] sm:$0xff]
    %v4238 = vld [vmem:[#allocation11 + $0x438] sm:$0xff]
    %v4239 = vld [vmem:[#allocation11 + $0x440] sm:$0xff]
    %v4240 = vld [vmem:[#allocation11 + $0x448] sm:$0xff]
    %v4241 = vld [vmem:[#allocation11 + $0x450] sm:$0xff]
    %v4242 = vld [vmem:[#allocation11 + $0x458] sm:$0xff]
    %v4243 = vld [vmem:[#allocation11 + $0x460] sm:$0xff]
    %v4244 = vld [vmem:[#allocation11 + $0x468] sm:$0xff]
    %v4245 = vld [vmem:[#allocation11 + $0x470] sm:$0xff]
    %v4246 = vld [vmem:[#allocation11 + $0x478] sm:$0xff]
    %v4247 = vld [vmem:[#allocation11 + $0x480] sm:$0xff]
    %v4248 = vld [vmem:[#allocation11 + $0x488] sm:$0xff]
    %v4249 = vld [vmem:[#allocation11 + $0x490] sm:$0xff]
    %v4250 = vld [vmem:[#allocation11 + $0x498] sm:$0xff]
    %v4251 = vld [vmem:[#allocation11 + $0x4a0] sm:$0xff]
    %v4252 = vld [vmem:[#allocation11 + $0x4a8] sm:$0xff]
    %v4253 = vld [vmem:[#allocation11 + $0x4b0] sm:$0xff]
    %v4254 = vld [vmem:[#allocation11 + $0x4b8] sm:$0xff]
    %v4255 = vld [vmem:[#allocation11 + $0x4c0] sm:$0xff]
    %v4256 = vld [vmem:[#allocation11 + $0x4c8] sm:$0xff]
    %v4257 = vld [vmem:[#allocation11 + $0x4d0] sm:$0xff]
    %v4258 = vld [vmem:[#allocation11 + $0x4d8] sm:$0xff]
    %v4259 = vld [vmem:[#allocation11 + $0x4e0] sm:$0xff]
    %v4260 = vld [vmem:[#allocation11 + $0x4e8] sm:$0xff]
    %v4261 = vld [vmem:[#allocation11 + $0x4f0] sm:$0xff]
    %v4262 = vld [vmem:[#allocation11 + $0x4f8] sm:$0xff]
    %v4263 = vld [vmem:[#allocation11 + $0x500] sm:$0xff]
    %v4264 = vld [vmem:[#allocation11 + $0x508] sm:$0xff]
    %v4265 = vld [vmem:[#allocation11 + $0x510] sm:$0xff]
    %v4266 = vld [vmem:[#allocation11 + $0x518] sm:$0xff]
    %v4267 = vld [vmem:[#allocation11 + $0x520] sm:$0xff]
    %v4268 = vld [vmem:[#allocation11 + $0x528] sm:$0xff]
    %v4269 = vld [vmem:[#allocation11 + $0x530] sm:$0xff]
    %v4270 = vld [vmem:[#allocation11 + $0x538] sm:$0xff]
    %v4271 = vld [vmem:[#allocation11 + $0x540] sm:$0xff]
    %v4272 = vld [vmem:[#allocation11 + $0x548] sm:$0xff]
    %v4273 = vld [vmem:[#allocation11 + $0x550] sm:$0xff]
    %v4274 = vld [vmem:[#allocation11 + $0x558] sm:$0xff]
    %v4275 = vld [vmem:[#allocation11 + $0x560] sm:$0xff]
    %v4276 = vld [vmem:[#allocation11 + $0x568] sm:$0xff]
    %v4277 = vld [vmem:[#allocation11 + $0x570] sm:$0xff]
    %v4278 = vld [vmem:[#allocation11 + $0x578] sm:$0xff]
    %v4279 = vld [vmem:[#allocation11 + $0x580] sm:$0xff]
    %v4280 = vld [vmem:[#allocation11 + $0x588] sm:$0xff]
    %v4281 = vld [vmem:[#allocation11 + $0x590] sm:$0xff]
    %v4282 = vld [vmem:[#allocation11 + $0x598] sm:$0xff]
    %v4283 = vld [vmem:[#allocation11 + $0x5a0] sm:$0xff]
    %v4284 = vld [vmem:[#allocation11 + $0x5a8] sm:$0xff]
    %v4285 = vld [vmem:[#allocation11 + $0x5b0] sm:$0xff]
    %v4286 = vld [vmem:[#allocation11 + $0x5b8] sm:$0xff]
    %v4287 = vld [vmem:[#allocation11 + $0x5c0] sm:$0xff]
    %v4288 = vld [vmem:[#allocation11 + $0x5c8] sm:$0xff]
    %v4289 = vld [vmem:[#allocation11 + $0x5d0] sm:$0xff]
    %v4290 = vld [vmem:[#allocation11 + $0x5d8] sm:$0xff]
    %v4291 = vld [vmem:[#allocation11 + $0x5e0] sm:$0xff]
    %v4292 = vld [vmem:[#allocation11 + $0x5e8] sm:$0xff]
    %v4293 = vld [vmem:[#allocation11 + $0x5f0] sm:$0xff]
    %v4294 = vld [vmem:[#allocation11 + $0x5f8] sm:$0xff]
    %v4295 = vld [vmem:[#allocation11 + $0x600] sm:$0xff]
    %v4296 = vld [vmem:[#allocation11 + $0x608] sm:$0xff]
    %v4297 = vld [vmem:[#allocation11 + $0x610] sm:$0xff]
    %v4298 = vld [vmem:[#allocation11 + $0x618] sm:$0xff]
    %v4299 = vld [vmem:[#allocation11 + $0x620] sm:$0xff]
    %v4300 = vld [vmem:[#allocation11 + $0x628] sm:$0xff]
    %v4301 = vld [vmem:[#allocation11 + $0x630] sm:$0xff]
    %v4302 = vld [vmem:[#allocation11 + $0x638] sm:$0xff]
    %v4303 = vld [vmem:[#allocation11 + $0x640] sm:$0xff]
    %v4304 = vld [vmem:[#allocation11 + $0x648] sm:$0xff]
    %v4305 = vld [vmem:[#allocation11 + $0x650] sm:$0xff]
    %v4306 = vld [vmem:[#allocation11 + $0x658] sm:$0xff]
    %v4307 = vld [vmem:[#allocation11 + $0x660] sm:$0xff]
    %v4308 = vld [vmem:[#allocation11 + $0x668] sm:$0xff]
    %v4309 = vld [vmem:[#allocation11 + $0x670] sm:$0xff]
    %v4310 = vld [vmem:[#allocation11 + $0x678] sm:$0xff]
    %v4311 = vld [vmem:[#allocation11 + $0x680] sm:$0xff]
    %v4312 = vld [vmem:[#allocation11 + $0x688] sm:$0xff]
    %v4313 = vld [vmem:[#allocation11 + $0x690] sm:$0xff]
    %v4314 = vld [vmem:[#allocation11 + $0x698] sm:$0xff]
    %v4315 = vld [vmem:[#allocation11 + $0x6a0] sm:$0xff]
    %v4316 = vld [vmem:[#allocation11 + $0x6a8] sm:$0xff]
    %v4317 = vld [vmem:[#allocation11 + $0x6b0] sm:$0xff]
    %v4318 = vld [vmem:[#allocation11 + $0x6b8] sm:$0xff]
    %v4319 = vld [vmem:[#allocation11 + $0x6c0] sm:$0xff]
    %v4320 = vld [vmem:[#allocation11 + $0x6c8] sm:$0xff]
    %v4321 = vld [vmem:[#allocation11 + $0x6d0] sm:$0xff]
    %v4322 = vld [vmem:[#allocation11 + $0x6d8] sm:$0xff]
    %v4323 = vld [vmem:[#allocation11 + $0x6e0] sm:$0xff]
    %v4324 = vld [vmem:[#allocation11 + $0x6e8] sm:$0xff]
    %v4325 = vld [vmem:[#allocation11 + $0x6f0] sm:$0xff]
    %v4326 = vld [vmem:[#allocation11 + $0x6f8] sm:$0xff]
    %v4327 = vld [vmem:[#allocation11 + $0x700] sm:$0xff]
    %v4328 = vld [vmem:[#allocation11 + $0x708] sm:$0xff]
    %v4329 = vld [vmem:[#allocation11 + $0x710] sm:$0xff]
    %v4330 = vld [vmem:[#allocation11 + $0x718] sm:$0xff]
    %v4331 = vld [vmem:[#allocation11 + $0x720] sm:$0xff]
    %v4332 = vld [vmem:[#allocation11 + $0x728] sm:$0xff]
    %v4333 = vld [vmem:[#allocation11 + $0x730] sm:$0xff]
    %v4334 = vld [vmem:[#allocation11 + $0x738] sm:$0xff]
    %v4335 = vld [vmem:[#allocation11 + $0x740] sm:$0xff]
    %v4336 = vld [vmem:[#allocation11 + $0x748] sm:$0xff]
    %v4337 = vld [vmem:[#allocation11 + $0x750] sm:$0xff]
    %v4338 = vld [vmem:[#allocation11 + $0x758] sm:$0xff]
    %v4339 = vld [vmem:[#allocation11 + $0x760] sm:$0xff]
    %v4340 = vld [vmem:[#allocation11 + $0x768] sm:$0xff]
    %v4341 = vld [vmem:[#allocation11 + $0x770] sm:$0xff]
    %v4342 = vld [vmem:[#allocation11 + $0x778] sm:$0xff]
    %v4343 = vld [vmem:[#allocation11 + $0x780] sm:$0xff]
    %v4344 = vld [vmem:[#allocation11 + $0x788] sm:$0xff]
    %v4345 = vld [vmem:[#allocation11 + $0x790] sm:$0xff]
    %v4346 = vld [vmem:[#allocation11 + $0x798] sm:$0xff]
    %v4347 = vld [vmem:[#allocation11 + $0x7a0] sm:$0xff]
    %v4348 = vld [vmem:[#allocation11 + $0x7a8] sm:$0xff]
    %v4349 = vld [vmem:[#allocation11 + $0x7b0] sm:$0xff]
    %v4350 = vld [vmem:[#allocation11 + $0x7b8] sm:$0xff]
    %v4351 = vld [vmem:[#allocation11 + $0x7c0] sm:$0xff]
    %v4352 = vld [vmem:[#allocation11 + $0x7c8] sm:$0xff]
    %v4353 = vld [vmem:[#allocation11 + $0x7d0] sm:$0xff]
    %v4354 = vld [vmem:[#allocation11 + $0x7d8] sm:$0xff]
    %v4355 = vld [vmem:[#allocation11 + $0x7e0] sm:$0xff]
    %v4356 = vld [vmem:[#allocation11 + $0x7e8] sm:$0xff]
    %v4357 = vld [vmem:[#allocation11 + $0x7f0] sm:$0xff]
    %v4358 = vld [vmem:[#allocation11 + $0x7f8] sm:$0xff]
    %v4359 = vld [vmem:[#allocation11 + $0x800] sm:$0xff]
    %v4360 = vld [vmem:[#allocation11 + $0x808] sm:$0xff]
    %v4361 = vld [vmem:[#allocation11 + $0x810] sm:$0xff]
    %v4362 = vld [vmem:[#allocation11 + $0x818] sm:$0xff]
    %v4363 = vld [vmem:[#allocation11 + $0x820] sm:$0xff]
    %v4364 = vld [vmem:[#allocation11 + $0x828] sm:$0xff]
    %v4365 = vld [vmem:[#allocation11 + $0x830] sm:$0xff]
    %v4366 = vld [vmem:[#allocation11 + $0x838] sm:$0xff]
    %v4367 = vld [vmem:[#allocation11 + $0x840] sm:$0xff]
    %v4368 = vld [vmem:[#allocation11 + $0x848] sm:$0xff]
    %v4369 = vld [vmem:[#allocation11 + $0x850] sm:$0xff]
    %v4370 = vld [vmem:[#allocation11 + $0x858] sm:$0xff]
    %v4371 = vld [vmem:[#allocation11 + $0x860] sm:$0xff]
    %v4372 = vld [vmem:[#allocation11 + $0x868] sm:$0xff]
    %v4373 = vld [vmem:[#allocation11 + $0x870] sm:$0xff]
    %v4374 = vld [vmem:[#allocation11 + $0x878] sm:$0xff]
    %v4375 = vld [vmem:[#allocation11 + $0x880] sm:$0xff]
    %v4376 = vld [vmem:[#allocation11 + $0x888] sm:$0xff]
    %v4377 = vld [vmem:[#allocation11 + $0x890] sm:$0xff]
    %v4378 = vld [vmem:[#allocation11 + $0x898] sm:$0xff]
    %v4379 = vld [vmem:[#allocation11 + $0x8a0] sm:$0xff]
    %v4380 = vld [vmem:[#allocation11 + $0x8a8] sm:$0xff]
    %v4381 = vld [vmem:[#allocation11 + $0x8b0] sm:$0xff]
    %v4382 = vld [vmem:[#allocation11 + $0x8b8] sm:$0xff]
    %v4383 = vld [vmem:[#allocation11 + $0x8c0] sm:$0xff]
    %v4384 = vld [vmem:[#allocation11 + $0x8c8] sm:$0xff]
    %v4385 = vld [vmem:[#allocation11 + $0x8d0] sm:$0xff]
    %v4386 = vld [vmem:[#allocation11 + $0x8d8] sm:$0xff]
    %v4387 = vld [vmem:[#allocation11 + $0x8e0] sm:$0xff]
    %v4388 = vld [vmem:[#allocation11 + $0x8e8] sm:$0xff]
    %v4389 = vld [vmem:[#allocation11 + $0x8f0] sm:$0xff]
    %v4390 = vld [vmem:[#allocation11 + $0x8f8] sm:$0xff]
    %v4391 = vld [vmem:[#allocation11 + $0x900] sm:$0xff]
    %v4392 = vld [vmem:[#allocation11 + $0x908] sm:$0xff]
    %v4393 = vld [vmem:[#allocation11 + $0x910] sm:$0xff]
    %v4394 = vld [vmem:[#allocation11 + $0x918] sm:$0xff]
    %v4395 = vld [vmem:[#allocation11 + $0x920] sm:$0xff]
    %v4396 = vld [vmem:[#allocation11 + $0x928] sm:$0xff]
    %v4397 = vld [vmem:[#allocation11 + $0x930] sm:$0xff]
    %v4398 = vld [vmem:[#allocation11 + $0x938] sm:$0xff]
    %v4399 = vld [vmem:[#allocation11 + $0x940] sm:$0xff]
    %v4400 = vld [vmem:[#allocation11 + $0x948] sm:$0xff]
    %v4401 = vld [vmem:[#allocation11 + $0x950] sm:$0xff]
    %v4402 = vld [vmem:[#allocation11 + $0x958] sm:$0xff]
    %v4403 = vld [vmem:[#allocation11 + $0x960] sm:$0xff]
    %v4404 = vld [vmem:[#allocation11 + $0x968] sm:$0xff]
    %v4405 = vld [vmem:[#allocation11 + $0x970] sm:$0xff]
    %v4406 = vld [vmem:[#allocation11 + $0x978] sm:$0xff]
    %v4407 = vld [vmem:[#allocation11 + $0x980] sm:$0xff]
    %v4408 = vld [vmem:[#allocation11 + $0x988] sm:$0xff]
    %v4409 = vld [vmem:[#allocation11 + $0x990] sm:$0xff]
    %v4410 = vld [vmem:[#allocation11 + $0x998] sm:$0xff]
    %v4411 = vld [vmem:[#allocation11 + $0x9a0] sm:$0xff]
    %v4412 = vld [vmem:[#allocation11 + $0x9a8] sm:$0xff]
    %v4413 = vld [vmem:[#allocation11 + $0x9b0] sm:$0xff]
    %v4414 = vld [vmem:[#allocation11 + $0x9b8] sm:$0xff]
    %v4415 = vld [vmem:[#allocation11 + $0x9c0] sm:$0xff]
    %v4416 = vld [vmem:[#allocation11 + $0x9c8] sm:$0xff]
    %v4417 = vld [vmem:[#allocation11 + $0x9d0] sm:$0xff]
    %v4418 = vld [vmem:[#allocation11 + $0x9d8] sm:$0xff]
    %v4419 = vld [vmem:[#allocation11 + $0x9e0] sm:$0xff]
    %v4420 = vld [vmem:[#allocation11 + $0x9e8] sm:$0xff]
    %v4421 = vld [vmem:[#allocation11 + $0x9f0] sm:$0xff]
    %v4422 = vld [vmem:[#allocation11 + $0x9f8] sm:$0xff]
    %v4423 = vld [vmem:[#allocation11 + $0xa00] sm:$0xff]
    %v4424 = vld [vmem:[#allocation11 + $0xa08] sm:$0xff]
    %v4425 = vld [vmem:[#allocation11 + $0xa10] sm:$0xff]
    %v4426 = vld [vmem:[#allocation11 + $0xa18] sm:$0xff]
    %v4427 = vld [vmem:[#allocation11 + $0xa20] sm:$0xff]
    %v4428 = vld [vmem:[#allocation11 + $0xa28] sm:$0xff]
    %v4429 = vld [vmem:[#allocation11 + $0xa30] sm:$0xff]
    %v4430 = vld [vmem:[#allocation11 + $0xa38] sm:$0xff]
    %v4431 = vld [vmem:[#allocation11 + $0xa40] sm:$0xff]
    %v4432 = vld [vmem:[#allocation11 + $0xa48] sm:$0xff]
    %v4433 = vld [vmem:[#allocation11 + $0xa50] sm:$0xff]
    %v4434 = vld [vmem:[#allocation11 + $0xa58] sm:$0xff]
    %v4435 = vld [vmem:[#allocation11 + $0xa60] sm:$0xff]
    %v4436 = vld [vmem:[#allocation11 + $0xa68] sm:$0xff]
    %v4437 = vld [vmem:[#allocation11 + $0xa70] sm:$0xff]
    %v4438 = vld [vmem:[#allocation11 + $0xa78] sm:$0xff]
    %v4439 = vld [vmem:[#allocation11 + $0xa80] sm:$0xff]
    %v4440 = vld [vmem:[#allocation11 + $0xa88] sm:$0xff]
    %v4441 = vld [vmem:[#allocation11 + $0xa90] sm:$0xff]
    %v4442 = vld [vmem:[#allocation11 + $0xa98] sm:$0xff]
    %v4443 = vld [vmem:[#allocation11 + $0xaa0] sm:$0xff]
    %v4444 = vld [vmem:[#allocation11 + $0xaa8] sm:$0xff]
    %v4445 = vld [vmem:[#allocation11 + $0xab0] sm:$0xff]
    %v4446 = vld [vmem:[#allocation11 + $0xab8] sm:$0xff]
    %v4447 = vld [vmem:[#allocation11 + $0xac0] sm:$0xff]
    %v4448 = vld [vmem:[#allocation11 + $0xac8] sm:$0xff]
    %v4449 = vld [vmem:[#allocation11 + $0xad0] sm:$0xff]
    %v4450 = vld [vmem:[#allocation11 + $0xad8] sm:$0xff]
    %v4451 = vld [vmem:[#allocation11 + $0xae0] sm:$0xff]
    %v4452 = vld [vmem:[#allocation11 + $0xae8] sm:$0xff]
    %v4453 = vld [vmem:[#allocation11 + $0xaf0] sm:$0xff]
    %v4454 = vld [vmem:[#allocation11 + $0xaf8] sm:$0xff]
    %v4455 = vld [vmem:[#allocation11 + $0xb00] sm:$0xff]
    %v4456 = vld [vmem:[#allocation11 + $0xb08] sm:$0xff]
    %v4457 = vld [vmem:[#allocation11 + $0xb10] sm:$0xff]
    %v4458 = vld [vmem:[#allocation11 + $0xb18] sm:$0xff]
    %v4459 = vld [vmem:[#allocation11 + $0xb20] sm:$0xff]
    %v4460 = vld [vmem:[#allocation11 + $0xb28] sm:$0xff]
    %v4461 = vld [vmem:[#allocation11 + $0xb30] sm:$0xff]
    %v4462 = vld [vmem:[#allocation11 + $0xb38] sm:$0xff]
    %v4463 = vld [vmem:[#allocation11 + $0xb40] sm:$0xff]
    %v4464 = vld [vmem:[#allocation11 + $0xb48] sm:$0xff]
    %v4465 = vld [vmem:[#allocation11 + $0xb50] sm:$0xff]
    %v4466 = vld [vmem:[#allocation11 + $0xb58] sm:$0xff]
    %v4467 = vld [vmem:[#allocation11 + $0xb60] sm:$0xff]
    %v4468 = vld [vmem:[#allocation11 + $0xb68] sm:$0xff]
    %v4469 = vld [vmem:[#allocation11 + $0xb70] sm:$0xff]
    %v4470 = vld [vmem:[#allocation11 + $0xb78] sm:$0xff]
    %v4471 = vld [vmem:[#allocation11 + $0xb80] sm:$0xff]
    %v4472 = vld [vmem:[#allocation11 + $0xb88] sm:$0xff]
    %v4473 = vld [vmem:[#allocation11 + $0xb90] sm:$0xff]
    %v4474 = vld [vmem:[#allocation11 + $0xb98] sm:$0xff]
    %v4475 = vld [vmem:[#allocation11 + $0xba0] sm:$0xff]
    %v4476 = vld [vmem:[#allocation11 + $0xba8] sm:$0xff]
    %v4477 = vld [vmem:[#allocation11 + $0xbb0] sm:$0xff]
    %v4478 = vld [vmem:[#allocation11 + $0xbb8] sm:$0xff]
    %v4479 = vld [vmem:[#allocation11 + $0xbc0] sm:$0xff]
    %v4480 = vld [vmem:[#allocation11 + $0xbc8] sm:$0xff]
    %v4481 = vld [vmem:[#allocation11 + $0xbd0] sm:$0xff]
    %v4482 = vld [vmem:[#allocation11 + $0xbd8] sm:$0xff]
    %v4483 = vld [vmem:[#allocation11 + $0xbe0] sm:$0xff]
    %v4484 = vld [vmem:[#allocation11 + $0xbe8] sm:$0xff]
    %v4485 = vld [vmem:[#allocation11 + $0xbf0] sm:$0xff]
    %v4486 = vld [vmem:[#allocation11 + $0xbf8] sm:$0xff]
    %v4487 = vld [vmem:[#allocation11 + $0xc00] sm:$0xff]
    %v4488 = vld [vmem:[#allocation11 + $0xc08] sm:$0xff]
    %v4489 = vld [vmem:[#allocation11 + $0xc10] sm:$0xff]
    %v4490 = vld [vmem:[#allocation11 + $0xc18] sm:$0xff]
    %v4491 = vld [vmem:[#allocation11 + $0xc20] sm:$0xff]
    %v4492 = vld [vmem:[#allocation11 + $0xc28] sm:$0xff]
    %v4493 = vld [vmem:[#allocation11 + $0xc30] sm:$0xff]
    %v4494 = vld [vmem:[#allocation11 + $0xc38] sm:$0xff]
    %v4495 = vld [vmem:[#allocation11 + $0xc40] sm:$0xff]
    %v4496 = vld [vmem:[#allocation11 + $0xc48] sm:$0xff]
    %v4497 = vld [vmem:[#allocation11 + $0xc50] sm:$0xff]
    %v4498 = vld [vmem:[#allocation11 + $0xc58] sm:$0xff]
    %v4499 = vld [vmem:[#allocation11 + $0xc60] sm:$0xff]
    %v4500 = vld [vmem:[#allocation11 + $0xc68] sm:$0xff]
    %v4501 = vld [vmem:[#allocation11 + $0xc70] sm:$0xff]
    %v4502 = vld [vmem:[#allocation11 + $0xc78] sm:$0xff]
    %v4503 = vld [vmem:[#allocation11 + $0xc80] sm:$0xff]
    %v4504 = vld [vmem:[#allocation11 + $0xc88] sm:$0xff]
    %v4505 = vld [vmem:[#allocation11 + $0xc90] sm:$0xff]
    %v4506 = vld [vmem:[#allocation11 + $0xc98] sm:$0xff]
    %v4507 = vld [vmem:[#allocation11 + $0xca0] sm:$0xff]
    %v4508 = vld [vmem:[#allocation11 + $0xca8] sm:$0xff]
    %v4509 = vld [vmem:[#allocation11 + $0xcb0] sm:$0xff]
    %v4510 = vld [vmem:[#allocation11 + $0xcb8] sm:$0xff]
    %v4511 = vld [vmem:[#allocation11 + $0xcc0] sm:$0xff]
    %v4512 = vld [vmem:[#allocation11 + $0xcc8] sm:$0xff]
    %v4513 = vld [vmem:[#allocation11 + $0xcd0] sm:$0xff]
    %v4514 = vld [vmem:[#allocation11 + $0xcd8] sm:$0xff]
    %v4515 = vld [vmem:[#allocation11 + $0xce0] sm:$0xff]
    %v4516 = vld [vmem:[#allocation11 + $0xce8] sm:$0xff]
    %v4517 = vld [vmem:[#allocation11 + $0xcf0] sm:$0xff]
    %v4518 = vld [vmem:[#allocation11 + $0xcf8] sm:$0xff]
    %v4519 = vld [vmem:[#allocation11 + $0xd00] sm:$0xff]
    %v4520 = vld [vmem:[#allocation11 + $0xd08] sm:$0xff]
    %v4521 = vld [vmem:[#allocation11 + $0xd10] sm:$0xff]
    %v4522 = vld [vmem:[#allocation11 + $0xd18] sm:$0xff]
    %v4523 = vld [vmem:[#allocation11 + $0xd20] sm:$0xff]
    %v4524 = vld [vmem:[#allocation11 + $0xd28] sm:$0xff]
    %v4525 = vld [vmem:[#allocation11 + $0xd30] sm:$0xff]
    %v4526 = vld [vmem:[#allocation11 + $0xd38] sm:$0xff]
    %v4527 = vld [vmem:[#allocation11 + $0xd40] sm:$0xff]
    %v4528 = vld [vmem:[#allocation11 + $0xd48] sm:$0xff]
    %v4529 = vld [vmem:[#allocation11 + $0xd50] sm:$0xff]
    %v4530 = vld [vmem:[#allocation11 + $0xd58] sm:$0xff]
    %v4531 = vld [vmem:[#allocation11 + $0xd60] sm:$0xff]
    %v4532 = vld [vmem:[#allocation11 + $0xd68] sm:$0xff]
    %v4533 = vld [vmem:[#allocation11 + $0xd70] sm:$0xff]
    %v4534 = vld [vmem:[#allocation11 + $0xd78] sm:$0xff]
    %v4535 = vld [vmem:[#allocation11 + $0xd80] sm:$0xff]
    %v4536 = vld [vmem:[#allocation11 + $0xd88] sm:$0xff]
    %v4537 = vld [vmem:[#allocation11 + $0xd90] sm:$0xff]
    %v4538 = vld [vmem:[#allocation11 + $0xd98] sm:$0xff]
    %v4539 = vld [vmem:[#allocation11 + $0xda0] sm:$0xff]
    %v4540 = vld [vmem:[#allocation11 + $0xda8] sm:$0xff]
    %v4541 = vld [vmem:[#allocation11 + $0xdb0] sm:$0xff]
    %v4542 = vld [vmem:[#allocation11 + $0xdb8] sm:$0xff]
    %v4543 = vld [vmem:[#allocation11 + $0xdc0] sm:$0xff]
    %v4544 = vld [vmem:[#allocation11 + $0xdc8] sm:$0xff]
    %v4545 = vld [vmem:[#allocation11 + $0xdd0] sm:$0xff]
    %v4546 = vld [vmem:[#allocation11 + $0xdd8] sm:$0xff]
    %v4547 = vld [vmem:[#allocation11 + $0xde0] sm:$0xff]
    %v4548 = vld [vmem:[#allocation11 + $0xde8] sm:$0xff]
    %v4549 = vld [vmem:[#allocation11 + $0xdf0] sm:$0xff]
    %v4550 = vld [vmem:[#allocation11 + $0xdf8] sm:$0xff]
    %v4551 = vld [vmem:[#allocation11 + $0xe00] sm:$0xff]
    %v4552 = vld [vmem:[#allocation11 + $0xe08] sm:$0xff]
    %v4553 = vld [vmem:[#allocation11 + $0xe10] sm:$0xff]
    %v4554 = vld [vmem:[#allocation11 + $0xe18] sm:$0xff]
    %v4555 = vld [vmem:[#allocation11 + $0xe20] sm:$0xff]
    %v4556 = vld [vmem:[#allocation11 + $0xe28] sm:$0xff]
    %v4557 = vld [vmem:[#allocation11 + $0xe30] sm:$0xff]
    %v4558 = vld [vmem:[#allocation11 + $0xe38] sm:$0xff]
    %v4559 = vld [vmem:[#allocation11 + $0xe40] sm:$0xff]
    %v4560 = vld [vmem:[#allocation11 + $0xe48] sm:$0xff]
    %v4561 = vld [vmem:[#allocation11 + $0xe50] sm:$0xff]
    %v4562 = vld [vmem:[#allocation11 + $0xe58] sm:$0xff]
    %v4563 = vld [vmem:[#allocation11 + $0xe60] sm:$0xff]
    %v4564 = vld [vmem:[#allocation11 + $0xe68] sm:$0xff]
    %v4565 = vld [vmem:[#allocation11 + $0xe70] sm:$0xff]
    %v4566 = vld [vmem:[#allocation11 + $0xe78] sm:$0xff]
    %v4567 = vld [vmem:[#allocation11 + $0xe80] sm:$0xff]
    %v4568 = vld [vmem:[#allocation11 + $0xe88] sm:$0xff]
    %v4569 = vld [vmem:[#allocation11 + $0xe90] sm:$0xff]
    %v4570 = vld [vmem:[#allocation11 + $0xe98] sm:$0xff]
    %v4571 = vld [vmem:[#allocation11 + $0xea0] sm:$0xff]
    %v4572 = vld [vmem:[#allocation11 + $0xea8] sm:$0xff]
    %v4573 = vld [vmem:[#allocation11 + $0xeb0] sm:$0xff]
    %v4574 = vld [vmem:[#allocation11 + $0xeb8] sm:$0xff]
    %v4575 = vld [vmem:[#allocation11 + $0xec0] sm:$0xff]
    %v4576 = vld [vmem:[#allocation11 + $0xec8] sm:$0xff]
    %v4577 = vld [vmem:[#allocation11 + $0xed0] sm:$0xff]
    %v4578 = vld [vmem:[#allocation11 + $0xed8] sm:$0xff]
    %v4579 = vld [vmem:[#allocation11 + $0xee0] sm:$0xff]
    %v4580 = vld [vmem:[#allocation11 + $0xee8] sm:$0xff]
    %v4581 = vld [vmem:[#allocation11 + $0xef0] sm:$0xff]
    %v4582 = vld [vmem:[#allocation11 + $0xef8] sm:$0xff]
    %v4583 = vld [vmem:[#allocation11 + $0xf00] sm:$0xff]
    %v4584 = vld [vmem:[#allocation11 + $0xf08] sm:$0xff]
    %v4585 = vld [vmem:[#allocation11 + $0xf10] sm:$0xff]
    %v4586 = vld [vmem:[#allocation11 + $0xf18] sm:$0xff]
    %v4587 = vld [vmem:[#allocation11 + $0xf20] sm:$0xff]
    %v4588 = vld [vmem:[#allocation11 + $0xf28] sm:$0xff]
    %v4589 = vld [vmem:[#allocation11 + $0xf30] sm:$0xff]
    %v4590 = vld [vmem:[#allocation11 + $0xf38] sm:$0xff]
    %v4591 = vld [vmem:[#allocation11 + $0xf40] sm:$0xff]
    %v4592 = vld [vmem:[#allocation11 + $0xf48] sm:$0xff]
    %v4593 = vld [vmem:[#allocation11 + $0xf50] sm:$0xff]
    %v4594 = vld [vmem:[#allocation11 + $0xf58] sm:$0xff]
    %v4595 = vld [vmem:[#allocation11 + $0xf60] sm:$0xff]
    %v4596 = vld [vmem:[#allocation11 + $0xf68] sm:$0xff]
    %v4597 = vld [vmem:[#allocation11 + $0xf70] sm:$0xff]
    %v4598 = vld [vmem:[#allocation11 + $0xf78] sm:$0xff]
    %v4599 = vld [vmem:[#allocation11 + $0xf80] sm:$0xff]
    %v4600 = vld [vmem:[#allocation11 + $0xf88] sm:$0xff]
    %v4601 = vld [vmem:[#allocation11 + $0xf90] sm:$0xff]
    %v4602 = vld [vmem:[#allocation11 + $0xf98] sm:$0xff]
    %v4603 = vld [vmem:[#allocation11 + $0xfa0] sm:$0xff]
    %v4604 = vld [vmem:[#allocation11 + $0xfa8] sm:$0xff]
    %v4605 = vld [vmem:[#allocation11 + $0xfb0] sm:$0xff]
    %v4606 = vld [vmem:[#allocation11 + $0xfb8] sm:$0xff]
    %v4607 = vld [vmem:[#allocation11 + $0xfc0] sm:$0xff]
    %v4608 = vld [vmem:[#allocation11 + $0xfc8] sm:$0xff]
    %v4609 = vld [vmem:[#allocation11 + $0xfd0] sm:$0xff]
    %v4610 = vld [vmem:[#allocation11 + $0xfd8] sm:$0xff]
    %v4611 = vld [vmem:[#allocation11 + $0xfe0] sm:$0xff]
    %v4612 = vld [vmem:[#allocation11 + $0xfe8] sm:$0xff]
    %v4613 = vld [vmem:[#allocation11 + $0xff0] sm:$0xff]
    %v4614 = vld [vmem:[#allocation11 + $0xff8] sm:$0xff]
    %v4615 = vld [vmem:[#allocation13] sm:$0xff]
    %v4617 = vperm.slane %v4615, 0
    %v4618 = vperm.slane %v4615, 1
    %v4619 = vperm.slane %v4615, 2
    %v4620 = vperm.slane %v4615, 3
    %v4621 = vperm.slane %v4615, 4
    %v4622 = vperm.slane %v4615, 5
    %v4623 = vperm.slane %v4615, 6
    %v4624 = vperm.slane %v4615, 7
    %v5145 = vunpack.c.l.b16 %v4103
    %v5146 = vunpack.c.h.b16 %v4103
    %v5147 = vunpack.c.l.b16 %v4104
    %v5148 = vunpack.c.h.b16 %v4104
    %v5149 = vunpack.c.l.b16 %v4105
    %v5150 = vunpack.c.h.b16 %v4105
    %v5151 = vunpack.c.l.b16 %v4106
    %v5152 = vunpack.c.h.b16 %v4106
    %v5153 = vunpack.c.l.b16 %v4107
    %v5154 = vunpack.c.h.b16 %v4107
    %v5155 = vunpack.c.l.b16 %v4108
    %v5156 = vunpack.c.h.b16 %v4108
    %v5157 = vunpack.c.l.b16 %v4109
    %v5158 = vunpack.c.h.b16 %v4109
    %v5159 = vunpack.c.l.b16 %v4110
    %v5160 = vunpack.c.h.b16 %v4110
    %v5161 = vunpack.c.l.b16 %v4111
    %v5162 = vunpack.c.h.b16 %v4111
    %v5163 = vunpack.c.l.b16 %v4112
    %v5164 = vunpack.c.h.b16 %v4112
    %v5165 = vunpack.c.l.b16 %v4113
    %v5166 = vunpack.c.h.b16 %v4113
    %v5167 = vunpack.c.l.b16 %v4114
    %v5168 = vunpack.c.h.b16 %v4114
    %v5169 = vunpack.c.l.b16 %v4115
    %v5170 = vunpack.c.h.b16 %v4115
    %v5171 = vunpack.c.l.b16 %v4116
    %v5172 = vunpack.c.h.b16 %v4116
    %v5173 = vunpack.c.l.b16 %v4117
    %v5174 = vunpack.c.h.b16 %v4117
    %v5175 = vunpack.c.l.b16 %v4118
    %v5176 = vunpack.c.h.b16 %v4118
    %v5177 = vunpack.c.l.b16 %v4119
    %v5178 = vunpack.c.h.b16 %v4119
    %v5179 = vunpack.c.l.b16 %v4120
    %v5180 = vunpack.c.h.b16 %v4120
    %v5181 = vunpack.c.l.b16 %v4121
    %v5182 = vunpack.c.h.b16 %v4121
    %v5183 = vunpack.c.l.b16 %v4122
    %v5184 = vunpack.c.h.b16 %v4122
    %v5185 = vunpack.c.l.b16 %v4123
    %v5186 = vunpack.c.h.b16 %v4123
    %v5187 = vunpack.c.l.b16 %v4124
    %v5188 = vunpack.c.h.b16 %v4124
    %v5189 = vunpack.c.l.b16 %v4125
    %v5190 = vunpack.c.h.b16 %v4125
    %v5191 = vunpack.c.l.b16 %v4126
    %v5192 = vunpack.c.h.b16 %v4126
    %v5193 = vunpack.c.l.b16 %v4127
    %v5194 = vunpack.c.h.b16 %v4127
    %v5195 = vunpack.c.l.b16 %v4128
    %v5196 = vunpack.c.h.b16 %v4128
    %v5197 = vunpack.c.l.b16 %v4129
    %v5198 = vunpack.c.h.b16 %v4129
    %v5199 = vunpack.c.l.b16 %v4130
    %v5200 = vunpack.c.h.b16 %v4130
    %v5201 = vunpack.c.l.b16 %v4131
    %v5202 = vunpack.c.h.b16 %v4131
    %v5203 = vunpack.c.l.b16 %v4132
    %v5204 = vunpack.c.h.b16 %v4132
    %v5205 = vunpack.c.l.b16 %v4133
    %v5206 = vunpack.c.h.b16 %v4133
    %v5207 = vunpack.c.l.b16 %v4134
    %v5208 = vunpack.c.h.b16 %v4134
    %v5209 = vunpack.c.l.b16 %v4135
    %v5210 = vunpack.c.h.b16 %v4135
    %v5211 = vunpack.c.l.b16 %v4136
    %v5212 = vunpack.c.h.b16 %v4136
    %v5213 = vunpack.c.l.b16 %v4137
    %v5214 = vunpack.c.h.b16 %v4137
    %v5215 = vunpack.c.l.b16 %v4138
    %v5216 = vunpack.c.h.b16 %v4138
    %v5217 = vunpack.c.l.b16 %v4139
    %v5218 = vunpack.c.h.b16 %v4139
    %v5219 = vunpack.c.l.b16 %v4140
    %v5220 = vunpack.c.h.b16 %v4140
    %v5221 = vunpack.c.l.b16 %v4141
    %v5222 = vunpack.c.h.b16 %v4141
    %v5223 = vunpack.c.l.b16 %v4142
    %v5224 = vunpack.c.h.b16 %v4142
    %v5225 = vunpack.c.l.b16 %v4143
    %v5226 = vunpack.c.h.b16 %v4143
    %v5227 = vunpack.c.l.b16 %v4144
    %v5228 = vunpack.c.h.b16 %v4144
    %v5229 = vunpack.c.l.b16 %v4145
    %v5230 = vunpack.c.h.b16 %v4145
    %v5231 = vunpack.c.l.b16 %v4146
    %v5232 = vunpack.c.h.b16 %v4146
    %v5233 = vunpack.c.l.b16 %v4147
    %v5234 = vunpack.c.h.b16 %v4147
    %v5235 = vunpack.c.l.b16 %v4148
    %v5236 = vunpack.c.h.b16 %v4148
    %v5237 = vunpack.c.l.b16 %v4149
    %v5238 = vunpack.c.h.b16 %v4149
    %v5239 = vunpack.c.l.b16 %v4150
    %v5240 = vunpack.c.h.b16 %v4150
    %v5241 = vunpack.c.l.b16 %v4151
    %v5242 = vunpack.c.h.b16 %v4151
    %v5243 = vunpack.c.l.b16 %v4152
    %v5244 = vunpack.c.h.b16 %v4152
    %v5245 = vunpack.c.l.b16 %v4153
    %v5246 = vunpack.c.h.b16 %v4153
    %v5247 = vunpack.c.l.b16 %v4154
    %v5248 = vunpack.c.h.b16 %v4154
    %v5249 = vunpack.c.l.b16 %v4155
    %v5250 = vunpack.c.h.b16 %v4155
    %v5251 = vunpack.c.l.b16 %v4156
    %v5252 = vunpack.c.h.b16 %v4156
    %v5253 = vunpack.c.l.b16 %v4157
    %v5254 = vunpack.c.h.b16 %v4157
    %v5255 = vunpack.c.l.b16 %v4158
    %v5256 = vunpack.c.h.b16 %v4158
    %v5257 = vunpack.c.l.b16 %v4159
    %v5258 = vunpack.c.h.b16 %v4159
    %v5259 = vunpack.c.l.b16 %v4160
    %v5260 = vunpack.c.h.b16 %v4160
    %v5261 = vunpack.c.l.b16 %v4161
    %v5262 = vunpack.c.h.b16 %v4161
    %v5263 = vunpack.c.l.b16 %v4162
    %v5264 = vunpack.c.h.b16 %v4162
    %v5265 = vunpack.c.l.b16 %v4163
    %v5266 = vunpack.c.h.b16 %v4163
    %v5267 = vunpack.c.l.b16 %v4164
    %v5268 = vunpack.c.h.b16 %v4164
    %v5269 = vunpack.c.l.b16 %v4165
    %v5270 = vunpack.c.h.b16 %v4165
    %v5271 = vunpack.c.l.b16 %v4166
    %v5272 = vunpack.c.h.b16 %v4166
    %v5273 = vunpack.c.l.b16 %v4167
    %v5274 = vunpack.c.h.b16 %v4167
    %v5275 = vunpack.c.l.b16 %v4168
    %v5276 = vunpack.c.h.b16 %v4168
    %v5277 = vunpack.c.l.b16 %v4169
    %v5278 = vunpack.c.h.b16 %v4169
    %v5279 = vunpack.c.l.b16 %v4170
    %v5280 = vunpack.c.h.b16 %v4170
    %v5281 = vunpack.c.l.b16 %v4171
    %v5282 = vunpack.c.h.b16 %v4171
    %v5283 = vunpack.c.l.b16 %v4172
    %v5284 = vunpack.c.h.b16 %v4172
    %v5285 = vunpack.c.l.b16 %v4173
    %v5286 = vunpack.c.h.b16 %v4173
    %v5287 = vunpack.c.l.b16 %v4174
    %v5288 = vunpack.c.h.b16 %v4174
    %v5289 = vunpack.c.l.b16 %v4175
    %v5290 = vunpack.c.h.b16 %v4175
    %v5291 = vunpack.c.l.b16 %v4176
    %v5292 = vunpack.c.h.b16 %v4176
    %v5293 = vunpack.c.l.b16 %v4177
    %v5294 = vunpack.c.h.b16 %v4177
    %v5295 = vunpack.c.l.b16 %v4178
    %v5296 = vunpack.c.h.b16 %v4178
    %v5297 = vunpack.c.l.b16 %v4179
    %v5298 = vunpack.c.h.b16 %v4179
    %v5299 = vunpack.c.l.b16 %v4180
    %v5300 = vunpack.c.h.b16 %v4180
    %v5301 = vunpack.c.l.b16 %v4181
    %v5302 = vunpack.c.h.b16 %v4181
    %v5303 = vunpack.c.l.b16 %v4182
    %v5304 = vunpack.c.h.b16 %v4182
    %v5305 = vunpack.c.l.b16 %v4183
    %v5306 = vunpack.c.h.b16 %v4183
    %v5307 = vunpack.c.l.b16 %v4184
    %v5308 = vunpack.c.h.b16 %v4184
    %v5309 = vunpack.c.l.b16 %v4185
    %v5310 = vunpack.c.h.b16 %v4185
    %v5311 = vunpack.c.l.b16 %v4186
    %v5312 = vunpack.c.h.b16 %v4186
    %v5313 = vunpack.c.l.b16 %v4187
    %v5314 = vunpack.c.h.b16 %v4187
    %v5315 = vunpack.c.l.b16 %v4188
    %v5316 = vunpack.c.h.b16 %v4188
    %v5317 = vunpack.c.l.b16 %v4189
    %v5318 = vunpack.c.h.b16 %v4189
    %v5319 = vunpack.c.l.b16 %v4190
    %v5320 = vunpack.c.h.b16 %v4190
    %v5321 = vunpack.c.l.b16 %v4191
    %v5322 = vunpack.c.h.b16 %v4191
    %v5323 = vunpack.c.l.b16 %v4192
    %v5324 = vunpack.c.h.b16 %v4192
    %v5325 = vunpack.c.l.b16 %v4193
    %v5326 = vunpack.c.h.b16 %v4193
    %v5327 = vunpack.c.l.b16 %v4194
    %v5328 = vunpack.c.h.b16 %v4194
    %v5329 = vunpack.c.l.b16 %v4195
    %v5330 = vunpack.c.h.b16 %v4195
    %v5331 = vunpack.c.l.b16 %v4196
    %v5332 = vunpack.c.h.b16 %v4196
    %v5333 = vunpack.c.l.b16 %v4197
    %v5334 = vunpack.c.h.b16 %v4197
    %v5335 = vunpack.c.l.b16 %v4198
    %v5336 = vunpack.c.h.b16 %v4198
    %v5337 = vunpack.c.l.b16 %v4199
    %v5338 = vunpack.c.h.b16 %v4199
    %v5339 = vunpack.c.l.b16 %v4200
    %v5340 = vunpack.c.h.b16 %v4200
    %v5341 = vunpack.c.l.b16 %v4201
    %v5342 = vunpack.c.h.b16 %v4201
    %v5343 = vunpack.c.l.b16 %v4202
    %v5344 = vunpack.c.h.b16 %v4202
    %v5345 = vunpack.c.l.b16 %v4203
    %v5346 = vunpack.c.h.b16 %v4203
    %v5347 = vunpack.c.l.b16 %v4204
    %v5348 = vunpack.c.h.b16 %v4204
    %v5349 = vunpack.c.l.b16 %v4205
    %v5350 = vunpack.c.h.b16 %v4205
    %v5351 = vunpack.c.l.b16 %v4206
    %v5352 = vunpack.c.h.b16 %v4206
    %v5353 = vunpack.c.l.b16 %v4207
    %v5354 = vunpack.c.h.b16 %v4207
    %v5355 = vunpack.c.l.b16 %v4208
    %v5356 = vunpack.c.h.b16 %v4208
    %v5357 = vunpack.c.l.b16 %v4209
    %v5358 = vunpack.c.h.b16 %v4209
    %v5359 = vunpack.c.l.b16 %v4210
    %v5360 = vunpack.c.h.b16 %v4210
    %v5361 = vunpack.c.l.b16 %v4211
    %v5362 = vunpack.c.h.b16 %v4211
    %v5363 = vunpack.c.l.b16 %v4212
    %v5364 = vunpack.c.h.b16 %v4212
    %v5365 = vunpack.c.l.b16 %v4213
    %v5366 = vunpack.c.h.b16 %v4213
    %v5367 = vunpack.c.l.b16 %v4214
    %v5368 = vunpack.c.h.b16 %v4214
    %v5369 = vunpack.c.l.b16 %v4215
    %v5370 = vunpack.c.h.b16 %v4215
    %v5371 = vunpack.c.l.b16 %v4216
    %v5372 = vunpack.c.h.b16 %v4216
    %v5373 = vunpack.c.l.b16 %v4217
    %v5374 = vunpack.c.h.b16 %v4217
    %v5375 = vunpack.c.l.b16 %v4218
    %v5376 = vunpack.c.h.b16 %v4218
    %v5377 = vunpack.c.l.b16 %v4219
    %v5378 = vunpack.c.h.b16 %v4219
    %v5379 = vunpack.c.l.b16 %v4220
    %v5380 = vunpack.c.h.b16 %v4220
    %v5381 = vunpack.c.l.b16 %v4221
    %v5382 = vunpack.c.h.b16 %v4221
    %v5383 = vunpack.c.l.b16 %v4222
    %v5384 = vunpack.c.h.b16 %v4222
    %v5385 = vunpack.c.l.b16 %v4223
    %v5386 = vunpack.c.h.b16 %v4223
    %v5387 = vunpack.c.l.b16 %v4224
    %v5388 = vunpack.c.h.b16 %v4224
    %v5389 = vunpack.c.l.b16 %v4225
    %v5390 = vunpack.c.h.b16 %v4225
    %v5391 = vunpack.c.l.b16 %v4226
    %v5392 = vunpack.c.h.b16 %v4226
    %v5393 = vunpack.c.l.b16 %v4227
    %v5394 = vunpack.c.h.b16 %v4227
    %v5395 = vunpack.c.l.b16 %v4228
    %v5396 = vunpack.c.h.b16 %v4228
    %v5397 = vunpack.c.l.b16 %v4229
    %v5398 = vunpack.c.h.b16 %v4229
    %v5399 = vunpack.c.l.b16 %v4230
    %v5400 = vunpack.c.h.b16 %v4230
    %v5401 = vunpack.c.l.b16 %v4231
    %v5402 = vunpack.c.h.b16 %v4231
    %v5403 = vunpack.c.l.b16 %v4232
    %v5404 = vunpack.c.h.b16 %v4232
    %v5405 = vunpack.c.l.b16 %v4233
    %v5406 = vunpack.c.h.b16 %v4233
    %v5407 = vunpack.c.l.b16 %v4234
    %v5408 = vunpack.c.h.b16 %v4234
    %v5409 = vunpack.c.l.b16 %v4235
    %v5410 = vunpack.c.h.b16 %v4235
    %v5411 = vunpack.c.l.b16 %v4236
    %v5412 = vunpack.c.h.b16 %v4236
    %v5413 = vunpack.c.l.b16 %v4237
    %v5414 = vunpack.c.h.b16 %v4237
    %v5415 = vunpack.c.l.b16 %v4238
    %v5416 = vunpack.c.h.b16 %v4238
    %v5417 = vunpack.c.l.b16 %v4239
    %v5418 = vunpack.c.h.b16 %v4239
    %v5419 = vunpack.c.l.b16 %v4240
    %v5420 = vunpack.c.h.b16 %v4240
    %v5421 = vunpack.c.l.b16 %v4241
    %v5422 = vunpack.c.h.b16 %v4241
    %v5423 = vunpack.c.l.b16 %v4242
    %v5424 = vunpack.c.h.b16 %v4242
    %v5425 = vunpack.c.l.b16 %v4243
    %v5426 = vunpack.c.h.b16 %v4243
    %v5427 = vunpack.c.l.b16 %v4244
    %v5428 = vunpack.c.h.b16 %v4244
    %v5429 = vunpack.c.l.b16 %v4245
    %v5430 = vunpack.c.h.b16 %v4245
    %v5431 = vunpack.c.l.b16 %v4246
    %v5432 = vunpack.c.h.b16 %v4246
    %v5433 = vunpack.c.l.b16 %v4247
    %v5434 = vunpack.c.h.b16 %v4247
    %v5435 = vunpack.c.l.b16 %v4248
    %v5436 = vunpack.c.h.b16 %v4248
    %v5437 = vunpack.c.l.b16 %v4249
    %v5438 = vunpack.c.h.b16 %v4249
    %v5439 = vunpack.c.l.b16 %v4250
    %v5440 = vunpack.c.h.b16 %v4250
    %v5441 = vunpack.c.l.b16 %v4251
    %v5442 = vunpack.c.h.b16 %v4251
    %v5443 = vunpack.c.l.b16 %v4252
    %v5444 = vunpack.c.h.b16 %v4252
    %v5445 = vunpack.c.l.b16 %v4253
    %v5446 = vunpack.c.h.b16 %v4253
    %v5447 = vunpack.c.l.b16 %v4254
    %v5448 = vunpack.c.h.b16 %v4254
    %v5449 = vunpack.c.l.b16 %v4255
    %v5450 = vunpack.c.h.b16 %v4255
    %v5451 = vunpack.c.l.b16 %v4256
    %v5452 = vunpack.c.h.b16 %v4256
    %v5453 = vunpack.c.l.b16 %v4257
    %v5454 = vunpack.c.h.b16 %v4257
    %v5455 = vunpack.c.l.b16 %v4258
    %v5456 = vunpack.c.h.b16 %v4258
    %v5457 = vunpack.c.l.b16 %v4259
    %v5458 = vunpack.c.h.b16 %v4259
    %v5459 = vunpack.c.l.b16 %v4260
    %v5460 = vunpack.c.h.b16 %v4260
    %v5461 = vunpack.c.l.b16 %v4261
    %v5462 = vunpack.c.h.b16 %v4261
    %v5463 = vunpack.c.l.b16 %v4262
    %v5464 = vunpack.c.h.b16 %v4262
    %v5465 = vunpack.c.l.b16 %v4263
    %v5466 = vunpack.c.h.b16 %v4263
    %v5467 = vunpack.c.l.b16 %v4264
    %v5468 = vunpack.c.h.b16 %v4264
    %v5469 = vunpack.c.l.b16 %v4265
    %v5470 = vunpack.c.h.b16 %v4265
    %v5471 = vunpack.c.l.b16 %v4266
    %v5472 = vunpack.c.h.b16 %v4266
    %v5473 = vunpack.c.l.b16 %v4267
    %v5474 = vunpack.c.h.b16 %v4267
    %v5475 = vunpack.c.l.b16 %v4268
    %v5476 = vunpack.c.h.b16 %v4268
    %v5477 = vunpack.c.l.b16 %v4269
    %v5478 = vunpack.c.h.b16 %v4269
    %v5479 = vunpack.c.l.b16 %v4270
    %v5480 = vunpack.c.h.b16 %v4270
    %v5481 = vunpack.c.l.b16 %v4271
    %v5482 = vunpack.c.h.b16 %v4271
    %v5483 = vunpack.c.l.b16 %v4272
    %v5484 = vunpack.c.h.b16 %v4272
    %v5485 = vunpack.c.l.b16 %v4273
    %v5486 = vunpack.c.h.b16 %v4273
    %v5487 = vunpack.c.l.b16 %v4274
    %v5488 = vunpack.c.h.b16 %v4274
    %v5489 = vunpack.c.l.b16 %v4275
    %v5490 = vunpack.c.h.b16 %v4275
    %v5491 = vunpack.c.l.b16 %v4276
    %v5492 = vunpack.c.h.b16 %v4276
    %v5493 = vunpack.c.l.b16 %v4277
    %v5494 = vunpack.c.h.b16 %v4277
    %v5495 = vunpack.c.l.b16 %v4278
    %v5496 = vunpack.c.h.b16 %v4278
    %v5497 = vunpack.c.l.b16 %v4279
    %v5498 = vunpack.c.h.b16 %v4279
    %v5499 = vunpack.c.l.b16 %v4280
    %v5500 = vunpack.c.h.b16 %v4280
    %v5501 = vunpack.c.l.b16 %v4281
    %v5502 = vunpack.c.h.b16 %v4281
    %v5503 = vunpack.c.l.b16 %v4282
    %v5504 = vunpack.c.h.b16 %v4282
    %v5505 = vunpack.c.l.b16 %v4283
    %v5506 = vunpack.c.h.b16 %v4283
    %v5507 = vunpack.c.l.b16 %v4284
    %v5508 = vunpack.c.h.b16 %v4284
    %v5509 = vunpack.c.l.b16 %v4285
    %v5510 = vunpack.c.h.b16 %v4285
    %v5511 = vunpack.c.l.b16 %v4286
    %v5512 = vunpack.c.h.b16 %v4286
    %v5513 = vunpack.c.l.b16 %v4287
    %v5514 = vunpack.c.h.b16 %v4287
    %v5515 = vunpack.c.l.b16 %v4288
    %v5516 = vunpack.c.h.b16 %v4288
    %v5517 = vunpack.c.l.b16 %v4289
    %v5518 = vunpack.c.h.b16 %v4289
    %v5519 = vunpack.c.l.b16 %v4290
    %v5520 = vunpack.c.h.b16 %v4290
    %v5521 = vunpack.c.l.b16 %v4291
    %v5522 = vunpack.c.h.b16 %v4291
    %v5523 = vunpack.c.l.b16 %v4292
    %v5524 = vunpack.c.h.b16 %v4292
    %v5525 = vunpack.c.l.b16 %v4293
    %v5526 = vunpack.c.h.b16 %v4293
    %v5527 = vunpack.c.l.b16 %v4294
    %v5528 = vunpack.c.h.b16 %v4294
    %v5529 = vunpack.c.l.b16 %v4295
    %v5530 = vunpack.c.h.b16 %v4295
    %v5531 = vunpack.c.l.b16 %v4296
    %v5532 = vunpack.c.h.b16 %v4296
    %v5533 = vunpack.c.l.b16 %v4297
    %v5534 = vunpack.c.h.b16 %v4297
    %v5535 = vunpack.c.l.b16 %v4298
    %v5536 = vunpack.c.h.b16 %v4298
    %v5537 = vunpack.c.l.b16 %v4299
    %v5538 = vunpack.c.h.b16 %v4299
    %v5539 = vunpack.c.l.b16 %v4300
    %v5540 = vunpack.c.h.b16 %v4300
    %v5541 = vunpack.c.l.b16 %v4301
    %v5542 = vunpack.c.h.b16 %v4301
    %v5543 = vunpack.c.l.b16 %v4302
    %v5544 = vunpack.c.h.b16 %v4302
    %v5545 = vunpack.c.l.b16 %v4303
    %v5546 = vunpack.c.h.b16 %v4303
    %v5547 = vunpack.c.l.b16 %v4304
    %v5548 = vunpack.c.h.b16 %v4304
    %v5549 = vunpack.c.l.b16 %v4305
    %v5550 = vunpack.c.h.b16 %v4305
    %v5551 = vunpack.c.l.b16 %v4306
    %v5552 = vunpack.c.h.b16 %v4306
    %v5553 = vunpack.c.l.b16 %v4307
    %v5554 = vunpack.c.h.b16 %v4307
    %v5555 = vunpack.c.l.b16 %v4308
    %v5556 = vunpack.c.h.b16 %v4308
    %v5557 = vunpack.c.l.b16 %v4309
    %v5558 = vunpack.c.h.b16 %v4309
    %v5559 = vunpack.c.l.b16 %v4310
    %v5560 = vunpack.c.h.b16 %v4310
    %v5561 = vunpack.c.l.b16 %v4311
    %v5562 = vunpack.c.h.b16 %v4311
    %v5563 = vunpack.c.l.b16 %v4312
    %v5564 = vunpack.c.h.b16 %v4312
    %v5565 = vunpack.c.l.b16 %v4313
    %v5566 = vunpack.c.h.b16 %v4313
    %v5567 = vunpack.c.l.b16 %v4314
    %v5568 = vunpack.c.h.b16 %v4314
    %v5569 = vunpack.c.l.b16 %v4315
    %v5570 = vunpack.c.h.b16 %v4315
    %v5571 = vunpack.c.l.b16 %v4316
    %v5572 = vunpack.c.h.b16 %v4316
    %v5573 = vunpack.c.l.b16 %v4317
    %v5574 = vunpack.c.h.b16 %v4317
    %v5575 = vunpack.c.l.b16 %v4318
    %v5576 = vunpack.c.h.b16 %v4318
    %v5577 = vunpack.c.l.b16 %v4319
    %v5578 = vunpack.c.h.b16 %v4319
    %v5579 = vunpack.c.l.b16 %v4320
    %v5580 = vunpack.c.h.b16 %v4320
    %v5581 = vunpack.c.l.b16 %v4321
    %v5582 = vunpack.c.h.b16 %v4321
    %v5583 = vunpack.c.l.b16 %v4322
    %v5584 = vunpack.c.h.b16 %v4322
    %v5585 = vunpack.c.l.b16 %v4323
    %v5586 = vunpack.c.h.b16 %v4323
    %v5587 = vunpack.c.l.b16 %v4324
    %v5588 = vunpack.c.h.b16 %v4324
    %v5589 = vunpack.c.l.b16 %v4325
    %v5590 = vunpack.c.h.b16 %v4325
    %v5591 = vunpack.c.l.b16 %v4326
    %v5592 = vunpack.c.h.b16 %v4326
    %v5593 = vunpack.c.l.b16 %v4327
    %v5594 = vunpack.c.h.b16 %v4327
    %v5595 = vunpack.c.l.b16 %v4328
    %v5596 = vunpack.c.h.b16 %v4328
    %v5597 = vunpack.c.l.b16 %v4329
    %v5598 = vunpack.c.h.b16 %v4329
    %v5599 = vunpack.c.l.b16 %v4330
    %v5600 = vunpack.c.h.b16 %v4330
    %v5601 = vunpack.c.l.b16 %v4331
    %v5602 = vunpack.c.h.b16 %v4331
    %v5603 = vunpack.c.l.b16 %v4332
    %v5604 = vunpack.c.h.b16 %v4332
    %v5605 = vunpack.c.l.b16 %v4333
    %v5606 = vunpack.c.h.b16 %v4333
    %v5607 = vunpack.c.l.b16 %v4334
    %v5608 = vunpack.c.h.b16 %v4334
    %v5609 = vunpack.c.l.b16 %v4335
    %v5610 = vunpack.c.h.b16 %v4335
    %v5611 = vunpack.c.l.b16 %v4336
    %v5612 = vunpack.c.h.b16 %v4336
    %v5613 = vunpack.c.l.b16 %v4337
    %v5614 = vunpack.c.h.b16 %v4337
    %v5615 = vunpack.c.l.b16 %v4338
    %v5616 = vunpack.c.h.b16 %v4338
    %v5617 = vunpack.c.l.b16 %v4339
    %v5618 = vunpack.c.h.b16 %v4339
    %v5619 = vunpack.c.l.b16 %v4340
    %v5620 = vunpack.c.h.b16 %v4340
    %v5621 = vunpack.c.l.b16 %v4341
    %v5622 = vunpack.c.h.b16 %v4341
    %v5623 = vunpack.c.l.b16 %v4342
    %v5624 = vunpack.c.h.b16 %v4342
    %v5625 = vunpack.c.l.b16 %v4343
    %v5626 = vunpack.c.h.b16 %v4343
    %v5627 = vunpack.c.l.b16 %v4344
    %v5628 = vunpack.c.h.b16 %v4344
    %v5629 = vunpack.c.l.b16 %v4345
    %v5630 = vunpack.c.h.b16 %v4345
    %v5631 = vunpack.c.l.b16 %v4346
    %v5632 = vunpack.c.h.b16 %v4346
    %v5633 = vunpack.c.l.b16 %v4347
    %v5634 = vunpack.c.h.b16 %v4347
    %v5635 = vunpack.c.l.b16 %v4348
    %v5636 = vunpack.c.h.b16 %v4348
    %v5637 = vunpack.c.l.b16 %v4349
    %v5638 = vunpack.c.h.b16 %v4349
    %v5639 = vunpack.c.l.b16 %v4350
    %v5640 = vunpack.c.h.b16 %v4350
    %v5641 = vunpack.c.l.b16 %v4351
    %v5642 = vunpack.c.h.b16 %v4351
    %v5643 = vunpack.c.l.b16 %v4352
    %v5644 = vunpack.c.h.b16 %v4352
    %v5645 = vunpack.c.l.b16 %v4353
    %v5646 = vunpack.c.h.b16 %v4353
    %v5647 = vunpack.c.l.b16 %v4354
    %v5648 = vunpack.c.h.b16 %v4354
    %v5649 = vunpack.c.l.b16 %v4355
    %v5650 = vunpack.c.h.b16 %v4355
    %v5651 = vunpack.c.l.b16 %v4356
    %v5652 = vunpack.c.h.b16 %v4356
    %v5653 = vunpack.c.l.b16 %v4357
    %v5654 = vunpack.c.h.b16 %v4357
    %v5655 = vunpack.c.l.b16 %v4358
    %v5656 = vunpack.c.h.b16 %v4358
    %v5657 = vunpack.c.l.b16 %v4359
    %v5658 = vunpack.c.h.b16 %v4359
    %v5659 = vunpack.c.l.b16 %v4360
    %v5660 = vunpack.c.h.b16 %v4360
    %v5661 = vunpack.c.l.b16 %v4361
    %v5662 = vunpack.c.h.b16 %v4361
    %v5663 = vunpack.c.l.b16 %v4362
    %v5664 = vunpack.c.h.b16 %v4362
    %v5665 = vunpack.c.l.b16 %v4363
    %v5666 = vunpack.c.h.b16 %v4363
    %v5667 = vunpack.c.l.b16 %v4364
    %v5668 = vunpack.c.h.b16 %v4364
    %v5669 = vunpack.c.l.b16 %v4365
    %v5670 = vunpack.c.h.b16 %v4365
    %v5671 = vunpack.c.l.b16 %v4366
    %v5672 = vunpack.c.h.b16 %v4366
    %v5673 = vunpack.c.l.b16 %v4367
    %v5674 = vunpack.c.h.b16 %v4367
    %v5675 = vunpack.c.l.b16 %v4368
    %v5676 = vunpack.c.h.b16 %v4368
    %v5677 = vunpack.c.l.b16 %v4369
    %v5678 = vunpack.c.h.b16 %v4369
    %v5679 = vunpack.c.l.b16 %v4370
    %v5680 = vunpack.c.h.b16 %v4370
    %v5681 = vunpack.c.l.b16 %v4371
    %v5682 = vunpack.c.h.b16 %v4371
    %v5683 = vunpack.c.l.b16 %v4372
    %v5684 = vunpack.c.h.b16 %v4372
    %v5685 = vunpack.c.l.b16 %v4373
    %v5686 = vunpack.c.h.b16 %v4373
    %v5687 = vunpack.c.l.b16 %v4374
    %v5688 = vunpack.c.h.b16 %v4374
    %v5689 = vunpack.c.l.b16 %v4375
    %v5690 = vunpack.c.h.b16 %v4375
    %v5691 = vunpack.c.l.b16 %v4376
    %v5692 = vunpack.c.h.b16 %v4376
    %v5693 = vunpack.c.l.b16 %v4377
    %v5694 = vunpack.c.h.b16 %v4377
    %v5695 = vunpack.c.l.b16 %v4378
    %v5696 = vunpack.c.h.b16 %v4378
    %v5697 = vunpack.c.l.b16 %v4379
    %v5698 = vunpack.c.h.b16 %v4379
    %v5699 = vunpack.c.l.b16 %v4380
    %v5700 = vunpack.c.h.b16 %v4380
    %v5701 = vunpack.c.l.b16 %v4381
    %v5702 = vunpack.c.h.b16 %v4381
    %v5703 = vunpack.c.l.b16 %v4382
    %v5704 = vunpack.c.h.b16 %v4382
    %v5705 = vunpack.c.l.b16 %v4383
    %v5706 = vunpack.c.h.b16 %v4383
    %v5707 = vunpack.c.l.b16 %v4384
    %v5708 = vunpack.c.h.b16 %v4384
    %v5709 = vunpack.c.l.b16 %v4385
    %v5710 = vunpack.c.h.b16 %v4385
    %v5711 = vunpack.c.l.b16 %v4386
    %v5712 = vunpack.c.h.b16 %v4386
    %v5713 = vunpack.c.l.b16 %v4387
    %v5714 = vunpack.c.h.b16 %v4387
    %v5715 = vunpack.c.l.b16 %v4388
    %v5716 = vunpack.c.h.b16 %v4388
    %v5717 = vunpack.c.l.b16 %v4389
    %v5718 = vunpack.c.h.b16 %v4389
    %v5719 = vunpack.c.l.b16 %v4390
    %v5720 = vunpack.c.h.b16 %v4390
    %v5721 = vunpack.c.l.b16 %v4391
    %v5722 = vunpack.c.h.b16 %v4391
    %v5723 = vunpack.c.l.b16 %v4392
    %v5724 = vunpack.c.h.b16 %v4392
    %v5725 = vunpack.c.l.b16 %v4393
    %v5726 = vunpack.c.h.b16 %v4393
    %v5727 = vunpack.c.l.b16 %v4394
    %v5728 = vunpack.c.h.b16 %v4394
    %v5729 = vunpack.c.l.b16 %v4395
    %v5730 = vunpack.c.h.b16 %v4395
    %v5731 = vunpack.c.l.b16 %v4396
    %v5732 = vunpack.c.h.b16 %v4396
    %v5733 = vunpack.c.l.b16 %v4397
    %v5734 = vunpack.c.h.b16 %v4397
    %v5735 = vunpack.c.l.b16 %v4398
    %v5736 = vunpack.c.h.b16 %v4398
    %v5737 = vunpack.c.l.b16 %v4399
    %v5738 = vunpack.c.h.b16 %v4399
    %v5739 = vunpack.c.l.b16 %v4400
    %v5740 = vunpack.c.h.b16 %v4400
    %v5741 = vunpack.c.l.b16 %v4401
    %v5742 = vunpack.c.h.b16 %v4401
    %v5743 = vunpack.c.l.b16 %v4402
    %v5744 = vunpack.c.h.b16 %v4402
    %v5745 = vunpack.c.l.b16 %v4403
    %v5746 = vunpack.c.h.b16 %v4403
    %v5747 = vunpack.c.l.b16 %v4404
    %v5748 = vunpack.c.h.b16 %v4404
    %v5749 = vunpack.c.l.b16 %v4405
    %v5750 = vunpack.c.h.b16 %v4405
    %v5751 = vunpack.c.l.b16 %v4406
    %v5752 = vunpack.c.h.b16 %v4406
    %v5753 = vunpack.c.l.b16 %v4407
    %v5754 = vunpack.c.h.b16 %v4407
    %v5755 = vunpack.c.l.b16 %v4408
    %v5756 = vunpack.c.h.b16 %v4408
    %v5757 = vunpack.c.l.b16 %v4409
    %v5758 = vunpack.c.h.b16 %v4409
    %v5759 = vunpack.c.l.b16 %v4410
    %v5760 = vunpack.c.h.b16 %v4410
    %v5761 = vunpack.c.l.b16 %v4411
    %v5762 = vunpack.c.h.b16 %v4411
    %v5763 = vunpack.c.l.b16 %v4412
    %v5764 = vunpack.c.h.b16 %v4412
    %v5765 = vunpack.c.l.b16 %v4413
    %v5766 = vunpack.c.h.b16 %v4413
    %v5767 = vunpack.c.l.b16 %v4414
    %v5768 = vunpack.c.h.b16 %v4414
    %v5769 = vunpack.c.l.b16 %v4415
    %v5770 = vunpack.c.h.b16 %v4415
    %v5771 = vunpack.c.l.b16 %v4416
    %v5772 = vunpack.c.h.b16 %v4416
    %v5773 = vunpack.c.l.b16 %v4417
    %v5774 = vunpack.c.h.b16 %v4417
    %v5775 = vunpack.c.l.b16 %v4418
    %v5776 = vunpack.c.h.b16 %v4418
    %v5777 = vunpack.c.l.b16 %v4419
    %v5778 = vunpack.c.h.b16 %v4419
    %v5779 = vunpack.c.l.b16 %v4420
    %v5780 = vunpack.c.h.b16 %v4420
    %v5781 = vunpack.c.l.b16 %v4421
    %v5782 = vunpack.c.h.b16 %v4421
    %v5783 = vunpack.c.l.b16 %v4422
    %v5784 = vunpack.c.h.b16 %v4422
    %v5785 = vunpack.c.l.b16 %v4423
    %v5786 = vunpack.c.h.b16 %v4423
    %v5787 = vunpack.c.l.b16 %v4424
    %v5788 = vunpack.c.h.b16 %v4424
    %v5789 = vunpack.c.l.b16 %v4425
    %v5790 = vunpack.c.h.b16 %v4425
    %v5791 = vunpack.c.l.b16 %v4426
    %v5792 = vunpack.c.h.b16 %v4426
    %v5793 = vunpack.c.l.b16 %v4427
    %v5794 = vunpack.c.h.b16 %v4427
    %v5795 = vunpack.c.l.b16 %v4428
    %v5796 = vunpack.c.h.b16 %v4428
    %v5797 = vunpack.c.l.b16 %v4429
    %v5798 = vunpack.c.h.b16 %v4429
    %v5799 = vunpack.c.l.b16 %v4430
    %v5800 = vunpack.c.h.b16 %v4430
    %v5801 = vunpack.c.l.b16 %v4431
    %v5802 = vunpack.c.h.b16 %v4431
    %v5803 = vunpack.c.l.b16 %v4432
    %v5804 = vunpack.c.h.b16 %v4432
    %v5805 = vunpack.c.l.b16 %v4433
    %v5806 = vunpack.c.h.b16 %v4433
    %v5807 = vunpack.c.l.b16 %v4434
    %v5808 = vunpack.c.h.b16 %v4434
    %v5809 = vunpack.c.l.b16 %v4435
    %v5810 = vunpack.c.h.b16 %v4435
    %v5811 = vunpack.c.l.b16 %v4436
    %v5812 = vunpack.c.h.b16 %v4436
    %v5813 = vunpack.c.l.b16 %v4437
    %v5814 = vunpack.c.h.b16 %v4437
    %v5815 = vunpack.c.l.b16 %v4438
    %v5816 = vunpack.c.h.b16 %v4438
    %v5817 = vunpack.c.l.b16 %v4439
    %v5818 = vunpack.c.h.b16 %v4439
    %v5819 = vunpack.c.l.b16 %v4440
    %v5820 = vunpack.c.h.b16 %v4440
    %v5821 = vunpack.c.l.b16 %v4441
    %v5822 = vunpack.c.h.b16 %v4441
    %v5823 = vunpack.c.l.b16 %v4442
    %v5824 = vunpack.c.h.b16 %v4442
    %v5825 = vunpack.c.l.b16 %v4443
    %v5826 = vunpack.c.h.b16 %v4443
    %v5827 = vunpack.c.l.b16 %v4444
    %v5828 = vunpack.c.h.b16 %v4444
    %v5829 = vunpack.c.l.b16 %v4445
    %v5830 = vunpack.c.h.b16 %v4445
    %v5831 = vunpack.c.l.b16 %v4446
    %v5832 = vunpack.c.h.b16 %v4446
    %v5833 = vunpack.c.l.b16 %v4447
    %v5834 = vunpack.c.h.b16 %v4447
    %v5835 = vunpack.c.l.b16 %v4448
    %v5836 = vunpack.c.h.b16 %v4448
    %v5837 = vunpack.c.l.b16 %v4449
    %v5838 = vunpack.c.h.b16 %v4449
    %v5839 = vunpack.c.l.b16 %v4450
    %v5840 = vunpack.c.h.b16 %v4450
    %v5841 = vunpack.c.l.b16 %v4451
    %v5842 = vunpack.c.h.b16 %v4451
    %v5843 = vunpack.c.l.b16 %v4452
    %v5844 = vunpack.c.h.b16 %v4452
    %v5845 = vunpack.c.l.b16 %v4453
    %v5846 = vunpack.c.h.b16 %v4453
    %v5847 = vunpack.c.l.b16 %v4454
    %v5848 = vunpack.c.h.b16 %v4454
    %v5849 = vunpack.c.l.b16 %v4455
    %v5850 = vunpack.c.h.b16 %v4455
    %v5851 = vunpack.c.l.b16 %v4456
    %v5852 = vunpack.c.h.b16 %v4456
    %v5853 = vunpack.c.l.b16 %v4457
    %v5854 = vunpack.c.h.b16 %v4457
    %v5855 = vunpack.c.l.b16 %v4458
    %v5856 = vunpack.c.h.b16 %v4458
    %v5857 = vunpack.c.l.b16 %v4459
    %v5858 = vunpack.c.h.b16 %v4459
    %v5859 = vunpack.c.l.b16 %v4460
    %v5860 = vunpack.c.h.b16 %v4460
    %v5861 = vunpack.c.l.b16 %v4461
    %v5862 = vunpack.c.h.b16 %v4461
    %v5863 = vunpack.c.l.b16 %v4462
    %v5864 = vunpack.c.h.b16 %v4462
    %v5865 = vunpack.c.l.b16 %v4463
    %v5866 = vunpack.c.h.b16 %v4463
    %v5867 = vunpack.c.l.b16 %v4464
    %v5868 = vunpack.c.h.b16 %v4464
    %v5869 = vunpack.c.l.b16 %v4465
    %v5870 = vunpack.c.h.b16 %v4465
    %v5871 = vunpack.c.l.b16 %v4466
    %v5872 = vunpack.c.h.b16 %v4466
    %v5873 = vunpack.c.l.b16 %v4467
    %v5874 = vunpack.c.h.b16 %v4467
    %v5875 = vunpack.c.l.b16 %v4468
    %v5876 = vunpack.c.h.b16 %v4468
    %v5877 = vunpack.c.l.b16 %v4469
    %v5878 = vunpack.c.h.b16 %v4469
    %v5879 = vunpack.c.l.b16 %v4470
    %v5880 = vunpack.c.h.b16 %v4470
    %v5881 = vunpack.c.l.b16 %v4471
    %v5882 = vunpack.c.h.b16 %v4471
    %v5883 = vunpack.c.l.b16 %v4472
    %v5884 = vunpack.c.h.b16 %v4472
    %v5885 = vunpack.c.l.b16 %v4473
    %v5886 = vunpack.c.h.b16 %v4473
    %v5887 = vunpack.c.l.b16 %v4474
    %v5888 = vunpack.c.h.b16 %v4474
    %v5889 = vunpack.c.l.b16 %v4475
    %v5890 = vunpack.c.h.b16 %v4475
    %v5891 = vunpack.c.l.b16 %v4476
    %v5892 = vunpack.c.h.b16 %v4476
    %v5893 = vunpack.c.l.b16 %v4477
    %v5894 = vunpack.c.h.b16 %v4477
    %v5895 = vunpack.c.l.b16 %v4478
    %v5896 = vunpack.c.h.b16 %v4478
    %v5897 = vunpack.c.l.b16 %v4479
    %v5898 = vunpack.c.h.b16 %v4479
    %v5899 = vunpack.c.l.b16 %v4480
    %v5900 = vunpack.c.h.b16 %v4480
    %v5901 = vunpack.c.l.b16 %v4481
    %v5902 = vunpack.c.h.b16 %v4481
    %v5903 = vunpack.c.l.b16 %v4482
    %v5904 = vunpack.c.h.b16 %v4482
    %v5905 = vunpack.c.l.b16 %v4483
    %v5906 = vunpack.c.h.b16 %v4483
    %v5907 = vunpack.c.l.b16 %v4484
    %v5908 = vunpack.c.h.b16 %v4484
    %v5909 = vunpack.c.l.b16 %v4485
    %v5910 = vunpack.c.h.b16 %v4485
    %v5911 = vunpack.c.l.b16 %v4486
    %v5912 = vunpack.c.h.b16 %v4486
    %v5913 = vunpack.c.l.b16 %v4487
    %v5914 = vunpack.c.h.b16 %v4487
    %v5915 = vunpack.c.l.b16 %v4488
    %v5916 = vunpack.c.h.b16 %v4488
    %v5917 = vunpack.c.l.b16 %v4489
    %v5918 = vunpack.c.h.b16 %v4489
    %v5919 = vunpack.c.l.b16 %v4490
    %v5920 = vunpack.c.h.b16 %v4490
    %v5921 = vunpack.c.l.b16 %v4491
    %v5922 = vunpack.c.h.b16 %v4491
    %v5923 = vunpack.c.l.b16 %v4492
    %v5924 = vunpack.c.h.b16 %v4492
    %v5925 = vunpack.c.l.b16 %v4493
    %v5926 = vunpack.c.h.b16 %v4493
    %v5927 = vunpack.c.l.b16 %v4494
    %v5928 = vunpack.c.h.b16 %v4494
    %v5929 = vunpack.c.l.b16 %v4495
    %v5930 = vunpack.c.h.b16 %v4495
    %v5931 = vunpack.c.l.b16 %v4496
    %v5932 = vunpack.c.h.b16 %v4496
    %v5933 = vunpack.c.l.b16 %v4497
    %v5934 = vunpack.c.h.b16 %v4497
    %v5935 = vunpack.c.l.b16 %v4498
    %v5936 = vunpack.c.h.b16 %v4498
    %v5937 = vunpack.c.l.b16 %v4499
    %v5938 = vunpack.c.h.b16 %v4499
    %v5939 = vunpack.c.l.b16 %v4500
    %v5940 = vunpack.c.h.b16 %v4500
    %v5941 = vunpack.c.l.b16 %v4501
    %v5942 = vunpack.c.h.b16 %v4501
    %v5943 = vunpack.c.l.b16 %v4502
    %v5944 = vunpack.c.h.b16 %v4502
    %v5945 = vunpack.c.l.b16 %v4503
    %v5946 = vunpack.c.h.b16 %v4503
    %v5947 = vunpack.c.l.b16 %v4504
    %v5948 = vunpack.c.h.b16 %v4504
    %v5949 = vunpack.c.l.b16 %v4505
    %v5950 = vunpack.c.h.b16 %v4505
    %v5951 = vunpack.c.l.b16 %v4506
    %v5952 = vunpack.c.h.b16 %v4506
    %v5953 = vunpack.c.l.b16 %v4507
    %v5954 = vunpack.c.h.b16 %v4507
    %v5955 = vunpack.c.l.b16 %v4508
    %v5956 = vunpack.c.h.b16 %v4508
    %v5957 = vunpack.c.l.b16 %v4509
    %v5958 = vunpack.c.h.b16 %v4509
    %v5959 = vunpack.c.l.b16 %v4510
    %v5960 = vunpack.c.h.b16 %v4510
    %v5961 = vunpack.c.l.b16 %v4511
    %v5962 = vunpack.c.h.b16 %v4511
    %v5963 = vunpack.c.l.b16 %v4512
    %v5964 = vunpack.c.h.b16 %v4512
    %v5965 = vunpack.c.l.b16 %v4513
    %v5966 = vunpack.c.h.b16 %v4513
    %v5967 = vunpack.c.l.b16 %v4514
    %v5968 = vunpack.c.h.b16 %v4514
    %v5969 = vunpack.c.l.b16 %v4515
    %v5970 = vunpack.c.h.b16 %v4515
    %v5971 = vunpack.c.l.b16 %v4516
    %v5972 = vunpack.c.h.b16 %v4516
    %v5973 = vunpack.c.l.b16 %v4517
    %v5974 = vunpack.c.h.b16 %v4517
    %v5975 = vunpack.c.l.b16 %v4518
    %v5976 = vunpack.c.h.b16 %v4518
    %v5977 = vunpack.c.l.b16 %v4519
    %v5978 = vunpack.c.h.b16 %v4519
    %v5979 = vunpack.c.l.b16 %v4520
    %v5980 = vunpack.c.h.b16 %v4520
    %v5981 = vunpack.c.l.b16 %v4521
    %v5982 = vunpack.c.h.b16 %v4521
    %v5983 = vunpack.c.l.b16 %v4522
    %v5984 = vunpack.c.h.b16 %v4522
    %v5985 = vunpack.c.l.b16 %v4523
    %v5986 = vunpack.c.h.b16 %v4523
    %v5987 = vunpack.c.l.b16 %v4524
    %v5988 = vunpack.c.h.b16 %v4524
    %v5989 = vunpack.c.l.b16 %v4525
    %v5990 = vunpack.c.h.b16 %v4525
    %v5991 = vunpack.c.l.b16 %v4526
    %v5992 = vunpack.c.h.b16 %v4526
    %v5993 = vunpack.c.l.b16 %v4527
    %v5994 = vunpack.c.h.b16 %v4527
    %v5995 = vunpack.c.l.b16 %v4528
    %v5996 = vunpack.c.h.b16 %v4528
    %v5997 = vunpack.c.l.b16 %v4529
    %v5998 = vunpack.c.h.b16 %v4529
    %v5999 = vunpack.c.l.b16 %v4530
    %v6000 = vunpack.c.h.b16 %v4530
    %v6001 = vunpack.c.l.b16 %v4531
    %v6002 = vunpack.c.h.b16 %v4531
    %v6003 = vunpack.c.l.b16 %v4532
    %v6004 = vunpack.c.h.b16 %v4532
    %v6005 = vunpack.c.l.b16 %v4533
    %v6006 = vunpack.c.h.b16 %v4533
    %v6007 = vunpack.c.l.b16 %v4534
    %v6008 = vunpack.c.h.b16 %v4534
    %v6009 = vunpack.c.l.b16 %v4535
    %v6010 = vunpack.c.h.b16 %v4535
    %v6011 = vunpack.c.l.b16 %v4536
    %v6012 = vunpack.c.h.b16 %v4536
    %v6013 = vunpack.c.l.b16 %v4537
    %v6014 = vunpack.c.h.b16 %v4537
    %v6015 = vunpack.c.l.b16 %v4538
    %v6016 = vunpack.c.h.b16 %v4538
    %v6017 = vunpack.c.l.b16 %v4539
    %v6018 = vunpack.c.h.b16 %v4539
    %v6019 = vunpack.c.l.b16 %v4540
    %v6020 = vunpack.c.h.b16 %v4540
    %v6021 = vunpack.c.l.b16 %v4541
    %v6022 = vunpack.c.h.b16 %v4541
    %v6023 = vunpack.c.l.b16 %v4542
    %v6024 = vunpack.c.h.b16 %v4542
    %v6025 = vunpack.c.l.b16 %v4543
    %v6026 = vunpack.c.h.b16 %v4543
    %v6027 = vunpack.c.l.b16 %v4544
    %v6028 = vunpack.c.h.b16 %v4544
    %v6029 = vunpack.c.l.b16 %v4545
    %v6030 = vunpack.c.h.b16 %v4545
    %v6031 = vunpack.c.l.b16 %v4546
    %v6032 = vunpack.c.h.b16 %v4546
    %v6033 = vunpack.c.l.b16 %v4547
    %v6034 = vunpack.c.h.b16 %v4547
    %v6035 = vunpack.c.l.b16 %v4548
    %v6036 = vunpack.c.h.b16 %v4548
    %v6037 = vunpack.c.l.b16 %v4549
    %v6038 = vunpack.c.h.b16 %v4549
    %v6039 = vunpack.c.l.b16 %v4550
    %v6040 = vunpack.c.h.b16 %v4550
    %v6041 = vunpack.c.l.b16 %v4551
    %v6042 = vunpack.c.h.b16 %v4551
    %v6043 = vunpack.c.l.b16 %v4552
    %v6044 = vunpack.c.h.b16 %v4552
    %v6045 = vunpack.c.l.b16 %v4553
    %v6046 = vunpack.c.h.b16 %v4553
    %v6047 = vunpack.c.l.b16 %v4554
    %v6048 = vunpack.c.h.b16 %v4554
    %v6049 = vunpack.c.l.b16 %v4555
    %v6050 = vunpack.c.h.b16 %v4555
    %v6051 = vunpack.c.l.b16 %v4556
    %v6052 = vunpack.c.h.b16 %v4556
    %v6053 = vunpack.c.l.b16 %v4557
    %v6054 = vunpack.c.h.b16 %v4557
    %v6055 = vunpack.c.l.b16 %v4558
    %v6056 = vunpack.c.h.b16 %v4558
    %v6057 = vunpack.c.l.b16 %v4559
    %v6058 = vunpack.c.h.b16 %v4559
    %v6059 = vunpack.c.l.b16 %v4560
    %v6060 = vunpack.c.h.b16 %v4560
    %v6061 = vunpack.c.l.b16 %v4561
    %v6062 = vunpack.c.h.b16 %v4561
    %v6063 = vunpack.c.l.b16 %v4562
    %v6064 = vunpack.c.h.b16 %v4562
    %v6065 = vunpack.c.l.b16 %v4563
    %v6066 = vunpack.c.h.b16 %v4563
    %v6067 = vunpack.c.l.b16 %v4564
    %v6068 = vunpack.c.h.b16 %v4564
    %v6069 = vunpack.c.l.b16 %v4565
    %v6070 = vunpack.c.h.b16 %v4565
    %v6071 = vunpack.c.l.b16 %v4566
    %v6072 = vunpack.c.h.b16 %v4566
    %v6073 = vunpack.c.l.b16 %v4567
    %v6074 = vunpack.c.h.b16 %v4567
    %v6075 = vunpack.c.l.b16 %v4568
    %v6076 = vunpack.c.h.b16 %v4568
    %v6077 = vunpack.c.l.b16 %v4569
    %v6078 = vunpack.c.h.b16 %v4569
    %v6079 = vunpack.c.l.b16 %v4570
    %v6080 = vunpack.c.h.b16 %v4570
    %v6081 = vunpack.c.l.b16 %v4571
    %v6082 = vunpack.c.h.b16 %v4571
    %v6083 = vunpack.c.l.b16 %v4572
    %v6084 = vunpack.c.h.b16 %v4572
    %v6085 = vunpack.c.l.b16 %v4573
    %v6086 = vunpack.c.h.b16 %v4573
    %v6087 = vunpack.c.l.b16 %v4574
    %v6088 = vunpack.c.h.b16 %v4574
    %v6089 = vunpack.c.l.b16 %v4575
    %v6090 = vunpack.c.h.b16 %v4575
    %v6091 = vunpack.c.l.b16 %v4576
    %v6092 = vunpack.c.h.b16 %v4576
    %v6093 = vunpack.c.l.b16 %v4577
    %v6094 = vunpack.c.h.b16 %v4577
    %v6095 = vunpack.c.l.b16 %v4578
    %v6096 = vunpack.c.h.b16 %v4578
    %v6097 = vunpack.c.l.b16 %v4579
    %v6098 = vunpack.c.h.b16 %v4579
    %v6099 = vunpack.c.l.b16 %v4580
    %v6100 = vunpack.c.h.b16 %v4580
    %v6101 = vunpack.c.l.b16 %v4581
    %v6102 = vunpack.c.h.b16 %v4581
    %v6103 = vunpack.c.l.b16 %v4582
    %v6104 = vunpack.c.h.b16 %v4582
    %v6105 = vunpack.c.l.b16 %v4583
    %v6106 = vunpack.c.h.b16 %v4583
    %v6107 = vunpack.c.l.b16 %v4584
    %v6108 = vunpack.c.h.b16 %v4584
    %v6109 = vunpack.c.l.b16 %v4585
    %v6110 = vunpack.c.h.b16 %v4585
    %v6111 = vunpack.c.l.b16 %v4586
    %v6112 = vunpack.c.h.b16 %v4586
    %v6113 = vunpack.c.l.b16 %v4587
    %v6114 = vunpack.c.h.b16 %v4587
    %v6115 = vunpack.c.l.b16 %v4588
    %v6116 = vunpack.c.h.b16 %v4588
    %v6117 = vunpack.c.l.b16 %v4589
    %v6118 = vunpack.c.h.b16 %v4589
    %v6119 = vunpack.c.l.b16 %v4590
    %v6120 = vunpack.c.h.b16 %v4590
    %v6121 = vunpack.c.l.b16 %v4591
    %v6122 = vunpack.c.h.b16 %v4591
    %v6123 = vunpack.c.l.b16 %v4592
    %v6124 = vunpack.c.h.b16 %v4592
    %v6125 = vunpack.c.l.b16 %v4593
    %v6126 = vunpack.c.h.b16 %v4593
    %v6127 = vunpack.c.l.b16 %v4594
    %v6128 = vunpack.c.h.b16 %v4594
    %v6129 = vunpack.c.l.b16 %v4595
    %v6130 = vunpack.c.h.b16 %v4595
    %v6131 = vunpack.c.l.b16 %v4596
    %v6132 = vunpack.c.h.b16 %v4596
    %v6133 = vunpack.c.l.b16 %v4597
    %v6134 = vunpack.c.h.b16 %v4597
    %v6135 = vunpack.c.l.b16 %v4598
    %v6136 = vunpack.c.h.b16 %v4598
    %v6137 = vunpack.c.l.b16 %v4599
    %v6138 = vunpack.c.h.b16 %v4599
    %v6139 = vunpack.c.l.b16 %v4600
    %v6140 = vunpack.c.h.b16 %v4600
    %v6141 = vunpack.c.l.b16 %v4601
    %v6142 = vunpack.c.h.b16 %v4601
    %v6143 = vunpack.c.l.b16 %v4602
    %v6144 = vunpack.c.h.b16 %v4602
    %v6145 = vunpack.c.l.b16 %v4603
    %v6146 = vunpack.c.h.b16 %v4603
    %v6147 = vunpack.c.l.b16 %v4604
    %v6148 = vunpack.c.h.b16 %v4604
    %v6149 = vunpack.c.l.b16 %v4605
    %v6150 = vunpack.c.h.b16 %v4605
    %v6151 = vunpack.c.l.b16 %v4606
    %v6152 = vunpack.c.h.b16 %v4606
    %v6153 = vunpack.c.l.b16 %v4607
    %v6154 = vunpack.c.h.b16 %v4607
    %v6155 = vunpack.c.l.b16 %v4608
    %v6156 = vunpack.c.h.b16 %v4608
    %v6157 = vunpack.c.l.b16 %v4609
    %v6158 = vunpack.c.h.b16 %v4609
    %v6159 = vunpack.c.l.b16 %v4610
    %v6160 = vunpack.c.h.b16 %v4610
    %v6161 = vunpack.c.l.b16 %v4611
    %v6162 = vunpack.c.h.b16 %v4611
    %v6163 = vunpack.c.l.b16 %v4612
    %v6164 = vunpack.c.h.b16 %v4612
    %v6165 = vunpack.c.l.b16 %v4613
    %v6166 = vunpack.c.h.b16 %v4613
    %v6167 = vunpack.c.l.b16 %v4614
    %v6168 = vunpack.c.h.b16 %v4614
    %v6169 = vpack.c.b16 %v5153, %v5145
    %v6170 = vpack.c.b16 %v5154, %v5146
    %v6171 = vpack.c.b16 %v5155, %v5147
    %v6172 = vpack.c.b16 %v5156, %v5148
    %v6173 = vpack.c.b16 %v5157, %v5149
    %v6174 = vpack.c.b16 %v5158, %v5150
    %v6175 = vpack.c.b16 %v5159, %v5151
    %v6176 = vpack.c.b16 %v5160, %v5152
    %v6177 = vpack.c.b16 %v5169, %v5161
    %v6178 = vpack.c.b16 %v5170, %v5162
    %v6179 = vpack.c.b16 %v5171, %v5163
    %v6180 = vpack.c.b16 %v5172, %v5164
    %v6181 = vpack.c.b16 %v5173, %v5165
    %v6182 = vpack.c.b16 %v5174, %v5166
    %v6183 = vpack.c.b16 %v5175, %v5167
    %v6184 = vpack.c.b16 %v5176, %v5168
    %v6185 = vpack.c.b16 %v5185, %v5177
    %v6186 = vpack.c.b16 %v5186, %v5178
    %v6187 = vpack.c.b16 %v5187, %v5179
    %v6188 = vpack.c.b16 %v5188, %v5180
    %v6189 = vpack.c.b16 %v5189, %v5181
    %v6190 = vpack.c.b16 %v5190, %v5182
    %v6191 = vpack.c.b16 %v5191, %v5183
    %v6192 = vpack.c.b16 %v5192, %v5184
    %v6193 = vpack.c.b16 %v5201, %v5193
    %v6194 = vpack.c.b16 %v5202, %v5194
    %v6195 = vpack.c.b16 %v5203, %v5195
    %v6196 = vpack.c.b16 %v5204, %v5196
    %v6197 = vpack.c.b16 %v5205, %v5197
    %v6198 = vpack.c.b16 %v5206, %v5198
    %v6199 = vpack.c.b16 %v5207, %v5199
    %v6200 = vpack.c.b16 %v5208, %v5200
    %v6201 = vpack.c.b16 %v5217, %v5209
    %v6202 = vpack.c.b16 %v5218, %v5210
    %v6203 = vpack.c.b16 %v5219, %v5211
    %v6204 = vpack.c.b16 %v5220, %v5212
    %v6205 = vpack.c.b16 %v5221, %v5213
    %v6206 = vpack.c.b16 %v5222, %v5214
    %v6207 = vpack.c.b16 %v5223, %v5215
    %v6208 = vpack.c.b16 %v5224, %v5216
    %v6209 = vpack.c.b16 %v5233, %v5225
    %v6210 = vpack.c.b16 %v5234, %v5226
    %v6211 = vpack.c.b16 %v5235, %v5227
    %v6212 = vpack.c.b16 %v5236, %v5228
    %v6213 = vpack.c.b16 %v5237, %v5229
    %v6214 = vpack.c.b16 %v5238, %v5230
    %v6215 = vpack.c.b16 %v5239, %v5231
    %v6216 = vpack.c.b16 %v5240, %v5232
    %v6217 = vpack.c.b16 %v5249, %v5241
    %v6218 = vpack.c.b16 %v5250, %v5242
    %v6219 = vpack.c.b16 %v5251, %v5243
    %v6220 = vpack.c.b16 %v5252, %v5244
    %v6221 = vpack.c.b16 %v5253, %v5245
    %v6222 = vpack.c.b16 %v5254, %v5246
    %v6223 = vpack.c.b16 %v5255, %v5247
    %v6224 = vpack.c.b16 %v5256, %v5248
    %v6225 = vpack.c.b16 %v5265, %v5257
    %v6226 = vpack.c.b16 %v5266, %v5258
    %v6227 = vpack.c.b16 %v5267, %v5259
    %v6228 = vpack.c.b16 %v5268, %v5260
    %v6229 = vpack.c.b16 %v5269, %v5261
    %v6230 = vpack.c.b16 %v5270, %v5262
    %v6231 = vpack.c.b16 %v5271, %v5263
    %v6232 = vpack.c.b16 %v5272, %v5264
    %v6233 = vpack.c.b16 %v5281, %v5273
    %v6234 = vpack.c.b16 %v5282, %v5274
    %v6235 = vpack.c.b16 %v5283, %v5275
    %v6236 = vpack.c.b16 %v5284, %v5276
    %v6237 = vpack.c.b16 %v5285, %v5277
    %v6238 = vpack.c.b16 %v5286, %v5278
    %v6239 = vpack.c.b16 %v5287, %v5279
    %v6240 = vpack.c.b16 %v5288, %v5280
    %v6241 = vpack.c.b16 %v5297, %v5289
    %v6242 = vpack.c.b16 %v5298, %v5290
    %v6243 = vpack.c.b16 %v5299, %v5291
    %v6244 = vpack.c.b16 %v5300, %v5292
    %v6245 = vpack.c.b16 %v5301, %v5293
    %v6246 = vpack.c.b16 %v5302, %v5294
    %v6247 = vpack.c.b16 %v5303, %v5295
    %v6248 = vpack.c.b16 %v5304, %v5296
    %v6249 = vpack.c.b16 %v5313, %v5305
    %v6250 = vpack.c.b16 %v5314, %v5306
    %v6251 = vpack.c.b16 %v5315, %v5307
    %v6252 = vpack.c.b16 %v5316, %v5308
    %v6253 = vpack.c.b16 %v5317, %v5309
    %v6254 = vpack.c.b16 %v5318, %v5310
    %v6255 = vpack.c.b16 %v5319, %v5311
    %v6256 = vpack.c.b16 %v5320, %v5312
    %v6257 = vpack.c.b16 %v5329, %v5321
    %v6258 = vpack.c.b16 %v5330, %v5322
    %v6259 = vpack.c.b16 %v5331, %v5323
    %v6260 = vpack.c.b16 %v5332, %v5324
    %v6261 = vpack.c.b16 %v5333, %v5325
    %v6262 = vpack.c.b16 %v5334, %v5326
    %v6263 = vpack.c.b16 %v5335, %v5327
    %v6264 = vpack.c.b16 %v5336, %v5328
    %v6265 = vpack.c.b16 %v5345, %v5337
    %v6266 = vpack.c.b16 %v5346, %v5338
    %v6267 = vpack.c.b16 %v5347, %v5339
    %v6268 = vpack.c.b16 %v5348, %v5340
    %v6269 = vpack.c.b16 %v5349, %v5341
    %v6270 = vpack.c.b16 %v5350, %v5342
    %v6271 = vpack.c.b16 %v5351, %v5343
    %v6272 = vpack.c.b16 %v5352, %v5344
    %v6273 = vpack.c.b16 %v5361, %v5353
    %v6274 = vpack.c.b16 %v5362, %v5354
    %v6275 = vpack.c.b16 %v5363, %v5355
    %v6276 = vpack.c.b16 %v5364, %v5356
    %v6277 = vpack.c.b16 %v5365, %v5357
    %v6278 = vpack.c.b16 %v5366, %v5358
    %v6279 = vpack.c.b16 %v5367, %v5359
    %v6280 = vpack.c.b16 %v5368, %v5360
    %v6281 = vpack.c.b16 %v5377, %v5369
    %v6282 = vpack.c.b16 %v5378, %v5370
    %v6283 = vpack.c.b16 %v5379, %v5371
    %v6284 = vpack.c.b16 %v5380, %v5372
    %v6285 = vpack.c.b16 %v5381, %v5373
    %v6286 = vpack.c.b16 %v5382, %v5374
    %v6287 = vpack.c.b16 %v5383, %v5375
    %v6288 = vpack.c.b16 %v5384, %v5376
    %v6289 = vpack.c.b16 %v5393, %v5385
    %v6290 = vpack.c.b16 %v5394, %v5386
    %v6291 = vpack.c.b16 %v5395, %v5387
    %v6292 = vpack.c.b16 %v5396, %v5388
    %v6293 = vpack.c.b16 %v5397, %v5389
    %v6294 = vpack.c.b16 %v5398, %v5390
    %v6295 = vpack.c.b16 %v5399, %v5391
    %v6296 = vpack.c.b16 %v5400, %v5392
    %v6297 = vpack.c.b16 %v5409, %v5401
    %v6298 = vpack.c.b16 %v5410, %v5402
    %v6299 = vpack.c.b16 %v5411, %v5403
    %v6300 = vpack.c.b16 %v5412, %v5404
    %v6301 = vpack.c.b16 %v5413, %v5405
    %v6302 = vpack.c.b16 %v5414, %v5406
    %v6303 = vpack.c.b16 %v5415, %v5407
    %v6304 = vpack.c.b16 %v5416, %v5408
    %v6305 = vpack.c.b16 %v5425, %v5417
    %v6306 = vpack.c.b16 %v5426, %v5418
    %v6307 = vpack.c.b16 %v5427, %v5419
    %v6308 = vpack.c.b16 %v5428, %v5420
    %v6309 = vpack.c.b16 %v5429, %v5421
    %v6310 = vpack.c.b16 %v5430, %v5422
    %v6311 = vpack.c.b16 %v5431, %v5423
    %v6312 = vpack.c.b16 %v5432, %v5424
    %v6313 = vpack.c.b16 %v5441, %v5433
    %v6314 = vpack.c.b16 %v5442, %v5434
    %v6315 = vpack.c.b16 %v5443, %v5435
    %v6316 = vpack.c.b16 %v5444, %v5436
    %v6317 = vpack.c.b16 %v5445, %v5437
    %v6318 = vpack.c.b16 %v5446, %v5438
    %v6319 = vpack.c.b16 %v5447, %v5439
    %v6320 = vpack.c.b16 %v5448, %v5440
    %v6321 = vpack.c.b16 %v5457, %v5449
    %v6322 = vpack.c.b16 %v5458, %v5450
    %v6323 = vpack.c.b16 %v5459, %v5451
    %v6324 = vpack.c.b16 %v5460, %v5452
    %v6325 = vpack.c.b16 %v5461, %v5453
    %v6326 = vpack.c.b16 %v5462, %v5454
    %v6327 = vpack.c.b16 %v5463, %v5455
    %v6328 = vpack.c.b16 %v5464, %v5456
    %v6329 = vpack.c.b16 %v5473, %v5465
    %v6330 = vpack.c.b16 %v5474, %v5466
    %v6331 = vpack.c.b16 %v5475, %v5467
    %v6332 = vpack.c.b16 %v5476, %v5468
    %v6333 = vpack.c.b16 %v5477, %v5469
    %v6334 = vpack.c.b16 %v5478, %v5470
    %v6335 = vpack.c.b16 %v5479, %v5471
    %v6336 = vpack.c.b16 %v5480, %v5472
    %v6337 = vpack.c.b16 %v5489, %v5481
    %v6338 = vpack.c.b16 %v5490, %v5482
    %v6339 = vpack.c.b16 %v5491, %v5483
    %v6340 = vpack.c.b16 %v5492, %v5484
    %v6341 = vpack.c.b16 %v5493, %v5485
    %v6342 = vpack.c.b16 %v5494, %v5486
    %v6343 = vpack.c.b16 %v5495, %v5487
    %v6344 = vpack.c.b16 %v5496, %v5488
    %v6345 = vpack.c.b16 %v5505, %v5497
    %v6346 = vpack.c.b16 %v5506, %v5498
    %v6347 = vpack.c.b16 %v5507, %v5499
    %v6348 = vpack.c.b16 %v5508, %v5500
    %v6349 = vpack.c.b16 %v5509, %v5501
    %v6350 = vpack.c.b16 %v5510, %v5502
    %v6351 = vpack.c.b16 %v5511, %v5503
    %v6352 = vpack.c.b16 %v5512, %v5504
    %v6353 = vpack.c.b16 %v5521, %v5513
    %v6354 = vpack.c.b16 %v5522, %v5514
    %v6355 = vpack.c.b16 %v5523, %v5515
    %v6356 = vpack.c.b16 %v5524, %v5516
    %v6357 = vpack.c.b16 %v5525, %v5517
    %v6358 = vpack.c.b16 %v5526, %v5518
    %v6359 = vpack.c.b16 %v5527, %v5519
    %v6360 = vpack.c.b16 %v5528, %v5520
    %v6361 = vpack.c.b16 %v5537, %v5529
    %v6362 = vpack.c.b16 %v5538, %v5530
    %v6363 = vpack.c.b16 %v5539, %v5531
    %v6364 = vpack.c.b16 %v5540, %v5532
    %v6365 = vpack.c.b16 %v5541, %v5533
    %v6366 = vpack.c.b16 %v5542, %v5534
    %v6367 = vpack.c.b16 %v5543, %v5535
    %v6368 = vpack.c.b16 %v5544, %v5536
    %v6369 = vpack.c.b16 %v5553, %v5545
    %v6370 = vpack.c.b16 %v5554, %v5546
    %v6371 = vpack.c.b16 %v5555, %v5547
    %v6372 = vpack.c.b16 %v5556, %v5548
    %v6373 = vpack.c.b16 %v5557, %v5549
    %v6374 = vpack.c.b16 %v5558, %v5550
    %v6375 = vpack.c.b16 %v5559, %v5551
    %v6376 = vpack.c.b16 %v5560, %v5552
    %v6377 = vpack.c.b16 %v5569, %v5561
    %v6378 = vpack.c.b16 %v5570, %v5562
    %v6379 = vpack.c.b16 %v5571, %v5563
    %v6380 = vpack.c.b16 %v5572, %v5564
    %v6381 = vpack.c.b16 %v5573, %v5565
    %v6382 = vpack.c.b16 %v5574, %v5566
    %v6383 = vpack.c.b16 %v5575, %v5567
    %v6384 = vpack.c.b16 %v5576, %v5568
    %v6385 = vpack.c.b16 %v5585, %v5577
    %v6386 = vpack.c.b16 %v5586, %v5578
    %v6387 = vpack.c.b16 %v5587, %v5579
    %v6388 = vpack.c.b16 %v5588, %v5580
    %v6389 = vpack.c.b16 %v5589, %v5581
    %v6390 = vpack.c.b16 %v5590, %v5582
    %v6391 = vpack.c.b16 %v5591, %v5583
    %v6392 = vpack.c.b16 %v5592, %v5584
    %v6393 = vpack.c.b16 %v5601, %v5593
    %v6394 = vpack.c.b16 %v5602, %v5594
    %v6395 = vpack.c.b16 %v5603, %v5595
    %v6396 = vpack.c.b16 %v5604, %v5596
    %v6397 = vpack.c.b16 %v5605, %v5597
    %v6398 = vpack.c.b16 %v5606, %v5598
    %v6399 = vpack.c.b16 %v5607, %v5599
    %v6400 = vpack.c.b16 %v5608, %v5600
    %v6401 = vpack.c.b16 %v5617, %v5609
    %v6402 = vpack.c.b16 %v5618, %v5610
    %v6403 = vpack.c.b16 %v5619, %v5611
    %v6404 = vpack.c.b16 %v5620, %v5612
    %v6405 = vpack.c.b16 %v5621, %v5613
    %v6406 = vpack.c.b16 %v5622, %v5614
    %v6407 = vpack.c.b16 %v5623, %v5615
    %v6408 = vpack.c.b16 %v5624, %v5616
    %v6409 = vpack.c.b16 %v5633, %v5625
    %v6410 = vpack.c.b16 %v5634, %v5626
    %v6411 = vpack.c.b16 %v5635, %v5627
    %v6412 = vpack.c.b16 %v5636, %v5628
    %v6413 = vpack.c.b16 %v5637, %v5629
    %v6414 = vpack.c.b16 %v5638, %v5630
    %v6415 = vpack.c.b16 %v5639, %v5631
    %v6416 = vpack.c.b16 %v5640, %v5632
    %v6417 = vpack.c.b16 %v5649, %v5641
    %v6418 = vpack.c.b16 %v5650, %v5642
    %v6419 = vpack.c.b16 %v5651, %v5643
    %v6420 = vpack.c.b16 %v5652, %v5644
    %v6421 = vpack.c.b16 %v5653, %v5645
    %v6422 = vpack.c.b16 %v5654, %v5646
    %v6423 = vpack.c.b16 %v5655, %v5647
    %v6424 = vpack.c.b16 %v5656, %v5648
    %v6425 = vpack.c.b16 %v5665, %v5657
    %v6426 = vpack.c.b16 %v5666, %v5658
    %v6427 = vpack.c.b16 %v5667, %v5659
    %v6428 = vpack.c.b16 %v5668, %v5660
    %v6429 = vpack.c.b16 %v5669, %v5661
    %v6430 = vpack.c.b16 %v5670, %v5662
    %v6431 = vpack.c.b16 %v5671, %v5663
    %v6432 = vpack.c.b16 %v5672, %v5664
    %v6433 = vpack.c.b16 %v5681, %v5673
    %v6434 = vpack.c.b16 %v5682, %v5674
    %v6435 = vpack.c.b16 %v5683, %v5675
    %v6436 = vpack.c.b16 %v5684, %v5676
    %v6437 = vpack.c.b16 %v5685, %v5677
    %v6438 = vpack.c.b16 %v5686, %v5678
    %v6439 = vpack.c.b16 %v5687, %v5679
    %v6440 = vpack.c.b16 %v5688, %v5680
    %v6441 = vpack.c.b16 %v5697, %v5689
    %v6442 = vpack.c.b16 %v5698, %v5690
    %v6443 = vpack.c.b16 %v5699, %v5691
    %v6444 = vpack.c.b16 %v5700, %v5692
    %v6445 = vpack.c.b16 %v5701, %v5693
    %v6446 = vpack.c.b16 %v5702, %v5694
    %v6447 = vpack.c.b16 %v5703, %v5695
    %v6448 = vpack.c.b16 %v5704, %v5696
    %v6449 = vpack.c.b16 %v5713, %v5705
    %v6450 = vpack.c.b16 %v5714, %v5706
    %v6451 = vpack.c.b16 %v5715, %v5707
    %v6452 = vpack.c.b16 %v5716, %v5708
    %v6453 = vpack.c.b16 %v5717, %v5709
    %v6454 = vpack.c.b16 %v5718, %v5710
    %v6455 = vpack.c.b16 %v5719, %v5711
    %v6456 = vpack.c.b16 %v5720, %v5712
    %v6457 = vpack.c.b16 %v5729, %v5721
    %v6458 = vpack.c.b16 %v5730, %v5722
    %v6459 = vpack.c.b16 %v5731, %v5723
    %v6460 = vpack.c.b16 %v5732, %v5724
    %v6461 = vpack.c.b16 %v5733, %v5725
    %v6462 = vpack.c.b16 %v5734, %v5726
    %v6463 = vpack.c.b16 %v5735, %v5727
    %v6464 = vpack.c.b16 %v5736, %v5728
    %v6465 = vpack.c.b16 %v5745, %v5737
    %v6466 = vpack.c.b16 %v5746, %v5738
    %v6467 = vpack.c.b16 %v5747, %v5739
    %v6468 = vpack.c.b16 %v5748, %v5740
    %v6469 = vpack.c.b16 %v5749, %v5741
    %v6470 = vpack.c.b16 %v5750, %v5742
    %v6471 = vpack.c.b16 %v5751, %v5743
    %v6472 = vpack.c.b16 %v5752, %v5744
    %v6473 = vpack.c.b16 %v5761, %v5753
    %v6474 = vpack.c.b16 %v5762, %v5754
    %v6475 = vpack.c.b16 %v5763, %v5755
    %v6476 = vpack.c.b16 %v5764, %v5756
    %v6477 = vpack.c.b16 %v5765, %v5757
    %v6478 = vpack.c.b16 %v5766, %v5758
    %v6479 = vpack.c.b16 %v5767, %v5759
    %v6480 = vpack.c.b16 %v5768, %v5760
    %v6481 = vpack.c.b16 %v5777, %v5769
    %v6482 = vpack.c.b16 %v5778, %v5770
    %v6483 = vpack.c.b16 %v5779, %v5771
    %v6484 = vpack.c.b16 %v5780, %v5772
    %v6485 = vpack.c.b16 %v5781, %v5773
    %v6486 = vpack.c.b16 %v5782, %v5774
    %v6487 = vpack.c.b16 %v5783, %v5775
    %v6488 = vpack.c.b16 %v5784, %v5776
    %v6489 = vpack.c.b16 %v5793, %v5785
    %v6490 = vpack.c.b16 %v5794, %v5786
    %v6491 = vpack.c.b16 %v5795, %v5787
    %v6492 = vpack.c.b16 %v5796, %v5788
    %v6493 = vpack.c.b16 %v5797, %v5789
    %v6494 = vpack.c.b16 %v5798, %v5790
    %v6495 = vpack.c.b16 %v5799, %v5791
    %v6496 = vpack.c.b16 %v5800, %v5792
    %v6497 = vpack.c.b16 %v5809, %v5801
    %v6498 = vpack.c.b16 %v5810, %v5802
    %v6499 = vpack.c.b16 %v5811, %v5803
    %v6500 = vpack.c.b16 %v5812, %v5804
    %v6501 = vpack.c.b16 %v5813, %v5805
    %v6502 = vpack.c.b16 %v5814, %v5806
    %v6503 = vpack.c.b16 %v5815, %v5807
    %v6504 = vpack.c.b16 %v5816, %v5808
    %v6505 = vpack.c.b16 %v5825, %v5817
    %v6506 = vpack.c.b16 %v5826, %v5818
    %v6507 = vpack.c.b16 %v5827, %v5819
    %v6508 = vpack.c.b16 %v5828, %v5820
    %v6509 = vpack.c.b16 %v5829, %v5821
    %v6510 = vpack.c.b16 %v5830, %v5822
    %v6511 = vpack.c.b16 %v5831, %v5823
    %v6512 = vpack.c.b16 %v5832, %v5824
    %v6513 = vpack.c.b16 %v5841, %v5833
    %v6514 = vpack.c.b16 %v5842, %v5834
    %v6515 = vpack.c.b16 %v5843, %v5835
    %v6516 = vpack.c.b16 %v5844, %v5836
    %v6517 = vpack.c.b16 %v5845, %v5837
    %v6518 = vpack.c.b16 %v5846, %v5838
    %v6519 = vpack.c.b16 %v5847, %v5839
    %v6520 = vpack.c.b16 %v5848, %v5840
    %v6521 = vpack.c.b16 %v5857, %v5849
    %v6522 = vpack.c.b16 %v5858, %v5850
    %v6523 = vpack.c.b16 %v5859, %v5851
    %v6524 = vpack.c.b16 %v5860, %v5852
    %v6525 = vpack.c.b16 %v5861, %v5853
    %v6526 = vpack.c.b16 %v5862, %v5854
    %v6527 = vpack.c.b16 %v5863, %v5855
    %v6528 = vpack.c.b16 %v5864, %v5856
    %v6529 = vpack.c.b16 %v5873, %v5865
    %v6530 = vpack.c.b16 %v5874, %v5866
    %v6531 = vpack.c.b16 %v5875, %v5867
    %v6532 = vpack.c.b16 %v5876, %v5868
    %v6533 = vpack.c.b16 %v5877, %v5869
    %v6534 = vpack.c.b16 %v5878, %v5870
    %v6535 = vpack.c.b16 %v5879, %v5871
    %v6536 = vpack.c.b16 %v5880, %v5872
    %v6537 = vpack.c.b16 %v5889, %v5881
    %v6538 = vpack.c.b16 %v5890, %v5882
    %v6539 = vpack.c.b16 %v5891, %v5883
    %v6540 = vpack.c.b16 %v5892, %v5884
    %v6541 = vpack.c.b16 %v5893, %v5885
    %v6542 = vpack.c.b16 %v5894, %v5886
    %v6543 = vpack.c.b16 %v5895, %v5887
    %v6544 = vpack.c.b16 %v5896, %v5888
    %v6545 = vpack.c.b16 %v5905, %v5897
    %v6546 = vpack.c.b16 %v5906, %v5898
    %v6547 = vpack.c.b16 %v5907, %v5899
    %v6548 = vpack.c.b16 %v5908, %v5900
    %v6549 = vpack.c.b16 %v5909, %v5901
    %v6550 = vpack.c.b16 %v5910, %v5902
    %v6551 = vpack.c.b16 %v5911, %v5903
    %v6552 = vpack.c.b16 %v5912, %v5904
    %v6553 = vpack.c.b16 %v5921, %v5913
    %v6554 = vpack.c.b16 %v5922, %v5914
    %v6555 = vpack.c.b16 %v5923, %v5915
    %v6556 = vpack.c.b16 %v5924, %v5916
    %v6557 = vpack.c.b16 %v5925, %v5917
    %v6558 = vpack.c.b16 %v5926, %v5918
    %v6559 = vpack.c.b16 %v5927, %v5919
    %v6560 = vpack.c.b16 %v5928, %v5920
    %v6561 = vpack.c.b16 %v5937, %v5929
    %v6562 = vpack.c.b16 %v5938, %v5930
    %v6563 = vpack.c.b16 %v5939, %v5931
    %v6564 = vpack.c.b16 %v5940, %v5932
    %v6565 = vpack.c.b16 %v5941, %v5933
    %v6566 = vpack.c.b16 %v5942, %v5934
    %v6567 = vpack.c.b16 %v5943, %v5935
    %v6568 = vpack.c.b16 %v5944, %v5936
    %v6569 = vpack.c.b16 %v5953, %v5945
    %v6570 = vpack.c.b16 %v5954, %v5946
    %v6571 = vpack.c.b16 %v5955, %v5947
    %v6572 = vpack.c.b16 %v5956, %v5948
    %v6573 = vpack.c.b16 %v5957, %v5949
    %v6574 = vpack.c.b16 %v5958, %v5950
    %v6575 = vpack.c.b16 %v5959, %v5951
    %v6576 = vpack.c.b16 %v5960, %v5952
    %v6577 = vpack.c.b16 %v5969, %v5961
    %v6578 = vpack.c.b16 %v5970, %v5962
    %v6579 = vpack.c.b16 %v5971, %v5963
    %v6580 = vpack.c.b16 %v5972, %v5964
    %v6581 = vpack.c.b16 %v5973, %v5965
    %v6582 = vpack.c.b16 %v5974, %v5966
    %v6583 = vpack.c.b16 %v5975, %v5967
    %v6584 = vpack.c.b16 %v5976, %v5968
    %v6585 = vpack.c.b16 %v5985, %v5977
    %v6586 = vpack.c.b16 %v5986, %v5978
    %v6587 = vpack.c.b16 %v5987, %v5979
    %v6588 = vpack.c.b16 %v5988, %v5980
    %v6589 = vpack.c.b16 %v5989, %v5981
    %v6590 = vpack.c.b16 %v5990, %v5982
    %v6591 = vpack.c.b16 %v5991, %v5983
    %v6592 = vpack.c.b16 %v5992, %v5984
    %v6593 = vpack.c.b16 %v6001, %v5993
    %v6594 = vpack.c.b16 %v6002, %v5994
    %v6595 = vpack.c.b16 %v6003, %v5995
    %v6596 = vpack.c.b16 %v6004, %v5996
    %v6597 = vpack.c.b16 %v6005, %v5997
    %v6598 = vpack.c.b16 %v6006, %v5998
    %v6599 = vpack.c.b16 %v6007, %v5999
    %v6600 = vpack.c.b16 %v6008, %v6000
    %v6601 = vpack.c.b16 %v6017, %v6009
    %v6602 = vpack.c.b16 %v6018, %v6010
    %v6603 = vpack.c.b16 %v6019, %v6011
    %v6604 = vpack.c.b16 %v6020, %v6012
    %v6605 = vpack.c.b16 %v6021, %v6013
    %v6606 = vpack.c.b16 %v6022, %v6014
    %v6607 = vpack.c.b16 %v6023, %v6015
    %v6608 = vpack.c.b16 %v6024, %v6016
    %v6609 = vpack.c.b16 %v6033, %v6025
    %v6610 = vpack.c.b16 %v6034, %v6026
    %v6611 = vpack.c.b16 %v6035, %v6027
    %v6612 = vpack.c.b16 %v6036, %v6028
    %v6613 = vpack.c.b16 %v6037, %v6029
    %v6614 = vpack.c.b16 %v6038, %v6030
    %v6615 = vpack.c.b16 %v6039, %v6031
    %v6616 = vpack.c.b16 %v6040, %v6032
    %v6617 = vpack.c.b16 %v6049, %v6041
    %v6618 = vpack.c.b16 %v6050, %v6042
    %v6619 = vpack.c.b16 %v6051, %v6043
    %v6620 = vpack.c.b16 %v6052, %v6044
    %v6621 = vpack.c.b16 %v6053, %v6045
    %v6622 = vpack.c.b16 %v6054, %v6046
    %v6623 = vpack.c.b16 %v6055, %v6047
    %v6624 = vpack.c.b16 %v6056, %v6048
    %v6625 = vpack.c.b16 %v6065, %v6057
    %v6626 = vpack.c.b16 %v6066, %v6058
    %v6627 = vpack.c.b16 %v6067, %v6059
    %v6628 = vpack.c.b16 %v6068, %v6060
    %v6629 = vpack.c.b16 %v6069, %v6061
    %v6630 = vpack.c.b16 %v6070, %v6062
    %v6631 = vpack.c.b16 %v6071, %v6063
    %v6632 = vpack.c.b16 %v6072, %v6064
    %v6633 = vpack.c.b16 %v6081, %v6073
    %v6634 = vpack.c.b16 %v6082, %v6074
    %v6635 = vpack.c.b16 %v6083, %v6075
    %v6636 = vpack.c.b16 %v6084, %v6076
    %v6637 = vpack.c.b16 %v6085, %v6077
    %v6638 = vpack.c.b16 %v6086, %v6078
    %v6639 = vpack.c.b16 %v6087, %v6079
    %v6640 = vpack.c.b16 %v6088, %v6080
    %v6641 = vpack.c.b16 %v6097, %v6089
    %v6642 = vpack.c.b16 %v6098, %v6090
    %v6643 = vpack.c.b16 %v6099, %v6091
    %v6644 = vpack.c.b16 %v6100, %v6092
    %v6645 = vpack.c.b16 %v6101, %v6093
    %v6646 = vpack.c.b16 %v6102, %v6094
    %v6647 = vpack.c.b16 %v6103, %v6095
    %v6648 = vpack.c.b16 %v6104, %v6096
    %v6649 = vpack.c.b16 %v6113, %v6105
    %v6650 = vpack.c.b16 %v6114, %v6106
    %v6651 = vpack.c.b16 %v6115, %v6107
    %v6652 = vpack.c.b16 %v6116, %v6108
    %v6653 = vpack.c.b16 %v6117, %v6109
    %v6654 = vpack.c.b16 %v6118, %v6110
    %v6655 = vpack.c.b16 %v6119, %v6111
    %v6656 = vpack.c.b16 %v6120, %v6112
    %v6657 = vpack.c.b16 %v6129, %v6121
    %v6658 = vpack.c.b16 %v6130, %v6122
    %v6659 = vpack.c.b16 %v6131, %v6123
    %v6660 = vpack.c.b16 %v6132, %v6124
    %v6661 = vpack.c.b16 %v6133, %v6125
    %v6662 = vpack.c.b16 %v6134, %v6126
    %v6663 = vpack.c.b16 %v6135, %v6127
    %v6664 = vpack.c.b16 %v6136, %v6128
    %v6665 = vpack.c.b16 %v6145, %v6137
    %v6666 = vpack.c.b16 %v6146, %v6138
    %v6667 = vpack.c.b16 %v6147, %v6139
    %v6668 = vpack.c.b16 %v6148, %v6140
    %v6669 = vpack.c.b16 %v6149, %v6141
    %v6670 = vpack.c.b16 %v6150, %v6142
    %v6671 = vpack.c.b16 %v6151, %v6143
    %v6672 = vpack.c.b16 %v6152, %v6144
    %v6673 = vpack.c.b16 %v6161, %v6153
    %v6674 = vpack.c.b16 %v6162, %v6154
    %v6675 = vpack.c.b16 %v6163, %v6155
    %v6676 = vpack.c.b16 %v6164, %v6156
    %v6677 = vpack.c.b16 %v6165, %v6157
    %v6678 = vpack.c.b16 %v6166, %v6158
    %v6679 = vpack.c.b16 %v6167, %v6159
    %v6680 = vpack.c.b16 %v6168, %v6160
    %7193 = vmatpush.bf16.msra.mxu0 %v6225
    %7194 = vmatpush.bf16.msra.mxu0 %v6217
    %7195 = vmatpush.bf16.msra.mxu0 %v6209
    %7196 = vmatpush.bf16.msra.mxu0 %v6201
    %7197 = vmatpush.bf16.msra.mxu0 %v6193
    %7198 = vmatpush.bf16.msra.mxu0 %v6185
    %7199 = vmatpush.bf16.msra.mxu0 %v6177
    %7200 = vmatpush.bf16.msra.mxu0 %v6169
    %7201 = vmatmul.bf16.gmra.mxu0 %v4095
    %v7202 = vpop.f32.mrf.mxu0
    %v7203 = vadd.f32 %v4617, %v7202
    %v7204 = vpop.f32.mrf.mxu0
    %7205 = vdwg.mxu0
    %7206 = vmatpush.bf16.msra.mxu0 %v6289
    %7207 = vmatpush.bf16.msra.mxu0 %v6281
    %7208 = vmatpush.bf16.msra.mxu0 %v6273
    %7209 = vmatpush.bf16.msra.mxu0 %v6265
    %7210 = vmatpush.bf16.msra.mxu0 %v6257
    %7211 = vmatpush.bf16.msra.mxu0 %v6249
    %7212 = vmatpush.bf16.msra.mxu0 %v6241
    %7213 = vmatpush.bf16.msra.mxu0 %v6233
    %7214 = vmatmul.bf16.gmra.mxu0 %v4096
    %v7215 = vpop.f32.mrf.mxu0
    %v7216 = vadd.f32 %v7203, %v7215
    %v7217 = vpop.f32.mrf.mxu0
    %7218 = vdwg.mxu0
    %7219 = vmatpush.bf16.msra.mxu0 %v6353
    %7220 = vmatpush.bf16.msra.mxu0 %v6345
    %7221 = vmatpush.bf16.msra.mxu0 %v6337
    %7222 = vmatpush.bf16.msra.mxu0 %v6329
    %7223 = vmatpush.bf16.msra.mxu0 %v6321
    %7224 = vmatpush.bf16.msra.mxu0 %v6313
    %7225 = vmatpush.bf16.msra.mxu0 %v6305
    %7226 = vmatpush.bf16.msra.mxu0 %v6297
    %7227 = vmatmul.bf16.gmra.mxu0 %v4097
    %v7228 = vpop.f32.mrf.mxu0
    %v7229 = vadd.f32 %v7216, %v7228
    %v7230 = vpop.f32.mrf.mxu0
    %7231 = vdwg.mxu0
    %7232 = vmatpush.bf16.msra.mxu0 %v6417
    %7233 = vmatpush.bf16.msra.mxu0 %v6409
    %7234 = vmatpush.bf16.msra.mxu0 %v6401
    %7235 = vmatpush.bf16.msra.mxu0 %v6393
    %7236 = vmatpush.bf16.msra.mxu0 %v6385
    %7237 = vmatpush.bf16.msra.mxu0 %v6377
    %7238 = vmatpush.bf16.msra.mxu0 %v6369
    %7239 = vmatpush.bf16.msra.mxu0 %v6361
    %7240 = vmatmul.bf16.gmra.mxu0 %v4098
    %v7241 = vpop.f32.mrf.mxu0
    %v7242 = vadd.f32 %v7229, %v7241
    %v7243 = vpop.f32.mrf.mxu0
    %7244 = vdwg.mxu0
    %7245 = vmatpush.bf16.msra.mxu0 %v6481
    %7246 = vmatpush.bf16.msra.mxu0 %v6473
    %7247 = vmatpush.bf16.msra.mxu0 %v6465
    %7248 = vmatpush.bf16.msra.mxu0 %v6457
    %7249 = vmatpush.bf16.msra.mxu0 %v6449
    %7250 = vmatpush.bf16.msra.mxu0 %v6441
    %7251 = vmatpush.bf16.msra.mxu0 %v6433
    %7252 = vmatpush.bf16.msra.mxu0 %v6425
    %7253 = vmatmul.bf16.gmra.mxu0 %v4099
    %v7254 = vpop.f32.mrf.mxu0
    %v7255 = vadd.f32 %v7242, %v7254
    %v7256 = vpop.f32.mrf.mxu0
    %7257 = vdwg.mxu0
    %7258 = vmatpush.bf16.msra.mxu0 %v6545
    %7259 = vmatpush.bf16.msra.mxu0 %v6537
    %7260 = vmatpush.bf16.msra.mxu0 %v6529
    %7261 = vmatpush.bf16.msra.mxu0 %v6521
    %7262 = vmatpush.bf16.msra.mxu0 %v6513
    %7263 = vmatpush.bf16.msra.mxu0 %v6505
    %7264 = vmatpush.bf16.msra.mxu0 %v6497
    %7265 = vmatpush.bf16.msra.mxu0 %v6489
    %7266 = vmatmul.bf16.gmra.mxu0 %v4100
    %v7267 = vpop.f32.mrf.mxu0
    %v7268 = vadd.f32 %v7255, %v7267
    %v7269 = vpop.f32.mrf.mxu0
    %7270 = vdwg.mxu0
    %7271 = vmatpush.bf16.msra.mxu0 %v6609
    %7272 = vmatpush.bf16.msra.mxu0 %v6601
    %7273 = vmatpush.bf16.msra.mxu0 %v6593
    %7274 = vmatpush.bf16.msra.mxu0 %v6585
    %7275 = vmatpush.bf16.msra.mxu0 %v6577
    %7276 = vmatpush.bf16.msra.mxu0 %v6569
    %7277 = vmatpush.bf16.msra.mxu0 %v6561
    %7278 = vmatpush.bf16.msra.mxu0 %v6553
    %7279 = vmatmul.bf16.gmra.mxu0 %v4101
    %v7280 = vpop.f32.mrf.mxu0
    %v7281 = vadd.f32 %v7268, %v7280
    %v7282 = vpop.f32.mrf.mxu0
    %7283 = vdwg.mxu0
    %7284 = vmatpush.bf16.msra.mxu0 %v6673
    %7285 = vmatpush.bf16.msra.mxu0 %v6665
    %7286 = vmatpush.bf16.msra.mxu0 %v6657
    %7287 = vmatpush.bf16.msra.mxu0 %v6649
    %7288 = vmatpush.bf16.msra.mxu0 %v6641
    %7289 = vmatpush.bf16.msra.mxu0 %v6633
    %7290 = vmatpush.bf16.msra.mxu0 %v6625
    %7291 = vmatpush.bf16.msra.mxu0 %v6617
    %7292 = vmatmul.bf16.gmra.mxu0 %v4102
    %v7293 = vpop.f32.mrf.mxu0
    %v7294 = vadd.f32 %v7281, %v7293
    %v7295 = vpop.f32.mrf.mxu0
    %7296 = vdwg.mxu0
    %7297 = vmatpush.bf16.msra.mxu0 %v6226
    %7298 = vmatpush.bf16.msra.mxu0 %v6218
    %7299 = vmatpush.bf16.msra.mxu0 %v6210
    %7300 = vmatpush.bf16.msra.mxu0 %v6202
    %7301 = vmatpush.bf16.msra.mxu0 %v6194
    %7302 = vmatpush.bf16.msra.mxu0 %v6186
    %7303 = vmatpush.bf16.msra.mxu0 %v6178
    %7304 = vmatpush.bf16.msra.mxu0 %v6170
    %7305 = vmatmul.bf16.gmra.mxu0 %v4095
    %v7306 = vpop.f32.mrf.mxu0
    %v7307 = vadd.f32 %v4618, %v7306
    %v7308 = vpop.f32.mrf.mxu0
    %7309 = vdwg.mxu0
    %7310 = vmatpush.bf16.msra.mxu0 %v6290
    %7311 = vmatpush.bf16.msra.mxu0 %v6282
    %7312 = vmatpush.bf16.msra.mxu0 %v6274
    %7313 = vmatpush.bf16.msra.mxu0 %v6266
    %7314 = vmatpush.bf16.msra.mxu0 %v6258
    %7315 = vmatpush.bf16.msra.mxu0 %v6250
    %7316 = vmatpush.bf16.msra.mxu0 %v6242
    %7317 = vmatpush.bf16.msra.mxu0 %v6234
    %7318 = vmatmul.bf16.gmra.mxu0 %v4096
    %v7319 = vpop.f32.mrf.mxu0
    %v7320 = vadd.f32 %v7307, %v7319
    %v7321 = vpop.f32.mrf.mxu0
    %7322 = vdwg.mxu0
    %7323 = vmatpush.bf16.msra.mxu0 %v6354
    %7324 = vmatpush.bf16.msra.mxu0 %v6346
    %7325 = vmatpush.bf16.msra.mxu0 %v6338
    %7326 = vmatpush.bf16.msra.mxu0 %v6330
    %7327 = vmatpush.bf16.msra.mxu0 %v6322
    %7328 = vmatpush.bf16.msra.mxu0 %v6314
    %7329 = vmatpush.bf16.msra.mxu0 %v6306
    %7330 = vmatpush.bf16.msra.mxu0 %v6298
    %7331 = vmatmul.bf16.gmra.mxu0 %v4097
    %v7332 = vpop.f32.mrf.mxu0
    %v7333 = vadd.f32 %v7320, %v7332
    %v7334 = vpop.f32.mrf.mxu0
    %7335 = vdwg.mxu0
    %7336 = vmatpush.bf16.msra.mxu0 %v6418
    %7337 = vmatpush.bf16.msra.mxu0 %v6410
    %7338 = vmatpush.bf16.msra.mxu0 %v6402
    %7339 = vmatpush.bf16.msra.mxu0 %v6394
    %7340 = vmatpush.bf16.msra.mxu0 %v6386
    %7341 = vmatpush.bf16.msra.mxu0 %v6378
    %7342 = vmatpush.bf16.msra.mxu0 %v6370
    %7343 = vmatpush.bf16.msra.mxu0 %v6362
    %7344 = vmatmul.bf16.gmra.mxu0 %v4098
    %v7345 = vpop.f32.mrf.mxu0
    %v7346 = vadd.f32 %v7333, %v7345
    %v7347 = vpop.f32.mrf.mxu0
    %7348 = vdwg.mxu0
    %7349 = vmatpush.bf16.msra.mxu0 %v6482
    %7350 = vmatpush.bf16.msra.mxu0 %v6474
    %7351 = vmatpush.bf16.msra.mxu0 %v6466
    %7352 = vmatpush.bf16.msra.mxu0 %v6458
    %7353 = vmatpush.bf16.msra.mxu0 %v6450
    %7354 = vmatpush.bf16.msra.mxu0 %v6442
    %7355 = vmatpush.bf16.msra.mxu0 %v6434
    %7356 = vmatpush.bf16.msra.mxu0 %v6426
    %7357 = vmatmul.bf16.gmra.mxu0 %v4099
    %v7358 = vpop.f32.mrf.mxu0
    %v7359 = vadd.f32 %v7346, %v7358
    %v7360 = vpop.f32.mrf.mxu0
    %7361 = vdwg.mxu0
    %7362 = vmatpush.bf16.msra.mxu0 %v6546
    %7363 = vmatpush.bf16.msra.mxu0 %v6538
    %7364 = vmatpush.bf16.msra.mxu0 %v6530
    %7365 = vmatpush.bf16.msra.mxu0 %v6522
    %7366 = vmatpush.bf16.msra.mxu0 %v6514
    %7367 = vmatpush.bf16.msra.mxu0 %v6506
    %7368 = vmatpush.bf16.msra.mxu0 %v6498
    %7369 = vmatpush.bf16.msra.mxu0 %v6490
    %7370 = vmatmul.bf16.gmra.mxu0 %v4100
    %v7371 = vpop.f32.mrf.mxu0
    %v7372 = vadd.f32 %v7359, %v7371
    %v7373 = vpop.f32.mrf.mxu0
    %7374 = vdwg.mxu0
    %7375 = vmatpush.bf16.msra.mxu0 %v6610
    %7376 = vmatpush.bf16.msra.mxu0 %v6602
    %7377 = vmatpush.bf16.msra.mxu0 %v6594
    %7378 = vmatpush.bf16.msra.mxu0 %v6586
    %7379 = vmatpush.bf16.msra.mxu0 %v6578
    %7380 = vmatpush.bf16.msra.mxu0 %v6570
    %7381 = vmatpush.bf16.msra.mxu0 %v6562
    %7382 = vmatpush.bf16.msra.mxu0 %v6554
    %7383 = vmatmul.bf16.gmra.mxu0 %v4101
    %v7384 = vpop.f32.mrf.mxu0
    %v7385 = vadd.f32 %v7372, %v7384
    %v7386 = vpop.f32.mrf.mxu0
    %7387 = vdwg.mxu0
    %7388 = vmatpush.bf16.msra.mxu0 %v6674
    %7389 = vmatpush.bf16.msra.mxu0 %v6666
    %7390 = vmatpush.bf16.msra.mxu0 %v6658
    %7391 = vmatpush.bf16.msra.mxu0 %v6650
    %7392 = vmatpush.bf16.msra.mxu0 %v6642
    %7393 = vmatpush.bf16.msra.mxu0 %v6634
    %7394 = vmatpush.bf16.msra.mxu0 %v6626
    %7395 = vmatpush.bf16.msra.mxu0 %v6618
    %7396 = vmatmul.bf16.gmra.mxu0 %v4102
    %v7397 = vpop.f32.mrf.mxu0
    %v7398 = vadd.f32 %v7385, %v7397
    %v7399 = vpop.f32.mrf.mxu0
    %7400 = vdwg.mxu0
    %7401 = vmatpush.bf16.msra.mxu0 %v6227
    %7402 = vmatpush.bf16.msra.mxu0 %v6219
    %7403 = vmatpush.bf16.msra.mxu0 %v6211
    %7404 = vmatpush.bf16.msra.mxu0 %v6203
    %7405 = vmatpush.bf16.msra.mxu0 %v6195
    %7406 = vmatpush.bf16.msra.mxu0 %v6187
    %7407 = vmatpush.bf16.msra.mxu0 %v6179
    %7408 = vmatpush.bf16.msra.mxu0 %v6171
    %7409 = vmatmul.bf16.gmra.mxu0 %v4095
    %v7410 = vpop.f32.mrf.mxu0
    %v7411 = vadd.f32 %v4619, %v7410
    %v7412 = vpop.f32.mrf.mxu0
    %7413 = vdwg.mxu0
    %7414 = vmatpush.bf16.msra.mxu0 %v6291
    %7415 = vmatpush.bf16.msra.mxu0 %v6283
    %7416 = vmatpush.bf16.msra.mxu0 %v6275
    %7417 = vmatpush.bf16.msra.mxu0 %v6267
    %7418 = vmatpush.bf16.msra.mxu0 %v6259
    %7419 = vmatpush.bf16.msra.mxu0 %v6251
    %7420 = vmatpush.bf16.msra.mxu0 %v6243
    %7421 = vmatpush.bf16.msra.mxu0 %v6235
    %7422 = vmatmul.bf16.gmra.mxu0 %v4096
    %v7423 = vpop.f32.mrf.mxu0
    %v7424 = vadd.f32 %v7411, %v7423
    %v7425 = vpop.f32.mrf.mxu0
    %7426 = vdwg.mxu0
    %7427 = vmatpush.bf16.msra.mxu0 %v6355
    %7428 = vmatpush.bf16.msra.mxu0 %v6347
    %7429 = vmatpush.bf16.msra.mxu0 %v6339
    %7430 = vmatpush.bf16.msra.mxu0 %v6331
    %7431 = vmatpush.bf16.msra.mxu0 %v6323
    %7432 = vmatpush.bf16.msra.mxu0 %v6315
    %7433 = vmatpush.bf16.msra.mxu0 %v6307
    %7434 = vmatpush.bf16.msra.mxu0 %v6299
    %7435 = vmatmul.bf16.gmra.mxu0 %v4097
    %v7436 = vpop.f32.mrf.mxu0
    %v7437 = vadd.f32 %v7424, %v7436
    %v7438 = vpop.f32.mrf.mxu0
    %7439 = vdwg.mxu0
    %7440 = vmatpush.bf16.msra.mxu0 %v6419
    %7441 = vmatpush.bf16.msra.mxu0 %v6411
    %7442 = vmatpush.bf16.msra.mxu0 %v6403
    %7443 = vmatpush.bf16.msra.mxu0 %v6395
    %7444 = vmatpush.bf16.msra.mxu0 %v6387
    %7445 = vmatpush.bf16.msra.mxu0 %v6379
    %7446 = vmatpush.bf16.msra.mxu0 %v6371
    %7447 = vmatpush.bf16.msra.mxu0 %v6363
    %7448 = vmatmul.bf16.gmra.mxu0 %v4098
    %v7449 = vpop.f32.mrf.mxu0
    %v7450 = vadd.f32 %v7437, %v7449
    %v7451 = vpop.f32.mrf.mxu0
    %7452 = vdwg.mxu0
    %7453 = vmatpush.bf16.msra.mxu0 %v6483
    %7454 = vmatpush.bf16.msra.mxu0 %v6475
    %7455 = vmatpush.bf16.msra.mxu0 %v6467
    %7456 = vmatpush.bf16.msra.mxu0 %v6459
    %7457 = vmatpush.bf16.msra.mxu0 %v6451
    %7458 = vmatpush.bf16.msra.mxu0 %v6443
    %7459 = vmatpush.bf16.msra.mxu0 %v6435
    %7460 = vmatpush.bf16.msra.mxu0 %v6427
    %7461 = vmatmul.bf16.gmra.mxu0 %v4099
    %v7462 = vpop.f32.mrf.mxu0
    %v7463 = vadd.f32 %v7450, %v7462
    %v7464 = vpop.f32.mrf.mxu0
    %7465 = vdwg.mxu0
    %7466 = vmatpush.bf16.msra.mxu0 %v6547
    %7467 = vmatpush.bf16.msra.mxu0 %v6539
    %7468 = vmatpush.bf16.msra.mxu0 %v6531
    %7469 = vmatpush.bf16.msra.mxu0 %v6523
    %7470 = vmatpush.bf16.msra.mxu0 %v6515
    %7471 = vmatpush.bf16.msra.mxu0 %v6507
    %7472 = vmatpush.bf16.msra.mxu0 %v6499
    %7473 = vmatpush.bf16.msra.mxu0 %v6491
    %7474 = vmatmul.bf16.gmra.mxu0 %v4100
    %v7475 = vpop.f32.mrf.mxu0
    %v7476 = vadd.f32 %v7463, %v7475
    %v7477 = vpop.f32.mrf.mxu0
    %7478 = vdwg.mxu0
    %7479 = vmatpush.bf16.msra.mxu0 %v6611
    %7480 = vmatpush.bf16.msra.mxu0 %v6603
    %7481 = vmatpush.bf16.msra.mxu0 %v6595
    %7482 = vmatpush.bf16.msra.mxu0 %v6587
    %7483 = vmatpush.bf16.msra.mxu0 %v6579
    %7484 = vmatpush.bf16.msra.mxu0 %v6571
    %7485 = vmatpush.bf16.msra.mxu0 %v6563
    %7486 = vmatpush.bf16.msra.mxu0 %v6555
    %7487 = vmatmul.bf16.gmra.mxu0 %v4101
    %v7488 = vpop.f32.mrf.mxu0
    %v7489 = vadd.f32 %v7476, %v7488
    %v7490 = vpop.f32.mrf.mxu0
    %7491 = vdwg.mxu0
    %7492 = vmatpush.bf16.msra.mxu0 %v6675
    %7493 = vmatpush.bf16.msra.mxu0 %v6667
    %7494 = vmatpush.bf16.msra.mxu0 %v6659
    %7495 = vmatpush.bf16.msra.mxu0 %v6651
    %7496 = vmatpush.bf16.msra.mxu0 %v6643
    %7497 = vmatpush.bf16.msra.mxu0 %v6635
    %7498 = vmatpush.bf16.msra.mxu0 %v6627
    %7499 = vmatpush.bf16.msra.mxu0 %v6619
    %7500 = vmatmul.bf16.gmra.mxu0 %v4102
    %v7501 = vpop.f32.mrf.mxu0
    %v7502 = vadd.f32 %v7489, %v7501
    %v7503 = vpop.f32.mrf.mxu0
    %7504 = vdwg.mxu0
    %7505 = vmatpush.bf16.msra.mxu0 %v6228
    %7506 = vmatpush.bf16.msra.mxu0 %v6220
    %7507 = vmatpush.bf16.msra.mxu0 %v6212
    %7508 = vmatpush.bf16.msra.mxu0 %v6204
    %7509 = vmatpush.bf16.msra.mxu0 %v6196
    %7510 = vmatpush.bf16.msra.mxu0 %v6188
    %7511 = vmatpush.bf16.msra.mxu0 %v6180
    %7512 = vmatpush.bf16.msra.mxu0 %v6172
    %7513 = vmatmul.bf16.gmra.mxu0 %v4095
    %v7514 = vpop.f32.mrf.mxu0
    %v7515 = vadd.f32 %v4620, %v7514
    %v7516 = vpop.f32.mrf.mxu0
    %7517 = vdwg.mxu0
    %7518 = vmatpush.bf16.msra.mxu0 %v6292
    %7519 = vmatpush.bf16.msra.mxu0 %v6284
    %7520 = vmatpush.bf16.msra.mxu0 %v6276
    %7521 = vmatpush.bf16.msra.mxu0 %v6268
    %7522 = vmatpush.bf16.msra.mxu0 %v6260
    %7523 = vmatpush.bf16.msra.mxu0 %v6252
    %7524 = vmatpush.bf16.msra.mxu0 %v6244
    %7525 = vmatpush.bf16.msra.mxu0 %v6236
    %7526 = vmatmul.bf16.gmra.mxu0 %v4096
    %v7527 = vpop.f32.mrf.mxu0
    %v7528 = vadd.f32 %v7515, %v7527
    %v7529 = vpop.f32.mrf.mxu0
    %7530 = vdwg.mxu0
    %7531 = vmatpush.bf16.msra.mxu0 %v6356
    %7532 = vmatpush.bf16.msra.mxu0 %v6348
    %7533 = vmatpush.bf16.msra.mxu0 %v6340
    %7534 = vmatpush.bf16.msra.mxu0 %v6332
    %7535 = vmatpush.bf16.msra.mxu0 %v6324
    %7536 = vmatpush.bf16.msra.mxu0 %v6316
    %7537 = vmatpush.bf16.msra.mxu0 %v6308
    %7538 = vmatpush.bf16.msra.mxu0 %v6300
    %7539 = vmatmul.bf16.gmra.mxu0 %v4097
    %v7540 = vpop.f32.mrf.mxu0
    %v7541 = vadd.f32 %v7528, %v7540
    %v7542 = vpop.f32.mrf.mxu0
    %7543 = vdwg.mxu0
    %7544 = vmatpush.bf16.msra.mxu0 %v6420
    %7545 = vmatpush.bf16.msra.mxu0 %v6412
    %7546 = vmatpush.bf16.msra.mxu0 %v6404
    %7547 = vmatpush.bf16.msra.mxu0 %v6396
    %7548 = vmatpush.bf16.msra.mxu0 %v6388
    %7549 = vmatpush.bf16.msra.mxu0 %v6380
    %7550 = vmatpush.bf16.msra.mxu0 %v6372
    %7551 = vmatpush.bf16.msra.mxu0 %v6364
    %7552 = vmatmul.bf16.gmra.mxu0 %v4098
    %v7553 = vpop.f32.mrf.mxu0
    %v7554 = vadd.f32 %v7541, %v7553
    %v7555 = vpop.f32.mrf.mxu0
    %7556 = vdwg.mxu0
    %7557 = vmatpush.bf16.msra.mxu0 %v6484
    %7558 = vmatpush.bf16.msra.mxu0 %v6476
    %7559 = vmatpush.bf16.msra.mxu0 %v6468
    %7560 = vmatpush.bf16.msra.mxu0 %v6460
    %7561 = vmatpush.bf16.msra.mxu0 %v6452
    %7562 = vmatpush.bf16.msra.mxu0 %v6444
    %7563 = vmatpush.bf16.msra.mxu0 %v6436
    %7564 = vmatpush.bf16.msra.mxu0 %v6428
    %7565 = vmatmul.bf16.gmra.mxu0 %v4099
    %v7566 = vpop.f32.mrf.mxu0
    %v7567 = vadd.f32 %v7554, %v7566
    %v7568 = vpop.f32.mrf.mxu0
    %7569 = vdwg.mxu0
    %7570 = vmatpush.bf16.msra.mxu0 %v6548
    %7571 = vmatpush.bf16.msra.mxu0 %v6540
    %7572 = vmatpush.bf16.msra.mxu0 %v6532
    %7573 = vmatpush.bf16.msra.mxu0 %v6524
    %7574 = vmatpush.bf16.msra.mxu0 %v6516
    %7575 = vmatpush.bf16.msra.mxu0 %v6508
    %7576 = vmatpush.bf16.msra.mxu0 %v6500
    %7577 = vmatpush.bf16.msra.mxu0 %v6492
    %7578 = vmatmul.bf16.gmra.mxu0 %v4100
    %v7579 = vpop.f32.mrf.mxu0
    %v7580 = vadd.f32 %v7567, %v7579
    %v7581 = vpop.f32.mrf.mxu0
    %7582 = vdwg.mxu0
    %7583 = vmatpush.bf16.msra.mxu0 %v6612
    %7584 = vmatpush.bf16.msra.mxu0 %v6604
    %7585 = vmatpush.bf16.msra.mxu0 %v6596
    %7586 = vmatpush.bf16.msra.mxu0 %v6588
    %7587 = vmatpush.bf16.msra.mxu0 %v6580
    %7588 = vmatpush.bf16.msra.mxu0 %v6572
    %7589 = vmatpush.bf16.msra.mxu0 %v6564
    %7590 = vmatpush.bf16.msra.mxu0 %v6556
    %7591 = vmatmul.bf16.gmra.mxu0 %v4101
    %v7592 = vpop.f32.mrf.mxu0
    %v7593 = vadd.f32 %v7580, %v7592
    %v7594 = vpop.f32.mrf.mxu0
    %7595 = vdwg.mxu0
    %7596 = vmatpush.bf16.msra.mxu0 %v6676
    %7597 = vmatpush.bf16.msra.mxu0 %v6668
    %7598 = vmatpush.bf16.msra.mxu0 %v6660
    %7599 = vmatpush.bf16.msra.mxu0 %v6652
    %7600 = vmatpush.bf16.msra.mxu0 %v6644
    %7601 = vmatpush.bf16.msra.mxu0 %v6636
    %7602 = vmatpush.bf16.msra.mxu0 %v6628
    %7603 = vmatpush.bf16.msra.mxu0 %v6620
    %7604 = vmatmul.bf16.gmra.mxu0 %v4102
    %v7605 = vpop.f32.mrf.mxu0
    %v7606 = vadd.f32 %v7593, %v7605
    %v7607 = vpop.f32.mrf.mxu0
    %7608 = vdwg.mxu0
    %7609 = vmatpush.bf16.msra.mxu0 %v6229
    %7610 = vmatpush.bf16.msra.mxu0 %v6221
    %7611 = vmatpush.bf16.msra.mxu0 %v6213
    %7612 = vmatpush.bf16.msra.mxu0 %v6205
    %7613 = vmatpush.bf16.msra.mxu0 %v6197
    %7614 = vmatpush.bf16.msra.mxu0 %v6189
    %7615 = vmatpush.bf16.msra.mxu0 %v6181
    %7616 = vmatpush.bf16.msra.mxu0 %v6173
    %7617 = vmatmul.bf16.gmra.mxu0 %v4095
    %v7618 = vpop.f32.mrf.mxu0
    %v7619 = vadd.f32 %v4621, %v7618
    %v7620 = vpop.f32.mrf.mxu0
    %7621 = vdwg.mxu0
    %7622 = vmatpush.bf16.msra.mxu0 %v6293
    %7623 = vmatpush.bf16.msra.mxu0 %v6285
    %7624 = vmatpush.bf16.msra.mxu0 %v6277
    %7625 = vmatpush.bf16.msra.mxu0 %v6269
    %7626 = vmatpush.bf16.msra.mxu0 %v6261
    %7627 = vmatpush.bf16.msra.mxu0 %v6253
    %7628 = vmatpush.bf16.msra.mxu0 %v6245
    %7629 = vmatpush.bf16.msra.mxu0 %v6237
    %7630 = vmatmul.bf16.gmra.mxu0 %v4096
    %v7631 = vpop.f32.mrf.mxu0
    %v7632 = vadd.f32 %v7619, %v7631
    %v7633 = vpop.f32.mrf.mxu0
    %7634 = vdwg.mxu0
    %7635 = vmatpush.bf16.msra.mxu0 %v6357
    %7636 = vmatpush.bf16.msra.mxu0 %v6349
    %7637 = vmatpush.bf16.msra.mxu0 %v6341
    %7638 = vmatpush.bf16.msra.mxu0 %v6333
    %7639 = vmatpush.bf16.msra.mxu0 %v6325
    %7640 = vmatpush.bf16.msra.mxu0 %v6317
    %7641 = vmatpush.bf16.msra.mxu0 %v6309
    %7642 = vmatpush.bf16.msra.mxu0 %v6301
    %7643 = vmatmul.bf16.gmra.mxu0 %v4097
    %v7644 = vpop.f32.mrf.mxu0
    %v7645 = vadd.f32 %v7632, %v7644
    %v7646 = vpop.f32.mrf.mxu0
    %7647 = vdwg.mxu0
    %7648 = vmatpush.bf16.msra.mxu0 %v6421
    %7649 = vmatpush.bf16.msra.mxu0 %v6413
    %7650 = vmatpush.bf16.msra.mxu0 %v6405
    %7651 = vmatpush.bf16.msra.mxu0 %v6397
    %7652 = vmatpush.bf16.msra.mxu0 %v6389
    %7653 = vmatpush.bf16.msra.mxu0 %v6381
    %7654 = vmatpush.bf16.msra.mxu0 %v6373
    %7655 = vmatpush.bf16.msra.mxu0 %v6365
    %7656 = vmatmul.bf16.gmra.mxu0 %v4098
    %v7657 = vpop.f32.mrf.mxu0
    %v7658 = vadd.f32 %v7645, %v7657
    %v7659 = vpop.f32.mrf.mxu0
    %7660 = vdwg.mxu0
    %7661 = vmatpush.bf16.msra.mxu0 %v6485
    %7662 = vmatpush.bf16.msra.mxu0 %v6477
    %7663 = vmatpush.bf16.msra.mxu0 %v6469
    %7664 = vmatpush.bf16.msra.mxu0 %v6461
    %7665 = vmatpush.bf16.msra.mxu0 %v6453
    %7666 = vmatpush.bf16.msra.mxu0 %v6445
    %7667 = vmatpush.bf16.msra.mxu0 %v6437
    %7668 = vmatpush.bf16.msra.mxu0 %v6429
    %7669 = vmatmul.bf16.gmra.mxu0 %v4099
    %v7670 = vpop.f32.mrf.mxu0
    %v7671 = vadd.f32 %v7658, %v7670
    %v7672 = vpop.f32.mrf.mxu0
    %7673 = vdwg.mxu0
    %7674 = vmatpush.bf16.msra.mxu0 %v6549
    %7675 = vmatpush.bf16.msra.mxu0 %v6541
    %7676 = vmatpush.bf16.msra.mxu0 %v6533
    %7677 = vmatpush.bf16.msra.mxu0 %v6525
    %7678 = vmatpush.bf16.msra.mxu0 %v6517
    %7679 = vmatpush.bf16.msra.mxu0 %v6509
    %7680 = vmatpush.bf16.msra.mxu0 %v6501
    %7681 = vmatpush.bf16.msra.mxu0 %v6493
    %7682 = vmatmul.bf16.gmra.mxu0 %v4100
    %v7683 = vpop.f32.mrf.mxu0
    %v7684 = vadd.f32 %v7671, %v7683
    %v7685 = vpop.f32.mrf.mxu0
    %7686 = vdwg.mxu0
    %7687 = vmatpush.bf16.msra.mxu0 %v6613
    %7688 = vmatpush.bf16.msra.mxu0 %v6605
    %7689 = vmatpush.bf16.msra.mxu0 %v6597
    %7690 = vmatpush.bf16.msra.mxu0 %v6589
    %7691 = vmatpush.bf16.msra.mxu0 %v6581
    %7692 = vmatpush.bf16.msra.mxu0 %v6573
    %7693 = vmatpush.bf16.msra.mxu0 %v6565
    %7694 = vmatpush.bf16.msra.mxu0 %v6557
    %7695 = vmatmul.bf16.gmra.mxu0 %v4101
    %v7696 = vpop.f32.mrf.mxu0
    %v7697 = vadd.f32 %v7684, %v7696
    %v7698 = vpop.f32.mrf.mxu0
    %7699 = vdwg.mxu0
    %7700 = vmatpush.bf16.msra.mxu0 %v6677
    %7701 = vmatpush.bf16.msra.mxu0 %v6669
    %7702 = vmatpush.bf16.msra.mxu0 %v6661
    %7703 = vmatpush.bf16.msra.mxu0 %v6653
    %7704 = vmatpush.bf16.msra.mxu0 %v6645
    %7705 = vmatpush.bf16.msra.mxu0 %v6637
    %7706 = vmatpush.bf16.msra.mxu0 %v6629
    %7707 = vmatpush.bf16.msra.mxu0 %v6621
    %7708 = vmatmul.bf16.gmra.mxu0 %v4102
    %v7709 = vpop.f32.mrf.mxu0
    %v7710 = vadd.f32 %v7697, %v7709
    %v7711 = vpop.f32.mrf.mxu0
    %7712 = vdwg.mxu0
    %7713 = vmatpush.bf16.msra.mxu0 %v6230
    %7714 = vmatpush.bf16.msra.mxu0 %v6222
    %7715 = vmatpush.bf16.msra.mxu0 %v6214
    %7716 = vmatpush.bf16.msra.mxu0 %v6206
    %7717 = vmatpush.bf16.msra.mxu0 %v6198
    %7718 = vmatpush.bf16.msra.mxu0 %v6190
    %7719 = vmatpush.bf16.msra.mxu0 %v6182
    %7720 = vmatpush.bf16.msra.mxu0 %v6174
    %7721 = vmatmul.bf16.gmra.mxu0 %v4095
    %v7722 = vpop.f32.mrf.mxu0
    %v7723 = vadd.f32 %v4622, %v7722
    %v7724 = vpop.f32.mrf.mxu0
    %7725 = vdwg.mxu0
    %7726 = vmatpush.bf16.msra.mxu0 %v6294
    %7727 = vmatpush.bf16.msra.mxu0 %v6286
    %7728 = vmatpush.bf16.msra.mxu0 %v6278
    %7729 = vmatpush.bf16.msra.mxu0 %v6270
    %7730 = vmatpush.bf16.msra.mxu0 %v6262
    %7731 = vmatpush.bf16.msra.mxu0 %v6254
    %7732 = vmatpush.bf16.msra.mxu0 %v6246
    %7733 = vmatpush.bf16.msra.mxu0 %v6238
    %7734 = vmatmul.bf16.gmra.mxu0 %v4096
    %v7735 = vpop.f32.mrf.mxu0
    %v7736 = vadd.f32 %v7723, %v7735
    %v7737 = vpop.f32.mrf.mxu0
    %7738 = vdwg.mxu0
    %7739 = vmatpush.bf16.msra.mxu0 %v6358
    %7740 = vmatpush.bf16.msra.mxu0 %v6350
    %7741 = vmatpush.bf16.msra.mxu0 %v6342
    %7742 = vmatpush.bf16.msra.mxu0 %v6334
    %7743 = vmatpush.bf16.msra.mxu0 %v6326
    %7744 = vmatpush.bf16.msra.mxu0 %v6318
    %7745 = vmatpush.bf16.msra.mxu0 %v6310
    %7746 = vmatpush.bf16.msra.mxu0 %v6302
    %7747 = vmatmul.bf16.gmra.mxu0 %v4097
    %v7748 = vpop.f32.mrf.mxu0
    %v7749 = vadd.f32 %v7736, %v7748
    %v7750 = vpop.f32.mrf.mxu0
    %7751 = vdwg.mxu0
    %7752 = vmatpush.bf16.msra.mxu0 %v6422
    %7753 = vmatpush.bf16.msra.mxu0 %v6414
    %7754 = vmatpush.bf16.msra.mxu0 %v6406
    %7755 = vmatpush.bf16.msra.mxu0 %v6398
    %7756 = vmatpush.bf16.msra.mxu0 %v6390
    %7757 = vmatpush.bf16.msra.mxu0 %v6382
    %7758 = vmatpush.bf16.msra.mxu0 %v6374
    %7759 = vmatpush.bf16.msra.mxu0 %v6366
    %7760 = vmatmul.bf16.gmra.mxu0 %v4098
    %v7761 = vpop.f32.mrf.mxu0
    %v7762 = vadd.f32 %v7749, %v7761
    %v7763 = vpop.f32.mrf.mxu0
    %7764 = vdwg.mxu0
    %7765 = vmatpush.bf16.msra.mxu0 %v6486
    %7766 = vmatpush.bf16.msra.mxu0 %v6478
    %7767 = vmatpush.bf16.msra.mxu0 %v6470
    %7768 = vmatpush.bf16.msra.mxu0 %v6462
    %7769 = vmatpush.bf16.msra.mxu0 %v6454
    %7770 = vmatpush.bf16.msra.mxu0 %v6446
    %7771 = vmatpush.bf16.msra.mxu0 %v6438
    %7772 = vmatpush.bf16.msra.mxu0 %v6430
    %7773 = vmatmul.bf16.gmra.mxu0 %v4099
    %v7774 = vpop.f32.mrf.mxu0
    %v7775 = vadd.f32 %v7762, %v7774
    %v7776 = vpop.f32.mrf.mxu0
    %7777 = vdwg.mxu0
    %7778 = vmatpush.bf16.msra.mxu0 %v6550
    %7779 = vmatpush.bf16.msra.mxu0 %v6542
    %7780 = vmatpush.bf16.msra.mxu0 %v6534
    %7781 = vmatpush.bf16.msra.mxu0 %v6526
    %7782 = vmatpush.bf16.msra.mxu0 %v6518
    %7783 = vmatpush.bf16.msra.mxu0 %v6510
    %7784 = vmatpush.bf16.msra.mxu0 %v6502
    %7785 = vmatpush.bf16.msra.mxu0 %v6494
    %7786 = vmatmul.bf16.gmra.mxu0 %v4100
    %v7787 = vpop.f32.mrf.mxu0
    %v7788 = vadd.f32 %v7775, %v7787
    %v7789 = vpop.f32.mrf.mxu0
    %7790 = vdwg.mxu0
    %7791 = vmatpush.bf16.msra.mxu0 %v6614
    %7792 = vmatpush.bf16.msra.mxu0 %v6606
    %7793 = vmatpush.bf16.msra.mxu0 %v6598
    %7794 = vmatpush.bf16.msra.mxu0 %v6590
    %7795 = vmatpush.bf16.msra.mxu0 %v6582
    %7796 = vmatpush.bf16.msra.mxu0 %v6574
    %7797 = vmatpush.bf16.msra.mxu0 %v6566
    %7798 = vmatpush.bf16.msra.mxu0 %v6558
    %7799 = vmatmul.bf16.gmra.mxu0 %v4101
    %v7800 = vpop.f32.mrf.mxu0
    %v7801 = vadd.f32 %v7788, %v7800
    %v7802 = vpop.f32.mrf.mxu0
    %7803 = vdwg.mxu0
    %7804 = vmatpush.bf16.msra.mxu0 %v6678
    %7805 = vmatpush.bf16.msra.mxu0 %v6670
    %7806 = vmatpush.bf16.msra.mxu0 %v6662
    %7807 = vmatpush.bf16.msra.mxu0 %v6654
    %7808 = vmatpush.bf16.msra.mxu0 %v6646
    %7809 = vmatpush.bf16.msra.mxu0 %v6638
    %7810 = vmatpush.bf16.msra.mxu0 %v6630
    %7811 = vmatpush.bf16.msra.mxu0 %v6622
    %7812 = vmatmul.bf16.gmra.mxu0 %v4102
    %v7813 = vpop.f32.mrf.mxu0
    %v7814 = vadd.f32 %v7801, %v7813
    %v7815 = vpop.f32.mrf.mxu0
    %7816 = vdwg.mxu0
    %7817 = vmatpush.bf16.msra.mxu0 %v6231
    %7818 = vmatpush.bf16.msra.mxu0 %v6223
    %7819 = vmatpush.bf16.msra.mxu0 %v6215
    %7820 = vmatpush.bf16.msra.mxu0 %v6207
    %7821 = vmatpush.bf16.msra.mxu0 %v6199
    %7822 = vmatpush.bf16.msra.mxu0 %v6191
    %7823 = vmatpush.bf16.msra.mxu0 %v6183
    %7824 = vmatpush.bf16.msra.mxu0 %v6175
    %7825 = vmatmul.bf16.gmra.mxu0 %v4095
    %v7826 = vpop.f32.mrf.mxu0
    %v7827 = vadd.f32 %v4623, %v7826
    %v7828 = vpop.f32.mrf.mxu0
    %7829 = vdwg.mxu0
    %7830 = vmatpush.bf16.msra.mxu0 %v6295
    %7831 = vmatpush.bf16.msra.mxu0 %v6287
    %7832 = vmatpush.bf16.msra.mxu0 %v6279
    %7833 = vmatpush.bf16.msra.mxu0 %v6271
    %7834 = vmatpush.bf16.msra.mxu0 %v6263
    %7835 = vmatpush.bf16.msra.mxu0 %v6255
    %7836 = vmatpush.bf16.msra.mxu0 %v6247
    %7837 = vmatpush.bf16.msra.mxu0 %v6239
    %7838 = vmatmul.bf16.gmra.mxu0 %v4096
    %v7839 = vpop.f32.mrf.mxu0
    %v7840 = vadd.f32 %v7827, %v7839
    %v7841 = vpop.f32.mrf.mxu0
    %7842 = vdwg.mxu0
    %7843 = vmatpush.bf16.msra.mxu0 %v6359
    %7844 = vmatpush.bf16.msra.mxu0 %v6351
    %7845 = vmatpush.bf16.msra.mxu0 %v6343
    %7846 = vmatpush.bf16.msra.mxu0 %v6335
    %7847 = vmatpush.bf16.msra.mxu0 %v6327
    %7848 = vmatpush.bf16.msra.mxu0 %v6319
    %7849 = vmatpush.bf16.msra.mxu0 %v6311
    %7850 = vmatpush.bf16.msra.mxu0 %v6303
    %7851 = vmatmul.bf16.gmra.mxu0 %v4097
    %v7852 = vpop.f32.mrf.mxu0
    %v7853 = vadd.f32 %v7840, %v7852
    %v7854 = vpop.f32.mrf.mxu0
    %7855 = vdwg.mxu0
    %7856 = vmatpush.bf16.msra.mxu0 %v6423
    %7857 = vmatpush.bf16.msra.mxu0 %v6415
    %7858 = vmatpush.bf16.msra.mxu0 %v6407
    %7859 = vmatpush.bf16.msra.mxu0 %v6399
    %7860 = vmatpush.bf16.msra.mxu0 %v6391
    %7861 = vmatpush.bf16.msra.mxu0 %v6383
    %7862 = vmatpush.bf16.msra.mxu0 %v6375
    %7863 = vmatpush.bf16.msra.mxu0 %v6367
    %7864 = vmatmul.bf16.gmra.mxu0 %v4098
    %v7865 = vpop.f32.mrf.mxu0
    %v7866 = vadd.f32 %v7853, %v7865
    %v7867 = vpop.f32.mrf.mxu0
    %7868 = vdwg.mxu0
    %7869 = vmatpush.bf16.msra.mxu0 %v6487
    %7870 = vmatpush.bf16.msra.mxu0 %v6479
    %7871 = vmatpush.bf16.msra.mxu0 %v6471
    %7872 = vmatpush.bf16.msra.mxu0 %v6463
    %7873 = vmatpush.bf16.msra.mxu0 %v6455
    %7874 = vmatpush.bf16.msra.mxu0 %v6447
    %7875 = vmatpush.bf16.msra.mxu0 %v6439
    %7876 = vmatpush.bf16.msra.mxu0 %v6431
    %7877 = vmatmul.bf16.gmra.mxu0 %v4099
    %v7878 = vpop.f32.mrf.mxu0
    %v7879 = vadd.f32 %v7866, %v7878
    %v7880 = vpop.f32.mrf.mxu0
    %7881 = vdwg.mxu0
    %7882 = vmatpush.bf16.msra.mxu0 %v6551
    %7883 = vmatpush.bf16.msra.mxu0 %v6543
    %7884 = vmatpush.bf16.msra.mxu0 %v6535
    %7885 = vmatpush.bf16.msra.mxu0 %v6527
    %7886 = vmatpush.bf16.msra.mxu0 %v6519
    %7887 = vmatpush.bf16.msra.mxu0 %v6511
    %7888 = vmatpush.bf16.msra.mxu0 %v6503
    %7889 = vmatpush.bf16.msra.mxu0 %v6495
    %7890 = vmatmul.bf16.gmra.mxu0 %v4100
    %v7891 = vpop.f32.mrf.mxu0
    %v7892 = vadd.f32 %v7879, %v7891
    %v7893 = vpop.f32.mrf.mxu0
    %7894 = vdwg.mxu0
    %7895 = vmatpush.bf16.msra.mxu0 %v6615
    %7896 = vmatpush.bf16.msra.mxu0 %v6607
    %7897 = vmatpush.bf16.msra.mxu0 %v6599
    %7898 = vmatpush.bf16.msra.mxu0 %v6591
    %7899 = vmatpush.bf16.msra.mxu0 %v6583
    %7900 = vmatpush.bf16.msra.mxu0 %v6575
    %7901 = vmatpush.bf16.msra.mxu0 %v6567
    %7902 = vmatpush.bf16.msra.mxu0 %v6559
    %7903 = vmatmul.bf16.gmra.mxu0 %v4101
    %v7904 = vpop.f32.mrf.mxu0
    %v7905 = vadd.f32 %v7892, %v7904
    %v7906 = vpop.f32.mrf.mxu0
    %7907 = vdwg.mxu0
    %7908 = vmatpush.bf16.msra.mxu0 %v6679
    %7909 = vmatpush.bf16.msra.mxu0 %v6671
    %7910 = vmatpush.bf16.msra.mxu0 %v6663
    %7911 = vmatpush.bf16.msra.mxu0 %v6655
    %7912 = vmatpush.bf16.msra.mxu0 %v6647
    %7913 = vmatpush.bf16.msra.mxu0 %v6639
    %7914 = vmatpush.bf16.msra.mxu0 %v6631
    %7915 = vmatpush.bf16.msra.mxu0 %v6623
    %7916 = vmatmul.bf16.gmra.mxu0 %v4102
    %v7917 = vpop.f32.mrf.mxu0
    %v7918 = vadd.f32 %v7905, %v7917
    %v7919 = vpop.f32.mrf.mxu0
    %7920 = vdwg.mxu0
    %7921 = vmatpush.bf16.msra.mxu0 %v6232
    %7922 = vmatpush.bf16.msra.mxu0 %v6224
    %7923 = vmatpush.bf16.msra.mxu0 %v6216
    %7924 = vmatpush.bf16.msra.mxu0 %v6208
    %7925 = vmatpush.bf16.msra.mxu0 %v6200
    %7926 = vmatpush.bf16.msra.mxu0 %v6192
    %7927 = vmatpush.bf16.msra.mxu0 %v6184
    %7928 = vmatpush.bf16.msra.mxu0 %v6176
    %7929 = vmatmul.bf16.gmra.mxu0 %v4095
    %v7930 = vpop.f32.mrf.mxu0
    %v7931 = vadd.f32 %v4624, %v7930
    %v7932 = vpop.f32.mrf.mxu0
    %7933 = vdwg.mxu0
    %7934 = vmatpush.bf16.msra.mxu0 %v6296
    %7935 = vmatpush.bf16.msra.mxu0 %v6288
    %7936 = vmatpush.bf16.msra.mxu0 %v6280
    %7937 = vmatpush.bf16.msra.mxu0 %v6272
    %7938 = vmatpush.bf16.msra.mxu0 %v6264
    %7939 = vmatpush.bf16.msra.mxu0 %v6256
    %7940 = vmatpush.bf16.msra.mxu0 %v6248
    %7941 = vmatpush.bf16.msra.mxu0 %v6240
    %7942 = vmatmul.bf16.gmra.mxu0 %v4096
    %v7943 = vpop.f32.mrf.mxu0
    %v7944 = vadd.f32 %v7931, %v7943
    %v7945 = vpop.f32.mrf.mxu0
    %7946 = vdwg.mxu0
    %7947 = vmatpush.bf16.msra.mxu0 %v6360
    %7948 = vmatpush.bf16.msra.mxu0 %v6352
    %7949 = vmatpush.bf16.msra.mxu0 %v6344
    %7950 = vmatpush.bf16.msra.mxu0 %v6336
    %7951 = vmatpush.bf16.msra.mxu0 %v6328
    %7952 = vmatpush.bf16.msra.mxu0 %v6320
    %7953 = vmatpush.bf16.msra.mxu0 %v6312
    %7954 = vmatpush.bf16.msra.mxu0 %v6304
    %7955 = vmatmul.bf16.gmra.mxu0 %v4097
    %v7956 = vpop.f32.mrf.mxu0
    %v7957 = vadd.f32 %v7944, %v7956
    %v7958 = vpop.f32.mrf.mxu0
    %7959 = vdwg.mxu0
    %7960 = vmatpush.bf16.msra.mxu0 %v6424
    %7961 = vmatpush.bf16.msra.mxu0 %v6416
    %7962 = vmatpush.bf16.msra.mxu0 %v6408
    %7963 = vmatpush.bf16.msra.mxu0 %v6400
    %7964 = vmatpush.bf16.msra.mxu0 %v6392
    %7965 = vmatpush.bf16.msra.mxu0 %v6384
    %7966 = vmatpush.bf16.msra.mxu0 %v6376
    %7967 = vmatpush.bf16.msra.mxu0 %v6368
    %7968 = vmatmul.bf16.gmra.mxu0 %v4098
    %v7969 = vpop.f32.mrf.mxu0
    %v7970 = vadd.f32 %v7957, %v7969
    %v7971 = vpop.f32.mrf.mxu0
    %7972 = vdwg.mxu0
    %7973 = vmatpush.bf16.msra.mxu0 %v6488
    %7974 = vmatpush.bf16.msra.mxu0 %v6480
    %7975 = vmatpush.bf16.msra.mxu0 %v6472
    %7976 = vmatpush.bf16.msra.mxu0 %v6464
    %7977 = vmatpush.bf16.msra.mxu0 %v6456
    %7978 = vmatpush.bf16.msra.mxu0 %v6448
    %7979 = vmatpush.bf16.msra.mxu0 %v6440
    %7980 = vmatpush.bf16.msra.mxu0 %v6432
    %7981 = vmatmul.bf16.gmra.mxu0 %v4099
    %v7982 = vpop.f32.mrf.mxu0
    %v7983 = vadd.f32 %v7970, %v7982
    %v7984 = vpop.f32.mrf.mxu0
    %7985 = vdwg.mxu0
    %7986 = vmatpush.bf16.msra.mxu0 %v6552
    %7987 = vmatpush.bf16.msra.mxu0 %v6544
    %7988 = vmatpush.bf16.msra.mxu0 %v6536
    %7989 = vmatpush.bf16.msra.mxu0 %v6528
    %7990 = vmatpush.bf16.msra.mxu0 %v6520
    %7991 = vmatpush.bf16.msra.mxu0 %v6512
    %7992 = vmatpush.bf16.msra.mxu0 %v6504
    %7993 = vmatpush.bf16.msra.mxu0 %v6496
    %7994 = vmatmul.bf16.gmra.mxu0 %v4100
    %v7995 = vpop.f32.mrf.mxu0
    %v7996 = vadd.f32 %v7983, %v7995
    %v7997 = vpop.f32.mrf.mxu0
    %7998 = vdwg.mxu0
    %7999 = vmatpush.bf16.msra.mxu0 %v6616
    %8000 = vmatpush.bf16.msra.mxu0 %v6608
    %8001 = vmatpush.bf16.msra.mxu0 %v6600
    %8002 = vmatpush.bf16.msra.mxu0 %v6592
    %8003 = vmatpush.bf16.msra.mxu0 %v6584
    %8004 = vmatpush.bf16.msra.mxu0 %v6576
    %8005 = vmatpush.bf16.msra.mxu0 %v6568
    %8006 = vmatpush.bf16.msra.mxu0 %v6560
    %8007 = vmatmul.bf16.gmra.mxu0 %v4101
    %v8008 = vpop.f32.mrf.mxu0
    %v8009 = vadd.f32 %v7996, %v8008
    %v8010 = vpop.f32.mrf.mxu0
    %8011 = vdwg.mxu0
    %8012 = vmatpush.bf16.msra.mxu0 %v6680
    %8013 = vmatpush.bf16.msra.mxu0 %v6672
    %8014 = vmatpush.bf16.msra.mxu0 %v6664
    %8015 = vmatpush.bf16.msra.mxu0 %v6656
    %8016 = vmatpush.bf16.msra.mxu0 %v6648
    %8017 = vmatpush.bf16.msra.mxu0 %v6640
    %8018 = vmatpush.bf16.msra.mxu0 %v6632
    %8019 = vmatpush.bf16.msra.mxu0 %v6624
    %8020 = vmatmul.bf16.gmra.mxu0 %v4102
    %v8021 = vpop.f32.mrf.mxu0
    %v8022 = vadd.f32 %v8009, %v8021
    %v8023 = vpop.f32.mrf.mxu0
    %8024 = vdwg.mxu0
    %v8033 = vrot.slane %v7398, 6
    %v8034 = vrot.slane %v7502, 4
    %v8035 = vrot.slane %v7606, 2
    %v8036 = vrot.slane %v7814, 6
    %v8037 = vrot.slane %v7918, 4
    %v8038 = vrot.slane %v8022, 2
    %vm8039 = vcmask 1041408
    %v8040 = vsel %vm8039, %v7294, %v8033
    %vm8041 = vcmask 1045508
    %v8042 = vsel %vm8041, %v8034, %v8035
    %vm8043 = vcmask 1043456
    %v8044 = vsel %vm8043, %v8040, %v8042
    %v8045 = vsel %vm8039, %v7710, %v8036
    %v8046 = vsel %vm8041, %v8037, %v8038
    %v8047 = vsel %vm8043, %v8045, %v8046
    %8050 = vst [vmem:[#allocation14] sm:$0xff] %v8044
    %8051 = vst [vmem:[#allocation14 + $0x8] sm:$0xff] %v8047
    // Predicated region
    $region58: #{tpu_custom_call.1} parent=1 // pred_check
      _
    $region59: #{tpu_custom_call.1} parent=1 // pred_check_branch
      %8053 = sbr.rel (0) target = $region61
    $region60: #{tpu_custom_call.1} parent=1 // pred_region
      %8055 = vsyncadd [#allocation4], 0
      %s8057 = sshll.u32 [#allocation14], 4
      %s8058 = int_to_ptr.vmem [resolvable:$true] %s8057
      %s8059 = sshll.u32 %s7, 4
      %s8060 = int_to_ptr.hbm [resolvable:$true] %s8059
      %8062 = dma.vmem_to_hbm [thread:$0]  %s8058, 256, %s8060, [#allocation4]
    $region61: #{tpu_custom_call.1} parent=1 // pred_fallthru
      _
    // Predicated region
    $region62: #{tpu_custom_call.1} parent=1 // pred_check
      _
    $region63: #{tpu_custom_call.1} parent=1 // pred_check_branch
      %8064 = sbr.rel (0) target = $region65
    $region64: #{tpu_custom_call.1} parent=1 // pred_region
      %8066 = dma.done [#allocation4], 256
    $region65: #{tpu_custom_call.1} parent=1 // pred_fallthru
      _
    %8067 = vsyncpa [#allocation3], 1
    %8068 = vsyncpa [#allocation6], 1
    %8069 = vsyncpa [#allocation9], 1
    %8070 = vsyncpa [#allocation12], 1
    %8071 = vsyncpa [#allocation4], 1

</llo_original>
